<compile_context>
chip_gen: v7x
topology: tpu7x:2x2x1
jax: 0.10.0
libtpu: 0.0.40
codegen_flags: <defaults>
</compile_context>

<pallas_src>
import math
from functools import partial

import jax
import jax.numpy as jnp
from jax import lax
from jax.experimental import pallas as pl
from jax.experimental.pallas import tpu as pltpu

_BN_EPS = 1e-5
_LANE = 128
_EH = 1   # halo ring (rows) of the conv1 output grid
_EW = 4   # halo ring (cols); keeps W + 2*_EW a multiple of 8 when W % 8 == 0


def _round_up(v, m):
    return ((v + m - 1) // m) * m


# ----------------------------------------------------------------------------
# Fused DoubleConv kernel: one grid step = one image, everything in VMEM.
# ----------------------------------------------------------------------------
def _double_conv_kernel(x_ref, mask_ref, w1_ref, b1_ref, w2_ref, b2_ref,
                        o_ref, *, H, W):
    GH, GW = H + 2 * _EH, W + 2 * _EW          # conv1 halo grid
    c1 = w1_ref.shape[-1]                      # padded out-channels (lane dim)

    # ---- conv1 (BN scale pre-folded into w1) + bias + ReLU ------------------
    # Computed on the halo grid so the result is already a zero-padded input
    # for conv2 after masking (no unaligned stores needed).
    acc1 = jnp.zeros((GH * GW, c1), jnp.float32)
    for t in range(9):
        dh, dw = t // 3, t % 3
        tap = x_ref[dh:dh + GH, dw:dw + GW, :]            # (GH, GW, Cin_p)
        tap = tap.reshape(GH * GW, tap.shape[-1]).astype(jnp.bfloat16)
        acc1 = acc1 + jnp.dot(tap, w1_ref[t],
                              preferred_element_type=jnp.float32)
    y1 = jnp.maximum(acc1 + b1_ref[...], 0.0)
    # Zero the halo ring -> y1 becomes the zero-padded conv2 input.
    y1 = (y1 * mask_ref[...]).reshape(GH, GW, c1)

    # ---- conv2 (BN scale pre-folded into w2) + bias + ReLU ------------------
    acc2 = jnp.zeros((H * W, c1), jnp.float32)
    for t in range(9):
        dh, dw = t // 3, t % 3
        tap = y1[dh + _EH - 1:dh + _EH - 1 + H,
                 dw + _EW - 1:dw + _EW - 1 + W, :]         # (H, W, c1)
        tap = tap.reshape(H * W, c1).astype(jnp.bfloat16)
        acc2 = acc2 + jnp.dot(tap, w2_ref[t],
                              preferred_element_type=jnp.float32)
    y2 = jnp.maximum(acc2 + b2_ref[...], 0.0)
    o_ref[...] = y2.reshape(H, W, c1).astype(o_ref.dtype)


# ----------------------------------------------------------------------------
# Wrapper: NCHW in / NCHW out, one pallas_call for the whole DoubleConv.
# ----------------------------------------------------------------------------
def double_conv_forward(x_nchw, packed, *, cout):
    N, Cin, H, W = x_nchw.shape
    assert W % 8 == 0, "kernel assumes W is a multiple of 8"
    cin_p = packed["w1"].shape[1]
    cout_p = packed["w1"].shape[2]
    GH, GW = H + 2 * _EH, W + 2 * _EW

    # NCHW -> NHWC; zero-pad spatially for the halo grid and pad channels.
    x = jnp.transpose(x_nchw, (0, 2, 3, 1))
    x = jnp.pad(x, ((0, 0), (_EH + 1, _EH + 1), (_EW + 1, _EW + 1),
                    (0, cin_p - Cin)))

    # Interior mask of the conv1 halo grid (tiny constant).
    ai = jnp.arange(GH)[:, None]
    bi = jnp.arange(GW)[None, :]
    mask = ((ai >= _EH) & (ai < _EH + H) & (bi >= _EW) & (bi < _EW + W))
    mask = mask.astype(jnp.float32).reshape(GH * GW, 1)

    out = pl.pallas_call(
        partial(_double_conv_kernel, H=H, W=W),
        out_shape=jax.ShapeDtypeStruct((N, H, W, cout_p), jnp.float32),
        grid_spec=pltpu.PrefetchScalarGridSpec(
            num_scalar_prefetch=0,
            grid=(N,),
            in_specs=[
                pl.BlockSpec((None, GH + 2, GW + 2, cin_p),
                             lambda n: (n, 0, 0, 0)),
                pl.BlockSpec((GH * GW, 1), lambda n: (0, 0)),
                pl.BlockSpec((9, cin_p, cout_p), lambda n: (0, 0, 0)),
                pl.BlockSpec((1, cout_p), lambda n: (0, 0)),
                pl.BlockSpec((9, cout_p, cout_p), lambda n: (0, 0, 0)),
                pl.BlockSpec((1, cout_p), lambda n: (0, 0)),
            ],
            out_specs=pl.BlockSpec((None, H, W, cout_p),
                                   lambda n: (n, 0, 0, 0)),
        ),
        compiler_params=pltpu.CompilerParams(
            dimension_semantics=("parallel",)),
    )(x, mask, packed["w1"], packed["b1"], packed["w2"], packed["b2"])

    return jnp.transpose(out[..., :cout], (0, 3, 1, 2))    # NHWC -> NCHW


# ----------------------------------------------------------------------------
# Parameter init (raw, PyTorch-like) + one-time packing (fold BN, pad, bf16).
# ----------------------------------------------------------------------------
def _fold_bn(gamma, beta, mean, var):
    scale = gamma / jnp.sqrt(var + _BN_EPS)
    return scale, beta - mean * scale


def _pack_conv(w, scale, cin_p, cout_p):
    # w: (Cout, Cin, 3, 3) torch layout -> (9, cin_p, cout_p) bf16 with the
    # BN scale folded into the output-channel columns.
    cout, cin = w.shape[0], w.shape[1]
    wt = jnp.transpose(w, (2, 3, 1, 0)).reshape(9, cin, cout)   # (tap, ci, co)
    wt = wt * scale[None, None, :]
    wt = jnp.pad(wt, ((0, 0), (0, cin_p - cin), (0, cout_p - cout)))
    return wt.astype(jnp.bfloat16)


def init_params(key, cin, cout):
    ks = jax.random.split(key, 8)
    w1 = jax.random.normal(ks[0], (cout, cin, 3, 3), jnp.float32) * \
        math.sqrt(2.0 / (9 * cin))
    w2 = jax.random.normal(ks[1], (cout, cout, 3, 3), jnp.float32) * \
        math.sqrt(2.0 / (9 * cout))
    # eval-mode BatchNorm parameters / running statistics
    g1 = 1.0 + 0.1 * jax.random.normal(ks[2], (cout,), jnp.float32)
    be1 = 0.1 * jax.random.normal(ks[3], (cout,), jnp.float32)
    m1 = 0.1 * jax.random.normal(ks[4], (cout,), jnp.float32)
    v1 = 1.0 + 0.1 * jax.random.uniform(ks[5], (cout,), jnp.float32)
    g2 = 1.0 + 0.1 * jax.random.normal(ks[6], (cout,), jnp.float32)
    be2 = 0.1 * jax.random.normal(ks[7], (cout,), jnp.float32)
    m2 = jnp.zeros((cout,), jnp.float32)
    v2 = jnp.ones((cout,), jnp.float32)
    return dict(w1=w1, w2=w2, g1=g1, be1=be1, m1=m1, v1=v1,
                g2=g2, be2=be2, m2=m2, v2=v2)


def pack_params(raw, cin, cout):
    cin_p = _round_up(max(cin, 8), 8)
    cout_p = _round_up(cout, _LANE)
    s1, sh1 = _fold_bn(raw["g1"], raw["be1"], raw["m1"], raw["v1"])
    s2, sh2 = _fold_bn(raw["g2"], raw["be2"], raw["m2"], raw["v2"])
    return {
        "w1": _pack_conv(raw["w1"], s1, cin_p, cout_p),
        "b1": jnp.pad(sh1, (0, cout_p - cout)).reshape(1, cout_p),
        "w2": _pack_conv(raw["w2"], s2, cout_p, cout_p),
        "b2": jnp.pad(sh2, (0, cout_p - cout)).reshape(1, cout_p),
    }


# ----------------------------------------------------------------------------
# Pure-JAX reference (f32, XLA convs) for a correctness check.
# ----------------------------------------------------------------------------
def double_conv_reference(x_nchw, raw):
    def bn(y, g, b, m, v):
        s = g / jnp.sqrt(v + _BN_EPS)
        return y * s[None, :, None, None] + (b - m * s)[None, :, None, None]

    dn = ("NCHW", "OIHW", "NCHW")
    y = lax.conv_general_dilated(x_nchw, raw["w1"], (1, 1), [(1, 1), (1, 1)],
                                 dimension_numbers=dn,
                                 precision=lax.Precision.HIGHEST)
    y = jnp.maximum(bn(y, raw["g1"], raw["be1"], raw["m1"], raw["v1"]), 0.0)
    y = lax.conv_general_dilated(y, raw["w2"], (1, 1), [(1, 1), (1, 1)],
                                 dimension_numbers=dn,
                                 precision=lax.Precision.HIGHEST)
    y = jnp.maximum(bn(y, raw["g2"], raw["be2"], raw["m2"], raw["v2"]), 0.0)
    return y


# ----------------------------------------------------------------------------
if __name__ == "__main__":
    key = jax.random.PRNGKey(0)
    k_param, k_in = jax.random.split(key)

    N, in_c, out_c, H, W = 2, 4, 32, 16, 16

    raw = init_params(k_param, in_c, out_c)
    packed = pack_params(raw, in_c, out_c)
    x = jax.random.normal(k_in, (N, in_c, H, W), jnp.float32)

    fwd = jax.jit(partial(double_conv_forward, cout=out_c))
    y = fwd(x, packed)
    jax.block_until_ready(y)

    assert y.shape == (N, out_c, H, W), y.shape
    assert bool(jnp.all(jnp.isfinite(y)))

    y_ref = double_conv_reference(x, raw)
    err = float(jnp.max(jnp.abs(y - y_ref)))
    assert err < 1e-1, f"max abs error vs reference = {err}"

    print("KERNEL_OK")
</pallas_src>

<mosaic_0001>
module attributes {stable_mosaic.version = 11 : i64} {
  func.func @_double_conv_kernel(%arg0: i32, %arg1: memref<1x20x26x8xf32, #tpu.memory_space<vmem>>, %arg2: memref<432x1xf32, #tpu.memory_space<vmem>>, %arg3: memref<9x8x128xbf16, #tpu.memory_space<vmem>>, %arg4: memref<1x128xf32, #tpu.memory_space<vmem>>, %arg5: memref<9x128x128xbf16, #tpu.memory_space<vmem>>, %arg6: memref<1x128xf32, #tpu.memory_space<vmem>>, %arg7: memref<1x16x16x128xf32, #tpu.memory_space<vmem>>) attributes {dimension_semantics = [#tpu.dimension_semantics<parallel>], iteration_bounds = array<i64: 2>, scalar_prefetch = 0 : i64, scratch_operands = 0 : i64, tpu.core_type = #tpu.core_type<tc>, window_params = [{transform_indices = @transform_0, window_bounds = array<i64: 1, 20, 26, 8>}, {pipeline_mode = #tpu.pipeline_mode<synchronous>, transform_indices = @transform_1, window_bounds = array<i64: 432, 1>}, {pipeline_mode = #tpu.pipeline_mode<synchronous>, transform_indices = @transform_2, window_bounds = array<i64: 9, 8, 128>}, {pipeline_mode = #tpu.pipeline_mode<synchronous>, transform_indices = @transform_3, window_bounds = array<i64: 1, 128>}, {pipeline_mode = #tpu.pipeline_mode<synchronous>, transform_indices = @transform_4, window_bounds = array<i64: 9, 128, 128>}, {pipeline_mode = #tpu.pipeline_mode<synchronous>, transform_indices = @transform_5, window_bounds = array<i64: 1, 128>}, {transform_indices = @transform_6, window_bounds = array<i64: 1, 16, 16, 128>}]} {
    %cst = arith.constant 0.000000e+00 : f32
    %0 = vector.broadcast %cst : f32 to vector<432x128xf32>
    %c0 = arith.constant 0 : index
    %c0_0 = arith.constant 0 : index
    %c0_1 = arith.constant 0 : index
    %c0_2 = arith.constant 0 : index
    %1 = vector.load %arg1[%c0, %c0_0, %c0_1, %c0_2] : memref<1x20x26x8xf32, #tpu.memory_space<vmem>>, vector<1x18x24x8xf32>
    %2 = vector.shape_cast %1 : vector<1x18x24x8xf32> to vector<18x24x8xf32>
    %3 = vector.shape_cast %2 : vector<18x24x8xf32> to vector<432x8xf32>
    %4 = arith.truncf %3 : vector<432x8xf32> to vector<432x8xbf16>
    %c0_3 = arith.constant 0 : index
    %c0_4 = arith.constant 0 : index
    %c0_5 = arith.constant 0 : index
    %5 = vector.load %arg3[%c0_3, %c0_4, %c0_5] : memref<9x8x128xbf16, #tpu.memory_space<vmem>>, vector<1x8x128xbf16>
    %6 = vector.shape_cast %5 : vector<1x8x128xbf16> to vector<8x128xbf16>
    %cst_6 = arith.constant dense<0.000000e+00> : vector<432x128xf32>
    %7 = tpu.matmul %4, %6, %cst_6 {dimension_numbers = #tpu.dot_dimension_numbers<[1], [0], [0], [1], [0, 0, 1, 1], [], []>} : vector<432x8xbf16>, vector<8x128xbf16>, vector<432x128xf32> -> vector<432x128xf32>
    %8 = arith.addf %0, %7 : vector<432x128xf32>
    %c0_7 = arith.constant 0 : index
    %c0_8 = arith.constant 0 : index
    %c1 = arith.constant 1 : index
    %c0_9 = arith.constant 0 : index
    %9 = vector.load %arg1[%c0_7, %c0_8, %c1, %c0_9] : memref<1x20x26x8xf32, #tpu.memory_space<vmem>>, vector<1x18x24x8xf32>
    %10 = vector.shape_cast %9 : vector<1x18x24x8xf32> to vector<18x24x8xf32>
    %11 = vector.shape_cast %10 : vector<18x24x8xf32> to vector<432x8xf32>
    %12 = arith.truncf %11 : vector<432x8xf32> to vector<432x8xbf16>
    %c1_10 = arith.constant 1 : index
    %c0_11 = arith.constant 0 : index
    %c0_12 = arith.constant 0 : index
    %13 = vector.load %arg3[%c1_10, %c0_11, %c0_12] : memref<9x8x128xbf16, #tpu.memory_space<vmem>>, vector<1x8x128xbf16>
    %14 = vector.shape_cast %13 : vector<1x8x128xbf16> to vector<8x128xbf16>
    %cst_13 = arith.constant dense<0.000000e+00> : vector<432x128xf32>
    %15 = tpu.matmul %12, %14, %cst_13 {dimension_numbers = #tpu.dot_dimension_numbers<[1], [0], [0], [1], [0, 0, 1, 1], [], []>} : vector<432x8xbf16>, vector<8x128xbf16>, vector<432x128xf32> -> vector<432x128xf32>
    %16 = arith.addf %8, %15 : vector<432x128xf32>
    %c0_14 = arith.constant 0 : index
    %c0_15 = arith.constant 0 : index
    %c2 = arith.constant 2 : index
    %c0_16 = arith.constant 0 : index
    %17 = vector.load %arg1[%c0_14, %c0_15, %c2, %c0_16] : memref<1x20x26x8xf32, #tpu.memory_space<vmem>>, vector<1x18x24x8xf32>
    %18 = vector.shape_cast %17 : vector<1x18x24x8xf32> to vector<18x24x8xf32>
    %19 = vector.shape_cast %18 : vector<18x24x8xf32> to vector<432x8xf32>
    %20 = arith.truncf %19 : vector<432x8xf32> to vector<432x8xbf16>
    %c2_17 = arith.constant 2 : index
    %c0_18 = arith.constant 0 : index
    %c0_19 = arith.constant 0 : index
    %21 = vector.load %arg3[%c2_17, %c0_18, %c0_19] : memref<9x8x128xbf16, #tpu.memory_space<vmem>>, vector<1x8x128xbf16>
    %22 = vector.shape_cast %21 : vector<1x8x128xbf16> to vector<8x128xbf16>
    %cst_20 = arith.constant dense<0.000000e+00> : vector<432x128xf32>
    %23 = tpu.matmul %20, %22, %cst_20 {dimension_numbers = #tpu.dot_dimension_numbers<[1], [0], [0], [1], [0, 0, 1, 1], [], []>} : vector<432x8xbf16>, vector<8x128xbf16>, vector<432x128xf32> -> vector<432x128xf32>
    %24 = arith.addf %16, %23 : vector<432x128xf32>
    %c0_21 = arith.constant 0 : index
    %c1_22 = arith.constant 1 : index
    %c0_23 = arith.constant 0 : index
    %c0_24 = arith.constant 0 : index
    %25 = vector.load %arg1[%c0_21, %c1_22, %c0_23, %c0_24] : memref<1x20x26x8xf32, #tpu.memory_space<vmem>>, vector<1x18x24x8xf32>
    %26 = vector.shape_cast %25 : vector<1x18x24x8xf32> to vector<18x24x8xf32>
    %27 = vector.shape_cast %26 : vector<18x24x8xf32> to vector<432x8xf32>
    %28 = arith.truncf %27 : vector<432x8xf32> to vector<432x8xbf16>
    %c3 = arith.constant 3 : index
    %c0_25 = arith.constant 0 : index
    %c0_26 = arith.constant 0 : index
    %29 = vector.load %arg3[%c3, %c0_25, %c0_26] : memref<9x8x128xbf16, #tpu.memory_space<vmem>>, vector<1x8x128xbf16>
    %30 = vector.shape_cast %29 : vector<1x8x128xbf16> to vector<8x128xbf16>
    %cst_27 = arith.constant dense<0.000000e+00> : vector<432x128xf32>
    %31 = tpu.matmul %28, %30, %cst_27 {dimension_numbers = #tpu.dot_dimension_numbers<[1], [0], [0], [1], [0, 0, 1, 1], [], []>} : vector<432x8xbf16>, vector<8x128xbf16>, vector<432x128xf32> -> vector<432x128xf32>
    %32 = arith.addf %24, %31 : vector<432x128xf32>
    %c0_28 = arith.constant 0 : index
    %c1_29 = arith.constant 1 : index
    %c1_30 = arith.constant 1 : index
    %c0_31 = arith.constant 0 : index
    %33 = vector.load %arg1[%c0_28, %c1_29, %c1_30, %c0_31] : memref<1x20x26x8xf32, #tpu.memory_space<vmem>>, vector<1x18x24x8xf32>
    %34 = vector.shape_cast %33 : vector<1x18x24x8xf32> to vector<18x24x8xf32>
    %35 = vector.shape_cast %34 : vector<18x24x8xf32> to vector<432x8xf32>
    %36 = arith.truncf %35 : vector<432x8xf32> to vector<432x8xbf16>
    %c4 = arith.constant 4 : index
    %c0_32 = arith.constant 0 : index
    %c0_33 = arith.constant 0 : index
    %37 = vector.load %arg3[%c4, %c0_32, %c0_33] : memref<9x8x128xbf16, #tpu.memory_space<vmem>>, vector<1x8x128xbf16>
    %38 = vector.shape_cast %37 : vector<1x8x128xbf16> to vector<8x128xbf16>
    %cst_34 = arith.constant dense<0.000000e+00> : vector<432x128xf32>
    %39 = tpu.matmul %36, %38, %cst_34 {dimension_numbers = #tpu.dot_dimension_numbers<[1], [0], [0], [1], [0, 0, 1, 1], [], []>} : vector<432x8xbf16>, vector<8x128xbf16>, vector<432x128xf32> -> vector<432x128xf32>
    %40 = arith.addf %32, %39 : vector<432x128xf32>
    %c0_35 = arith.constant 0 : index
    %c1_36 = arith.constant 1 : index
    %c2_37 = arith.constant 2 : index
    %c0_38 = arith.constant 0 : index
    %41 = vector.load %arg1[%c0_35, %c1_36, %c2_37, %c0_38] : memref<1x20x26x8xf32, #tpu.memory_space<vmem>>, vector<1x18x24x8xf32>
    %42 = vector.shape_cast %41 : vector<1x18x24x8xf32> to vector<18x24x8xf32>
    %43 = vector.shape_cast %42 : vector<18x24x8xf32> to vector<432x8xf32>
    %44 = arith.truncf %43 : vector<432x8xf32> to vector<432x8xbf16>
    %c5 = arith.constant 5 : index
    %c0_39 = arith.constant 0 : index
    %c0_40 = arith.constant 0 : index
    %45 = vector.load %arg3[%c5, %c0_39, %c0_40] : memref<9x8x128xbf16, #tpu.memory_space<vmem>>, vector<1x8x128xbf16>
    %46 = vector.shape_cast %45 : vector<1x8x128xbf16> to vector<8x128xbf16>
    %cst_41 = arith.constant dense<0.000000e+00> : vector<432x128xf32>
    %47 = tpu.matmul %44, %46, %cst_41 {dimension_numbers = #tpu.dot_dimension_numbers<[1], [0], [0], [1], [0, 0, 1, 1], [], []>} : vector<432x8xbf16>, vector<8x128xbf16>, vector<432x128xf32> -> vector<432x128xf32>
    %48 = arith.addf %40, %47 : vector<432x128xf32>
    %c0_42 = arith.constant 0 : index
    %c2_43 = arith.constant 2 : index
    %c0_44 = arith.constant 0 : index
    %c0_45 = arith.constant 0 : index
    %49 = vector.load %arg1[%c0_42, %c2_43, %c0_44, %c0_45] : memref<1x20x26x8xf32, #tpu.memory_space<vmem>>, vector<1x18x24x8xf32>
    %50 = vector.shape_cast %49 : vector<1x18x24x8xf32> to vector<18x24x8xf32>
    %51 = vector.shape_cast %50 : vector<18x24x8xf32> to vector<432x8xf32>
    %52 = arith.truncf %51 : vector<432x8xf32> to vector<432x8xbf16>
    %c6 = arith.constant 6 : index
    %c0_46 = arith.constant 0 : index
    %c0_47 = arith.constant 0 : index
    %53 = vector.load %arg3[%c6, %c0_46, %c0_47] : memref<9x8x128xbf16, #tpu.memory_space<vmem>>, vector<1x8x128xbf16>
    %54 = vector.shape_cast %53 : vector<1x8x128xbf16> to vector<8x128xbf16>
    %cst_48 = arith.constant dense<0.000000e+00> : vector<432x128xf32>
    %55 = tpu.matmul %52, %54, %cst_48 {dimension_numbers = #tpu.dot_dimension_numbers<[1], [0], [0], [1], [0, 0, 1, 1], [], []>} : vector<432x8xbf16>, vector<8x128xbf16>, vector<432x128xf32> -> vector<432x128xf32>
    %56 = arith.addf %48, %55 : vector<432x128xf32>
    %c0_49 = arith.constant 0 : index
    %c2_50 = arith.constant 2 : index
    %c1_51 = arith.constant 1 : index
    %c0_52 = arith.constant 0 : index
    %57 = vector.load %arg1[%c0_49, %c2_50, %c1_51, %c0_52] : memref<1x20x26x8xf32, #tpu.memory_space<vmem>>, vector<1x18x24x8xf32>
    %58 = vector.shape_cast %57 : vector<1x18x24x8xf32> to vector<18x24x8xf32>
    %59 = vector.shape_cast %58 : vector<18x24x8xf32> to vector<432x8xf32>
    %60 = arith.truncf %59 : vector<432x8xf32> to vector<432x8xbf16>
    %c7 = arith.constant 7 : index
    %c0_53 = arith.constant 0 : index
    %c0_54 = arith.constant 0 : index
    %61 = vector.load %arg3[%c7, %c0_53, %c0_54] : memref<9x8x128xbf16, #tpu.memory_space<vmem>>, vector<1x8x128xbf16>
    %62 = vector.shape_cast %61 : vector<1x8x128xbf16> to vector<8x128xbf16>
    %cst_55 = arith.constant dense<0.000000e+00> : vector<432x128xf32>
    %63 = tpu.matmul %60, %62, %cst_55 {dimension_numbers = #tpu.dot_dimension_numbers<[1], [0], [0], [1], [0, 0, 1, 1], [], []>} : vector<432x8xbf16>, vector<8x128xbf16>, vector<432x128xf32> -> vector<432x128xf32>
    %64 = arith.addf %56, %63 : vector<432x128xf32>
    %c0_56 = arith.constant 0 : index
    %c2_57 = arith.constant 2 : index
    %c2_58 = arith.constant 2 : index
    %c0_59 = arith.constant 0 : index
    %65 = vector.load %arg1[%c0_56, %c2_57, %c2_58, %c0_59] : memref<1x20x26x8xf32, #tpu.memory_space<vmem>>, vector<1x18x24x8xf32>
    %66 = vector.shape_cast %65 : vector<1x18x24x8xf32> to vector<18x24x8xf32>
    %67 = vector.shape_cast %66 : vector<18x24x8xf32> to vector<432x8xf32>
    %68 = arith.truncf %67 : vector<432x8xf32> to vector<432x8xbf16>
    %c8 = arith.constant 8 : index
    %c0_60 = arith.constant 0 : index
    %c0_61 = arith.constant 0 : index
    %69 = vector.load %arg3[%c8, %c0_60, %c0_61] : memref<9x8x128xbf16, #tpu.memory_space<vmem>>, vector<1x8x128xbf16>
    %70 = vector.shape_cast %69 : vector<1x8x128xbf16> to vector<8x128xbf16>
    %cst_62 = arith.constant dense<0.000000e+00> : vector<432x128xf32>
    %71 = tpu.matmul %68, %70, %cst_62 {dimension_numbers = #tpu.dot_dimension_numbers<[1], [0], [0], [1], [0, 0, 1, 1], [], []>} : vector<432x8xbf16>, vector<8x128xbf16>, vector<432x128xf32> -> vector<432x128xf32>
    %72 = arith.addf %64, %71 : vector<432x128xf32>
    %c0_63 = arith.constant 0 : index
    %c0_64 = arith.constant 0 : index
    %73 = vector.load %arg4[%c0_63, %c0_64] : memref<1x128xf32, #tpu.memory_space<vmem>>, vector<1x128xf32>
    %74 = vector.broadcast %73 : vector<1x128xf32> to vector<432x128xf32>
    %75 = arith.addf %72, %74 : vector<432x128xf32>
    %cst_65 = arith.constant 0.000000e+00 : f32
    %76 = vector.broadcast %cst_65 : f32 to vector<432x128xf32>
    %77 = arith.maximumf %75, %76 : vector<432x128xf32>
    %c0_66 = arith.constant 0 : index
    %c0_67 = arith.constant 0 : index
    %78 = vector.load %arg2[%c0_66, %c0_67] : memref<432x1xf32, #tpu.memory_space<vmem>>, vector<432x1xf32>
    %79 = vector.broadcast %78 : vector<432x1xf32> to vector<432x128xf32>
    %80 = arith.mulf %77, %79 : vector<432x128xf32>
    %81 = vector.shape_cast %80 : vector<432x128xf32> to vector<18x24x128xf32>
    %cst_68 = arith.constant 0.000000e+00 : f32
    %82 = vector.broadcast %cst_68 : f32 to vector<256x128xf32>
    %83 = vector.extract_strided_slice %81 {offsets = [0, 3, 0], sizes = [16, 16, 128], strides = [1, 1, 1]} : vector<18x24x128xf32> to vector<16x16x128xf32>
    %84 = vector.shape_cast %83 : vector<16x16x128xf32> to vector<256x128xf32>
    %85 = arith.truncf %84 : vector<256x128xf32> to vector<256x128xbf16>
    %c0_69 = arith.constant 0 : index
    %c0_70 = arith.constant 0 : index
    %c0_71 = arith.constant 0 : index
    %86 = vector.load %arg5[%c0_69, %c0_70, %c0_71] : memref<9x128x128xbf16, #tpu.memory_space<vmem>>, vector<1x128x128xbf16>
    %87 = vector.shape_cast %86 : vector<1x128x128xbf16> to vector<128x128xbf16>
    %cst_72 = arith.constant dense<0.000000e+00> : vector<256x128xf32>
    %88 = tpu.matmul %85, %87, %cst_72 {dimension_numbers = #tpu.dot_dimension_numbers<[1], [0], [0], [1], [0, 0, 1, 1], [], []>} : vector<256x128xbf16>, vector<128x128xbf16>, vector<256x128xf32> -> vector<256x128xf32>
    %89 = arith.addf %82, %88 : vector<256x128xf32>
    %90 = vector.extract_strided_slice %81 {offsets = [0, 4, 0], sizes = [16, 16, 128], strides = [1, 1, 1]} : vector<18x24x128xf32> to vector<16x16x128xf32>
    %91 = vector.shape_cast %90 : vector<16x16x128xf32> to vector<256x128xf32>
    %92 = arith.truncf %91 : vector<256x128xf32> to vector<256x128xbf16>
    %c1_73 = arith.constant 1 : index
    %c0_74 = arith.constant 0 : index
    %c0_75 = arith.constant 0 : index
    %93 = vector.load %arg5[%c1_73, %c0_74, %c0_75] : memref<9x128x128xbf16, #tpu.memory_space<vmem>>, vector<1x128x128xbf16>
    %94 = vector.shape_cast %93 : vector<1x128x128xbf16> to vector<128x128xbf16>
    %cst_76 = arith.constant dense<0.000000e+00> : vector<256x128xf32>
    %95 = tpu.matmul %92, %94, %cst_76 {dimension_numbers = #tpu.dot_dimension_numbers<[1], [0], [0], [1], [0, 0, 1, 1], [], []>} : vector<256x128xbf16>, vector<128x128xbf16>, vector<256x128xf32> -> vector<256x128xf32>
    %96 = arith.addf %89, %95 : vector<256x128xf32>
    %97 = vector.extract_strided_slice %81 {offsets = [0, 5, 0], sizes = [16, 16, 128], strides = [1, 1, 1]} : vector<18x24x128xf32> to vector<16x16x128xf32>
    %98 = vector.shape_cast %97 : vector<16x16x128xf32> to vector<256x128xf32>
    %99 = arith.truncf %98 : vector<256x128xf32> to vector<256x128xbf16>
    %c2_77 = arith.constant 2 : index
    %c0_78 = arith.constant 0 : index
    %c0_79 = arith.constant 0 : index
    %100 = vector.load %arg5[%c2_77, %c0_78, %c0_79] : memref<9x128x128xbf16, #tpu.memory_space<vmem>>, vector<1x128x128xbf16>
    %101 = vector.shape_cast %100 : vector<1x128x128xbf16> to vector<128x128xbf16>
    %cst_80 = arith.constant dense<0.000000e+00> : vector<256x128xf32>
    %102 = tpu.matmul %99, %101, %cst_80 {dimension_numbers = #tpu.dot_dimension_numbers<[1], [0], [0], [1], [0, 0, 1, 1], [], []>} : vector<256x128xbf16>, vector<128x128xbf16>, vector<256x128xf32> -> vector<256x128xf32>
    %103 = arith.addf %96, %102 : vector<256x128xf32>
    %104 = vector.extract_strided_slice %81 {offsets = [1, 3, 0], sizes = [16, 16, 128], strides = [1, 1, 1]} : vector<18x24x128xf32> to vector<16x16x128xf32>
    %105 = vector.shape_cast %104 : vector<16x16x128xf32> to vector<256x128xf32>
    %106 = arith.truncf %105 : vector<256x128xf32> to vector<256x128xbf16>
    %c3_81 = arith.constant 3 : index
    %c0_82 = arith.constant 0 : index
    %c0_83 = arith.constant 0 : index
    %107 = vector.load %arg5[%c3_81, %c0_82, %c0_83] : memref<9x128x128xbf16, #tpu.memory_space<vmem>>, vector<1x128x128xbf16>
    %108 = vector.shape_cast %107 : vector<1x128x128xbf16> to vector<128x128xbf16>
    %cst_84 = arith.constant dense<0.000000e+00> : vector<256x128xf32>
    %109 = tpu.matmul %106, %108, %cst_84 {dimension_numbers = #tpu.dot_dimension_numbers<[1], [0], [0], [1], [0, 0, 1, 1], [], []>} : vector<256x128xbf16>, vector<128x128xbf16>, vector<256x128xf32> -> vector<256x128xf32>
    %110 = arith.addf %103, %109 : vector<256x128xf32>
    %111 = vector.extract_strided_slice %81 {offsets = [1, 4, 0], sizes = [16, 16, 128], strides = [1, 1, 1]} : vector<18x24x128xf32> to vector<16x16x128xf32>
    %112 = vector.shape_cast %111 : vector<16x16x128xf32> to vector<256x128xf32>
    %113 = arith.truncf %112 : vector<256x128xf32> to vector<256x128xbf16>
    %c4_85 = arith.constant 4 : index
    %c0_86 = arith.constant 0 : index
    %c0_87 = arith.constant 0 : index
    %114 = vector.load %arg5[%c4_85, %c0_86, %c0_87] : memref<9x128x128xbf16, #tpu.memory_space<vmem>>, vector<1x128x128xbf16>
    %115 = vector.shape_cast %114 : vector<1x128x128xbf16> to vector<128x128xbf16>
    %cst_88 = arith.constant dense<0.000000e+00> : vector<256x128xf32>
    %116 = tpu.matmul %113, %115, %cst_88 {dimension_numbers = #tpu.dot_dimension_numbers<[1], [0], [0], [1], [0, 0, 1, 1], [], []>} : vector<256x128xbf16>, vector<128x128xbf16>, vector<256x128xf32> -> vector<256x128xf32>
    %117 = arith.addf %110, %116 : vector<256x128xf32>
    %118 = vector.extract_strided_slice %81 {offsets = [1, 5, 0], sizes = [16, 16, 128], strides = [1, 1, 1]} : vector<18x24x128xf32> to vector<16x16x128xf32>
    %119 = vector.shape_cast %118 : vector<16x16x128xf32> to vector<256x128xf32>
    %120 = arith.truncf %119 : vector<256x128xf32> to vector<256x128xbf16>
    %c5_89 = arith.constant 5 : index
    %c0_90 = arith.constant 0 : index
    %c0_91 = arith.constant 0 : index
    %121 = vector.load %arg5[%c5_89, %c0_90, %c0_91] : memref<9x128x128xbf16, #tpu.memory_space<vmem>>, vector<1x128x128xbf16>
    %122 = vector.shape_cast %121 : vector<1x128x128xbf16> to vector<128x128xbf16>
    %cst_92 = arith.constant dense<0.000000e+00> : vector<256x128xf32>
    %123 = tpu.matmul %120, %122, %cst_92 {dimension_numbers = #tpu.dot_dimension_numbers<[1], [0], [0], [1], [0, 0, 1, 1], [], []>} : vector<256x128xbf16>, vector<128x128xbf16>, vector<256x128xf32> -> vector<256x128xf32>
    %124 = arith.addf %117, %123 : vector<256x128xf32>
    %125 = vector.extract_strided_slice %81 {offsets = [2, 3, 0], sizes = [16, 16, 128], strides = [1, 1, 1]} : vector<18x24x128xf32> to vector<16x16x128xf32>
    %126 = vector.shape_cast %125 : vector<16x16x128xf32> to vector<256x128xf32>
    %127 = arith.truncf %126 : vector<256x128xf32> to vector<256x128xbf16>
    %c6_93 = arith.constant 6 : index
    %c0_94 = arith.constant 0 : index
    %c0_95 = arith.constant 0 : index
    %128 = vector.load %arg5[%c6_93, %c0_94, %c0_95] : memref<9x128x128xbf16, #tpu.memory_space<vmem>>, vector<1x128x128xbf16>
    %129 = vector.shape_cast %128 : vector<1x128x128xbf16> to vector<128x128xbf16>
    %cst_96 = arith.constant dense<0.000000e+00> : vector<256x128xf32>
    %130 = tpu.matmul %127, %129, %cst_96 {dimension_numbers = #tpu.dot_dimension_numbers<[1], [0], [0], [1], [0, 0, 1, 1], [], []>} : vector<256x128xbf16>, vector<128x128xbf16>, vector<256x128xf32> -> vector<256x128xf32>
    %131 = arith.addf %124, %130 : vector<256x128xf32>
    %132 = vector.extract_strided_slice %81 {offsets = [2, 4, 0], sizes = [16, 16, 128], strides = [1, 1, 1]} : vector<18x24x128xf32> to vector<16x16x128xf32>
    %133 = vector.shape_cast %132 : vector<16x16x128xf32> to vector<256x128xf32>
    %134 = arith.truncf %133 : vector<256x128xf32> to vector<256x128xbf16>
    %c7_97 = arith.constant 7 : index
    %c0_98 = arith.constant 0 : index
    %c0_99 = arith.constant 0 : index
    %135 = vector.load %arg5[%c7_97, %c0_98, %c0_99] : memref<9x128x128xbf16, #tpu.memory_space<vmem>>, vector<1x128x128xbf16>
    %136 = vector.shape_cast %135 : vector<1x128x128xbf16> to vector<128x128xbf16>
    %cst_100 = arith.constant dense<0.000000e+00> : vector<256x128xf32>
    %137 = tpu.matmul %134, %136, %cst_100 {dimension_numbers = #tpu.dot_dimension_numbers<[1], [0], [0], [1], [0, 0, 1, 1], [], []>} : vector<256x128xbf16>, vector<128x128xbf16>, vector<256x128xf32> -> vector<256x128xf32>
    %138 = arith.addf %131, %137 : vector<256x128xf32>
    %139 = vector.extract_strided_slice %81 {offsets = [2, 5, 0], sizes = [16, 16, 128], strides = [1, 1, 1]} : vector<18x24x128xf32> to vector<16x16x128xf32>
    %140 = vector.shape_cast %139 : vector<16x16x128xf32> to vector<256x128xf32>
    %141 = arith.truncf %140 : vector<256x128xf32> to vector<256x128xbf16>
    %c8_101 = arith.constant 8 : index
    %c0_102 = arith.constant 0 : index
    %c0_103 = arith.constant 0 : index
    %142 = vector.load %arg5[%c8_101, %c0_102, %c0_103] : memref<9x128x128xbf16, #tpu.memory_space<vmem>>, vector<1x128x128xbf16>
    %143 = vector.shape_cast %142 : vector<1x128x128xbf16> to vector<128x128xbf16>
    %cst_104 = arith.constant dense<0.000000e+00> : vector<256x128xf32>
    %144 = tpu.matmul %141, %143, %cst_104 {dimension_numbers = #tpu.dot_dimension_numbers<[1], [0], [0], [1], [0, 0, 1, 1], [], []>} : vector<256x128xbf16>, vector<128x128xbf16>, vector<256x128xf32> -> vector<256x128xf32>
    %145 = arith.addf %138, %144 : vector<256x128xf32>
    %c0_105 = arith.constant 0 : index
    %c0_106 = arith.constant 0 : index
    %146 = vector.load %arg6[%c0_105, %c0_106] : memref<1x128xf32, #tpu.memory_space<vmem>>, vector<1x128xf32>
    %147 = vector.broadcast %146 : vector<1x128xf32> to vector<256x128xf32>
    %148 = arith.addf %145, %147 : vector<256x128xf32>
    %cst_107 = arith.constant 0.000000e+00 : f32
    %149 = vector.broadcast %cst_107 : f32 to vector<256x128xf32>
    %150 = arith.maximumf %148, %149 : vector<256x128xf32>
    %151 = vector.shape_cast %150 : vector<256x128xf32> to vector<16x16x128xf32>
    %c0_108 = arith.constant 0 : index
    %c0_109 = arith.constant 0 : index
    %c0_110 = arith.constant 0 : index
    %c0_111 = arith.constant 0 : index
    %152 = vector.load %arg7[%c0_108, %c0_109, %c0_110, %c0_111] : memref<1x16x16x128xf32, #tpu.memory_space<vmem>>, vector<1x16x16x128xf32>
    %153 = vector.shape_cast %152 : vector<1x16x16x128xf32> to vector<16x16x128xf32>
    %154 = vector.shape_cast %151 : vector<16x16x128xf32> to vector<1x16x16x128xf32>
    tpu.vector_store %arg7[%c0_108, %c0_109, %c0_110, %c0_111], %154 {strides = array<i32>} : memref<1x16x16x128xf32, #tpu.memory_space<vmem>>, vector<1x16x16x128xf32>,
    return
  }
  func.func @transform_0(%arg0: i32) -> (i32, i32, i32, i32) {
    %c0_i32 = arith.constant 0 : i32
    %c0_i32_0 = arith.constant 0 : i32
    %c0_i32_1 = arith.constant 0 : i32
    %c0_i32_2 = arith.constant 0 : i32
    return %arg0, %c0_i32, %c0_i32_0, %c0_i32_1 : i32, i32, i32, i32
  }
  func.func @transform_1(%arg0: i32) -> (i32, i32) {
    %c0_i32 = arith.constant 0 : i32
    %c0_i32_0 = arith.constant 0 : i32
    %c0_i32_1 = arith.constant 0 : i32
    return %c0_i32, %c0_i32_0 : i32, i32
  }
  func.func @transform_2(%arg0: i32) -> (i32, i32, i32) {
    %c0_i32 = arith.constant 0 : i32
    %c0_i32_0 = arith.constant 0 : i32
    %c0_i32_1 = arith.constant 0 : i32
    %c0_i32_2 = arith.constant 0 : i32
    return %c0_i32, %c0_i32_0, %c0_i32_1 : i32, i32, i32
  }
  func.func @transform_3(%arg0: i32) -> (i32, i32) {
    %c0_i32 = arith.constant 0 : i32
    %c0_i32_0 = arith.constant 0 : i32
    %c0_i32_1 = arith.constant 0 : i32
    return %c0_i32, %c0_i32_0 : i32, i32
  }
  func.func @transform_4(%arg0: i32) -> (i32, i32, i32) {
    %c0_i32 = arith.constant 0 : i32
    %c0_i32_0 = arith.constant 0 : i32
    %c0_i32_1 = arith.constant 0 : i32
    %c0_i32_2 = arith.constant 0 : i32
    return %c0_i32, %c0_i32_0, %c0_i32_1 : i32, i32, i32
  }
  func.func @transform_5(%arg0: i32) -> (i32, i32) {
    %c0_i32 = arith.constant 0 : i32
    %c0_i32_0 = arith.constant 0 : i32
    %c0_i32_1 = arith.constant 0 : i32
    return %c0_i32, %c0_i32_0 : i32, i32
  }
  func.func @transform_6(%arg0: i32) -> (i32, i32, i32, i32) {
    %c0_i32 = arith.constant 0 : i32
    %c0_i32_0 = arith.constant 0 : i32
    %c0_i32_1 = arith.constant 0 : i32
    %c0_i32_2 = arith.constant 0 : i32
    return %arg0, %c0_i32, %c0_i32_0, %c0_i32_1 : i32, i32, i32, i32
  }
}

</mosaic_0001>

<llo_original>
// kernel: double_conv_forward.1
$region0: #{double_conv_forward.1}
  #allocation0 [shape = 'u32[]', space=smem, size = 0x4, offset = 0x4, fixed_abs, tag = 'smem constant byte address 0x4 - core index']
  #allocation1 [shape = 'u32[144,128]{1,0:T(1,128)}', space=vmem, size = 0x12000, scoped, tag = 'internal scratch']
  %s0 = inlined_call_operand.vmem [shape: f32[2,20,26,8], index: 0, kind: input, shape index: {}]
  %s1 = inlined_call_operand.vmem [shape: f32[432,1], index: 1, kind: input, shape index: {}]
  %s2 = inlined_call_operand.vmem [shape: bf16[9,8,128], index: 2, kind: input, shape index: {}]
  %s3 = inlined_call_operand.vmem [shape: f32[1,128], index: 3, kind: input, shape index: {}]
  %s4 = inlined_call_operand.vmem [shape: bf16[9,128,128], index: 4, kind: input, shape index: {}]
  %s5 = inlined_call_operand.vmem [shape: f32[1,128], index: 5, kind: input, shape index: {}]
  %s6 = inlined_call_operand.vmem [shape: f32[2,16,16,128], index: 6, kind: output, shape index: {}]
  %s7 = sld [smem:[#allocation0]]
  $region57: #{double_conv_forward.1} parent=0
    _
  %s9 = ssub.s32 1, %s7
  %s10 = scalar_select 0, %s9, %s7
  loop: start=0, step=1, limit=4
  $region2: #{double_conv_forward.1} parent=0 // loop_pre_header
    _
  $region3: #{double_conv_forward.1} parent=0 // loop_header
    %s12 = sphi 0, %s16
    %p13 = scmp.ge.s32.totalorder %s12, 4
    %s22 = sphi 0, %s24
    %s25 = sphi 0, %s22
    %s26 = sphi 0, %s25
    %s42 = sphi 0, %s26
    %s46 = sphi 0, %s46
    %s48 = sphi 0, %s46
    %s49 = sphi 0, %s48
    %s63 = sphi 0, %s49
    %s67 = sphi 0, %s67
    %s69 = sphi 0, %s67
    %s70 = sphi 0, %s69
    %s84 = sphi 0, %s70
    %s88 = sphi 0, %s88
    %s90 = sphi 0, %s88
    %s91 = sphi 0, %s90
    %s105 = sphi 0, %s91
    %s109 = sphi 0, %s109
    %s111 = sphi 0, %s109
    %s112 = sphi 0, %s111
    %s126 = sphi 0, %s112
    %s130 = sphi 0, %s130
    %s132 = sphi 0, %s130
    %s133 = sphi 0, %s132
    %s147 = sphi 0, %s133
    %s153 = sphi 0, %s155
    %s156 = sphi 0, %s153
    %s157 = sphi 0, %s156
    %s173 = sphi 0, %s157
  $region4: #{double_conv_forward.1} parent=0 // loop_header_branch
    %15 = sbr.rel (%p13) target = $region8
  $region5: #{double_conv_forward.1} parent=0 // loop_body
    %s17 = ssub.s32 %s12, 1
    %s18 = ssub.s32 %s12, 2
    %s19 = sadd.s32 %s12, 1
    %s20 = ssub.s32 %s12, %s19
    %p21 = scmp.eq.s32.totalorder %s20, 0
    %s23 = sadd.s32 %s22, 1
    %s24 = scalar_select %p21, %s22, %s23
    %p27 = pneg %p21
    %p28 = scmp.eq.s32.totalorder %s12, 1
    %p29 = por %p27, %p28
    %p30 = scmp.ne.s32.totalorder %s22, %s25
    %p31 = scmp.eq.s32.totalorder %s12, 0
    %p32 = por %p30, %p31
    %p33 = scmp.ne.s32.totalorder %s22, %s25
    %p34 = scmp.eq.s32.totalorder %s17, 1
    %p35 = por %p33, %p34
    %p36 = scmp.ne.s32.totalorder %s25, %s26
    %p37 = scmp.eq.s32.totalorder %s17, 0
    %p38 = por %p36, %p37
    %p39 = scmp.ne.s32.totalorder %s25, %s26
    %p40 = scmp.eq.s32.totalorder %s18, 1
    %p41 = por %p39, %p40
    %p43 = scmp.ne.s32.totalorder %s26, %s42
    %p44 = scmp.eq.s32.totalorder %s18, 0
    %p45 = por %p43, %p44
    %s47 = sadd.s32 %s46, 1
    %p50 = scmp.eq.s32.totalorder %s12, 1
    %p51 = scmp.ne.s32.totalorder %s46, %s48
    %p52 = scmp.eq.s32.totalorder %s12, 0
    %p53 = por %p51, %p52
    %p54 = scmp.ne.s32.totalorder %s46, %s48
    %p55 = scmp.eq.s32.totalorder %s17, 1
    %p56 = por %p54, %p55
    %p57 = scmp.ne.s32.totalorder %s48, %s49
    %p58 = scmp.eq.s32.totalorder %s17, 0
    %p59 = por %p57, %p58
    %p60 = scmp.ne.s32.totalorder %s48, %s49
    %p61 = scmp.eq.s32.totalorder %s18, 1
    %p62 = por %p60, %p61
    %p64 = scmp.ne.s32.totalorder %s49, %s63
    %p65 = scmp.eq.s32.totalorder %s18, 0
    %p66 = por %p64, %p65
    %s68 = sadd.s32 %s67, 1
    %p71 = scmp.eq.s32.totalorder %s12, 1
    %p72 = scmp.ne.s32.totalorder %s67, %s69
    %p73 = scmp.eq.s32.totalorder %s12, 0
    %p74 = por %p72, %p73
    %p75 = scmp.ne.s32.totalorder %s67, %s69
    %p76 = scmp.eq.s32.totalorder %s17, 1
    %p77 = por %p75, %p76
    %p78 = scmp.ne.s32.totalorder %s69, %s70
    %p79 = scmp.eq.s32.totalorder %s17, 0
    %p80 = por %p78, %p79
    %p81 = scmp.ne.s32.totalorder %s69, %s70
    %p82 = scmp.eq.s32.totalorder %s18, 1
    %p83 = por %p81, %p82
    %p85 = scmp.ne.s32.totalorder %s70, %s84
    %p86 = scmp.eq.s32.totalorder %s18, 0
    %p87 = por %p85, %p86
    %s89 = sadd.s32 %s88, 1
    %p92 = scmp.eq.s32.totalorder %s12, 1
    %p93 = scmp.ne.s32.totalorder %s88, %s90
    %p94 = scmp.eq.s32.totalorder %s12, 0
    %p95 = por %p93, %p94
    %p96 = scmp.ne.s32.totalorder %s88, %s90
    %p97 = scmp.eq.s32.totalorder %s17, 1
    %p98 = por %p96, %p97
    %p99 = scmp.ne.s32.totalorder %s90, %s91
    %p100 = scmp.eq.s32.totalorder %s17, 0
    %p101 = por %p99, %p100
    %p102 = scmp.ne.s32.totalorder %s90, %s91
    %p103 = scmp.eq.s32.totalorder %s18, 1
    %p104 = por %p102, %p103
    %p106 = scmp.ne.s32.totalorder %s91, %s105
    %p107 = scmp.eq.s32.totalorder %s18, 0
    %p108 = por %p106, %p107
    %s110 = sadd.s32 %s109, 1
    %p113 = scmp.eq.s32.totalorder %s12, 1
    %p114 = scmp.ne.s32.totalorder %s109, %s111
    %p115 = scmp.eq.s32.totalorder %s12, 0
    %p116 = por %p114, %p115
    %p117 = scmp.ne.s32.totalorder %s109, %s111
    %p118 = scmp.eq.s32.totalorder %s17, 1
    %p119 = por %p117, %p118
    %p120 = scmp.ne.s32.totalorder %s111, %s112
    %p121 = scmp.eq.s32.totalorder %s17, 0
    %p122 = por %p120, %p121
    %p123 = scmp.ne.s32.totalorder %s111, %s112
    %p124 = scmp.eq.s32.totalorder %s18, 1
    %p125 = por %p123, %p124
    %p127 = scmp.ne.s32.totalorder %s112, %s126
    %p128 = scmp.eq.s32.totalorder %s18, 0
    %p129 = por %p127, %p128
    %s131 = sadd.s32 %s130, 1
    %p134 = scmp.eq.s32.totalorder %s12, 1
    %p135 = scmp.ne.s32.totalorder %s130, %s132
    %p136 = scmp.eq.s32.totalorder %s12, 0
    %p137 = por %p135, %p136
    %p138 = scmp.ne.s32.totalorder %s130, %s132
    %p139 = scmp.eq.s32.totalorder %s17, 1
    %p140 = por %p138, %p139
    %p141 = scmp.ne.s32.totalorder %s132, %s133
    %p142 = scmp.eq.s32.totalorder %s17, 0
    %p143 = por %p141, %p142
    %p144 = scmp.ne.s32.totalorder %s132, %s133
    %p145 = scmp.eq.s32.totalorder %s18, 1
    %p146 = por %p144, %p145
    %p148 = scmp.ne.s32.totalorder %s133, %s147
    %p149 = scmp.eq.s32.totalorder %s18, 0
    %p150 = por %p148, %p149
    %s151 = ssub.s32 %s12, %s19
    %p152 = scmp.eq.s32.totalorder %s151, 0
    %s154 = sadd.s32 %s153, 1
    %s155 = scalar_select %p152, %s153, %s154
    %p158 = pneg %p152
    %p159 = scmp.eq.s32.totalorder %s12, 1
    %p160 = por %p158, %p159
    %p161 = scmp.ne.s32.totalorder %s153, %s156
    %p162 = scmp.eq.s32.totalorder %s12, 0
    %p163 = por %p161, %p162
    %p164 = scmp.ne.s32.totalorder %s153, %s156
    %p165 = scmp.eq.s32.totalorder %s17, 1
    %p166 = por %p164, %p165
    %p167 = scmp.ne.s32.totalorder %s156, %s157
    %p168 = scmp.eq.s32.totalorder %s17, 0
    %p169 = por %p167, %p168
    %p170 = scmp.ne.s32.totalorder %s156, %s157
    %p171 = scmp.eq.s32.totalorder %s18, 1
    %p172 = por %p170, %p171
    %p174 = scmp.ne.s32.totalorder %s157, %s173
    %p175 = scmp.eq.s32.totalorder %s18, 0
    %p176 = por %p174, %p175
    %p177 = scmp.le.s32.totalorder 1, %s12
    %p178 = scmp.lt.s32.totalorder %s12, 3
    %p179 = pnand %p177, %p178
    %p180 = pneg %p179
    // Predicated region
    $region9: #{double_conv_forward.1} parent=5 // pred_check
      _
    $region10: #{double_conv_forward.1} parent=5 // pred_check_branch
      %182 = sbr.rel (%p179) target = $region12
    $region11: #{double_conv_forward.1} parent=5 // pred_region
      %s183 = ssub.s32 %s12, 1
      // Predicated region
      $region13: #{double_conv_forward.1} parent=11 // pred_check
        %p184 = pneg %p59
      $region14: #{double_conv_forward.1} parent=11 // pred_check_branch
        %186 = sbr.rel (%p184) target = $region16
      $region15: #{double_conv_forward.1} parent=11 // pred_region
        _
      $region16: #{double_conv_forward.1} parent=11 // pred_fallthru
        _
      // Predicated region
      $region17: #{double_conv_forward.1} parent=11 // pred_check
        %p187 = pneg %p80
      $region18: #{double_conv_forward.1} parent=11 // pred_check_branch
        %189 = sbr.rel (%p187) target = $region20
      $region19: #{double_conv_forward.1} parent=11 // pred_region
        _
      $region20: #{double_conv_forward.1} parent=11 // pred_fallthru
        _
      // Predicated region
      $region21: #{double_conv_forward.1} parent=11 // pred_check
        %p190 = pneg %p101
      $region22: #{double_conv_forward.1} parent=11 // pred_check_branch
        %192 = sbr.rel (%p190) target = $region24
      $region23: #{double_conv_forward.1} parent=11 // pred_region
        _
      $region24: #{double_conv_forward.1} parent=11 // pred_fallthru
        _
      // Predicated region
      $region25: #{double_conv_forward.1} parent=11 // pred_check
        %p193 = pneg %p122
      $region26: #{double_conv_forward.1} parent=11 // pred_check_branch
        %195 = sbr.rel (%p193) target = $region28
      $region27: #{double_conv_forward.1} parent=11 // pred_region
        _
      $region28: #{double_conv_forward.1} parent=11 // pred_fallthru
        _
      // Predicated region
      $region29: #{double_conv_forward.1} parent=11 // pred_check
        %p196 = pneg %p143
      $region30: #{double_conv_forward.1} parent=11 // pred_check_branch
        %198 = sbr.rel (%p196) target = $region32
      $region31: #{double_conv_forward.1} parent=11 // pred_region
        _
      $region32: #{double_conv_forward.1} parent=11 // pred_fallthru
        _
    $region12: #{double_conv_forward.1} parent=5 // pred_fallthru
      _
    %p199 = scmp.lt.s32.totalorder %s12, 2
    // Predicated region
    $region33: #{double_conv_forward.1} parent=5 // pred_check
      %p200 = pneg %p199
    $region34: #{double_conv_forward.1} parent=5 // pred_check_branch
      %202 = sbr.rel (%p200) target = $region36
    $region35: #{double_conv_forward.1} parent=5 // pred_region
      // Predicated region
      $region37: #{double_conv_forward.1} parent=35 // pred_check
        %p203 = pneg %p32
      $region38: #{double_conv_forward.1} parent=35 // pred_check_branch
        %205 = sbr.rel (%p203) target = $region40
      $region39: #{double_conv_forward.1} parent=35 // pred_region
        %p206 = scmp.lt.s32.totalorder %s12, 1
        %s207 = scalar_select %p206, %s12, 1
        %s208 = smul.addr %s207, 80
        %s209 = smul.addr %s208, 8
        %s210 = scalar_lea.vmem %s0, %s209
      $region40: #{double_conv_forward.1} parent=35 // pred_fallthru
        _
    $region36: #{double_conv_forward.1} parent=5 // pred_fallthru
      _
    %p211 = scmp.le.s32.totalorder 1, %s12
    %p212 = scmp.lt.s32.totalorder %s12, 3
    %p213 = pnand %p211, %p212
    %p214 = pneg %p213
    // Predicated region
    $region41: #{double_conv_forward.1} parent=5 // pred_check
      _
    $region42: #{double_conv_forward.1} parent=5 // pred_check_branch
      %216 = sbr.rel (%p213) target = $region44
    $region43: #{double_conv_forward.1} parent=5 // pred_region
      %s217 = ssub.s32 %s12, 1
      %p218 = scmp.lt.s32.totalorder %s17, 1
      %s219 = scalar_select %p218, %s17, 1
      %s220 = smul.addr %s219, 80
      %s221 = smul.addr %s220, 8
      %s222 = scalar_lea.vmem %s0, %s221
      %p223 = pneg %p38
      %p224 = pneg %p35
      %p225 = pneg %p59
      %p226 = pneg %p56
      %p227 = pneg %p80
      %p228 = pneg %p77
      %p229 = pneg %p101
      %p230 = pneg %p98
      %p231 = pneg %p122
      %p232 = pneg %p119
      %p233 = pneg %p143
      %p234 = pneg %p140
      %p235 = pneg %p169
      %p236 = pneg %p166
      %p237 = scmp.lt.s32.totalorder %s17, 1
      %s238 = scalar_select %p237, %s17, 1
      %s239 = smul.addr %s238, 32
      %s240 = smul.addr %s239, 8
      %s241 = scalar_lea.vmem %s6, %s240
      %p242 = scmp.lt.s32.totalorder %s17, 1
      %s243 = scalar_select %p242, %s17, 1
      %s244 = smul.addr %s243, 80
      %s245 = smul.addr %s244, 8
      %s246 = scalar_lea.vmem %s0, %s245
      %p247 = scmp.lt.s32.totalorder %s17, 1
      %s248 = scalar_select %p247, %s17, 1
      %s249 = smul.addr %s248, 32
      %s250 = smul.addr %s249, 8
      %s251 = scalar_lea.vmem %s6, %s250
      %v253 = vld [vmem:[%s246] sm:$0xff]
      %v254 = vld [vmem:[%s246 + $0x8] sm:$0xff]
      %v255 = vld [vmem:[%s246 + $0x10] sm:$0xff]
      %v256 = vld [vmem:[%s246 + $0x20] sm:$0xff]
      %v257 = vld [vmem:[%s246 + $0x28] sm:$0xff]
      %v258 = vld [vmem:[%s246 + $0x30] sm:$0xff]
      %v259 = vld [vmem:[%s246 + $0x40] sm:$0xff]
      %v260 = vld [vmem:[%s246 + $0x48] sm:$0xff]
      %v261 = vld [vmem:[%s246 + $0x50] sm:$0xff]
      %v262 = vld [vmem:[%s246 + $0x60] sm:$0xff]
      %v263 = vld [vmem:[%s246 + $0x68] sm:$0xff]
      %v264 = vld [vmem:[%s246 + $0x70] sm:$0xff]
      %v265 = vld [vmem:[%s246 + $0x80] sm:$0xff]
      %v266 = vld [vmem:[%s246 + $0x88] sm:$0xff]
      %v267 = vld [vmem:[%s246 + $0x90] sm:$0xff]
      %v268 = vld [vmem:[%s246 + $0xa0] sm:$0xff]
      %v269 = vld [vmem:[%s246 + $0xa8] sm:$0xff]
      %v270 = vld [vmem:[%s246 + $0xb0] sm:$0xff]
      %v271 = vld [vmem:[%s246 + $0xc0] sm:$0xff]
      %v272 = vld [vmem:[%s246 + $0xc8] sm:$0xff]
      %v273 = vld [vmem:[%s246 + $0xd0] sm:$0xff]
      %v274 = vld [vmem:[%s246 + $0xe0] sm:$0xff]
      %v275 = vld [vmem:[%s246 + $0xe8] sm:$0xff]
      %v276 = vld [vmem:[%s246 + $0xf0] sm:$0xff]
      %v277 = vld [vmem:[%s246 + $0x100] sm:$0xff]
      %v278 = vld [vmem:[%s246 + $0x108] sm:$0xff]
      %v279 = vld [vmem:[%s246 + $0x110] sm:$0xff]
      %v280 = vld [vmem:[%s246 + $0x120] sm:$0xff]
      %v281 = vld [vmem:[%s246 + $0x128] sm:$0xff]
      %v282 = vld [vmem:[%s246 + $0x130] sm:$0xff]
      %v283 = vld [vmem:[%s246 + $0x140] sm:$0xff]
      %v284 = vld [vmem:[%s246 + $0x148] sm:$0xff]
      %v285 = vld [vmem:[%s246 + $0x150] sm:$0xff]
      %v286 = vld [vmem:[%s246 + $0x160] sm:$0xff]
      %v287 = vld [vmem:[%s246 + $0x168] sm:$0xff]
      %v288 = vld [vmem:[%s246 + $0x170] sm:$0xff]
      %v289 = vld [vmem:[%s246 + $0x180] sm:$0xff]
      %v290 = vld [vmem:[%s246 + $0x188] sm:$0xff]
      %v291 = vld [vmem:[%s246 + $0x190] sm:$0xff]
      %v292 = vld [vmem:[%s246 + $0x1a0] sm:$0xff]
      %v293 = vld [vmem:[%s246 + $0x1a8] sm:$0xff]
      %v294 = vld [vmem:[%s246 + $0x1b0] sm:$0xff]
      %v295 = vld [vmem:[%s246 + $0x1c0] sm:$0xff]
      %v296 = vld [vmem:[%s246 + $0x1c8] sm:$0xff]
      %v297 = vld [vmem:[%s246 + $0x1d0] sm:$0xff]
      %v298 = vld [vmem:[%s246 + $0x1e0] sm:$0xff]
      %v299 = vld [vmem:[%s246 + $0x1e8] sm:$0xff]
      %v300 = vld [vmem:[%s246 + $0x1f0] sm:$0xff]
      %v301 = vld [vmem:[%s246 + $0x200] sm:$0xff]
      %v302 = vld [vmem:[%s246 + $0x208] sm:$0xff]
      %v303 = vld [vmem:[%s246 + $0x210] sm:$0xff]
      %v304 = vld [vmem:[%s246 + $0x220] sm:$0xff]
      %v305 = vld [vmem:[%s246 + $0x228] sm:$0xff]
      %v306 = vld [vmem:[%s246 + $0x230] sm:$0xff]
      %v307 = vpack.c.bf16 %v254, %v253
      %v308 = vpack.c.bf16 %v256, %v255
      %v309 = vpack.c.bf16 %v258, %v257
      %v310 = vpack.c.bf16 %v260, %v259
      %v311 = vpack.c.bf16 %v262, %v261
      %v312 = vpack.c.bf16 %v264, %v263
      %v313 = vpack.c.bf16 %v266, %v265
      %v314 = vpack.c.bf16 %v268, %v267
      %v315 = vpack.c.bf16 %v270, %v269
      %v316 = vpack.c.bf16 %v272, %v271
      %v317 = vpack.c.bf16 %v274, %v273
      %v318 = vpack.c.bf16 %v276, %v275
      %v319 = vpack.c.bf16 %v278, %v277
      %v320 = vpack.c.bf16 %v280, %v279
      %v321 = vpack.c.bf16 %v282, %v281
      %v322 = vpack.c.bf16 %v284, %v283
      %v323 = vpack.c.bf16 %v286, %v285
      %v324 = vpack.c.bf16 %v288, %v287
      %v325 = vpack.c.bf16 %v290, %v289
      %v326 = vpack.c.bf16 %v292, %v291
      %v327 = vpack.c.bf16 %v294, %v293
      %v328 = vpack.c.bf16 %v296, %v295
      %v329 = vpack.c.bf16 %v298, %v297
      %v330 = vpack.c.bf16 %v300, %v299
      %v331 = vpack.c.bf16 %v302, %v301
      %v332 = vpack.c.bf16 %v304, %v303
      %v333 = vpack.c.bf16 %v306, %v305
      %v334 = vld [vmem:[%s2] sm:$0xf]
      %v335 = vld [vmem:[%s246 + $0x1] sm:$0xff]
      %v336 = vld [vmem:[%s246 + $0x9] sm:$0xff]
      %v337 = vld [vmem:[%s246 + $0x11] sm:$0xff]
      %v338 = vld [vmem:[%s246 + $0x21] sm:$0xff]
      %v339 = vld [vmem:[%s246 + $0x29] sm:$0xff]
      %v340 = vld [vmem:[%s246 + $0x31] sm:$0xff]
      %v341 = vld [vmem:[%s246 + $0x41] sm:$0xff]
      %v342 = vld [vmem:[%s246 + $0x49] sm:$0xff]
      %v343 = vld [vmem:[%s246 + $0x51] sm:$0xff]
      %v344 = vld [vmem:[%s246 + $0x61] sm:$0xff]
      %v345 = vld [vmem:[%s246 + $0x69] sm:$0xff]
      %v346 = vld [vmem:[%s246 + $0x71] sm:$0xff]
      %v347 = vld [vmem:[%s246 + $0x81] sm:$0xff]
      %v348 = vld [vmem:[%s246 + $0x89] sm:$0xff]
      %v349 = vld [vmem:[%s246 + $0x91] sm:$0xff]
      %v350 = vld [vmem:[%s246 + $0xa1] sm:$0xff]
      %v351 = vld [vmem:[%s246 + $0xa9] sm:$0xff]
      %v352 = vld [vmem:[%s246 + $0xb1] sm:$0xff]
      %v353 = vld [vmem:[%s246 + $0xc1] sm:$0xff]
      %v354 = vld [vmem:[%s246 + $0xc9] sm:$0xff]
      %v355 = vld [vmem:[%s246 + $0xd1] sm:$0xff]
      %v356 = vld [vmem:[%s246 + $0xe1] sm:$0xff]
      %v357 = vld [vmem:[%s246 + $0xe9] sm:$0xff]
      %v358 = vld [vmem:[%s246 + $0xf1] sm:$0xff]
      %v359 = vld [vmem:[%s246 + $0x101] sm:$0xff]
      %v360 = vld [vmem:[%s246 + $0x109] sm:$0xff]
      %v361 = vld [vmem:[%s246 + $0x111] sm:$0xff]
      %v362 = vld [vmem:[%s246 + $0x121] sm:$0xff]
      %v363 = vld [vmem:[%s246 + $0x129] sm:$0xff]
      %v364 = vld [vmem:[%s246 + $0x131] sm:$0xff]
      %v365 = vld [vmem:[%s246 + $0x141] sm:$0xff]
      %v366 = vld [vmem:[%s246 + $0x149] sm:$0xff]
      %v367 = vld [vmem:[%s246 + $0x151] sm:$0xff]
      %v368 = vld [vmem:[%s246 + $0x161] sm:$0xff]
      %v369 = vld [vmem:[%s246 + $0x169] sm:$0xff]
      %v370 = vld [vmem:[%s246 + $0x171] sm:$0xff]
      %v371 = vld [vmem:[%s246 + $0x181] sm:$0xff]
      %v372 = vld [vmem:[%s246 + $0x189] sm:$0xff]
      %v373 = vld [vmem:[%s246 + $0x191] sm:$0xff]
      %v374 = vld [vmem:[%s246 + $0x1a1] sm:$0xff]
      %v375 = vld [vmem:[%s246 + $0x1a9] sm:$0xff]
      %v376 = vld [vmem:[%s246 + $0x1b1] sm:$0xff]
      %v377 = vld [vmem:[%s246 + $0x1c1] sm:$0xff]
      %v378 = vld [vmem:[%s246 + $0x1c9] sm:$0xff]
      %v379 = vld [vmem:[%s246 + $0x1d1] sm:$0xff]
      %v380 = vld [vmem:[%s246 + $0x1e1] sm:$0xff]
      %v381 = vld [vmem:[%s246 + $0x1e9] sm:$0xff]
      %v382 = vld [vmem:[%s246 + $0x1f1] sm:$0xff]
      %v383 = vld [vmem:[%s246 + $0x201] sm:$0xff]
      %v384 = vld [vmem:[%s246 + $0x209] sm:$0xff]
      %v385 = vld [vmem:[%s246 + $0x211] sm:$0xff]
      %v386 = vld [vmem:[%s246 + $0x221] sm:$0xff]
      %v387 = vld [vmem:[%s246 + $0x229] sm:$0xff]
      %v388 = vld [vmem:[%s246 + $0x231] sm:$0xff]
      %v389 = vpack.c.bf16 %v336, %v335
      %v390 = vpack.c.bf16 %v338, %v337
      %v391 = vpack.c.bf16 %v340, %v339
      %v392 = vpack.c.bf16 %v342, %v341
      %v393 = vpack.c.bf16 %v344, %v343
      %v394 = vpack.c.bf16 %v346, %v345
      %v395 = vpack.c.bf16 %v348, %v347
      %v396 = vpack.c.bf16 %v350, %v349
      %v397 = vpack.c.bf16 %v352, %v351
      %v398 = vpack.c.bf16 %v354, %v353
      %v399 = vpack.c.bf16 %v356, %v355
      %v400 = vpack.c.bf16 %v358, %v357
      %v401 = vpack.c.bf16 %v360, %v359
      %v402 = vpack.c.bf16 %v362, %v361
      %v403 = vpack.c.bf16 %v364, %v363
      %v404 = vpack.c.bf16 %v366, %v365
      %v405 = vpack.c.bf16 %v368, %v367
      %v406 = vpack.c.bf16 %v370, %v369
      %v407 = vpack.c.bf16 %v372, %v371
      %v408 = vpack.c.bf16 %v374, %v373
      %v409 = vpack.c.bf16 %v376, %v375
      %v410 = vpack.c.bf16 %v378, %v377
      %v411 = vpack.c.bf16 %v380, %v379
      %v412 = vpack.c.bf16 %v382, %v381
      %v413 = vpack.c.bf16 %v384, %v383
      %v414 = vpack.c.bf16 %v386, %v385
      %v415 = vpack.c.bf16 %v388, %v387
      %s416 = scalar_lea.vmem %s2, 4
      %v417 = vld [vmem:[%s416] sm:$0xf]
      %vm418 = vcmask 64512
      %v420 = vsel %vm418, %v389, 0
      %v423 = vsel %vm418, %v390, 0
      %v426 = vsel %vm418, %v391, 0
      %v429 = vsel %vm418, %v392, 0
      %v432 = vsel %vm418, %v393, 0
      %v435 = vsel %vm418, %v394, 0
      %v438 = vsel %vm418, %v395, 0
      %v441 = vsel %vm418, %v396, 0
      %v444 = vsel %vm418, %v397, 0
      %v447 = vsel %vm418, %v398, 0
      %v450 = vsel %vm418, %v399, 0
      %v453 = vsel %vm418, %v400, 0
      %v456 = vsel %vm418, %v401, 0
      %v459 = vsel %vm418, %v402, 0
      %v462 = vsel %vm418, %v403, 0
      %v465 = vsel %vm418, %v404, 0
      %v468 = vsel %vm418, %v405, 0
      %v471 = vsel %vm418, %v406, 0
      %v474 = vsel %vm418, %v407, 0
      %v477 = vsel %vm418, %v408, 0
      %v480 = vsel %vm418, %v409, 0
      %v483 = vsel %vm418, %v410, 0
      %v486 = vsel %vm418, %v411, 0
      %v489 = vsel %vm418, %v412, 0
      %v492 = vsel %vm418, %v413, 0
      %v495 = vsel %vm418, %v414, 0
      %v498 = vsel %vm418, %v415, 0
      %vm500 = vcmask 1043456
      %v502 = vsel %vm500, %v417, 0
      %504 = vmatprep.subr.bf16.mxu0 0
      %505 = vmatpush1.bf16.msra.mxu0 %v502
      %506 = vmatprep.subr.bf16.mxu0 0
      %507 = vmatpush1.bf16.msra.mxu0 0
      %508 = vmatprep.subr.bf16.mxu0 0
      %509 = vmatpush1.bf16.msra.mxu0 0
      %510 = vmatprep.subr.bf16.mxu0 0
      %511 = vmatpush1.bf16.msra.mxu0 0
      %512 = vmatprep.subr.bf16.mxu0 0
      %513 = vmatpush1.bf16.msra.mxu0 0
      %514 = vmatprep.subr.bf16.mxu0 0
      %515 = vmatpush1.bf16.msra.mxu0 0
      %516 = vmatprep.subr.bf16.mxu0 0
      %517 = vmatpush1.bf16.msra.mxu0 0
      %518 = vmatprep.subr.bf16.mxu0 0
      %519 = vmatpush1.bf16.msra.mxu0 0
      %520 = vmatprep.subr.bf16.mxu0 0
      %521 = vmatpush1.bf16.msra.mxu0 0
      %522 = vmatprep.subr.bf16.mxu0 0
      %523 = vmatpush1.bf16.msra.mxu0 0
      %524 = vmatprep.subr.bf16.mxu0 0
      %525 = vmatpush1.bf16.msra.mxu0 0
      %526 = vmatprep.subr.bf16.mxu0 0
      %527 = vmatpush1.bf16.msra.mxu0 0
      %528 = vmatprep.subr.bf16.mxu0 0
      %529 = vmatpush1.bf16.msra.mxu0 0
      %530 = vmatprep.subr.bf16.mxu0 0
      %531 = vmatpush1.bf16.msra.mxu0 0
      %532 = vmatprep.subr.bf16.mxu0 0
      %533 = vmatpush1.bf16.msra.mxu0 0
      %534 = vmatprep.subr.bf16.mxu0 0
      %535 = vmatpush1.bf16.msra.mxu0 0
      %536 = vmatprep.mubr.bf16.mxu0 0
      %537 = vmatmul.mubr.bf16.gmra.mrb[0].mxu0 %v420
      %v538 = vpop.f32.mrb[0].mxu0
      %v539 = vadd.f32 0.0, %v538
      %v540 = vpop.f32.mrb[0].mxu0
      %v541 = vpop.f32.mrb[0].mxu0
      %v542 = vadd.f32 0.0, %v541
      %v543 = vpop.f32.mrb[0].mxu0
      %544 = vmatprep.mubr.bf16.mxu0 0
      %545 = vmatmul.mubr.bf16.gmra.mrb[0].mxu0 %v423
      %v546 = vpop.f32.mrb[0].mxu0
      %v547 = vadd.f32 0.0, %v546
      %v548 = vpop.f32.mrb[0].mxu0
      %v549 = vpop.f32.mrb[0].mxu0
      %v550 = vadd.f32 0.0, %v549
      %v551 = vpop.f32.mrb[0].mxu0
      %552 = vmatprep.mubr.bf16.mxu0 0
      %553 = vmatmul.mubr.bf16.gmra.mrb[0].mxu0 %v426
      %v554 = vpop.f32.mrb[0].mxu0
      %v555 = vadd.f32 0.0, %v554
      %v556 = vpop.f32.mrb[0].mxu0
      %v557 = vpop.f32.mrb[0].mxu0
      %v558 = vadd.f32 0.0, %v557
      %v559 = vpop.f32.mrb[0].mxu0
      %560 = vmatprep.mubr.bf16.mxu0 0
      %561 = vmatmul.mubr.bf16.gmra.mrb[0].mxu0 %v429
      %v562 = vpop.f32.mrb[0].mxu0
      %v563 = vadd.f32 0.0, %v562
      %v564 = vpop.f32.mrb[0].mxu0
      %v565 = vpop.f32.mrb[0].mxu0
      %v566 = vadd.f32 0.0, %v565
      %v567 = vpop.f32.mrb[0].mxu0
      %568 = vmatprep.mubr.bf16.mxu0 0
      %569 = vmatmul.mubr.bf16.gmra.mrb[0].mxu0 %v432
      %v570 = vpop.f32.mrb[0].mxu0
      %v571 = vadd.f32 0.0, %v570
      %v572 = vpop.f32.mrb[0].mxu0
      %v573 = vpop.f32.mrb[0].mxu0
      %v574 = vadd.f32 0.0, %v573
      %v575 = vpop.f32.mrb[0].mxu0
      %576 = vmatprep.mubr.bf16.mxu0 0
      %577 = vmatmul.mubr.bf16.gmra.mrb[0].mxu0 %v435
      %v578 = vpop.f32.mrb[0].mxu0
      %v579 = vadd.f32 0.0, %v578
      %v580 = vpop.f32.mrb[0].mxu0
      %v581 = vpop.f32.mrb[0].mxu0
      %v582 = vadd.f32 0.0, %v581
      %v583 = vpop.f32.mrb[0].mxu0
      %584 = vmatprep.mubr.bf16.mxu0 0
      %585 = vmatmul.mubr.bf16.gmra.mrb[0].mxu0 %v438
      %v586 = vpop.f32.mrb[0].mxu0
      %v587 = vadd.f32 0.0, %v586
      %v588 = vpop.f32.mrb[0].mxu0
      %v589 = vpop.f32.mrb[0].mxu0
      %v590 = vadd.f32 0.0, %v589
      %v591 = vpop.f32.mrb[0].mxu0
      %592 = vmatprep.mubr.bf16.mxu0 0
      %593 = vmatmul.mubr.bf16.gmra.mrb[0].mxu0 %v441
      %v594 = vpop.f32.mrb[0].mxu0
      %v595 = vadd.f32 0.0, %v594
      %v596 = vpop.f32.mrb[0].mxu0
      %v597 = vpop.f32.mrb[0].mxu0
      %v598 = vadd.f32 0.0, %v597
      %v599 = vpop.f32.mrb[0].mxu0
      %600 = vmatprep.mubr.bf16.mxu0 0
      %601 = vmatmul.mubr.bf16.gmra.mrb[0].mxu0 %v444
      %v602 = vpop.f32.mrb[0].mxu0
      %v603 = vadd.f32 0.0, %v602
      %v604 = vpop.f32.mrb[0].mxu0
      %v605 = vpop.f32.mrb[0].mxu0
      %v606 = vadd.f32 0.0, %v605
      %v607 = vpop.f32.mrb[0].mxu0
      %608 = vmatprep.mubr.bf16.mxu0 0
      %609 = vmatmul.mubr.bf16.gmra.mrb[0].mxu0 %v447
      %v610 = vpop.f32.mrb[0].mxu0
      %v611 = vadd.f32 0.0, %v610
      %v612 = vpop.f32.mrb[0].mxu0
      %v613 = vpop.f32.mrb[0].mxu0
      %v614 = vadd.f32 0.0, %v613
      %v615 = vpop.f32.mrb[0].mxu0
      %616 = vmatprep.mubr.bf16.mxu0 0
      %617 = vmatmul.mubr.bf16.gmra.mrb[0].mxu0 %v450
      %v618 = vpop.f32.mrb[0].mxu0
      %v619 = vadd.f32 0.0, %v618
      %v620 = vpop.f32.mrb[0].mxu0
      %v621 = vpop.f32.mrb[0].mxu0
      %v622 = vadd.f32 0.0, %v621
      %v623 = vpop.f32.mrb[0].mxu0
      %624 = vmatprep.mubr.bf16.mxu0 0
      %625 = vmatmul.mubr.bf16.gmra.mrb[0].mxu0 %v453
      %v626 = vpop.f32.mrb[0].mxu0
      %v627 = vadd.f32 0.0, %v626
      %v628 = vpop.f32.mrb[0].mxu0
      %v629 = vpop.f32.mrb[0].mxu0
      %v630 = vadd.f32 0.0, %v629
      %v631 = vpop.f32.mrb[0].mxu0
      %632 = vmatprep.mubr.bf16.mxu0 0
      %633 = vmatmul.mubr.bf16.gmra.mrb[0].mxu0 %v456
      %v634 = vpop.f32.mrb[0].mxu0
      %v635 = vadd.f32 0.0, %v634
      %v636 = vpop.f32.mrb[0].mxu0
      %v637 = vpop.f32.mrb[0].mxu0
      %v638 = vadd.f32 0.0, %v637
      %v639 = vpop.f32.mrb[0].mxu0
      %640 = vmatprep.mubr.bf16.mxu0 0
      %641 = vmatmul.mubr.bf16.gmra.mrb[0].mxu0 %v459
      %v642 = vpop.f32.mrb[0].mxu0
      %v643 = vadd.f32 0.0, %v642
      %v644 = vpop.f32.mrb[0].mxu0
      %v645 = vpop.f32.mrb[0].mxu0
      %v646 = vadd.f32 0.0, %v645
      %v647 = vpop.f32.mrb[0].mxu0
      %648 = vmatprep.mubr.bf16.mxu0 0
      %649 = vmatmul.mubr.bf16.gmra.mrb[0].mxu0 %v462
      %v650 = vpop.f32.mrb[0].mxu0
      %v651 = vadd.f32 0.0, %v650
      %v652 = vpop.f32.mrb[0].mxu0
      %v653 = vpop.f32.mrb[0].mxu0
      %v654 = vadd.f32 0.0, %v653
      %v655 = vpop.f32.mrb[0].mxu0
      %656 = vmatprep.mubr.bf16.mxu0 0
      %657 = vmatmul.mubr.bf16.gmra.mrb[0].mxu0 %v465
      %v658 = vpop.f32.mrb[0].mxu0
      %v659 = vadd.f32 0.0, %v658
      %v660 = vpop.f32.mrb[0].mxu0
      %v661 = vpop.f32.mrb[0].mxu0
      %v662 = vadd.f32 0.0, %v661
      %v663 = vpop.f32.mrb[0].mxu0
      %664 = vmatprep.mubr.bf16.mxu0 0
      %665 = vmatmul.mubr.bf16.gmra.mrb[0].mxu0 %v468
      %v666 = vpop.f32.mrb[0].mxu0
      %v667 = vadd.f32 0.0, %v666
      %v668 = vpop.f32.mrb[0].mxu0
      %v669 = vpop.f32.mrb[0].mxu0
      %v670 = vadd.f32 0.0, %v669
      %v671 = vpop.f32.mrb[0].mxu0
      %672 = vmatprep.mubr.bf16.mxu0 0
      %673 = vmatmul.mubr.bf16.gmra.mrb[0].mxu0 %v471
      %v674 = vpop.f32.mrb[0].mxu0
      %v675 = vadd.f32 0.0, %v674
      %v676 = vpop.f32.mrb[0].mxu0
      %v677 = vpop.f32.mrb[0].mxu0
      %v678 = vadd.f32 0.0, %v677
      %v679 = vpop.f32.mrb[0].mxu0
      %680 = vmatprep.mubr.bf16.mxu0 0
      %681 = vmatmul.mubr.bf16.gmra.mrb[0].mxu0 %v474
      %v682 = vpop.f32.mrb[0].mxu0
      %v683 = vadd.f32 0.0, %v682
      %v684 = vpop.f32.mrb[0].mxu0
      %v685 = vpop.f32.mrb[0].mxu0
      %v686 = vadd.f32 0.0, %v685
      %v687 = vpop.f32.mrb[0].mxu0
      %688 = vmatprep.mubr.bf16.mxu0 0
      %689 = vmatmul.mubr.bf16.gmra.mrb[0].mxu0 %v477
      %v690 = vpop.f32.mrb[0].mxu0
      %v691 = vadd.f32 0.0, %v690
      %v692 = vpop.f32.mrb[0].mxu0
      %v693 = vpop.f32.mrb[0].mxu0
      %v694 = vadd.f32 0.0, %v693
      %v695 = vpop.f32.mrb[0].mxu0
      %696 = vmatprep.mubr.bf16.mxu0 0
      %697 = vmatmul.mubr.bf16.gmra.mrb[0].mxu0 %v480
      %v698 = vpop.f32.mrb[0].mxu0
      %v699 = vadd.f32 0.0, %v698
      %v700 = vpop.f32.mrb[0].mxu0
      %v701 = vpop.f32.mrb[0].mxu0
      %v702 = vadd.f32 0.0, %v701
      %v703 = vpop.f32.mrb[0].mxu0
      %704 = vmatprep.mubr.bf16.mxu0 0
      %705 = vmatmul.mubr.bf16.gmra.mrb[0].mxu0 %v483
      %v706 = vpop.f32.mrb[0].mxu0
      %v707 = vadd.f32 0.0, %v706
      %v708 = vpop.f32.mrb[0].mxu0
      %v709 = vpop.f32.mrb[0].mxu0
      %v710 = vadd.f32 0.0, %v709
      %v711 = vpop.f32.mrb[0].mxu0
      %712 = vmatprep.mubr.bf16.mxu0 0
      %713 = vmatmul.mubr.bf16.gmra.mrb[0].mxu0 %v486
      %v714 = vpop.f32.mrb[0].mxu0
      %v715 = vadd.f32 0.0, %v714
      %v716 = vpop.f32.mrb[0].mxu0
      %v717 = vpop.f32.mrb[0].mxu0
      %v718 = vadd.f32 0.0, %v717
      %v719 = vpop.f32.mrb[0].mxu0
      %720 = vmatprep.mubr.bf16.mxu0 0
      %721 = vmatmul.mubr.bf16.gmra.mrb[0].mxu0 %v489
      %v722 = vpop.f32.mrb[0].mxu0
      %v723 = vadd.f32 0.0, %v722
      %v724 = vpop.f32.mrb[0].mxu0
      %v725 = vpop.f32.mrb[0].mxu0
      %v726 = vadd.f32 0.0, %v725
      %v727 = vpop.f32.mrb[0].mxu0
      %728 = vmatprep.mubr.bf16.mxu0 0
      %729 = vmatmul.mubr.bf16.gmra.mrb[0].mxu0 %v492
      %v730 = vpop.f32.mrb[0].mxu0
      %v731 = vadd.f32 0.0, %v730
      %v732 = vpop.f32.mrb[0].mxu0
      %v733 = vpop.f32.mrb[0].mxu0
      %v734 = vadd.f32 0.0, %v733
      %v735 = vpop.f32.mrb[0].mxu0
      %736 = vmatprep.mubr.bf16.mxu0 0
      %737 = vmatmul.mubr.bf16.gmra.mrb[0].mxu0 %v495
      %v738 = vpop.f32.mrb[0].mxu0
      %v739 = vadd.f32 0.0, %v738
      %v740 = vpop.f32.mrb[0].mxu0
      %v741 = vpop.f32.mrb[0].mxu0
      %v742 = vadd.f32 0.0, %v741
      %v743 = vpop.f32.mrb[0].mxu0
      %744 = vmatprep.mubr.bf16.mxu0 0
      %745 = vmatmul.mubr.bf16.gmra.mrb[0].mxu0 %v498
      %v746 = vpop.f32.mrb[0].mxu0
      %v747 = vadd.f32 0.0, %v746
      %v748 = vpop.f32.mrb[0].mxu0
      %v749 = vpop.f32.mrb[0].mxu0
      %v750 = vadd.f32 0.0, %v749
      %v751 = vpop.f32.mrb[0].mxu0
      %752 = vdwg.mxu0
      %v754 = vsel %vm418, %v307, 0
      %v757 = vsel %vm418, %v308, 0
      %v760 = vsel %vm418, %v309, 0
      %v763 = vsel %vm418, %v310, 0
      %v766 = vsel %vm418, %v311, 0
      %v769 = vsel %vm418, %v312, 0
      %v772 = vsel %vm418, %v313, 0
      %v775 = vsel %vm418, %v314, 0
      %v778 = vsel %vm418, %v315, 0
      %v781 = vsel %vm418, %v316, 0
      %v784 = vsel %vm418, %v317, 0
      %v787 = vsel %vm418, %v318, 0
      %v790 = vsel %vm418, %v319, 0
      %v793 = vsel %vm418, %v320, 0
      %v796 = vsel %vm418, %v321, 0
      %v799 = vsel %vm418, %v322, 0
      %v802 = vsel %vm418, %v323, 0
      %v805 = vsel %vm418, %v324, 0
      %v808 = vsel %vm418, %v325, 0
      %v811 = vsel %vm418, %v326, 0
      %v814 = vsel %vm418, %v327, 0
      %v817 = vsel %vm418, %v328, 0
      %v820 = vsel %vm418, %v329, 0
      %v823 = vsel %vm418, %v330, 0
      %v826 = vsel %vm418, %v331, 0
      %v829 = vsel %vm418, %v332, 0
      %v832 = vsel %vm418, %v333, 0
      %v835 = vsel %vm500, %v334, 0
      %837 = vmatprep.subr.bf16.mxu0 0
      %838 = vmatpush1.bf16.msra.mxu0 %v835
      %839 = vmatprep.subr.bf16.mxu0 0
      %840 = vmatpush1.bf16.msra.mxu0 0
      %841 = vmatprep.subr.bf16.mxu0 0
      %842 = vmatpush1.bf16.msra.mxu0 0
      %843 = vmatprep.subr.bf16.mxu0 0
      %844 = vmatpush1.bf16.msra.mxu0 0
      %845 = vmatprep.subr.bf16.mxu0 0
      %846 = vmatpush1.bf16.msra.mxu0 0
      %847 = vmatprep.subr.bf16.mxu0 0
      %848 = vmatpush1.bf16.msra.mxu0 0
      %849 = vmatprep.subr.bf16.mxu0 0
      %850 = vmatpush1.bf16.msra.mxu0 0
      %851 = vmatprep.subr.bf16.mxu0 0
      %852 = vmatpush1.bf16.msra.mxu0 0
      %853 = vmatprep.subr.bf16.mxu0 0
      %854 = vmatpush1.bf16.msra.mxu0 0
      %855 = vmatprep.subr.bf16.mxu0 0
      %856 = vmatpush1.bf16.msra.mxu0 0
      %857 = vmatprep.subr.bf16.mxu0 0
      %858 = vmatpush1.bf16.msra.mxu0 0
      %859 = vmatprep.subr.bf16.mxu0 0
      %860 = vmatpush1.bf16.msra.mxu0 0
      %861 = vmatprep.subr.bf16.mxu0 0
      %862 = vmatpush1.bf16.msra.mxu0 0
      %863 = vmatprep.subr.bf16.mxu0 0
      %864 = vmatpush1.bf16.msra.mxu0 0
      %865 = vmatprep.subr.bf16.mxu0 0
      %866 = vmatpush1.bf16.msra.mxu0 0
      %867 = vmatprep.subr.bf16.mxu0 0
      %868 = vmatpush1.bf16.msra.mxu0 0
      %869 = vmatprep.mubr.bf16.mxu0 0
      %870 = vmatmul.mubr.bf16.gmra.mrb[0].mxu0 %v754
      %v871 = vpop.f32.mrb[0].mxu0
      %v872 = vadd.f32 %v539, %v871
      %v873 = vpop.f32.mrb[0].mxu0
      %v874 = vpop.f32.mrb[0].mxu0
      %v875 = vadd.f32 %v542, %v874
      %v876 = vpop.f32.mrb[0].mxu0
      %877 = vmatprep.mubr.bf16.mxu0 0
      %878 = vmatmul.mubr.bf16.gmra.mrb[0].mxu0 %v757
      %v879 = vpop.f32.mrb[0].mxu0
      %v880 = vadd.f32 %v547, %v879
      %v881 = vpop.f32.mrb[0].mxu0
      %v882 = vpop.f32.mrb[0].mxu0
      %v883 = vadd.f32 %v550, %v882
      %v884 = vpop.f32.mrb[0].mxu0
      %885 = vmatprep.mubr.bf16.mxu0 0
      %886 = vmatmul.mubr.bf16.gmra.mrb[0].mxu0 %v760
      %v887 = vpop.f32.mrb[0].mxu0
      %v888 = vadd.f32 %v555, %v887
      %v889 = vpop.f32.mrb[0].mxu0
      %v890 = vpop.f32.mrb[0].mxu0
      %v891 = vadd.f32 %v558, %v890
      %v892 = vpop.f32.mrb[0].mxu0
      %893 = vmatprep.mubr.bf16.mxu0 0
      %894 = vmatmul.mubr.bf16.gmra.mrb[0].mxu0 %v763
      %v895 = vpop.f32.mrb[0].mxu0
      %v896 = vadd.f32 %v563, %v895
      %v897 = vpop.f32.mrb[0].mxu0
      %v898 = vpop.f32.mrb[0].mxu0
      %v899 = vadd.f32 %v566, %v898
      %v900 = vpop.f32.mrb[0].mxu0
      %901 = vmatprep.mubr.bf16.mxu0 0
      %902 = vmatmul.mubr.bf16.gmra.mrb[0].mxu0 %v766
      %v903 = vpop.f32.mrb[0].mxu0
      %v904 = vadd.f32 %v571, %v903
      %v905 = vpop.f32.mrb[0].mxu0
      %v906 = vpop.f32.mrb[0].mxu0
      %v907 = vadd.f32 %v574, %v906
      %v908 = vpop.f32.mrb[0].mxu0
      %909 = vmatprep.mubr.bf16.mxu0 0
      %910 = vmatmul.mubr.bf16.gmra.mrb[0].mxu0 %v769
      %v911 = vpop.f32.mrb[0].mxu0
      %v912 = vadd.f32 %v579, %v911
      %v913 = vpop.f32.mrb[0].mxu0
      %v914 = vpop.f32.mrb[0].mxu0
      %v915 = vadd.f32 %v582, %v914
      %v916 = vpop.f32.mrb[0].mxu0
      %917 = vmatprep.mubr.bf16.mxu0 0
      %918 = vmatmul.mubr.bf16.gmra.mrb[0].mxu0 %v772
      %v919 = vpop.f32.mrb[0].mxu0
      %v920 = vadd.f32 %v587, %v919
      %v921 = vpop.f32.mrb[0].mxu0
      %v922 = vpop.f32.mrb[0].mxu0
      %v923 = vadd.f32 %v590, %v922
      %v924 = vpop.f32.mrb[0].mxu0
      %925 = vmatprep.mubr.bf16.mxu0 0
      %926 = vmatmul.mubr.bf16.gmra.mrb[0].mxu0 %v775
      %v927 = vpop.f32.mrb[0].mxu0
      %v928 = vadd.f32 %v595, %v927
      %v929 = vpop.f32.mrb[0].mxu0
      %v930 = vpop.f32.mrb[0].mxu0
      %v931 = vadd.f32 %v598, %v930
      %v932 = vpop.f32.mrb[0].mxu0
      %933 = vmatprep.mubr.bf16.mxu0 0
      %934 = vmatmul.mubr.bf16.gmra.mrb[0].mxu0 %v778
      %v935 = vpop.f32.mrb[0].mxu0
      %v936 = vadd.f32 %v603, %v935
      %v937 = vpop.f32.mrb[0].mxu0
      %v938 = vpop.f32.mrb[0].mxu0
      %v939 = vadd.f32 %v606, %v938
      %v940 = vpop.f32.mrb[0].mxu0
      %941 = vmatprep.mubr.bf16.mxu0 0
      %942 = vmatmul.mubr.bf16.gmra.mrb[0].mxu0 %v781
      %v943 = vpop.f32.mrb[0].mxu0
      %v944 = vadd.f32 %v611, %v943
      %v945 = vpop.f32.mrb[0].mxu0
      %v946 = vpop.f32.mrb[0].mxu0
      %v947 = vadd.f32 %v614, %v946
      %v948 = vpop.f32.mrb[0].mxu0
      %949 = vmatprep.mubr.bf16.mxu0 0
      %950 = vmatmul.mubr.bf16.gmra.mrb[0].mxu0 %v784
      %v951 = vpop.f32.mrb[0].mxu0
      %v952 = vadd.f32 %v619, %v951
      %v953 = vpop.f32.mrb[0].mxu0
      %v954 = vpop.f32.mrb[0].mxu0
      %v955 = vadd.f32 %v622, %v954
      %v956 = vpop.f32.mrb[0].mxu0
      %957 = vmatprep.mubr.bf16.mxu0 0
      %958 = vmatmul.mubr.bf16.gmra.mrb[0].mxu0 %v787
      %v959 = vpop.f32.mrb[0].mxu0
      %v960 = vadd.f32 %v627, %v959
      %v961 = vpop.f32.mrb[0].mxu0
      %v962 = vpop.f32.mrb[0].mxu0
      %v963 = vadd.f32 %v630, %v962
      %v964 = vpop.f32.mrb[0].mxu0
      %965 = vmatprep.mubr.bf16.mxu0 0
      %966 = vmatmul.mubr.bf16.gmra.mrb[0].mxu0 %v790
      %v967 = vpop.f32.mrb[0].mxu0
      %v968 = vadd.f32 %v635, %v967
      %v969 = vpop.f32.mrb[0].mxu0
      %v970 = vpop.f32.mrb[0].mxu0
      %v971 = vadd.f32 %v638, %v970
      %v972 = vpop.f32.mrb[0].mxu0
      %973 = vmatprep.mubr.bf16.mxu0 0
      %974 = vmatmul.mubr.bf16.gmra.mrb[0].mxu0 %v793
      %v975 = vpop.f32.mrb[0].mxu0
      %v976 = vadd.f32 %v643, %v975
      %v977 = vpop.f32.mrb[0].mxu0
      %v978 = vpop.f32.mrb[0].mxu0
      %v979 = vadd.f32 %v646, %v978
      %v980 = vpop.f32.mrb[0].mxu0
      %981 = vmatprep.mubr.bf16.mxu0 0
      %982 = vmatmul.mubr.bf16.gmra.mrb[0].mxu0 %v796
      %v983 = vpop.f32.mrb[0].mxu0
      %v984 = vadd.f32 %v651, %v983
      %v985 = vpop.f32.mrb[0].mxu0
      %v986 = vpop.f32.mrb[0].mxu0
      %v987 = vadd.f32 %v654, %v986
      %v988 = vpop.f32.mrb[0].mxu0
      %989 = vmatprep.mubr.bf16.mxu0 0
      %990 = vmatmul.mubr.bf16.gmra.mrb[0].mxu0 %v799
      %v991 = vpop.f32.mrb[0].mxu0
      %v992 = vadd.f32 %v659, %v991
      %v993 = vpop.f32.mrb[0].mxu0
      %v994 = vpop.f32.mrb[0].mxu0
      %v995 = vadd.f32 %v662, %v994
      %v996 = vpop.f32.mrb[0].mxu0
      %997 = vmatprep.mubr.bf16.mxu0 0
      %998 = vmatmul.mubr.bf16.gmra.mrb[0].mxu0 %v802
      %v999 = vpop.f32.mrb[0].mxu0
      %v1000 = vadd.f32 %v667, %v999
      %v1001 = vpop.f32.mrb[0].mxu0
      %v1002 = vpop.f32.mrb[0].mxu0
      %v1003 = vadd.f32 %v670, %v1002
      %v1004 = vpop.f32.mrb[0].mxu0
      %1005 = vmatprep.mubr.bf16.mxu0 0
      %1006 = vmatmul.mubr.bf16.gmra.mrb[0].mxu0 %v805
      %v1007 = vpop.f32.mrb[0].mxu0
      %v1008 = vadd.f32 %v675, %v1007
      %v1009 = vpop.f32.mrb[0].mxu0
      %v1010 = vpop.f32.mrb[0].mxu0
      %v1011 = vadd.f32 %v678, %v1010
      %v1012 = vpop.f32.mrb[0].mxu0
      %1013 = vmatprep.mubr.bf16.mxu0 0
      %1014 = vmatmul.mubr.bf16.gmra.mrb[0].mxu0 %v808
      %v1015 = vpop.f32.mrb[0].mxu0
      %v1016 = vadd.f32 %v683, %v1015
      %v1017 = vpop.f32.mrb[0].mxu0
      %v1018 = vpop.f32.mrb[0].mxu0
      %v1019 = vadd.f32 %v686, %v1018
      %v1020 = vpop.f32.mrb[0].mxu0
      %1021 = vmatprep.mubr.bf16.mxu0 0
      %1022 = vmatmul.mubr.bf16.gmra.mrb[0].mxu0 %v811
      %v1023 = vpop.f32.mrb[0].mxu0
      %v1024 = vadd.f32 %v691, %v1023
      %v1025 = vpop.f32.mrb[0].mxu0
      %v1026 = vpop.f32.mrb[0].mxu0
      %v1027 = vadd.f32 %v694, %v1026
      %v1028 = vpop.f32.mrb[0].mxu0
      %1029 = vmatprep.mubr.bf16.mxu0 0
      %1030 = vmatmul.mubr.bf16.gmra.mrb[0].mxu0 %v814
      %v1031 = vpop.f32.mrb[0].mxu0
      %v1032 = vadd.f32 %v699, %v1031
      %v1033 = vpop.f32.mrb[0].mxu0
      %v1034 = vpop.f32.mrb[0].mxu0
      %v1035 = vadd.f32 %v702, %v1034
      %v1036 = vpop.f32.mrb[0].mxu0
      %1037 = vmatprep.mubr.bf16.mxu0 0
      %1038 = vmatmul.mubr.bf16.gmra.mrb[0].mxu0 %v817
      %v1039 = vpop.f32.mrb[0].mxu0
      %v1040 = vadd.f32 %v707, %v1039
      %v1041 = vpop.f32.mrb[0].mxu0
      %v1042 = vpop.f32.mrb[0].mxu0
      %v1043 = vadd.f32 %v710, %v1042
      %v1044 = vpop.f32.mrb[0].mxu0
      %1045 = vmatprep.mubr.bf16.mxu0 0
      %1046 = vmatmul.mubr.bf16.gmra.mrb[0].mxu0 %v820
      %v1047 = vpop.f32.mrb[0].mxu0
      %v1048 = vadd.f32 %v715, %v1047
      %v1049 = vpop.f32.mrb[0].mxu0
      %v1050 = vpop.f32.mrb[0].mxu0
      %v1051 = vadd.f32 %v718, %v1050
      %v1052 = vpop.f32.mrb[0].mxu0
      %1053 = vmatprep.mubr.bf16.mxu0 0
      %1054 = vmatmul.mubr.bf16.gmra.mrb[0].mxu0 %v823
      %v1055 = vpop.f32.mrb[0].mxu0
      %v1056 = vadd.f32 %v723, %v1055
      %v1057 = vpop.f32.mrb[0].mxu0
      %v1058 = vpop.f32.mrb[0].mxu0
      %v1059 = vadd.f32 %v726, %v1058
      %v1060 = vpop.f32.mrb[0].mxu0
      %1061 = vmatprep.mubr.bf16.mxu0 0
      %1062 = vmatmul.mubr.bf16.gmra.mrb[0].mxu0 %v826
      %v1063 = vpop.f32.mrb[0].mxu0
      %v1064 = vadd.f32 %v731, %v1063
      %v1065 = vpop.f32.mrb[0].mxu0
      %v1066 = vpop.f32.mrb[0].mxu0
      %v1067 = vadd.f32 %v734, %v1066
      %v1068 = vpop.f32.mrb[0].mxu0
      %1069 = vmatprep.mubr.bf16.mxu0 0
      %1070 = vmatmul.mubr.bf16.gmra.mrb[0].mxu0 %v829
      %v1071 = vpop.f32.mrb[0].mxu0
      %v1072 = vadd.f32 %v739, %v1071
      %v1073 = vpop.f32.mrb[0].mxu0
      %v1074 = vpop.f32.mrb[0].mxu0
      %v1075 = vadd.f32 %v742, %v1074
      %v1076 = vpop.f32.mrb[0].mxu0
      %1077 = vmatprep.mubr.bf16.mxu0 0
      %1078 = vmatmul.mubr.bf16.gmra.mrb[0].mxu0 %v832
      %v1079 = vpop.f32.mrb[0].mxu0
      %v1080 = vadd.f32 %v747, %v1079
      %v1081 = vpop.f32.mrb[0].mxu0
      %v1082 = vpop.f32.mrb[0].mxu0
      %v1083 = vadd.f32 %v750, %v1082
      %v1084 = vpop.f32.mrb[0].mxu0
      %1085 = vdwg.mxu0
      %v1086 = vld [vmem:[%s246 + $0x2] sm:$0xff]
      %v1087 = vld [vmem:[%s246 + $0xa] sm:$0xff]
      %v1088 = vld [vmem:[%s246 + $0x12] sm:$0xff]
      %v1089 = vld [vmem:[%s246 + $0x22] sm:$0xff]
      %v1090 = vld [vmem:[%s246 + $0x2a] sm:$0xff]
      %v1091 = vld [vmem:[%s246 + $0x32] sm:$0xff]
      %v1092 = vld [vmem:[%s246 + $0x42] sm:$0xff]
      %v1093 = vld [vmem:[%s246 + $0x4a] sm:$0xff]
      %v1094 = vld [vmem:[%s246 + $0x52] sm:$0xff]
      %v1095 = vld [vmem:[%s246 + $0x62] sm:$0xff]
      %v1096 = vld [vmem:[%s246 + $0x6a] sm:$0xff]
      %v1097 = vld [vmem:[%s246 + $0x72] sm:$0xff]
      %v1098 = vld [vmem:[%s246 + $0x82] sm:$0xff]
      %v1099 = vld [vmem:[%s246 + $0x8a] sm:$0xff]
      %v1100 = vld [vmem:[%s246 + $0x92] sm:$0xff]
      %v1101 = vld [vmem:[%s246 + $0xa2] sm:$0xff]
      %v1102 = vld [vmem:[%s246 + $0xaa] sm:$0xff]
      %v1103 = vld [vmem:[%s246 + $0xb2] sm:$0xff]
      %v1104 = vld [vmem:[%s246 + $0xc2] sm:$0xff]
      %v1105 = vld [vmem:[%s246 + $0xca] sm:$0xff]
      %v1106 = vld [vmem:[%s246 + $0xd2] sm:$0xff]
      %v1107 = vld [vmem:[%s246 + $0xe2] sm:$0xff]
      %v1108 = vld [vmem:[%s246 + $0xea] sm:$0xff]
      %v1109 = vld [vmem:[%s246 + $0xf2] sm:$0xff]
      %v1110 = vld [vmem:[%s246 + $0x102] sm:$0xff]
      %v1111 = vld [vmem:[%s246 + $0x10a] sm:$0xff]
      %v1112 = vld [vmem:[%s246 + $0x112] sm:$0xff]
      %v1113 = vld [vmem:[%s246 + $0x122] sm:$0xff]
      %v1114 = vld [vmem:[%s246 + $0x12a] sm:$0xff]
      %v1115 = vld [vmem:[%s246 + $0x132] sm:$0xff]
      %v1116 = vld [vmem:[%s246 + $0x142] sm:$0xff]
      %v1117 = vld [vmem:[%s246 + $0x14a] sm:$0xff]
      %v1118 = vld [vmem:[%s246 + $0x152] sm:$0xff]
      %v1119 = vld [vmem:[%s246 + $0x162] sm:$0xff]
      %v1120 = vld [vmem:[%s246 + $0x16a] sm:$0xff]
      %v1121 = vld [vmem:[%s246 + $0x172] sm:$0xff]
      %v1122 = vld [vmem:[%s246 + $0x182] sm:$0xff]
      %v1123 = vld [vmem:[%s246 + $0x18a] sm:$0xff]
      %v1124 = vld [vmem:[%s246 + $0x192] sm:$0xff]
      %v1125 = vld [vmem:[%s246 + $0x1a2] sm:$0xff]
      %v1126 = vld [vmem:[%s246 + $0x1aa] sm:$0xff]
      %v1127 = vld [vmem:[%s246 + $0x1b2] sm:$0xff]
      %v1128 = vld [vmem:[%s246 + $0x1c2] sm:$0xff]
      %v1129 = vld [vmem:[%s246 + $0x1ca] sm:$0xff]
      %v1130 = vld [vmem:[%s246 + $0x1d2] sm:$0xff]
      %v1131 = vld [vmem:[%s246 + $0x1e2] sm:$0xff]
      %v1132 = vld [vmem:[%s246 + $0x1ea] sm:$0xff]
      %v1133 = vld [vmem:[%s246 + $0x1f2] sm:$0xff]
      %v1134 = vld [vmem:[%s246 + $0x202] sm:$0xff]
      %v1135 = vld [vmem:[%s246 + $0x20a] sm:$0xff]
      %v1136 = vld [vmem:[%s246 + $0x212] sm:$0xff]
      %v1137 = vld [vmem:[%s246 + $0x222] sm:$0xff]
      %v1138 = vld [vmem:[%s246 + $0x22a] sm:$0xff]
      %v1139 = vld [vmem:[%s246 + $0x232] sm:$0xff]
      %v1140 = vpack.c.bf16 %v1087, %v1086
      %v1141 = vpack.c.bf16 %v1089, %v1088
      %v1142 = vpack.c.bf16 %v1091, %v1090
      %v1143 = vpack.c.bf16 %v1093, %v1092
      %v1144 = vpack.c.bf16 %v1095, %v1094
      %v1145 = vpack.c.bf16 %v1097, %v1096
      %v1146 = vpack.c.bf16 %v1099, %v1098
      %v1147 = vpack.c.bf16 %v1101, %v1100
      %v1148 = vpack.c.bf16 %v1103, %v1102
      %v1149 = vpack.c.bf16 %v1105, %v1104
      %v1150 = vpack.c.bf16 %v1107, %v1106
      %v1151 = vpack.c.bf16 %v1109, %v1108
      %v1152 = vpack.c.bf16 %v1111, %v1110
      %v1153 = vpack.c.bf16 %v1113, %v1112
      %v1154 = vpack.c.bf16 %v1115, %v1114
      %v1155 = vpack.c.bf16 %v1117, %v1116
      %v1156 = vpack.c.bf16 %v1119, %v1118
      %v1157 = vpack.c.bf16 %v1121, %v1120
      %v1158 = vpack.c.bf16 %v1123, %v1122
      %v1159 = vpack.c.bf16 %v1125, %v1124
      %v1160 = vpack.c.bf16 %v1127, %v1126
      %v1161 = vpack.c.bf16 %v1129, %v1128
      %v1162 = vpack.c.bf16 %v1131, %v1130
      %v1163 = vpack.c.bf16 %v1133, %v1132
      %v1164 = vpack.c.bf16 %v1135, %v1134
      %v1165 = vpack.c.bf16 %v1137, %v1136
      %v1166 = vpack.c.bf16 %v1139, %v1138
      %s1167 = scalar_lea.vmem %s2, 8
      %v1168 = vld [vmem:[%s1167] sm:$0xf]
      %v1170 = vsel %vm418, %v1140, 0
      %v1173 = vsel %vm418, %v1141, 0
      %v1176 = vsel %vm418, %v1142, 0
      %v1179 = vsel %vm418, %v1143, 0
      %v1182 = vsel %vm418, %v1144, 0
      %v1185 = vsel %vm418, %v1145, 0
      %v1188 = vsel %vm418, %v1146, 0
      %v1191 = vsel %vm418, %v1147, 0
      %v1194 = vsel %vm418, %v1148, 0
      %v1197 = vsel %vm418, %v1149, 0
      %v1200 = vsel %vm418, %v1150, 0
      %v1203 = vsel %vm418, %v1151, 0
      %v1206 = vsel %vm418, %v1152, 0
      %v1209 = vsel %vm418, %v1153, 0
      %v1212 = vsel %vm418, %v1154, 0
      %v1215 = vsel %vm418, %v1155, 0
      %v1218 = vsel %vm418, %v1156, 0
      %v1221 = vsel %vm418, %v1157, 0
      %v1224 = vsel %vm418, %v1158, 0
      %v1227 = vsel %vm418, %v1159, 0
      %v1230 = vsel %vm418, %v1160, 0
      %v1233 = vsel %vm418, %v1161, 0
      %v1236 = vsel %vm418, %v1162, 0
      %v1239 = vsel %vm418, %v1163, 0
      %v1242 = vsel %vm418, %v1164, 0
      %v1245 = vsel %vm418, %v1165, 0
      %v1248 = vsel %vm418, %v1166, 0
      %v1251 = vsel %vm500, %v1168, 0
      %1253 = vmatprep.subr.bf16.mxu0 0
      %1254 = vmatpush1.bf16.msra.mxu0 %v1251
      %1255 = vmatprep.subr.bf16.mxu0 0
      %1256 = vmatpush1.bf16.msra.mxu0 0
      %1257 = vmatprep.subr.bf16.mxu0 0
      %1258 = vmatpush1.bf16.msra.mxu0 0
      %1259 = vmatprep.subr.bf16.mxu0 0
      %1260 = vmatpush1.bf16.msra.mxu0 0
      %1261 = vmatprep.subr.bf16.mxu0 0
      %1262 = vmatpush1.bf16.msra.mxu0 0
      %1263 = vmatprep.subr.bf16.mxu0 0
      %1264 = vmatpush1.bf16.msra.mxu0 0
      %1265 = vmatprep.subr.bf16.mxu0 0
      %1266 = vmatpush1.bf16.msra.mxu0 0
      %1267 = vmatprep.subr.bf16.mxu0 0
      %1268 = vmatpush1.bf16.msra.mxu0 0
      %1269 = vmatprep.subr.bf16.mxu0 0
      %1270 = vmatpush1.bf16.msra.mxu0 0
      %1271 = vmatprep.subr.bf16.mxu0 0
      %1272 = vmatpush1.bf16.msra.mxu0 0
      %1273 = vmatprep.subr.bf16.mxu0 0
      %1274 = vmatpush1.bf16.msra.mxu0 0
      %1275 = vmatprep.subr.bf16.mxu0 0
      %1276 = vmatpush1.bf16.msra.mxu0 0
      %1277 = vmatprep.subr.bf16.mxu0 0
      %1278 = vmatpush1.bf16.msra.mxu0 0
      %1279 = vmatprep.subr.bf16.mxu0 0
      %1280 = vmatpush1.bf16.msra.mxu0 0
      %1281 = vmatprep.subr.bf16.mxu0 0
      %1282 = vmatpush1.bf16.msra.mxu0 0
      %1283 = vmatprep.subr.bf16.mxu0 0
      %1284 = vmatpush1.bf16.msra.mxu0 0
      %1285 = vmatprep.mubr.bf16.mxu0 0
      %1286 = vmatmul.mubr.bf16.gmra.mrb[0].mxu0 %v1170
      %v1287 = vpop.f32.mrb[0].mxu0
      %v1288 = vadd.f32 0.0, %v1287
      %v1289 = vpop.f32.mrb[0].mxu0
      %v1290 = vpop.f32.mrb[0].mxu0
      %v1291 = vadd.f32 0.0, %v1290
      %v1292 = vpop.f32.mrb[0].mxu0
      %1293 = vmatprep.mubr.bf16.mxu0 0
      %1294 = vmatmul.mubr.bf16.gmra.mrb[0].mxu0 %v1173
      %v1295 = vpop.f32.mrb[0].mxu0
      %v1296 = vadd.f32 0.0, %v1295
      %v1297 = vpop.f32.mrb[0].mxu0
      %v1298 = vpop.f32.mrb[0].mxu0
      %v1299 = vadd.f32 0.0, %v1298
      %v1300 = vpop.f32.mrb[0].mxu0
      %1301 = vmatprep.mubr.bf16.mxu0 0
      %1302 = vmatmul.mubr.bf16.gmra.mrb[0].mxu0 %v1176
      %v1303 = vpop.f32.mrb[0].mxu0
      %v1304 = vadd.f32 0.0, %v1303
      %v1305 = vpop.f32.mrb[0].mxu0
      %v1306 = vpop.f32.mrb[0].mxu0
      %v1307 = vadd.f32 0.0, %v1306
      %v1308 = vpop.f32.mrb[0].mxu0
      %1309 = vmatprep.mubr.bf16.mxu0 0
      %1310 = vmatmul.mubr.bf16.gmra.mrb[0].mxu0 %v1179
      %v1311 = vpop.f32.mrb[0].mxu0
      %v1312 = vadd.f32 0.0, %v1311
      %v1313 = vpop.f32.mrb[0].mxu0
      %v1314 = vpop.f32.mrb[0].mxu0
      %v1315 = vadd.f32 0.0, %v1314
      %v1316 = vpop.f32.mrb[0].mxu0
      %1317 = vmatprep.mubr.bf16.mxu0 0
      %1318 = vmatmul.mubr.bf16.gmra.mrb[0].mxu0 %v1182
      %v1319 = vpop.f32.mrb[0].mxu0
      %v1320 = vadd.f32 0.0, %v1319
      %v1321 = vpop.f32.mrb[0].mxu0
      %v1322 = vpop.f32.mrb[0].mxu0
      %v1323 = vadd.f32 0.0, %v1322
      %v1324 = vpop.f32.mrb[0].mxu0
      %1325 = vmatprep.mubr.bf16.mxu0 0
      %1326 = vmatmul.mubr.bf16.gmra.mrb[0].mxu0 %v1185
      %v1327 = vpop.f32.mrb[0].mxu0
      %v1328 = vadd.f32 0.0, %v1327
      %v1329 = vpop.f32.mrb[0].mxu0
      %v1330 = vpop.f32.mrb[0].mxu0
      %v1331 = vadd.f32 0.0, %v1330
      %v1332 = vpop.f32.mrb[0].mxu0
      %1333 = vmatprep.mubr.bf16.mxu0 0
      %1334 = vmatmul.mubr.bf16.gmra.mrb[0].mxu0 %v1188
      %v1335 = vpop.f32.mrb[0].mxu0
      %v1336 = vadd.f32 0.0, %v1335
      %v1337 = vpop.f32.mrb[0].mxu0
      %v1338 = vpop.f32.mrb[0].mxu0
      %v1339 = vadd.f32 0.0, %v1338
      %v1340 = vpop.f32.mrb[0].mxu0
      %1341 = vmatprep.mubr.bf16.mxu0 0
      %1342 = vmatmul.mubr.bf16.gmra.mrb[0].mxu0 %v1191
      %v1343 = vpop.f32.mrb[0].mxu0
      %v1344 = vadd.f32 0.0, %v1343
      %v1345 = vpop.f32.mrb[0].mxu0
      %v1346 = vpop.f32.mrb[0].mxu0
      %v1347 = vadd.f32 0.0, %v1346
      %v1348 = vpop.f32.mrb[0].mxu0
      %1349 = vmatprep.mubr.bf16.mxu0 0
      %1350 = vmatmul.mubr.bf16.gmra.mrb[0].mxu0 %v1194
      %v1351 = vpop.f32.mrb[0].mxu0
      %v1352 = vadd.f32 0.0, %v1351
      %v1353 = vpop.f32.mrb[0].mxu0
      %v1354 = vpop.f32.mrb[0].mxu0
      %v1355 = vadd.f32 0.0, %v1354
      %v1356 = vpop.f32.mrb[0].mxu0
      %1357 = vmatprep.mubr.bf16.mxu0 0
      %1358 = vmatmul.mubr.bf16.gmra.mrb[0].mxu0 %v1197
      %v1359 = vpop.f32.mrb[0].mxu0
      %v1360 = vadd.f32 0.0, %v1359
      %v1361 = vpop.f32.mrb[0].mxu0
      %v1362 = vpop.f32.mrb[0].mxu0
      %v1363 = vadd.f32 0.0, %v1362
      %v1364 = vpop.f32.mrb[0].mxu0
      %1365 = vmatprep.mubr.bf16.mxu0 0
      %1366 = vmatmul.mubr.bf16.gmra.mrb[0].mxu0 %v1200
      %v1367 = vpop.f32.mrb[0].mxu0
      %v1368 = vadd.f32 0.0, %v1367
      %v1369 = vpop.f32.mrb[0].mxu0
      %v1370 = vpop.f32.mrb[0].mxu0
      %v1371 = vadd.f32 0.0, %v1370
      %v1372 = vpop.f32.mrb[0].mxu0
      %1373 = vmatprep.mubr.bf16.mxu0 0
      %1374 = vmatmul.mubr.bf16.gmra.mrb[0].mxu0 %v1203
      %v1375 = vpop.f32.mrb[0].mxu0
      %v1376 = vadd.f32 0.0, %v1375
      %v1377 = vpop.f32.mrb[0].mxu0
      %v1378 = vpop.f32.mrb[0].mxu0
      %v1379 = vadd.f32 0.0, %v1378
      %v1380 = vpop.f32.mrb[0].mxu0
      %1381 = vmatprep.mubr.bf16.mxu0 0
      %1382 = vmatmul.mubr.bf16.gmra.mrb[0].mxu0 %v1206
      %v1383 = vpop.f32.mrb[0].mxu0
      %v1384 = vadd.f32 0.0, %v1383
      %v1385 = vpop.f32.mrb[0].mxu0
      %v1386 = vpop.f32.mrb[0].mxu0
      %v1387 = vadd.f32 0.0, %v1386
      %v1388 = vpop.f32.mrb[0].mxu0
      %1389 = vmatprep.mubr.bf16.mxu0 0
      %1390 = vmatmul.mubr.bf16.gmra.mrb[0].mxu0 %v1209
      %v1391 = vpop.f32.mrb[0].mxu0
      %v1392 = vadd.f32 0.0, %v1391
      %v1393 = vpop.f32.mrb[0].mxu0
      %v1394 = vpop.f32.mrb[0].mxu0
      %v1395 = vadd.f32 0.0, %v1394
      %v1396 = vpop.f32.mrb[0].mxu0
      %1397 = vmatprep.mubr.bf16.mxu0 0
      %1398 = vmatmul.mubr.bf16.gmra.mrb[0].mxu0 %v1212
      %v1399 = vpop.f32.mrb[0].mxu0
      %v1400 = vadd.f32 0.0, %v1399
      %v1401 = vpop.f32.mrb[0].mxu0
      %v1402 = vpop.f32.mrb[0].mxu0
      %v1403 = vadd.f32 0.0, %v1402
      %v1404 = vpop.f32.mrb[0].mxu0
      %1405 = vmatprep.mubr.bf16.mxu0 0
      %1406 = vmatmul.mubr.bf16.gmra.mrb[0].mxu0 %v1215
      %v1407 = vpop.f32.mrb[0].mxu0
      %v1408 = vadd.f32 0.0, %v1407
      %v1409 = vpop.f32.mrb[0].mxu0
      %v1410 = vpop.f32.mrb[0].mxu0
      %v1411 = vadd.f32 0.0, %v1410
      %v1412 = vpop.f32.mrb[0].mxu0
      %1413 = vmatprep.mubr.bf16.mxu0 0
      %1414 = vmatmul.mubr.bf16.gmra.mrb[0].mxu0 %v1218
      %v1415 = vpop.f32.mrb[0].mxu0
      %v1416 = vadd.f32 0.0, %v1415
      %v1417 = vpop.f32.mrb[0].mxu0
      %v1418 = vpop.f32.mrb[0].mxu0
      %v1419 = vadd.f32 0.0, %v1418
      %v1420 = vpop.f32.mrb[0].mxu0
      %1421 = vmatprep.mubr.bf16.mxu0 0
      %1422 = vmatmul.mubr.bf16.gmra.mrb[0].mxu0 %v1221
      %v1423 = vpop.f32.mrb[0].mxu0
      %v1424 = vadd.f32 0.0, %v1423
      %v1425 = vpop.f32.mrb[0].mxu0
      %v1426 = vpop.f32.mrb[0].mxu0
      %v1427 = vadd.f32 0.0, %v1426
      %v1428 = vpop.f32.mrb[0].mxu0
      %1429 = vmatprep.mubr.bf16.mxu0 0
      %1430 = vmatmul.mubr.bf16.gmra.mrb[0].mxu0 %v1224
      %v1431 = vpop.f32.mrb[0].mxu0
      %v1432 = vadd.f32 0.0, %v1431
      %v1433 = vpop.f32.mrb[0].mxu0
      %v1434 = vpop.f32.mrb[0].mxu0
      %v1435 = vadd.f32 0.0, %v1434
      %v1436 = vpop.f32.mrb[0].mxu0
      %1437 = vmatprep.mubr.bf16.mxu0 0
      %1438 = vmatmul.mubr.bf16.gmra.mrb[0].mxu0 %v1227
      %v1439 = vpop.f32.mrb[0].mxu0
      %v1440 = vadd.f32 0.0, %v1439
      %v1441 = vpop.f32.mrb[0].mxu0
      %v1442 = vpop.f32.mrb[0].mxu0
      %v1443 = vadd.f32 0.0, %v1442
      %v1444 = vpop.f32.mrb[0].mxu0
      %1445 = vmatprep.mubr.bf16.mxu0 0
      %1446 = vmatmul.mubr.bf16.gmra.mrb[0].mxu0 %v1230
      %v1447 = vpop.f32.mrb[0].mxu0
      %v1448 = vadd.f32 0.0, %v1447
      %v1449 = vpop.f32.mrb[0].mxu0
      %v1450 = vpop.f32.mrb[0].mxu0
      %v1451 = vadd.f32 0.0, %v1450
      %v1452 = vpop.f32.mrb[0].mxu0
      %1453 = vmatprep.mubr.bf16.mxu0 0
      %1454 = vmatmul.mubr.bf16.gmra.mrb[0].mxu0 %v1233
      %v1455 = vpop.f32.mrb[0].mxu0
      %v1456 = vadd.f32 0.0, %v1455
      %v1457 = vpop.f32.mrb[0].mxu0
      %v1458 = vpop.f32.mrb[0].mxu0
      %v1459 = vadd.f32 0.0, %v1458
      %v1460 = vpop.f32.mrb[0].mxu0
      %1461 = vmatprep.mubr.bf16.mxu0 0
      %1462 = vmatmul.mubr.bf16.gmra.mrb[0].mxu0 %v1236
      %v1463 = vpop.f32.mrb[0].mxu0
      %v1464 = vadd.f32 0.0, %v1463
      %v1465 = vpop.f32.mrb[0].mxu0
      %v1466 = vpop.f32.mrb[0].mxu0
      %v1467 = vadd.f32 0.0, %v1466
      %v1468 = vpop.f32.mrb[0].mxu0
      %1469 = vmatprep.mubr.bf16.mxu0 0
      %1470 = vmatmul.mubr.bf16.gmra.mrb[0].mxu0 %v1239
      %v1471 = vpop.f32.mrb[0].mxu0
      %v1472 = vadd.f32 0.0, %v1471
      %v1473 = vpop.f32.mrb[0].mxu0
      %v1474 = vpop.f32.mrb[0].mxu0
      %v1475 = vadd.f32 0.0, %v1474
      %v1476 = vpop.f32.mrb[0].mxu0
      %1477 = vmatprep.mubr.bf16.mxu0 0
      %1478 = vmatmul.mubr.bf16.gmra.mrb[0].mxu0 %v1242
      %v1479 = vpop.f32.mrb[0].mxu0
      %v1480 = vadd.f32 0.0, %v1479
      %v1481 = vpop.f32.mrb[0].mxu0
      %v1482 = vpop.f32.mrb[0].mxu0
      %v1483 = vadd.f32 0.0, %v1482
      %v1484 = vpop.f32.mrb[0].mxu0
      %1485 = vmatprep.mubr.bf16.mxu0 0
      %1486 = vmatmul.mubr.bf16.gmra.mrb[0].mxu0 %v1245
      %v1487 = vpop.f32.mrb[0].mxu0
      %v1488 = vadd.f32 0.0, %v1487
      %v1489 = vpop.f32.mrb[0].mxu0
      %v1490 = vpop.f32.mrb[0].mxu0
      %v1491 = vadd.f32 0.0, %v1490
      %v1492 = vpop.f32.mrb[0].mxu0
      %1493 = vmatprep.mubr.bf16.mxu0 0
      %1494 = vmatmul.mubr.bf16.gmra.mrb[0].mxu0 %v1248
      %v1495 = vpop.f32.mrb[0].mxu0
      %v1496 = vadd.f32 0.0, %v1495
      %v1497 = vpop.f32.mrb[0].mxu0
      %v1498 = vpop.f32.mrb[0].mxu0
      %v1499 = vadd.f32 0.0, %v1498
      %v1500 = vpop.f32.mrb[0].mxu0
      %1501 = vdwg.mxu0
      %v1502 = vadd.f32 %v872, %v1288
      %v1503 = vadd.f32 %v875, %v1291
      %v1504 = vadd.f32 %v880, %v1296
      %v1505 = vadd.f32 %v883, %v1299
      %v1506 = vadd.f32 %v888, %v1304
      %v1507 = vadd.f32 %v891, %v1307
      %v1508 = vadd.f32 %v896, %v1312
      %v1509 = vadd.f32 %v899, %v1315
      %v1510 = vadd.f32 %v904, %v1320
      %v1511 = vadd.f32 %v907, %v1323
      %v1512 = vadd.f32 %v912, %v1328
      %v1513 = vadd.f32 %v915, %v1331
      %v1514 = vadd.f32 %v920, %v1336
      %v1515 = vadd.f32 %v923, %v1339
      %v1516 = vadd.f32 %v928, %v1344
      %v1517 = vadd.f32 %v931, %v1347
      %v1518 = vadd.f32 %v936, %v1352
      %v1519 = vadd.f32 %v939, %v1355
      %v1520 = vadd.f32 %v944, %v1360
      %v1521 = vadd.f32 %v947, %v1363
      %v1522 = vadd.f32 %v952, %v1368
      %v1523 = vadd.f32 %v955, %v1371
      %v1524 = vadd.f32 %v960, %v1376
      %v1525 = vadd.f32 %v963, %v1379
      %v1526 = vadd.f32 %v968, %v1384
      %v1527 = vadd.f32 %v971, %v1387
      %v1528 = vadd.f32 %v976, %v1392
      %v1529 = vadd.f32 %v979, %v1395
      %v1530 = vadd.f32 %v984, %v1400
      %v1531 = vadd.f32 %v987, %v1403
      %v1532 = vadd.f32 %v992, %v1408
      %v1533 = vadd.f32 %v995, %v1411
      %v1534 = vadd.f32 %v1000, %v1416
      %v1535 = vadd.f32 %v1003, %v1419
      %v1536 = vadd.f32 %v1008, %v1424
      %v1537 = vadd.f32 %v1011, %v1427
      %v1538 = vadd.f32 %v1016, %v1432
      %v1539 = vadd.f32 %v1019, %v1435
      %v1540 = vadd.f32 %v1024, %v1440
      %v1541 = vadd.f32 %v1027, %v1443
      %v1542 = vadd.f32 %v1032, %v1448
      %v1543 = vadd.f32 %v1035, %v1451
      %v1544 = vadd.f32 %v1040, %v1456
      %v1545 = vadd.f32 %v1043, %v1459
      %v1546 = vadd.f32 %v1048, %v1464
      %v1547 = vadd.f32 %v1051, %v1467
      %v1548 = vadd.f32 %v1056, %v1472
      %v1549 = vadd.f32 %v1059, %v1475
      %v1550 = vadd.f32 %v1064, %v1480
      %v1551 = vadd.f32 %v1067, %v1483
      %v1552 = vadd.f32 %v1072, %v1488
      %v1553 = vadd.f32 %v1075, %v1491
      %v1554 = vadd.f32 %v1080, %v1496
      %v1555 = vadd.f32 %v1083, %v1499
      %s1556 = scalar_lea.vmem %s246, 32
      %v1557 = vld [vmem:[%s1556] sm:$0xff]
      %v1558 = vld [vmem:[%s1556 + $0x8] sm:$0xff]
      %v1559 = vld [vmem:[%s1556 + $0x10] sm:$0xff]
      %v1560 = vld [vmem:[%s1556 + $0x20] sm:$0xff]
      %v1561 = vld [vmem:[%s1556 + $0x28] sm:$0xff]
      %v1562 = vld [vmem:[%s1556 + $0x30] sm:$0xff]
      %v1563 = vld [vmem:[%s1556 + $0x40] sm:$0xff]
      %v1564 = vld [vmem:[%s1556 + $0x48] sm:$0xff]
      %v1565 = vld [vmem:[%s1556 + $0x50] sm:$0xff]
      %v1566 = vld [vmem:[%s1556 + $0x60] sm:$0xff]
      %v1567 = vld [vmem:[%s1556 + $0x68] sm:$0xff]
      %v1568 = vld [vmem:[%s1556 + $0x70] sm:$0xff]
      %v1569 = vld [vmem:[%s1556 + $0x80] sm:$0xff]
      %v1570 = vld [vmem:[%s1556 + $0x88] sm:$0xff]
      %v1571 = vld [vmem:[%s1556 + $0x90] sm:$0xff]
      %v1572 = vld [vmem:[%s1556 + $0xa0] sm:$0xff]
      %v1573 = vld [vmem:[%s1556 + $0xa8] sm:$0xff]
      %v1574 = vld [vmem:[%s1556 + $0xb0] sm:$0xff]
      %v1575 = vld [vmem:[%s1556 + $0xc0] sm:$0xff]
      %v1576 = vld [vmem:[%s1556 + $0xc8] sm:$0xff]
      %v1577 = vld [vmem:[%s1556 + $0xd0] sm:$0xff]
      %v1578 = vld [vmem:[%s1556 + $0xe0] sm:$0xff]
      %v1579 = vld [vmem:[%s1556 + $0xe8] sm:$0xff]
      %v1580 = vld [vmem:[%s1556 + $0xf0] sm:$0xff]
      %v1581 = vld [vmem:[%s1556 + $0x100] sm:$0xff]
      %v1582 = vld [vmem:[%s1556 + $0x108] sm:$0xff]
      %v1583 = vld [vmem:[%s1556 + $0x110] sm:$0xff]
      %v1584 = vld [vmem:[%s1556 + $0x120] sm:$0xff]
      %v1585 = vld [vmem:[%s1556 + $0x128] sm:$0xff]
      %v1586 = vld [vmem:[%s1556 + $0x130] sm:$0xff]
      %v1587 = vld [vmem:[%s1556 + $0x140] sm:$0xff]
      %v1588 = vld [vmem:[%s1556 + $0x148] sm:$0xff]
      %v1589 = vld [vmem:[%s1556 + $0x150] sm:$0xff]
      %v1590 = vld [vmem:[%s1556 + $0x160] sm:$0xff]
      %v1591 = vld [vmem:[%s1556 + $0x168] sm:$0xff]
      %v1592 = vld [vmem:[%s1556 + $0x170] sm:$0xff]
      %v1593 = vld [vmem:[%s1556 + $0x180] sm:$0xff]
      %v1594 = vld [vmem:[%s1556 + $0x188] sm:$0xff]
      %v1595 = vld [vmem:[%s1556 + $0x190] sm:$0xff]
      %v1596 = vld [vmem:[%s1556 + $0x1a0] sm:$0xff]
      %v1597 = vld [vmem:[%s1556 + $0x1a8] sm:$0xff]
      %v1598 = vld [vmem:[%s1556 + $0x1b0] sm:$0xff]
      %v1599 = vld [vmem:[%s1556 + $0x1c0] sm:$0xff]
      %v1600 = vld [vmem:[%s1556 + $0x1c8] sm:$0xff]
      %v1601 = vld [vmem:[%s1556 + $0x1d0] sm:$0xff]
      %v1602 = vld [vmem:[%s1556 + $0x1e0] sm:$0xff]
      %v1603 = vld [vmem:[%s1556 + $0x1e8] sm:$0xff]
      %v1604 = vld [vmem:[%s1556 + $0x1f0] sm:$0xff]
      %v1605 = vld [vmem:[%s1556 + $0x200] sm:$0xff]
      %v1606 = vld [vmem:[%s1556 + $0x208] sm:$0xff]
      %v1607 = vld [vmem:[%s1556 + $0x210] sm:$0xff]
      %v1608 = vld [vmem:[%s1556 + $0x220] sm:$0xff]
      %v1609 = vld [vmem:[%s1556 + $0x228] sm:$0xff]
      %v1610 = vld [vmem:[%s1556 + $0x230] sm:$0xff]
      %v1611 = vpack.c.bf16 %v1558, %v1557
      %v1612 = vpack.c.bf16 %v1560, %v1559
      %v1613 = vpack.c.bf16 %v1562, %v1561
      %v1614 = vpack.c.bf16 %v1564, %v1563
      %v1615 = vpack.c.bf16 %v1566, %v1565
      %v1616 = vpack.c.bf16 %v1568, %v1567
      %v1617 = vpack.c.bf16 %v1570, %v1569
      %v1618 = vpack.c.bf16 %v1572, %v1571
      %v1619 = vpack.c.bf16 %v1574, %v1573
      %v1620 = vpack.c.bf16 %v1576, %v1575
      %v1621 = vpack.c.bf16 %v1578, %v1577
      %v1622 = vpack.c.bf16 %v1580, %v1579
      %v1623 = vpack.c.bf16 %v1582, %v1581
      %v1624 = vpack.c.bf16 %v1584, %v1583
      %v1625 = vpack.c.bf16 %v1586, %v1585
      %v1626 = vpack.c.bf16 %v1588, %v1587
      %v1627 = vpack.c.bf16 %v1590, %v1589
      %v1628 = vpack.c.bf16 %v1592, %v1591
      %v1629 = vpack.c.bf16 %v1594, %v1593
      %v1630 = vpack.c.bf16 %v1596, %v1595
      %v1631 = vpack.c.bf16 %v1598, %v1597
      %v1632 = vpack.c.bf16 %v1600, %v1599
      %v1633 = vpack.c.bf16 %v1602, %v1601
      %v1634 = vpack.c.bf16 %v1604, %v1603
      %v1635 = vpack.c.bf16 %v1606, %v1605
      %v1636 = vpack.c.bf16 %v1608, %v1607
      %v1637 = vpack.c.bf16 %v1610, %v1609
      %s1638 = scalar_lea.vmem %s2, 12
      %v1639 = vld [vmem:[%s1638] sm:$0xf]
      %v1641 = vsel %vm418, %v1611, 0
      %v1644 = vsel %vm418, %v1612, 0
      %v1647 = vsel %vm418, %v1613, 0
      %v1650 = vsel %vm418, %v1614, 0
      %v1653 = vsel %vm418, %v1615, 0
      %v1656 = vsel %vm418, %v1616, 0
      %v1659 = vsel %vm418, %v1617, 0
      %v1662 = vsel %vm418, %v1618, 0
      %v1665 = vsel %vm418, %v1619, 0
      %v1668 = vsel %vm418, %v1620, 0
      %v1671 = vsel %vm418, %v1621, 0
      %v1674 = vsel %vm418, %v1622, 0
      %v1677 = vsel %vm418, %v1623, 0
      %v1680 = vsel %vm418, %v1624, 0
      %v1683 = vsel %vm418, %v1625, 0
      %v1686 = vsel %vm418, %v1626, 0
      %v1689 = vsel %vm418, %v1627, 0
      %v1692 = vsel %vm418, %v1628, 0
      %v1695 = vsel %vm418, %v1629, 0
      %v1698 = vsel %vm418, %v1630, 0
      %v1701 = vsel %vm418, %v1631, 0
      %v1704 = vsel %vm418, %v1632, 0
      %v1707 = vsel %vm418, %v1633, 0
      %v1710 = vsel %vm418, %v1634, 0
      %v1713 = vsel %vm418, %v1635, 0
      %v1716 = vsel %vm418, %v1636, 0
      %v1719 = vsel %vm418, %v1637, 0
      %v1722 = vsel %vm500, %v1639, 0
      %1724 = vmatprep.subr.bf16.mxu0 0
      %1725 = vmatpush1.bf16.msra.mxu0 %v1722
      %1726 = vmatprep.subr.bf16.mxu0 0
      %1727 = vmatpush1.bf16.msra.mxu0 0
      %1728 = vmatprep.subr.bf16.mxu0 0
      %1729 = vmatpush1.bf16.msra.mxu0 0
      %1730 = vmatprep.subr.bf16.mxu0 0
      %1731 = vmatpush1.bf16.msra.mxu0 0
      %1732 = vmatprep.subr.bf16.mxu0 0
      %1733 = vmatpush1.bf16.msra.mxu0 0
      %1734 = vmatprep.subr.bf16.mxu0 0
      %1735 = vmatpush1.bf16.msra.mxu0 0
      %1736 = vmatprep.subr.bf16.mxu0 0
      %1737 = vmatpush1.bf16.msra.mxu0 0
      %1738 = vmatprep.subr.bf16.mxu0 0
      %1739 = vmatpush1.bf16.msra.mxu0 0
      %1740 = vmatprep.subr.bf16.mxu0 0
      %1741 = vmatpush1.bf16.msra.mxu0 0
      %1742 = vmatprep.subr.bf16.mxu0 0
      %1743 = vmatpush1.bf16.msra.mxu0 0
      %1744 = vmatprep.subr.bf16.mxu0 0
      %1745 = vmatpush1.bf16.msra.mxu0 0
      %1746 = vmatprep.subr.bf16.mxu0 0
      %1747 = vmatpush1.bf16.msra.mxu0 0
      %1748 = vmatprep.subr.bf16.mxu0 0
      %1749 = vmatpush1.bf16.msra.mxu0 0
      %1750 = vmatprep.subr.bf16.mxu0 0
      %1751 = vmatpush1.bf16.msra.mxu0 0
      %1752 = vmatprep.subr.bf16.mxu0 0
      %1753 = vmatpush1.bf16.msra.mxu0 0
      %1754 = vmatprep.subr.bf16.mxu0 0
      %1755 = vmatpush1.bf16.msra.mxu0 0
      %1756 = vmatprep.mubr.bf16.mxu0 0
      %1757 = vmatmul.mubr.bf16.gmra.mrb[0].mxu0 %v1641
      %v1758 = vpop.f32.mrb[0].mxu0
      %v1759 = vadd.f32 0.0, %v1758
      %v1760 = vpop.f32.mrb[0].mxu0
      %v1761 = vpop.f32.mrb[0].mxu0
      %v1762 = vadd.f32 0.0, %v1761
      %v1763 = vpop.f32.mrb[0].mxu0
      %1764 = vmatprep.mubr.bf16.mxu0 0
      %1765 = vmatmul.mubr.bf16.gmra.mrb[0].mxu0 %v1644
      %v1766 = vpop.f32.mrb[0].mxu0
      %v1767 = vadd.f32 0.0, %v1766
      %v1768 = vpop.f32.mrb[0].mxu0
      %v1769 = vpop.f32.mrb[0].mxu0
      %v1770 = vadd.f32 0.0, %v1769
      %v1771 = vpop.f32.mrb[0].mxu0
      %1772 = vmatprep.mubr.bf16.mxu0 0
      %1773 = vmatmul.mubr.bf16.gmra.mrb[0].mxu0 %v1647
      %v1774 = vpop.f32.mrb[0].mxu0
      %v1775 = vadd.f32 0.0, %v1774
      %v1776 = vpop.f32.mrb[0].mxu0
      %v1777 = vpop.f32.mrb[0].mxu0
      %v1778 = vadd.f32 0.0, %v1777
      %v1779 = vpop.f32.mrb[0].mxu0
      %1780 = vmatprep.mubr.bf16.mxu0 0
      %1781 = vmatmul.mubr.bf16.gmra.mrb[0].mxu0 %v1650
      %v1782 = vpop.f32.mrb[0].mxu0
      %v1783 = vadd.f32 0.0, %v1782
      %v1784 = vpop.f32.mrb[0].mxu0
      %v1785 = vpop.f32.mrb[0].mxu0
      %v1786 = vadd.f32 0.0, %v1785
      %v1787 = vpop.f32.mrb[0].mxu0
      %1788 = vmatprep.mubr.bf16.mxu0 0
      %1789 = vmatmul.mubr.bf16.gmra.mrb[0].mxu0 %v1653
      %v1790 = vpop.f32.mrb[0].mxu0
      %v1791 = vadd.f32 0.0, %v1790
      %v1792 = vpop.f32.mrb[0].mxu0
      %v1793 = vpop.f32.mrb[0].mxu0
      %v1794 = vadd.f32 0.0, %v1793
      %v1795 = vpop.f32.mrb[0].mxu0
      %1796 = vmatprep.mubr.bf16.mxu0 0
      %1797 = vmatmul.mubr.bf16.gmra.mrb[0].mxu0 %v1656
      %v1798 = vpop.f32.mrb[0].mxu0
      %v1799 = vadd.f32 0.0, %v1798
      %v1800 = vpop.f32.mrb[0].mxu0
      %v1801 = vpop.f32.mrb[0].mxu0
      %v1802 = vadd.f32 0.0, %v1801
      %v1803 = vpop.f32.mrb[0].mxu0
      %1804 = vmatprep.mubr.bf16.mxu0 0
      %1805 = vmatmul.mubr.bf16.gmra.mrb[0].mxu0 %v1659
      %v1806 = vpop.f32.mrb[0].mxu0
      %v1807 = vadd.f32 0.0, %v1806
      %v1808 = vpop.f32.mrb[0].mxu0
      %v1809 = vpop.f32.mrb[0].mxu0
      %v1810 = vadd.f32 0.0, %v1809
      %v1811 = vpop.f32.mrb[0].mxu0
      %1812 = vmatprep.mubr.bf16.mxu0 0
      %1813 = vmatmul.mubr.bf16.gmra.mrb[0].mxu0 %v1662
      %v1814 = vpop.f32.mrb[0].mxu0
      %v1815 = vadd.f32 0.0, %v1814
      %v1816 = vpop.f32.mrb[0].mxu0
      %v1817 = vpop.f32.mrb[0].mxu0
      %v1818 = vadd.f32 0.0, %v1817
      %v1819 = vpop.f32.mrb[0].mxu0
      %1820 = vmatprep.mubr.bf16.mxu0 0
      %1821 = vmatmul.mubr.bf16.gmra.mrb[0].mxu0 %v1665
      %v1822 = vpop.f32.mrb[0].mxu0
      %v1823 = vadd.f32 0.0, %v1822
      %v1824 = vpop.f32.mrb[0].mxu0
      %v1825 = vpop.f32.mrb[0].mxu0
      %v1826 = vadd.f32 0.0, %v1825
      %v1827 = vpop.f32.mrb[0].mxu0
      %1828 = vmatprep.mubr.bf16.mxu0 0
      %1829 = vmatmul.mubr.bf16.gmra.mrb[0].mxu0 %v1668
      %v1830 = vpop.f32.mrb[0].mxu0
      %v1831 = vadd.f32 0.0, %v1830
      %v1832 = vpop.f32.mrb[0].mxu0
      %v1833 = vpop.f32.mrb[0].mxu0
      %v1834 = vadd.f32 0.0, %v1833
      %v1835 = vpop.f32.mrb[0].mxu0
      %1836 = vmatprep.mubr.bf16.mxu0 0
      %1837 = vmatmul.mubr.bf16.gmra.mrb[0].mxu0 %v1671
      %v1838 = vpop.f32.mrb[0].mxu0
      %v1839 = vadd.f32 0.0, %v1838
      %v1840 = vpop.f32.mrb[0].mxu0
      %v1841 = vpop.f32.mrb[0].mxu0
      %v1842 = vadd.f32 0.0, %v1841
      %v1843 = vpop.f32.mrb[0].mxu0
      %1844 = vmatprep.mubr.bf16.mxu0 0
      %1845 = vmatmul.mubr.bf16.gmra.mrb[0].mxu0 %v1674
      %v1846 = vpop.f32.mrb[0].mxu0
      %v1847 = vadd.f32 0.0, %v1846
      %v1848 = vpop.f32.mrb[0].mxu0
      %v1849 = vpop.f32.mrb[0].mxu0
      %v1850 = vadd.f32 0.0, %v1849
      %v1851 = vpop.f32.mrb[0].mxu0
      %1852 = vmatprep.mubr.bf16.mxu0 0
      %1853 = vmatmul.mubr.bf16.gmra.mrb[0].mxu0 %v1677
      %v1854 = vpop.f32.mrb[0].mxu0
      %v1855 = vadd.f32 0.0, %v1854
      %v1856 = vpop.f32.mrb[0].mxu0
      %v1857 = vpop.f32.mrb[0].mxu0
      %v1858 = vadd.f32 0.0, %v1857
      %v1859 = vpop.f32.mrb[0].mxu0
      %1860 = vmatprep.mubr.bf16.mxu0 0
      %1861 = vmatmul.mubr.bf16.gmra.mrb[0].mxu0 %v1680
      %v1862 = vpop.f32.mrb[0].mxu0
      %v1863 = vadd.f32 0.0, %v1862
      %v1864 = vpop.f32.mrb[0].mxu0
      %v1865 = vpop.f32.mrb[0].mxu0
      %v1866 = vadd.f32 0.0, %v1865
      %v1867 = vpop.f32.mrb[0].mxu0
      %1868 = vmatprep.mubr.bf16.mxu0 0
      %1869 = vmatmul.mubr.bf16.gmra.mrb[0].mxu0 %v1683
      %v1870 = vpop.f32.mrb[0].mxu0
      %v1871 = vadd.f32 0.0, %v1870
      %v1872 = vpop.f32.mrb[0].mxu0
      %v1873 = vpop.f32.mrb[0].mxu0
      %v1874 = vadd.f32 0.0, %v1873
      %v1875 = vpop.f32.mrb[0].mxu0
      %1876 = vmatprep.mubr.bf16.mxu0 0
      %1877 = vmatmul.mubr.bf16.gmra.mrb[0].mxu0 %v1686
      %v1878 = vpop.f32.mrb[0].mxu0
      %v1879 = vadd.f32 0.0, %v1878
      %v1880 = vpop.f32.mrb[0].mxu0
      %v1881 = vpop.f32.mrb[0].mxu0
      %v1882 = vadd.f32 0.0, %v1881
      %v1883 = vpop.f32.mrb[0].mxu0
      %1884 = vmatprep.mubr.bf16.mxu0 0
      %1885 = vmatmul.mubr.bf16.gmra.mrb[0].mxu0 %v1689
      %v1886 = vpop.f32.mrb[0].mxu0
      %v1887 = vadd.f32 0.0, %v1886
      %v1888 = vpop.f32.mrb[0].mxu0
      %v1889 = vpop.f32.mrb[0].mxu0
      %v1890 = vadd.f32 0.0, %v1889
      %v1891 = vpop.f32.mrb[0].mxu0
      %1892 = vmatprep.mubr.bf16.mxu0 0
      %1893 = vmatmul.mubr.bf16.gmra.mrb[0].mxu0 %v1692
      %v1894 = vpop.f32.mrb[0].mxu0
      %v1895 = vadd.f32 0.0, %v1894
      %v1896 = vpop.f32.mrb[0].mxu0
      %v1897 = vpop.f32.mrb[0].mxu0
      %v1898 = vadd.f32 0.0, %v1897
      %v1899 = vpop.f32.mrb[0].mxu0
      %1900 = vmatprep.mubr.bf16.mxu0 0
      %1901 = vmatmul.mubr.bf16.gmra.mrb[0].mxu0 %v1695
      %v1902 = vpop.f32.mrb[0].mxu0
      %v1903 = vadd.f32 0.0, %v1902
      %v1904 = vpop.f32.mrb[0].mxu0
      %v1905 = vpop.f32.mrb[0].mxu0
      %v1906 = vadd.f32 0.0, %v1905
      %v1907 = vpop.f32.mrb[0].mxu0
      %1908 = vmatprep.mubr.bf16.mxu0 0
      %1909 = vmatmul.mubr.bf16.gmra.mrb[0].mxu0 %v1698
      %v1910 = vpop.f32.mrb[0].mxu0
      %v1911 = vadd.f32 0.0, %v1910
      %v1912 = vpop.f32.mrb[0].mxu0
      %v1913 = vpop.f32.mrb[0].mxu0
      %v1914 = vadd.f32 0.0, %v1913
      %v1915 = vpop.f32.mrb[0].mxu0
      %1916 = vmatprep.mubr.bf16.mxu0 0
      %1917 = vmatmul.mubr.bf16.gmra.mrb[0].mxu0 %v1701
      %v1918 = vpop.f32.mrb[0].mxu0
      %v1919 = vadd.f32 0.0, %v1918
      %v1920 = vpop.f32.mrb[0].mxu0
      %v1921 = vpop.f32.mrb[0].mxu0
      %v1922 = vadd.f32 0.0, %v1921
      %v1923 = vpop.f32.mrb[0].mxu0
      %1924 = vmatprep.mubr.bf16.mxu0 0
      %1925 = vmatmul.mubr.bf16.gmra.mrb[0].mxu0 %v1704
      %v1926 = vpop.f32.mrb[0].mxu0
      %v1927 = vadd.f32 0.0, %v1926
      %v1928 = vpop.f32.mrb[0].mxu0
      %v1929 = vpop.f32.mrb[0].mxu0
      %v1930 = vadd.f32 0.0, %v1929
      %v1931 = vpop.f32.mrb[0].mxu0
      %1932 = vmatprep.mubr.bf16.mxu0 0
      %1933 = vmatmul.mubr.bf16.gmra.mrb[0].mxu0 %v1707
      %v1934 = vpop.f32.mrb[0].mxu0
      %v1935 = vadd.f32 0.0, %v1934
      %v1936 = vpop.f32.mrb[0].mxu0
      %v1937 = vpop.f32.mrb[0].mxu0
      %v1938 = vadd.f32 0.0, %v1937
      %v1939 = vpop.f32.mrb[0].mxu0
      %1940 = vmatprep.mubr.bf16.mxu0 0
      %1941 = vmatmul.mubr.bf16.gmra.mrb[0].mxu0 %v1710
      %v1942 = vpop.f32.mrb[0].mxu0
      %v1943 = vadd.f32 0.0, %v1942
      %v1944 = vpop.f32.mrb[0].mxu0
      %v1945 = vpop.f32.mrb[0].mxu0
      %v1946 = vadd.f32 0.0, %v1945
      %v1947 = vpop.f32.mrb[0].mxu0
      %1948 = vmatprep.mubr.bf16.mxu0 0
      %1949 = vmatmul.mubr.bf16.gmra.mrb[0].mxu0 %v1713
      %v1950 = vpop.f32.mrb[0].mxu0
      %v1951 = vadd.f32 0.0, %v1950
      %v1952 = vpop.f32.mrb[0].mxu0
      %v1953 = vpop.f32.mrb[0].mxu0
      %v1954 = vadd.f32 0.0, %v1953
      %v1955 = vpop.f32.mrb[0].mxu0
      %1956 = vmatprep.mubr.bf16.mxu0 0
      %1957 = vmatmul.mubr.bf16.gmra.mrb[0].mxu0 %v1716
      %v1958 = vpop.f32.mrb[0].mxu0
      %v1959 = vadd.f32 0.0, %v1958
      %v1960 = vpop.f32.mrb[0].mxu0
      %v1961 = vpop.f32.mrb[0].mxu0
      %v1962 = vadd.f32 0.0, %v1961
      %v1963 = vpop.f32.mrb[0].mxu0
      %1964 = vmatprep.mubr.bf16.mxu0 0
      %1965 = vmatmul.mubr.bf16.gmra.mrb[0].mxu0 %v1719
      %v1966 = vpop.f32.mrb[0].mxu0
      %v1967 = vadd.f32 0.0, %v1966
      %v1968 = vpop.f32.mrb[0].mxu0
      %v1969 = vpop.f32.mrb[0].mxu0
      %v1970 = vadd.f32 0.0, %v1969
      %v1971 = vpop.f32.mrb[0].mxu0
      %1972 = vdwg.mxu0
      %v1973 = vadd.f32 %v1502, %v1759
      %v1974 = vadd.f32 %v1503, %v1762
      %v1975 = vadd.f32 %v1504, %v1767
      %v1976 = vadd.f32 %v1505, %v1770
      %v1977 = vadd.f32 %v1506, %v1775
      %v1978 = vadd.f32 %v1507, %v1778
      %v1979 = vadd.f32 %v1508, %v1783
      %v1980 = vadd.f32 %v1509, %v1786
      %v1981 = vadd.f32 %v1510, %v1791
      %v1982 = vadd.f32 %v1511, %v1794
      %v1983 = vadd.f32 %v1512, %v1799
      %v1984 = vadd.f32 %v1513, %v1802
      %v1985 = vadd.f32 %v1514, %v1807
      %v1986 = vadd.f32 %v1515, %v1810
      %v1987 = vadd.f32 %v1516, %v1815
      %v1988 = vadd.f32 %v1517, %v1818
      %v1989 = vadd.f32 %v1518, %v1823
      %v1990 = vadd.f32 %v1519, %v1826
      %v1991 = vadd.f32 %v1520, %v1831
      %v1992 = vadd.f32 %v1521, %v1834
      %v1993 = vadd.f32 %v1522, %v1839
      %v1994 = vadd.f32 %v1523, %v1842
      %v1995 = vadd.f32 %v1524, %v1847
      %v1996 = vadd.f32 %v1525, %v1850
      %v1997 = vadd.f32 %v1526, %v1855
      %v1998 = vadd.f32 %v1527, %v1858
      %v1999 = vadd.f32 %v1528, %v1863
      %v2000 = vadd.f32 %v1529, %v1866
      %v2001 = vadd.f32 %v1530, %v1871
      %v2002 = vadd.f32 %v1531, %v1874
      %v2003 = vadd.f32 %v1532, %v1879
      %v2004 = vadd.f32 %v1533, %v1882
      %v2005 = vadd.f32 %v1534, %v1887
      %v2006 = vadd.f32 %v1535, %v1890
      %v2007 = vadd.f32 %v1536, %v1895
      %v2008 = vadd.f32 %v1537, %v1898
      %v2009 = vadd.f32 %v1538, %v1903
      %v2010 = vadd.f32 %v1539, %v1906
      %v2011 = vadd.f32 %v1540, %v1911
      %v2012 = vadd.f32 %v1541, %v1914
      %v2013 = vadd.f32 %v1542, %v1919
      %v2014 = vadd.f32 %v1543, %v1922
      %v2015 = vadd.f32 %v1544, %v1927
      %v2016 = vadd.f32 %v1545, %v1930
      %v2017 = vadd.f32 %v1546, %v1935
      %v2018 = vadd.f32 %v1547, %v1938
      %v2019 = vadd.f32 %v1548, %v1943
      %v2020 = vadd.f32 %v1549, %v1946
      %v2021 = vadd.f32 %v1550, %v1951
      %v2022 = vadd.f32 %v1551, %v1954
      %v2023 = vadd.f32 %v1552, %v1959
      %v2024 = vadd.f32 %v1553, %v1962
      %v2025 = vadd.f32 %v1554, %v1967
      %v2026 = vadd.f32 %v1555, %v1970
      %v2027 = vld [vmem:[%s1556 + $0x1] sm:$0xff]
      %v2028 = vld [vmem:[%s1556 + $0x9] sm:$0xff]
      %v2029 = vld [vmem:[%s1556 + $0x11] sm:$0xff]
      %v2030 = vld [vmem:[%s1556 + $0x21] sm:$0xff]
      %v2031 = vld [vmem:[%s1556 + $0x29] sm:$0xff]
      %v2032 = vld [vmem:[%s1556 + $0x31] sm:$0xff]
      %v2033 = vld [vmem:[%s1556 + $0x41] sm:$0xff]
      %v2034 = vld [vmem:[%s1556 + $0x49] sm:$0xff]
      %v2035 = vld [vmem:[%s1556 + $0x51] sm:$0xff]
      %v2036 = vld [vmem:[%s1556 + $0x61] sm:$0xff]
      %v2037 = vld [vmem:[%s1556 + $0x69] sm:$0xff]
      %v2038 = vld [vmem:[%s1556 + $0x71] sm:$0xff]
      %v2039 = vld [vmem:[%s1556 + $0x81] sm:$0xff]
      %v2040 = vld [vmem:[%s1556 + $0x89] sm:$0xff]
      %v2041 = vld [vmem:[%s1556 + $0x91] sm:$0xff]
      %v2042 = vld [vmem:[%s1556 + $0xa1] sm:$0xff]
      %v2043 = vld [vmem:[%s1556 + $0xa9] sm:$0xff]
      %v2044 = vld [vmem:[%s1556 + $0xb1] sm:$0xff]
      %v2045 = vld [vmem:[%s1556 + $0xc1] sm:$0xff]
      %v2046 = vld [vmem:[%s1556 + $0xc9] sm:$0xff]
      %v2047 = vld [vmem:[%s1556 + $0xd1] sm:$0xff]
      %v2048 = vld [vmem:[%s1556 + $0xe1] sm:$0xff]
      %v2049 = vld [vmem:[%s1556 + $0xe9] sm:$0xff]
      %v2050 = vld [vmem:[%s1556 + $0xf1] sm:$0xff]
      %v2051 = vld [vmem:[%s1556 + $0x101] sm:$0xff]
      %v2052 = vld [vmem:[%s1556 + $0x109] sm:$0xff]
      %v2053 = vld [vmem:[%s1556 + $0x111] sm:$0xff]
      %v2054 = vld [vmem:[%s1556 + $0x121] sm:$0xff]
      %v2055 = vld [vmem:[%s1556 + $0x129] sm:$0xff]
      %v2056 = vld [vmem:[%s1556 + $0x131] sm:$0xff]
      %v2057 = vld [vmem:[%s1556 + $0x141] sm:$0xff]
      %v2058 = vld [vmem:[%s1556 + $0x149] sm:$0xff]
      %v2059 = vld [vmem:[%s1556 + $0x151] sm:$0xff]
      %v2060 = vld [vmem:[%s1556 + $0x161] sm:$0xff]
      %v2061 = vld [vmem:[%s1556 + $0x169] sm:$0xff]
      %v2062 = vld [vmem:[%s1556 + $0x171] sm:$0xff]
      %v2063 = vld [vmem:[%s1556 + $0x181] sm:$0xff]
      %v2064 = vld [vmem:[%s1556 + $0x189] sm:$0xff]
      %v2065 = vld [vmem:[%s1556 + $0x191] sm:$0xff]
      %v2066 = vld [vmem:[%s1556 + $0x1a1] sm:$0xff]
      %v2067 = vld [vmem:[%s1556 + $0x1a9] sm:$0xff]
      %v2068 = vld [vmem:[%s1556 + $0x1b1] sm:$0xff]
      %v2069 = vld [vmem:[%s1556 + $0x1c1] sm:$0xff]
      %v2070 = vld [vmem:[%s1556 + $0x1c9] sm:$0xff]
      %v2071 = vld [vmem:[%s1556 + $0x1d1] sm:$0xff]
      %v2072 = vld [vmem:[%s1556 + $0x1e1] sm:$0xff]
      %v2073 = vld [vmem:[%s1556 + $0x1e9] sm:$0xff]
      %v2074 = vld [vmem:[%s1556 + $0x1f1] sm:$0xff]
      %v2075 = vld [vmem:[%s1556 + $0x201] sm:$0xff]
      %v2076 = vld [vmem:[%s1556 + $0x209] sm:$0xff]
      %v2077 = vld [vmem:[%s1556 + $0x211] sm:$0xff]
      %v2078 = vld [vmem:[%s1556 + $0x221] sm:$0xff]
      %v2079 = vld [vmem:[%s1556 + $0x229] sm:$0xff]
      %v2080 = vld [vmem:[%s1556 + $0x231] sm:$0xff]
      %v2081 = vpack.c.bf16 %v2028, %v2027
      %v2082 = vpack.c.bf16 %v2030, %v2029
      %v2083 = vpack.c.bf16 %v2032, %v2031
      %v2084 = vpack.c.bf16 %v2034, %v2033
      %v2085 = vpack.c.bf16 %v2036, %v2035
      %v2086 = vpack.c.bf16 %v2038, %v2037
      %v2087 = vpack.c.bf16 %v2040, %v2039
      %v2088 = vpack.c.bf16 %v2042, %v2041
      %v2089 = vpack.c.bf16 %v2044, %v2043
      %v2090 = vpack.c.bf16 %v2046, %v2045
      %v2091 = vpack.c.bf16 %v2048, %v2047
      %v2092 = vpack.c.bf16 %v2050, %v2049
      %v2093 = vpack.c.bf16 %v2052, %v2051
      %v2094 = vpack.c.bf16 %v2054, %v2053
      %v2095 = vpack.c.bf16 %v2056, %v2055
      %v2096 = vpack.c.bf16 %v2058, %v2057
      %v2097 = vpack.c.bf16 %v2060, %v2059
      %v2098 = vpack.c.bf16 %v2062, %v2061
      %v2099 = vpack.c.bf16 %v2064, %v2063
      %v2100 = vpack.c.bf16 %v2066, %v2065
      %v2101 = vpack.c.bf16 %v2068, %v2067
      %v2102 = vpack.c.bf16 %v2070, %v2069
      %v2103 = vpack.c.bf16 %v2072, %v2071
      %v2104 = vpack.c.bf16 %v2074, %v2073
      %v2105 = vpack.c.bf16 %v2076, %v2075
      %v2106 = vpack.c.bf16 %v2078, %v2077
      %v2107 = vpack.c.bf16 %v2080, %v2079
      %s2108 = scalar_lea.vmem %s2, 16
      %v2109 = vld [vmem:[%s2108] sm:$0xf]
      %v2111 = vsel %vm418, %v2081, 0
      %v2114 = vsel %vm418, %v2082, 0
      %v2117 = vsel %vm418, %v2083, 0
      %v2120 = vsel %vm418, %v2084, 0
      %v2123 = vsel %vm418, %v2085, 0
      %v2126 = vsel %vm418, %v2086, 0
      %v2129 = vsel %vm418, %v2087, 0
      %v2132 = vsel %vm418, %v2088, 0
      %v2135 = vsel %vm418, %v2089, 0
      %v2138 = vsel %vm418, %v2090, 0
      %v2141 = vsel %vm418, %v2091, 0
      %v2144 = vsel %vm418, %v2092, 0
      %v2147 = vsel %vm418, %v2093, 0
      %v2150 = vsel %vm418, %v2094, 0
      %v2153 = vsel %vm418, %v2095, 0
      %v2156 = vsel %vm418, %v2096, 0
      %v2159 = vsel %vm418, %v2097, 0
      %v2162 = vsel %vm418, %v2098, 0
      %v2165 = vsel %vm418, %v2099, 0
      %v2168 = vsel %vm418, %v2100, 0
      %v2171 = vsel %vm418, %v2101, 0
      %v2174 = vsel %vm418, %v2102, 0
      %v2177 = vsel %vm418, %v2103, 0
      %v2180 = vsel %vm418, %v2104, 0
      %v2183 = vsel %vm418, %v2105, 0
      %v2186 = vsel %vm418, %v2106, 0
      %v2189 = vsel %vm418, %v2107, 0
      %v2192 = vsel %vm500, %v2109, 0
      %2194 = vmatprep.subr.bf16.mxu0 0
      %2195 = vmatpush1.bf16.msra.mxu0 %v2192
      %2196 = vmatprep.subr.bf16.mxu0 0
      %2197 = vmatpush1.bf16.msra.mxu0 0
      %2198 = vmatprep.subr.bf16.mxu0 0
      %2199 = vmatpush1.bf16.msra.mxu0 0
      %2200 = vmatprep.subr.bf16.mxu0 0
      %2201 = vmatpush1.bf16.msra.mxu0 0
      %2202 = vmatprep.subr.bf16.mxu0 0
      %2203 = vmatpush1.bf16.msra.mxu0 0
      %2204 = vmatprep.subr.bf16.mxu0 0
      %2205 = vmatpush1.bf16.msra.mxu0 0
      %2206 = vmatprep.subr.bf16.mxu0 0
      %2207 = vmatpush1.bf16.msra.mxu0 0
      %2208 = vmatprep.subr.bf16.mxu0 0
      %2209 = vmatpush1.bf16.msra.mxu0 0
      %2210 = vmatprep.subr.bf16.mxu0 0
      %2211 = vmatpush1.bf16.msra.mxu0 0
      %2212 = vmatprep.subr.bf16.mxu0 0
      %2213 = vmatpush1.bf16.msra.mxu0 0
      %2214 = vmatprep.subr.bf16.mxu0 0
      %2215 = vmatpush1.bf16.msra.mxu0 0
      %2216 = vmatprep.subr.bf16.mxu0 0
      %2217 = vmatpush1.bf16.msra.mxu0 0
      %2218 = vmatprep.subr.bf16.mxu0 0
      %2219 = vmatpush1.bf16.msra.mxu0 0
      %2220 = vmatprep.subr.bf16.mxu0 0
      %2221 = vmatpush1.bf16.msra.mxu0 0
      %2222 = vmatprep.subr.bf16.mxu0 0
      %2223 = vmatpush1.bf16.msra.mxu0 0
      %2224 = vmatprep.subr.bf16.mxu0 0
      %2225 = vmatpush1.bf16.msra.mxu0 0
      %2226 = vmatprep.mubr.bf16.mxu0 0
      %2227 = vmatmul.mubr.bf16.gmra.mrb[0].mxu0 %v2111
      %v2228 = vpop.f32.mrb[0].mxu0
      %v2229 = vadd.f32 0.0, %v2228
      %v2230 = vpop.f32.mrb[0].mxu0
      %v2231 = vpop.f32.mrb[0].mxu0
      %v2232 = vadd.f32 0.0, %v2231
      %v2233 = vpop.f32.mrb[0].mxu0
      %2234 = vmatprep.mubr.bf16.mxu0 0
      %2235 = vmatmul.mubr.bf16.gmra.mrb[0].mxu0 %v2114
      %v2236 = vpop.f32.mrb[0].mxu0
      %v2237 = vadd.f32 0.0, %v2236
      %v2238 = vpop.f32.mrb[0].mxu0
      %v2239 = vpop.f32.mrb[0].mxu0
      %v2240 = vadd.f32 0.0, %v2239
      %v2241 = vpop.f32.mrb[0].mxu0
      %2242 = vmatprep.mubr.bf16.mxu0 0
      %2243 = vmatmul.mubr.bf16.gmra.mrb[0].mxu0 %v2117
      %v2244 = vpop.f32.mrb[0].mxu0
      %v2245 = vadd.f32 0.0, %v2244
      %v2246 = vpop.f32.mrb[0].mxu0
      %v2247 = vpop.f32.mrb[0].mxu0
      %v2248 = vadd.f32 0.0, %v2247
      %v2249 = vpop.f32.mrb[0].mxu0
      %2250 = vmatprep.mubr.bf16.mxu0 0
      %2251 = vmatmul.mubr.bf16.gmra.mrb[0].mxu0 %v2120
      %v2252 = vpop.f32.mrb[0].mxu0
      %v2253 = vadd.f32 0.0, %v2252
      %v2254 = vpop.f32.mrb[0].mxu0
      %v2255 = vpop.f32.mrb[0].mxu0
      %v2256 = vadd.f32 0.0, %v2255
      %v2257 = vpop.f32.mrb[0].mxu0
      %2258 = vmatprep.mubr.bf16.mxu0 0
      %2259 = vmatmul.mubr.bf16.gmra.mrb[0].mxu0 %v2123
      %v2260 = vpop.f32.mrb[0].mxu0
      %v2261 = vadd.f32 0.0, %v2260
      %v2262 = vpop.f32.mrb[0].mxu0
      %v2263 = vpop.f32.mrb[0].mxu0
      %v2264 = vadd.f32 0.0, %v2263
      %v2265 = vpop.f32.mrb[0].mxu0
      %2266 = vmatprep.mubr.bf16.mxu0 0
      %2267 = vmatmul.mubr.bf16.gmra.mrb[0].mxu0 %v2126
      %v2268 = vpop.f32.mrb[0].mxu0
      %v2269 = vadd.f32 0.0, %v2268
      %v2270 = vpop.f32.mrb[0].mxu0
      %v2271 = vpop.f32.mrb[0].mxu0
      %v2272 = vadd.f32 0.0, %v2271
      %v2273 = vpop.f32.mrb[0].mxu0
      %2274 = vmatprep.mubr.bf16.mxu0 0
      %2275 = vmatmul.mubr.bf16.gmra.mrb[0].mxu0 %v2129
      %v2276 = vpop.f32.mrb[0].mxu0
      %v2277 = vadd.f32 0.0, %v2276
      %v2278 = vpop.f32.mrb[0].mxu0
      %v2279 = vpop.f32.mrb[0].mxu0
      %v2280 = vadd.f32 0.0, %v2279
      %v2281 = vpop.f32.mrb[0].mxu0
      %2282 = vmatprep.mubr.bf16.mxu0 0
      %2283 = vmatmul.mubr.bf16.gmra.mrb[0].mxu0 %v2132
      %v2284 = vpop.f32.mrb[0].mxu0
      %v2285 = vadd.f32 0.0, %v2284
      %v2286 = vpop.f32.mrb[0].mxu0
      %v2287 = vpop.f32.mrb[0].mxu0
      %v2288 = vadd.f32 0.0, %v2287
      %v2289 = vpop.f32.mrb[0].mxu0
      %2290 = vmatprep.mubr.bf16.mxu0 0
      %2291 = vmatmul.mubr.bf16.gmra.mrb[0].mxu0 %v2135
      %v2292 = vpop.f32.mrb[0].mxu0
      %v2293 = vadd.f32 0.0, %v2292
      %v2294 = vpop.f32.mrb[0].mxu0
      %v2295 = vpop.f32.mrb[0].mxu0
      %v2296 = vadd.f32 0.0, %v2295
      %v2297 = vpop.f32.mrb[0].mxu0
      %2298 = vmatprep.mubr.bf16.mxu0 0
      %2299 = vmatmul.mubr.bf16.gmra.mrb[0].mxu0 %v2138
      %v2300 = vpop.f32.mrb[0].mxu0
      %v2301 = vadd.f32 0.0, %v2300
      %v2302 = vpop.f32.mrb[0].mxu0
      %v2303 = vpop.f32.mrb[0].mxu0
      %v2304 = vadd.f32 0.0, %v2303
      %v2305 = vpop.f32.mrb[0].mxu0
      %2306 = vmatprep.mubr.bf16.mxu0 0
      %2307 = vmatmul.mubr.bf16.gmra.mrb[0].mxu0 %v2141
      %v2308 = vpop.f32.mrb[0].mxu0
      %v2309 = vadd.f32 0.0, %v2308
      %v2310 = vpop.f32.mrb[0].mxu0
      %v2311 = vpop.f32.mrb[0].mxu0
      %v2312 = vadd.f32 0.0, %v2311
      %v2313 = vpop.f32.mrb[0].mxu0
      %2314 = vmatprep.mubr.bf16.mxu0 0
      %2315 = vmatmul.mubr.bf16.gmra.mrb[0].mxu0 %v2144
      %v2316 = vpop.f32.mrb[0].mxu0
      %v2317 = vadd.f32 0.0, %v2316
      %v2318 = vpop.f32.mrb[0].mxu0
      %v2319 = vpop.f32.mrb[0].mxu0
      %v2320 = vadd.f32 0.0, %v2319
      %v2321 = vpop.f32.mrb[0].mxu0
      %2322 = vmatprep.mubr.bf16.mxu0 0
      %2323 = vmatmul.mubr.bf16.gmra.mrb[0].mxu0 %v2147
      %v2324 = vpop.f32.mrb[0].mxu0
      %v2325 = vadd.f32 0.0, %v2324
      %v2326 = vpop.f32.mrb[0].mxu0
      %v2327 = vpop.f32.mrb[0].mxu0
      %v2328 = vadd.f32 0.0, %v2327
      %v2329 = vpop.f32.mrb[0].mxu0
      %2330 = vmatprep.mubr.bf16.mxu0 0
      %2331 = vmatmul.mubr.bf16.gmra.mrb[0].mxu0 %v2150
      %v2332 = vpop.f32.mrb[0].mxu0
      %v2333 = vadd.f32 0.0, %v2332
      %v2334 = vpop.f32.mrb[0].mxu0
      %v2335 = vpop.f32.mrb[0].mxu0
      %v2336 = vadd.f32 0.0, %v2335
      %v2337 = vpop.f32.mrb[0].mxu0
      %2338 = vmatprep.mubr.bf16.mxu0 0
      %2339 = vmatmul.mubr.bf16.gmra.mrb[0].mxu0 %v2153
      %v2340 = vpop.f32.mrb[0].mxu0
      %v2341 = vadd.f32 0.0, %v2340
      %v2342 = vpop.f32.mrb[0].mxu0
      %v2343 = vpop.f32.mrb[0].mxu0
      %v2344 = vadd.f32 0.0, %v2343
      %v2345 = vpop.f32.mrb[0].mxu0
      %2346 = vmatprep.mubr.bf16.mxu0 0
      %2347 = vmatmul.mubr.bf16.gmra.mrb[0].mxu0 %v2156
      %v2348 = vpop.f32.mrb[0].mxu0
      %v2349 = vadd.f32 0.0, %v2348
      %v2350 = vpop.f32.mrb[0].mxu0
      %v2351 = vpop.f32.mrb[0].mxu0
      %v2352 = vadd.f32 0.0, %v2351
      %v2353 = vpop.f32.mrb[0].mxu0
      %2354 = vmatprep.mubr.bf16.mxu0 0
      %2355 = vmatmul.mubr.bf16.gmra.mrb[0].mxu0 %v2159
      %v2356 = vpop.f32.mrb[0].mxu0
      %v2357 = vadd.f32 0.0, %v2356
      %v2358 = vpop.f32.mrb[0].mxu0
      %v2359 = vpop.f32.mrb[0].mxu0
      %v2360 = vadd.f32 0.0, %v2359
      %v2361 = vpop.f32.mrb[0].mxu0
      %2362 = vmatprep.mubr.bf16.mxu0 0
      %2363 = vmatmul.mubr.bf16.gmra.mrb[0].mxu0 %v2162
      %v2364 = vpop.f32.mrb[0].mxu0
      %v2365 = vadd.f32 0.0, %v2364
      %v2366 = vpop.f32.mrb[0].mxu0
      %v2367 = vpop.f32.mrb[0].mxu0
      %v2368 = vadd.f32 0.0, %v2367
      %v2369 = vpop.f32.mrb[0].mxu0
      %2370 = vmatprep.mubr.bf16.mxu0 0
      %2371 = vmatmul.mubr.bf16.gmra.mrb[0].mxu0 %v2165
      %v2372 = vpop.f32.mrb[0].mxu0
      %v2373 = vadd.f32 0.0, %v2372
      %v2374 = vpop.f32.mrb[0].mxu0
      %v2375 = vpop.f32.mrb[0].mxu0
      %v2376 = vadd.f32 0.0, %v2375
      %v2377 = vpop.f32.mrb[0].mxu0
      %2378 = vmatprep.mubr.bf16.mxu0 0
      %2379 = vmatmul.mubr.bf16.gmra.mrb[0].mxu0 %v2168
      %v2380 = vpop.f32.mrb[0].mxu0
      %v2381 = vadd.f32 0.0, %v2380
      %v2382 = vpop.f32.mrb[0].mxu0
      %v2383 = vpop.f32.mrb[0].mxu0
      %v2384 = vadd.f32 0.0, %v2383
      %v2385 = vpop.f32.mrb[0].mxu0
      %2386 = vmatprep.mubr.bf16.mxu0 0
      %2387 = vmatmul.mubr.bf16.gmra.mrb[0].mxu0 %v2171
      %v2388 = vpop.f32.mrb[0].mxu0
      %v2389 = vadd.f32 0.0, %v2388
      %v2390 = vpop.f32.mrb[0].mxu0
      %v2391 = vpop.f32.mrb[0].mxu0
      %v2392 = vadd.f32 0.0, %v2391
      %v2393 = vpop.f32.mrb[0].mxu0
      %2394 = vmatprep.mubr.bf16.mxu0 0
      %2395 = vmatmul.mubr.bf16.gmra.mrb[0].mxu0 %v2174
      %v2396 = vpop.f32.mrb[0].mxu0
      %v2397 = vadd.f32 0.0, %v2396
      %v2398 = vpop.f32.mrb[0].mxu0
      %v2399 = vpop.f32.mrb[0].mxu0
      %v2400 = vadd.f32 0.0, %v2399
      %v2401 = vpop.f32.mrb[0].mxu0
      %2402 = vmatprep.mubr.bf16.mxu0 0
      %2403 = vmatmul.mubr.bf16.gmra.mrb[0].mxu0 %v2177
      %v2404 = vpop.f32.mrb[0].mxu0
      %v2405 = vadd.f32 0.0, %v2404
      %v2406 = vpop.f32.mrb[0].mxu0
      %v2407 = vpop.f32.mrb[0].mxu0
      %v2408 = vadd.f32 0.0, %v2407
      %v2409 = vpop.f32.mrb[0].mxu0
      %2410 = vmatprep.mubr.bf16.mxu0 0
      %2411 = vmatmul.mubr.bf16.gmra.mrb[0].mxu0 %v2180
      %v2412 = vpop.f32.mrb[0].mxu0
      %v2413 = vadd.f32 0.0, %v2412
      %v2414 = vpop.f32.mrb[0].mxu0
      %v2415 = vpop.f32.mrb[0].mxu0
      %v2416 = vadd.f32 0.0, %v2415
      %v2417 = vpop.f32.mrb[0].mxu0
      %2418 = vmatprep.mubr.bf16.mxu0 0
      %2419 = vmatmul.mubr.bf16.gmra.mrb[0].mxu0 %v2183
      %v2420 = vpop.f32.mrb[0].mxu0
      %v2421 = vadd.f32 0.0, %v2420
      %v2422 = vpop.f32.mrb[0].mxu0
      %v2423 = vpop.f32.mrb[0].mxu0
      %v2424 = vadd.f32 0.0, %v2423
      %v2425 = vpop.f32.mrb[0].mxu0
      %2426 = vmatprep.mubr.bf16.mxu0 0
      %2427 = vmatmul.mubr.bf16.gmra.mrb[0].mxu0 %v2186
      %v2428 = vpop.f32.mrb[0].mxu0
      %v2429 = vadd.f32 0.0, %v2428
      %v2430 = vpop.f32.mrb[0].mxu0
      %v2431 = vpop.f32.mrb[0].mxu0
      %v2432 = vadd.f32 0.0, %v2431
      %v2433 = vpop.f32.mrb[0].mxu0
      %2434 = vmatprep.mubr.bf16.mxu0 0
      %2435 = vmatmul.mubr.bf16.gmra.mrb[0].mxu0 %v2189
      %v2436 = vpop.f32.mrb[0].mxu0
      %v2437 = vadd.f32 0.0, %v2436
      %v2438 = vpop.f32.mrb[0].mxu0
      %v2439 = vpop.f32.mrb[0].mxu0
      %v2440 = vadd.f32 0.0, %v2439
      %v2441 = vpop.f32.mrb[0].mxu0
      %2442 = vdwg.mxu0
      %v2443 = vadd.f32 %v1973, %v2229
      %v2444 = vadd.f32 %v1974, %v2232
      %v2445 = vadd.f32 %v1975, %v2237
      %v2446 = vadd.f32 %v1976, %v2240
      %v2447 = vadd.f32 %v1977, %v2245
      %v2448 = vadd.f32 %v1978, %v2248
      %v2449 = vadd.f32 %v1979, %v2253
      %v2450 = vadd.f32 %v1980, %v2256
      %v2451 = vadd.f32 %v1981, %v2261
      %v2452 = vadd.f32 %v1982, %v2264
      %v2453 = vadd.f32 %v1983, %v2269
      %v2454 = vadd.f32 %v1984, %v2272
      %v2455 = vadd.f32 %v1985, %v2277
      %v2456 = vadd.f32 %v1986, %v2280
      %v2457 = vadd.f32 %v1987, %v2285
      %v2458 = vadd.f32 %v1988, %v2288
      %v2459 = vadd.f32 %v1989, %v2293
      %v2460 = vadd.f32 %v1990, %v2296
      %v2461 = vadd.f32 %v1991, %v2301
      %v2462 = vadd.f32 %v1992, %v2304
      %v2463 = vadd.f32 %v1993, %v2309
      %v2464 = vadd.f32 %v1994, %v2312
      %v2465 = vadd.f32 %v1995, %v2317
      %v2466 = vadd.f32 %v1996, %v2320
      %v2467 = vadd.f32 %v1997, %v2325
      %v2468 = vadd.f32 %v1998, %v2328
      %v2469 = vadd.f32 %v1999, %v2333
      %v2470 = vadd.f32 %v2000, %v2336
      %v2471 = vadd.f32 %v2001, %v2341
      %v2472 = vadd.f32 %v2002, %v2344
      %v2473 = vadd.f32 %v2003, %v2349
      %v2474 = vadd.f32 %v2004, %v2352
      %v2475 = vadd.f32 %v2005, %v2357
      %v2476 = vadd.f32 %v2006, %v2360
      %v2477 = vadd.f32 %v2007, %v2365
      %v2478 = vadd.f32 %v2008, %v2368
      %v2479 = vadd.f32 %v2009, %v2373
      %v2480 = vadd.f32 %v2010, %v2376
      %v2481 = vadd.f32 %v2011, %v2381
      %v2482 = vadd.f32 %v2012, %v2384
      %v2483 = vadd.f32 %v2013, %v2389
      %v2484 = vadd.f32 %v2014, %v2392
      %v2485 = vadd.f32 %v2015, %v2397
      %v2486 = vadd.f32 %v2016, %v2400
      %v2487 = vadd.f32 %v2017, %v2405
      %v2488 = vadd.f32 %v2018, %v2408
      %v2489 = vadd.f32 %v2019, %v2413
      %v2490 = vadd.f32 %v2020, %v2416
      %v2491 = vadd.f32 %v2021, %v2421
      %v2492 = vadd.f32 %v2022, %v2424
      %v2493 = vadd.f32 %v2023, %v2429
      %v2494 = vadd.f32 %v2024, %v2432
      %v2495 = vadd.f32 %v2025, %v2437
      %v2496 = vadd.f32 %v2026, %v2440
      %v2497 = vld [vmem:[%s1556 + $0x2] sm:$0xff]
      %v2498 = vld [vmem:[%s1556 + $0xa] sm:$0xff]
      %v2499 = vld [vmem:[%s1556 + $0x12] sm:$0xff]
      %v2500 = vld [vmem:[%s1556 + $0x22] sm:$0xff]
      %v2501 = vld [vmem:[%s1556 + $0x2a] sm:$0xff]
      %v2502 = vld [vmem:[%s1556 + $0x32] sm:$0xff]
      %v2503 = vld [vmem:[%s1556 + $0x42] sm:$0xff]
      %v2504 = vld [vmem:[%s1556 + $0x4a] sm:$0xff]
      %v2505 = vld [vmem:[%s1556 + $0x52] sm:$0xff]
      %v2506 = vld [vmem:[%s1556 + $0x62] sm:$0xff]
      %v2507 = vld [vmem:[%s1556 + $0x6a] sm:$0xff]
      %v2508 = vld [vmem:[%s1556 + $0x72] sm:$0xff]
      %v2509 = vld [vmem:[%s1556 + $0x82] sm:$0xff]
      %v2510 = vld [vmem:[%s1556 + $0x8a] sm:$0xff]
      %v2511 = vld [vmem:[%s1556 + $0x92] sm:$0xff]
      %v2512 = vld [vmem:[%s1556 + $0xa2] sm:$0xff]
      %v2513 = vld [vmem:[%s1556 + $0xaa] sm:$0xff]
      %v2514 = vld [vmem:[%s1556 + $0xb2] sm:$0xff]
      %v2515 = vld [vmem:[%s1556 + $0xc2] sm:$0xff]
      %v2516 = vld [vmem:[%s1556 + $0xca] sm:$0xff]
      %v2517 = vld [vmem:[%s1556 + $0xd2] sm:$0xff]
      %v2518 = vld [vmem:[%s1556 + $0xe2] sm:$0xff]
      %v2519 = vld [vmem:[%s1556 + $0xea] sm:$0xff]
      %v2520 = vld [vmem:[%s1556 + $0xf2] sm:$0xff]
      %v2521 = vld [vmem:[%s1556 + $0x102] sm:$0xff]
      %v2522 = vld [vmem:[%s1556 + $0x10a] sm:$0xff]
      %v2523 = vld [vmem:[%s1556 + $0x112] sm:$0xff]
      %v2524 = vld [vmem:[%s1556 + $0x122] sm:$0xff]
      %v2525 = vld [vmem:[%s1556 + $0x12a] sm:$0xff]
      %v2526 = vld [vmem:[%s1556 + $0x132] sm:$0xff]
      %v2527 = vld [vmem:[%s1556 + $0x142] sm:$0xff]
      %v2528 = vld [vmem:[%s1556 + $0x14a] sm:$0xff]
      %v2529 = vld [vmem:[%s1556 + $0x152] sm:$0xff]
      %v2530 = vld [vmem:[%s1556 + $0x162] sm:$0xff]
      %v2531 = vld [vmem:[%s1556 + $0x16a] sm:$0xff]
      %v2532 = vld [vmem:[%s1556 + $0x172] sm:$0xff]
      %v2533 = vld [vmem:[%s1556 + $0x182] sm:$0xff]
      %v2534 = vld [vmem:[%s1556 + $0x18a] sm:$0xff]
      %v2535 = vld [vmem:[%s1556 + $0x192] sm:$0xff]
      %v2536 = vld [vmem:[%s1556 + $0x1a2] sm:$0xff]
      %v2537 = vld [vmem:[%s1556 + $0x1aa] sm:$0xff]
      %v2538 = vld [vmem:[%s1556 + $0x1b2] sm:$0xff]
      %v2539 = vld [vmem:[%s1556 + $0x1c2] sm:$0xff]
      %v2540 = vld [vmem:[%s1556 + $0x1ca] sm:$0xff]
      %v2541 = vld [vmem:[%s1556 + $0x1d2] sm:$0xff]
      %v2542 = vld [vmem:[%s1556 + $0x1e2] sm:$0xff]
      %v2543 = vld [vmem:[%s1556 + $0x1ea] sm:$0xff]
      %v2544 = vld [vmem:[%s1556 + $0x1f2] sm:$0xff]
      %v2545 = vld [vmem:[%s1556 + $0x202] sm:$0xff]
      %v2546 = vld [vmem:[%s1556 + $0x20a] sm:$0xff]
      %v2547 = vld [vmem:[%s1556 + $0x212] sm:$0xff]
      %v2548 = vld [vmem:[%s1556 + $0x222] sm:$0xff]
      %v2549 = vld [vmem:[%s1556 + $0x22a] sm:$0xff]
      %v2550 = vld [vmem:[%s1556 + $0x232] sm:$0xff]
      %v2551 = vpack.c.bf16 %v2498, %v2497
      %v2552 = vpack.c.bf16 %v2500, %v2499
      %v2553 = vpack.c.bf16 %v2502, %v2501
      %v2554 = vpack.c.bf16 %v2504, %v2503
      %v2555 = vpack.c.bf16 %v2506, %v2505
      %v2556 = vpack.c.bf16 %v2508, %v2507
      %v2557 = vpack.c.bf16 %v2510, %v2509
      %v2558 = vpack.c.bf16 %v2512, %v2511
      %v2559 = vpack.c.bf16 %v2514, %v2513
      %v2560 = vpack.c.bf16 %v2516, %v2515
      %v2561 = vpack.c.bf16 %v2518, %v2517
      %v2562 = vpack.c.bf16 %v2520, %v2519
      %v2563 = vpack.c.bf16 %v2522, %v2521
      %v2564 = vpack.c.bf16 %v2524, %v2523
      %v2565 = vpack.c.bf16 %v2526, %v2525
      %v2566 = vpack.c.bf16 %v2528, %v2527
      %v2567 = vpack.c.bf16 %v2530, %v2529
      %v2568 = vpack.c.bf16 %v2532, %v2531
      %v2569 = vpack.c.bf16 %v2534, %v2533
      %v2570 = vpack.c.bf16 %v2536, %v2535
      %v2571 = vpack.c.bf16 %v2538, %v2537
      %v2572 = vpack.c.bf16 %v2540, %v2539
      %v2573 = vpack.c.bf16 %v2542, %v2541
      %v2574 = vpack.c.bf16 %v2544, %v2543
      %v2575 = vpack.c.bf16 %v2546, %v2545
      %v2576 = vpack.c.bf16 %v2548, %v2547
      %v2577 = vpack.c.bf16 %v2550, %v2549
      %s2578 = scalar_lea.vmem %s2, 20
      %v2579 = vld [vmem:[%s2578] sm:$0xf]
      %v2581 = vsel %vm418, %v2551, 0
      %v2584 = vsel %vm418, %v2552, 0
      %v2587 = vsel %vm418, %v2553, 0
      %v2590 = vsel %vm418, %v2554, 0
      %v2593 = vsel %vm418, %v2555, 0
      %v2596 = vsel %vm418, %v2556, 0
      %v2599 = vsel %vm418, %v2557, 0
      %v2602 = vsel %vm418, %v2558, 0
      %v2605 = vsel %vm418, %v2559, 0
      %v2608 = vsel %vm418, %v2560, 0
      %v2611 = vsel %vm418, %v2561, 0
      %v2614 = vsel %vm418, %v2562, 0
      %v2617 = vsel %vm418, %v2563, 0
      %v2620 = vsel %vm418, %v2564, 0
      %v2623 = vsel %vm418, %v2565, 0
      %v2626 = vsel %vm418, %v2566, 0
      %v2629 = vsel %vm418, %v2567, 0
      %v2632 = vsel %vm418, %v2568, 0
      %v2635 = vsel %vm418, %v2569, 0
      %v2638 = vsel %vm418, %v2570, 0
      %v2641 = vsel %vm418, %v2571, 0
      %v2644 = vsel %vm418, %v2572, 0
      %v2647 = vsel %vm418, %v2573, 0
      %v2650 = vsel %vm418, %v2574, 0
      %v2653 = vsel %vm418, %v2575, 0
      %v2656 = vsel %vm418, %v2576, 0
      %v2659 = vsel %vm418, %v2577, 0
      %v2662 = vsel %vm500, %v2579, 0
      %2664 = vmatprep.subr.bf16.mxu0 0
      %2665 = vmatpush1.bf16.msra.mxu0 %v2662
      %2666 = vmatprep.subr.bf16.mxu0 0
      %2667 = vmatpush1.bf16.msra.mxu0 0
      %2668 = vmatprep.subr.bf16.mxu0 0
      %2669 = vmatpush1.bf16.msra.mxu0 0
      %2670 = vmatprep.subr.bf16.mxu0 0
      %2671 = vmatpush1.bf16.msra.mxu0 0
      %2672 = vmatprep.subr.bf16.mxu0 0
      %2673 = vmatpush1.bf16.msra.mxu0 0
      %2674 = vmatprep.subr.bf16.mxu0 0
      %2675 = vmatpush1.bf16.msra.mxu0 0
      %2676 = vmatprep.subr.bf16.mxu0 0
      %2677 = vmatpush1.bf16.msra.mxu0 0
      %2678 = vmatprep.subr.bf16.mxu0 0
      %2679 = vmatpush1.bf16.msra.mxu0 0
      %2680 = vmatprep.subr.bf16.mxu0 0
      %2681 = vmatpush1.bf16.msra.mxu0 0
      %2682 = vmatprep.subr.bf16.mxu0 0
      %2683 = vmatpush1.bf16.msra.mxu0 0
      %2684 = vmatprep.subr.bf16.mxu0 0
      %2685 = vmatpush1.bf16.msra.mxu0 0
      %2686 = vmatprep.subr.bf16.mxu0 0
      %2687 = vmatpush1.bf16.msra.mxu0 0
      %2688 = vmatprep.subr.bf16.mxu0 0
      %2689 = vmatpush1.bf16.msra.mxu0 0
      %2690 = vmatprep.subr.bf16.mxu0 0
      %2691 = vmatpush1.bf16.msra.mxu0 0
      %2692 = vmatprep.subr.bf16.mxu0 0
      %2693 = vmatpush1.bf16.msra.mxu0 0
      %2694 = vmatprep.subr.bf16.mxu0 0
      %2695 = vmatpush1.bf16.msra.mxu0 0
      %2696 = vmatprep.mubr.bf16.mxu0 0
      %2697 = vmatmul.mubr.bf16.gmra.mrb[0].mxu0 %v2581
      %v2698 = vpop.f32.mrb[0].mxu0
      %v2699 = vadd.f32 0.0, %v2698
      %v2700 = vpop.f32.mrb[0].mxu0
      %v2701 = vpop.f32.mrb[0].mxu0
      %v2702 = vadd.f32 0.0, %v2701
      %v2703 = vpop.f32.mrb[0].mxu0
      %2704 = vmatprep.mubr.bf16.mxu0 0
      %2705 = vmatmul.mubr.bf16.gmra.mrb[0].mxu0 %v2584
      %v2706 = vpop.f32.mrb[0].mxu0
      %v2707 = vadd.f32 0.0, %v2706
      %v2708 = vpop.f32.mrb[0].mxu0
      %v2709 = vpop.f32.mrb[0].mxu0
      %v2710 = vadd.f32 0.0, %v2709
      %v2711 = vpop.f32.mrb[0].mxu0
      %2712 = vmatprep.mubr.bf16.mxu0 0
      %2713 = vmatmul.mubr.bf16.gmra.mrb[0].mxu0 %v2587
      %v2714 = vpop.f32.mrb[0].mxu0
      %v2715 = vadd.f32 0.0, %v2714
      %v2716 = vpop.f32.mrb[0].mxu0
      %v2717 = vpop.f32.mrb[0].mxu0
      %v2718 = vadd.f32 0.0, %v2717
      %v2719 = vpop.f32.mrb[0].mxu0
      %2720 = vmatprep.mubr.bf16.mxu0 0
      %2721 = vmatmul.mubr.bf16.gmra.mrb[0].mxu0 %v2590
      %v2722 = vpop.f32.mrb[0].mxu0
      %v2723 = vadd.f32 0.0, %v2722
      %v2724 = vpop.f32.mrb[0].mxu0
      %v2725 = vpop.f32.mrb[0].mxu0
      %v2726 = vadd.f32 0.0, %v2725
      %v2727 = vpop.f32.mrb[0].mxu0
      %2728 = vmatprep.mubr.bf16.mxu0 0
      %2729 = vmatmul.mubr.bf16.gmra.mrb[0].mxu0 %v2593
      %v2730 = vpop.f32.mrb[0].mxu0
      %v2731 = vadd.f32 0.0, %v2730
      %v2732 = vpop.f32.mrb[0].mxu0
      %v2733 = vpop.f32.mrb[0].mxu0
      %v2734 = vadd.f32 0.0, %v2733
      %v2735 = vpop.f32.mrb[0].mxu0
      %2736 = vmatprep.mubr.bf16.mxu0 0
      %2737 = vmatmul.mubr.bf16.gmra.mrb[0].mxu0 %v2596
      %v2738 = vpop.f32.mrb[0].mxu0
      %v2739 = vadd.f32 0.0, %v2738
      %v2740 = vpop.f32.mrb[0].mxu0
      %v2741 = vpop.f32.mrb[0].mxu0
      %v2742 = vadd.f32 0.0, %v2741
      %v2743 = vpop.f32.mrb[0].mxu0
      %2744 = vmatprep.mubr.bf16.mxu0 0
      %2745 = vmatmul.mubr.bf16.gmra.mrb[0].mxu0 %v2599
      %v2746 = vpop.f32.mrb[0].mxu0
      %v2747 = vadd.f32 0.0, %v2746
      %v2748 = vpop.f32.mrb[0].mxu0
      %v2749 = vpop.f32.mrb[0].mxu0
      %v2750 = vadd.f32 0.0, %v2749
      %v2751 = vpop.f32.mrb[0].mxu0
      %2752 = vmatprep.mubr.bf16.mxu0 0
      %2753 = vmatmul.mubr.bf16.gmra.mrb[0].mxu0 %v2602
      %v2754 = vpop.f32.mrb[0].mxu0
      %v2755 = vadd.f32 0.0, %v2754
      %v2756 = vpop.f32.mrb[0].mxu0
      %v2757 = vpop.f32.mrb[0].mxu0
      %v2758 = vadd.f32 0.0, %v2757
      %v2759 = vpop.f32.mrb[0].mxu0
      %2760 = vmatprep.mubr.bf16.mxu0 0
      %2761 = vmatmul.mubr.bf16.gmra.mrb[0].mxu0 %v2605
      %v2762 = vpop.f32.mrb[0].mxu0
      %v2763 = vadd.f32 0.0, %v2762
      %v2764 = vpop.f32.mrb[0].mxu0
      %v2765 = vpop.f32.mrb[0].mxu0
      %v2766 = vadd.f32 0.0, %v2765
      %v2767 = vpop.f32.mrb[0].mxu0
      %2768 = vmatprep.mubr.bf16.mxu0 0
      %2769 = vmatmul.mubr.bf16.gmra.mrb[0].mxu0 %v2608
      %v2770 = vpop.f32.mrb[0].mxu0
      %v2771 = vadd.f32 0.0, %v2770
      %v2772 = vpop.f32.mrb[0].mxu0
      %v2773 = vpop.f32.mrb[0].mxu0
      %v2774 = vadd.f32 0.0, %v2773
      %v2775 = vpop.f32.mrb[0].mxu0
      %2776 = vmatprep.mubr.bf16.mxu0 0
      %2777 = vmatmul.mubr.bf16.gmra.mrb[0].mxu0 %v2611
      %v2778 = vpop.f32.mrb[0].mxu0
      %v2779 = vadd.f32 0.0, %v2778
      %v2780 = vpop.f32.mrb[0].mxu0
      %v2781 = vpop.f32.mrb[0].mxu0
      %v2782 = vadd.f32 0.0, %v2781
      %v2783 = vpop.f32.mrb[0].mxu0
      %2784 = vmatprep.mubr.bf16.mxu0 0
      %2785 = vmatmul.mubr.bf16.gmra.mrb[0].mxu0 %v2614
      %v2786 = vpop.f32.mrb[0].mxu0
      %v2787 = vadd.f32 0.0, %v2786
      %v2788 = vpop.f32.mrb[0].mxu0
      %v2789 = vpop.f32.mrb[0].mxu0
      %v2790 = vadd.f32 0.0, %v2789
      %v2791 = vpop.f32.mrb[0].mxu0
      %2792 = vmatprep.mubr.bf16.mxu0 0
      %2793 = vmatmul.mubr.bf16.gmra.mrb[0].mxu0 %v2617
      %v2794 = vpop.f32.mrb[0].mxu0
      %v2795 = vadd.f32 0.0, %v2794
      %v2796 = vpop.f32.mrb[0].mxu0
      %v2797 = vpop.f32.mrb[0].mxu0
      %v2798 = vadd.f32 0.0, %v2797
      %v2799 = vpop.f32.mrb[0].mxu0
      %2800 = vmatprep.mubr.bf16.mxu0 0
      %2801 = vmatmul.mubr.bf16.gmra.mrb[0].mxu0 %v2620
      %v2802 = vpop.f32.mrb[0].mxu0
      %v2803 = vadd.f32 0.0, %v2802
      %v2804 = vpop.f32.mrb[0].mxu0
      %v2805 = vpop.f32.mrb[0].mxu0
      %v2806 = vadd.f32 0.0, %v2805
      %v2807 = vpop.f32.mrb[0].mxu0
      %2808 = vmatprep.mubr.bf16.mxu0 0
      %2809 = vmatmul.mubr.bf16.gmra.mrb[0].mxu0 %v2623
      %v2810 = vpop.f32.mrb[0].mxu0
      %v2811 = vadd.f32 0.0, %v2810
      %v2812 = vpop.f32.mrb[0].mxu0
      %v2813 = vpop.f32.mrb[0].mxu0
      %v2814 = vadd.f32 0.0, %v2813
      %v2815 = vpop.f32.mrb[0].mxu0
      %2816 = vmatprep.mubr.bf16.mxu0 0
      %2817 = vmatmul.mubr.bf16.gmra.mrb[0].mxu0 %v2626
      %v2818 = vpop.f32.mrb[0].mxu0
      %v2819 = vadd.f32 0.0, %v2818
      %v2820 = vpop.f32.mrb[0].mxu0
      %v2821 = vpop.f32.mrb[0].mxu0
      %v2822 = vadd.f32 0.0, %v2821
      %v2823 = vpop.f32.mrb[0].mxu0
      %2824 = vmatprep.mubr.bf16.mxu0 0
      %2825 = vmatmul.mubr.bf16.gmra.mrb[0].mxu0 %v2629
      %v2826 = vpop.f32.mrb[0].mxu0
      %v2827 = vadd.f32 0.0, %v2826
      %v2828 = vpop.f32.mrb[0].mxu0
      %v2829 = vpop.f32.mrb[0].mxu0
      %v2830 = vadd.f32 0.0, %v2829
      %v2831 = vpop.f32.mrb[0].mxu0
      %2832 = vmatprep.mubr.bf16.mxu0 0
      %2833 = vmatmul.mubr.bf16.gmra.mrb[0].mxu0 %v2632
      %v2834 = vpop.f32.mrb[0].mxu0
      %v2835 = vadd.f32 0.0, %v2834
      %v2836 = vpop.f32.mrb[0].mxu0
      %v2837 = vpop.f32.mrb[0].mxu0
      %v2838 = vadd.f32 0.0, %v2837
      %v2839 = vpop.f32.mrb[0].mxu0
      %2840 = vmatprep.mubr.bf16.mxu0 0
      %2841 = vmatmul.mubr.bf16.gmra.mrb[0].mxu0 %v2635
      %v2842 = vpop.f32.mrb[0].mxu0
      %v2843 = vadd.f32 0.0, %v2842
      %v2844 = vpop.f32.mrb[0].mxu0
      %v2845 = vpop.f32.mrb[0].mxu0
      %v2846 = vadd.f32 0.0, %v2845
      %v2847 = vpop.f32.mrb[0].mxu0
      %2848 = vmatprep.mubr.bf16.mxu0 0
      %2849 = vmatmul.mubr.bf16.gmra.mrb[0].mxu0 %v2638
      %v2850 = vpop.f32.mrb[0].mxu0
      %v2851 = vadd.f32 0.0, %v2850
      %v2852 = vpop.f32.mrb[0].mxu0
      %v2853 = vpop.f32.mrb[0].mxu0
      %v2854 = vadd.f32 0.0, %v2853
      %v2855 = vpop.f32.mrb[0].mxu0
      %2856 = vmatprep.mubr.bf16.mxu0 0
      %2857 = vmatmul.mubr.bf16.gmra.mrb[0].mxu0 %v2641
      %v2858 = vpop.f32.mrb[0].mxu0
      %v2859 = vadd.f32 0.0, %v2858
      %v2860 = vpop.f32.mrb[0].mxu0
      %v2861 = vpop.f32.mrb[0].mxu0
      %v2862 = vadd.f32 0.0, %v2861
      %v2863 = vpop.f32.mrb[0].mxu0
      %2864 = vmatprep.mubr.bf16.mxu0 0
      %2865 = vmatmul.mubr.bf16.gmra.mrb[0].mxu0 %v2644
      %v2866 = vpop.f32.mrb[0].mxu0
      %v2867 = vadd.f32 0.0, %v2866
      %v2868 = vpop.f32.mrb[0].mxu0
      %v2869 = vpop.f32.mrb[0].mxu0
      %v2870 = vadd.f32 0.0, %v2869
      %v2871 = vpop.f32.mrb[0].mxu0
      %2872 = vmatprep.mubr.bf16.mxu0 0
      %2873 = vmatmul.mubr.bf16.gmra.mrb[0].mxu0 %v2647
      %v2874 = vpop.f32.mrb[0].mxu0
      %v2875 = vadd.f32 0.0, %v2874
      %v2876 = vpop.f32.mrb[0].mxu0
      %v2877 = vpop.f32.mrb[0].mxu0
      %v2878 = vadd.f32 0.0, %v2877
      %v2879 = vpop.f32.mrb[0].mxu0
      %2880 = vmatprep.mubr.bf16.mxu0 0
      %2881 = vmatmul.mubr.bf16.gmra.mrb[0].mxu0 %v2650
      %v2882 = vpop.f32.mrb[0].mxu0
      %v2883 = vadd.f32 0.0, %v2882
      %v2884 = vpop.f32.mrb[0].mxu0
      %v2885 = vpop.f32.mrb[0].mxu0
      %v2886 = vadd.f32 0.0, %v2885
      %v2887 = vpop.f32.mrb[0].mxu0
      %2888 = vmatprep.mubr.bf16.mxu0 0
      %2889 = vmatmul.mubr.bf16.gmra.mrb[0].mxu0 %v2653
      %v2890 = vpop.f32.mrb[0].mxu0
      %v2891 = vadd.f32 0.0, %v2890
      %v2892 = vpop.f32.mrb[0].mxu0
      %v2893 = vpop.f32.mrb[0].mxu0
      %v2894 = vadd.f32 0.0, %v2893
      %v2895 = vpop.f32.mrb[0].mxu0
      %2896 = vmatprep.mubr.bf16.mxu0 0
      %2897 = vmatmul.mubr.bf16.gmra.mrb[0].mxu0 %v2656
      %v2898 = vpop.f32.mrb[0].mxu0
      %v2899 = vadd.f32 0.0, %v2898
      %v2900 = vpop.f32.mrb[0].mxu0
      %v2901 = vpop.f32.mrb[0].mxu0
      %v2902 = vadd.f32 0.0, %v2901
      %v2903 = vpop.f32.mrb[0].mxu0
      %2904 = vmatprep.mubr.bf16.mxu0 0
      %2905 = vmatmul.mubr.bf16.gmra.mrb[0].mxu0 %v2659
      %v2906 = vpop.f32.mrb[0].mxu0
      %v2907 = vadd.f32 0.0, %v2906
      %v2908 = vpop.f32.mrb[0].mxu0
      %v2909 = vpop.f32.mrb[0].mxu0
      %v2910 = vadd.f32 0.0, %v2909
      %v2911 = vpop.f32.mrb[0].mxu0
      %2912 = vdwg.mxu0
      %v2913 = vadd.f32 %v2443, %v2699
      %v2914 = vadd.f32 %v2444, %v2702
      %v2915 = vadd.f32 %v2445, %v2707
      %v2916 = vadd.f32 %v2446, %v2710
      %v2917 = vadd.f32 %v2447, %v2715
      %v2918 = vadd.f32 %v2448, %v2718
      %v2919 = vadd.f32 %v2449, %v2723
      %v2920 = vadd.f32 %v2450, %v2726
      %v2921 = vadd.f32 %v2451, %v2731
      %v2922 = vadd.f32 %v2452, %v2734
      %v2923 = vadd.f32 %v2453, %v2739
      %v2924 = vadd.f32 %v2454, %v2742
      %v2925 = vadd.f32 %v2455, %v2747
      %v2926 = vadd.f32 %v2456, %v2750
      %v2927 = vadd.f32 %v2457, %v2755
      %v2928 = vadd.f32 %v2458, %v2758
      %v2929 = vadd.f32 %v2459, %v2763
      %v2930 = vadd.f32 %v2460, %v2766
      %v2931 = vadd.f32 %v2461, %v2771
      %v2932 = vadd.f32 %v2462, %v2774
      %v2933 = vadd.f32 %v2463, %v2779
      %v2934 = vadd.f32 %v2464, %v2782
      %v2935 = vadd.f32 %v2465, %v2787
      %v2936 = vadd.f32 %v2466, %v2790
      %v2937 = vadd.f32 %v2467, %v2795
      %v2938 = vadd.f32 %v2468, %v2798
      %v2939 = vadd.f32 %v2469, %v2803
      %v2940 = vadd.f32 %v2470, %v2806
      %v2941 = vadd.f32 %v2471, %v2811
      %v2942 = vadd.f32 %v2472, %v2814
      %v2943 = vadd.f32 %v2473, %v2819
      %v2944 = vadd.f32 %v2474, %v2822
      %v2945 = vadd.f32 %v2475, %v2827
      %v2946 = vadd.f32 %v2476, %v2830
      %v2947 = vadd.f32 %v2477, %v2835
      %v2948 = vadd.f32 %v2478, %v2838
      %v2949 = vadd.f32 %v2479, %v2843
      %v2950 = vadd.f32 %v2480, %v2846
      %v2951 = vadd.f32 %v2481, %v2851
      %v2952 = vadd.f32 %v2482, %v2854
      %v2953 = vadd.f32 %v2483, %v2859
      %v2954 = vadd.f32 %v2484, %v2862
      %v2955 = vadd.f32 %v2485, %v2867
      %v2956 = vadd.f32 %v2486, %v2870
      %v2957 = vadd.f32 %v2487, %v2875
      %v2958 = vadd.f32 %v2488, %v2878
      %v2959 = vadd.f32 %v2489, %v2883
      %v2960 = vadd.f32 %v2490, %v2886
      %v2961 = vadd.f32 %v2491, %v2891
      %v2962 = vadd.f32 %v2492, %v2894
      %v2963 = vadd.f32 %v2493, %v2899
      %v2964 = vadd.f32 %v2494, %v2902
      %v2965 = vadd.f32 %v2495, %v2907
      %v2966 = vadd.f32 %v2496, %v2910
      %s2967 = scalar_lea.vmem %s246, 64
      %v2968 = vld [vmem:[%s2967] sm:$0xff]
      %v2969 = vld [vmem:[%s2967 + $0x8] sm:$0xff]
      %v2970 = vld [vmem:[%s2967 + $0x10] sm:$0xff]
      %v2971 = vld [vmem:[%s2967 + $0x20] sm:$0xff]
      %v2972 = vld [vmem:[%s2967 + $0x28] sm:$0xff]
      %v2973 = vld [vmem:[%s2967 + $0x30] sm:$0xff]
      %v2974 = vld [vmem:[%s2967 + $0x40] sm:$0xff]
      %v2975 = vld [vmem:[%s2967 + $0x48] sm:$0xff]
      %v2976 = vld [vmem:[%s2967 + $0x50] sm:$0xff]
      %v2977 = vld [vmem:[%s2967 + $0x60] sm:$0xff]
      %v2978 = vld [vmem:[%s2967 + $0x68] sm:$0xff]
      %v2979 = vld [vmem:[%s2967 + $0x70] sm:$0xff]
      %v2980 = vld [vmem:[%s2967 + $0x80] sm:$0xff]
      %v2981 = vld [vmem:[%s2967 + $0x88] sm:$0xff]
      %v2982 = vld [vmem:[%s2967 + $0x90] sm:$0xff]
      %v2983 = vld [vmem:[%s2967 + $0xa0] sm:$0xff]
      %v2984 = vld [vmem:[%s2967 + $0xa8] sm:$0xff]
      %v2985 = vld [vmem:[%s2967 + $0xb0] sm:$0xff]
      %v2986 = vld [vmem:[%s2967 + $0xc0] sm:$0xff]
      %v2987 = vld [vmem:[%s2967 + $0xc8] sm:$0xff]
      %v2988 = vld [vmem:[%s2967 + $0xd0] sm:$0xff]
      %v2989 = vld [vmem:[%s2967 + $0xe0] sm:$0xff]
      %v2990 = vld [vmem:[%s2967 + $0xe8] sm:$0xff]
      %v2991 = vld [vmem:[%s2967 + $0xf0] sm:$0xff]
      %v2992 = vld [vmem:[%s2967 + $0x100] sm:$0xff]
      %v2993 = vld [vmem:[%s2967 + $0x108] sm:$0xff]
      %v2994 = vld [vmem:[%s2967 + $0x110] sm:$0xff]
      %v2995 = vld [vmem:[%s2967 + $0x120] sm:$0xff]
      %v2996 = vld [vmem:[%s2967 + $0x128] sm:$0xff]
      %v2997 = vld [vmem:[%s2967 + $0x130] sm:$0xff]
      %v2998 = vld [vmem:[%s2967 + $0x140] sm:$0xff]
      %v2999 = vld [vmem:[%s2967 + $0x148] sm:$0xff]
      %v3000 = vld [vmem:[%s2967 + $0x150] sm:$0xff]
      %v3001 = vld [vmem:[%s2967 + $0x160] sm:$0xff]
      %v3002 = vld [vmem:[%s2967 + $0x168] sm:$0xff]
      %v3003 = vld [vmem:[%s2967 + $0x170] sm:$0xff]
      %v3004 = vld [vmem:[%s2967 + $0x180] sm:$0xff]
      %v3005 = vld [vmem:[%s2967 + $0x188] sm:$0xff]
      %v3006 = vld [vmem:[%s2967 + $0x190] sm:$0xff]
      %v3007 = vld [vmem:[%s2967 + $0x1a0] sm:$0xff]
      %v3008 = vld [vmem:[%s2967 + $0x1a8] sm:$0xff]
      %v3009 = vld [vmem:[%s2967 + $0x1b0] sm:$0xff]
      %v3010 = vld [vmem:[%s2967 + $0x1c0] sm:$0xff]
      %v3011 = vld [vmem:[%s2967 + $0x1c8] sm:$0xff]
      %v3012 = vld [vmem:[%s2967 + $0x1d0] sm:$0xff]
      %v3013 = vld [vmem:[%s2967 + $0x1e0] sm:$0xff]
      %v3014 = vld [vmem:[%s2967 + $0x1e8] sm:$0xff]
      %v3015 = vld [vmem:[%s2967 + $0x1f0] sm:$0xff]
      %v3016 = vld [vmem:[%s2967 + $0x200] sm:$0xff]
      %v3017 = vld [vmem:[%s2967 + $0x208] sm:$0xff]
      %v3018 = vld [vmem:[%s2967 + $0x210] sm:$0xff]
      %v3019 = vld [vmem:[%s2967 + $0x220] sm:$0xff]
      %v3020 = vld [vmem:[%s2967 + $0x228] sm:$0xff]
      %v3021 = vld [vmem:[%s2967 + $0x230] sm:$0xff]
      %v3022 = vpack.c.bf16 %v2969, %v2968
      %v3023 = vpack.c.bf16 %v2971, %v2970
      %v3024 = vpack.c.bf16 %v2973, %v2972
      %v3025 = vpack.c.bf16 %v2975, %v2974
      %v3026 = vpack.c.bf16 %v2977, %v2976
      %v3027 = vpack.c.bf16 %v2979, %v2978
      %v3028 = vpack.c.bf16 %v2981, %v2980
      %v3029 = vpack.c.bf16 %v2983, %v2982
      %v3030 = vpack.c.bf16 %v2985, %v2984
      %v3031 = vpack.c.bf16 %v2987, %v2986
      %v3032 = vpack.c.bf16 %v2989, %v2988
      %v3033 = vpack.c.bf16 %v2991, %v2990
      %v3034 = vpack.c.bf16 %v2993, %v2992
      %v3035 = vpack.c.bf16 %v2995, %v2994
      %v3036 = vpack.c.bf16 %v2997, %v2996
      %v3037 = vpack.c.bf16 %v2999, %v2998
      %v3038 = vpack.c.bf16 %v3001, %v3000
      %v3039 = vpack.c.bf16 %v3003, %v3002
      %v3040 = vpack.c.bf16 %v3005, %v3004
      %v3041 = vpack.c.bf16 %v3007, %v3006
      %v3042 = vpack.c.bf16 %v3009, %v3008
      %v3043 = vpack.c.bf16 %v3011, %v3010
      %v3044 = vpack.c.bf16 %v3013, %v3012
      %v3045 = vpack.c.bf16 %v3015, %v3014
      %v3046 = vpack.c.bf16 %v3017, %v3016
      %v3047 = vpack.c.bf16 %v3019, %v3018
      %v3048 = vpack.c.bf16 %v3021, %v3020
      %s3049 = scalar_lea.vmem %s2, 24
      %v3050 = vld [vmem:[%s3049] sm:$0xf]
      %v3052 = vsel %vm418, %v3022, 0
      %v3055 = vsel %vm418, %v3023, 0
      %v3058 = vsel %vm418, %v3024, 0
      %v3061 = vsel %vm418, %v3025, 0
      %v3064 = vsel %vm418, %v3026, 0
      %v3067 = vsel %vm418, %v3027, 0
      %v3070 = vsel %vm418, %v3028, 0
      %v3073 = vsel %vm418, %v3029, 0
      %v3076 = vsel %vm418, %v3030, 0
      %v3079 = vsel %vm418, %v3031, 0
      %v3082 = vsel %vm418, %v3032, 0
      %v3085 = vsel %vm418, %v3033, 0
      %v3088 = vsel %vm418, %v3034, 0
      %v3091 = vsel %vm418, %v3035, 0
      %v3094 = vsel %vm418, %v3036, 0
      %v3097 = vsel %vm418, %v3037, 0
      %v3100 = vsel %vm418, %v3038, 0
      %v3103 = vsel %vm418, %v3039, 0
      %v3106 = vsel %vm418, %v3040, 0
      %v3109 = vsel %vm418, %v3041, 0
      %v3112 = vsel %vm418, %v3042, 0
      %v3115 = vsel %vm418, %v3043, 0
      %v3118 = vsel %vm418, %v3044, 0
      %v3121 = vsel %vm418, %v3045, 0
      %v3124 = vsel %vm418, %v3046, 0
      %v3127 = vsel %vm418, %v3047, 0
      %v3130 = vsel %vm418, %v3048, 0
      %v3133 = vsel %vm500, %v3050, 0
      %3135 = vmatprep.subr.bf16.mxu0 0
      %3136 = vmatpush1.bf16.msra.mxu0 %v3133
      %3137 = vmatprep.subr.bf16.mxu0 0
      %3138 = vmatpush1.bf16.msra.mxu0 0
      %3139 = vmatprep.subr.bf16.mxu0 0
      %3140 = vmatpush1.bf16.msra.mxu0 0
      %3141 = vmatprep.subr.bf16.mxu0 0
      %3142 = vmatpush1.bf16.msra.mxu0 0
      %3143 = vmatprep.subr.bf16.mxu0 0
      %3144 = vmatpush1.bf16.msra.mxu0 0
      %3145 = vmatprep.subr.bf16.mxu0 0
      %3146 = vmatpush1.bf16.msra.mxu0 0
      %3147 = vmatprep.subr.bf16.mxu0 0
      %3148 = vmatpush1.bf16.msra.mxu0 0
      %3149 = vmatprep.subr.bf16.mxu0 0
      %3150 = vmatpush1.bf16.msra.mxu0 0
      %3151 = vmatprep.subr.bf16.mxu0 0
      %3152 = vmatpush1.bf16.msra.mxu0 0
      %3153 = vmatprep.subr.bf16.mxu0 0
      %3154 = vmatpush1.bf16.msra.mxu0 0
      %3155 = vmatprep.subr.bf16.mxu0 0
      %3156 = vmatpush1.bf16.msra.mxu0 0
      %3157 = vmatprep.subr.bf16.mxu0 0
      %3158 = vmatpush1.bf16.msra.mxu0 0
      %3159 = vmatprep.subr.bf16.mxu0 0
      %3160 = vmatpush1.bf16.msra.mxu0 0
      %3161 = vmatprep.subr.bf16.mxu0 0
      %3162 = vmatpush1.bf16.msra.mxu0 0
      %3163 = vmatprep.subr.bf16.mxu0 0
      %3164 = vmatpush1.bf16.msra.mxu0 0
      %3165 = vmatprep.subr.bf16.mxu0 0
      %3166 = vmatpush1.bf16.msra.mxu0 0
      %3167 = vmatprep.mubr.bf16.mxu0 0
      %3168 = vmatmul.mubr.bf16.gmra.mrb[0].mxu0 %v3052
      %v3169 = vpop.f32.mrb[0].mxu0
      %v3170 = vadd.f32 0.0, %v3169
      %v3171 = vpop.f32.mrb[0].mxu0
      %v3172 = vpop.f32.mrb[0].mxu0
      %v3173 = vadd.f32 0.0, %v3172
      %v3174 = vpop.f32.mrb[0].mxu0
      %3175 = vmatprep.mubr.bf16.mxu0 0
      %3176 = vmatmul.mubr.bf16.gmra.mrb[0].mxu0 %v3055
      %v3177 = vpop.f32.mrb[0].mxu0
      %v3178 = vadd.f32 0.0, %v3177
      %v3179 = vpop.f32.mrb[0].mxu0
      %v3180 = vpop.f32.mrb[0].mxu0
      %v3181 = vadd.f32 0.0, %v3180
      %v3182 = vpop.f32.mrb[0].mxu0
      %3183 = vmatprep.mubr.bf16.mxu0 0
      %3184 = vmatmul.mubr.bf16.gmra.mrb[0].mxu0 %v3058
      %v3185 = vpop.f32.mrb[0].mxu0
      %v3186 = vadd.f32 0.0, %v3185
      %v3187 = vpop.f32.mrb[0].mxu0
      %v3188 = vpop.f32.mrb[0].mxu0
      %v3189 = vadd.f32 0.0, %v3188
      %v3190 = vpop.f32.mrb[0].mxu0
      %3191 = vmatprep.mubr.bf16.mxu0 0
      %3192 = vmatmul.mubr.bf16.gmra.mrb[0].mxu0 %v3061
      %v3193 = vpop.f32.mrb[0].mxu0
      %v3194 = vadd.f32 0.0, %v3193
      %v3195 = vpop.f32.mrb[0].mxu0
      %v3196 = vpop.f32.mrb[0].mxu0
      %v3197 = vadd.f32 0.0, %v3196
      %v3198 = vpop.f32.mrb[0].mxu0
      %3199 = vmatprep.mubr.bf16.mxu0 0
      %3200 = vmatmul.mubr.bf16.gmra.mrb[0].mxu0 %v3064
      %v3201 = vpop.f32.mrb[0].mxu0
      %v3202 = vadd.f32 0.0, %v3201
      %v3203 = vpop.f32.mrb[0].mxu0
      %v3204 = vpop.f32.mrb[0].mxu0
      %v3205 = vadd.f32 0.0, %v3204
      %v3206 = vpop.f32.mrb[0].mxu0
      %3207 = vmatprep.mubr.bf16.mxu0 0
      %3208 = vmatmul.mubr.bf16.gmra.mrb[0].mxu0 %v3067
      %v3209 = vpop.f32.mrb[0].mxu0
      %v3210 = vadd.f32 0.0, %v3209
      %v3211 = vpop.f32.mrb[0].mxu0
      %v3212 = vpop.f32.mrb[0].mxu0
      %v3213 = vadd.f32 0.0, %v3212
      %v3214 = vpop.f32.mrb[0].mxu0
      %3215 = vmatprep.mubr.bf16.mxu0 0
      %3216 = vmatmul.mubr.bf16.gmra.mrb[0].mxu0 %v3070
      %v3217 = vpop.f32.mrb[0].mxu0
      %v3218 = vadd.f32 0.0, %v3217
      %v3219 = vpop.f32.mrb[0].mxu0
      %v3220 = vpop.f32.mrb[0].mxu0
      %v3221 = vadd.f32 0.0, %v3220
      %v3222 = vpop.f32.mrb[0].mxu0
      %3223 = vmatprep.mubr.bf16.mxu0 0
      %3224 = vmatmul.mubr.bf16.gmra.mrb[0].mxu0 %v3073
      %v3225 = vpop.f32.mrb[0].mxu0
      %v3226 = vadd.f32 0.0, %v3225
      %v3227 = vpop.f32.mrb[0].mxu0
      %v3228 = vpop.f32.mrb[0].mxu0
      %v3229 = vadd.f32 0.0, %v3228
      %v3230 = vpop.f32.mrb[0].mxu0
      %3231 = vmatprep.mubr.bf16.mxu0 0
      %3232 = vmatmul.mubr.bf16.gmra.mrb[0].mxu0 %v3076
      %v3233 = vpop.f32.mrb[0].mxu0
      %v3234 = vadd.f32 0.0, %v3233
      %v3235 = vpop.f32.mrb[0].mxu0
      %v3236 = vpop.f32.mrb[0].mxu0
      %v3237 = vadd.f32 0.0, %v3236
      %v3238 = vpop.f32.mrb[0].mxu0
      %3239 = vmatprep.mubr.bf16.mxu0 0
      %3240 = vmatmul.mubr.bf16.gmra.mrb[0].mxu0 %v3079
      %v3241 = vpop.f32.mrb[0].mxu0
      %v3242 = vadd.f32 0.0, %v3241
      %v3243 = vpop.f32.mrb[0].mxu0
      %v3244 = vpop.f32.mrb[0].mxu0
      %v3245 = vadd.f32 0.0, %v3244
      %v3246 = vpop.f32.mrb[0].mxu0
      %3247 = vmatprep.mubr.bf16.mxu0 0
      %3248 = vmatmul.mubr.bf16.gmra.mrb[0].mxu0 %v3082
      %v3249 = vpop.f32.mrb[0].mxu0
      %v3250 = vadd.f32 0.0, %v3249
      %v3251 = vpop.f32.mrb[0].mxu0
      %v3252 = vpop.f32.mrb[0].mxu0
      %v3253 = vadd.f32 0.0, %v3252
      %v3254 = vpop.f32.mrb[0].mxu0
      %3255 = vmatprep.mubr.bf16.mxu0 0
      %3256 = vmatmul.mubr.bf16.gmra.mrb[0].mxu0 %v3085
      %v3257 = vpop.f32.mrb[0].mxu0
      %v3258 = vadd.f32 0.0, %v3257
      %v3259 = vpop.f32.mrb[0].mxu0
      %v3260 = vpop.f32.mrb[0].mxu0
      %v3261 = vadd.f32 0.0, %v3260
      %v3262 = vpop.f32.mrb[0].mxu0
      %3263 = vmatprep.mubr.bf16.mxu0 0
      %3264 = vmatmul.mubr.bf16.gmra.mrb[0].mxu0 %v3088
      %v3265 = vpop.f32.mrb[0].mxu0
      %v3266 = vadd.f32 0.0, %v3265
      %v3267 = vpop.f32.mrb[0].mxu0
      %v3268 = vpop.f32.mrb[0].mxu0
      %v3269 = vadd.f32 0.0, %v3268
      %v3270 = vpop.f32.mrb[0].mxu0
      %3271 = vmatprep.mubr.bf16.mxu0 0
      %3272 = vmatmul.mubr.bf16.gmra.mrb[0].mxu0 %v3091
      %v3273 = vpop.f32.mrb[0].mxu0
      %v3274 = vadd.f32 0.0, %v3273
      %v3275 = vpop.f32.mrb[0].mxu0
      %v3276 = vpop.f32.mrb[0].mxu0
      %v3277 = vadd.f32 0.0, %v3276
      %v3278 = vpop.f32.mrb[0].mxu0
      %3279 = vmatprep.mubr.bf16.mxu0 0
      %3280 = vmatmul.mubr.bf16.gmra.mrb[0].mxu0 %v3094
      %v3281 = vpop.f32.mrb[0].mxu0
      %v3282 = vadd.f32 0.0, %v3281
      %v3283 = vpop.f32.mrb[0].mxu0
      %v3284 = vpop.f32.mrb[0].mxu0
      %v3285 = vadd.f32 0.0, %v3284
      %v3286 = vpop.f32.mrb[0].mxu0
      %3287 = vmatprep.mubr.bf16.mxu0 0
      %3288 = vmatmul.mubr.bf16.gmra.mrb[0].mxu0 %v3097
      %v3289 = vpop.f32.mrb[0].mxu0
      %v3290 = vadd.f32 0.0, %v3289
      %v3291 = vpop.f32.mrb[0].mxu0
      %v3292 = vpop.f32.mrb[0].mxu0
      %v3293 = vadd.f32 0.0, %v3292
      %v3294 = vpop.f32.mrb[0].mxu0
      %3295 = vmatprep.mubr.bf16.mxu0 0
      %3296 = vmatmul.mubr.bf16.gmra.mrb[0].mxu0 %v3100
      %v3297 = vpop.f32.mrb[0].mxu0
      %v3298 = vadd.f32 0.0, %v3297
      %v3299 = vpop.f32.mrb[0].mxu0
      %v3300 = vpop.f32.mrb[0].mxu0
      %v3301 = vadd.f32 0.0, %v3300
      %v3302 = vpop.f32.mrb[0].mxu0
      %3303 = vmatprep.mubr.bf16.mxu0 0
      %3304 = vmatmul.mubr.bf16.gmra.mrb[0].mxu0 %v3103
      %v3305 = vpop.f32.mrb[0].mxu0
      %v3306 = vadd.f32 0.0, %v3305
      %v3307 = vpop.f32.mrb[0].mxu0
      %v3308 = vpop.f32.mrb[0].mxu0
      %v3309 = vadd.f32 0.0, %v3308
      %v3310 = vpop.f32.mrb[0].mxu0
      %3311 = vmatprep.mubr.bf16.mxu0 0
      %3312 = vmatmul.mubr.bf16.gmra.mrb[0].mxu0 %v3106
      %v3313 = vpop.f32.mrb[0].mxu0
      %v3314 = vadd.f32 0.0, %v3313
      %v3315 = vpop.f32.mrb[0].mxu0
      %v3316 = vpop.f32.mrb[0].mxu0
      %v3317 = vadd.f32 0.0, %v3316
      %v3318 = vpop.f32.mrb[0].mxu0
      %3319 = vmatprep.mubr.bf16.mxu0 0
      %3320 = vmatmul.mubr.bf16.gmra.mrb[0].mxu0 %v3109
      %v3321 = vpop.f32.mrb[0].mxu0
      %v3322 = vadd.f32 0.0, %v3321
      %v3323 = vpop.f32.mrb[0].mxu0
      %v3324 = vpop.f32.mrb[0].mxu0
      %v3325 = vadd.f32 0.0, %v3324
      %v3326 = vpop.f32.mrb[0].mxu0
      %3327 = vmatprep.mubr.bf16.mxu0 0
      %3328 = vmatmul.mubr.bf16.gmra.mrb[0].mxu0 %v3112
      %v3329 = vpop.f32.mrb[0].mxu0
      %v3330 = vadd.f32 0.0, %v3329
      %v3331 = vpop.f32.mrb[0].mxu0
      %v3332 = vpop.f32.mrb[0].mxu0
      %v3333 = vadd.f32 0.0, %v3332
      %v3334 = vpop.f32.mrb[0].mxu0
      %3335 = vmatprep.mubr.bf16.mxu0 0
      %3336 = vmatmul.mubr.bf16.gmra.mrb[0].mxu0 %v3115
      %v3337 = vpop.f32.mrb[0].mxu0
      %v3338 = vadd.f32 0.0, %v3337
      %v3339 = vpop.f32.mrb[0].mxu0
      %v3340 = vpop.f32.mrb[0].mxu0
      %v3341 = vadd.f32 0.0, %v3340
      %v3342 = vpop.f32.mrb[0].mxu0
      %3343 = vmatprep.mubr.bf16.mxu0 0
      %3344 = vmatmul.mubr.bf16.gmra.mrb[0].mxu0 %v3118
      %v3345 = vpop.f32.mrb[0].mxu0
      %v3346 = vadd.f32 0.0, %v3345
      %v3347 = vpop.f32.mrb[0].mxu0
      %v3348 = vpop.f32.mrb[0].mxu0
      %v3349 = vadd.f32 0.0, %v3348
      %v3350 = vpop.f32.mrb[0].mxu0
      %3351 = vmatprep.mubr.bf16.mxu0 0
      %3352 = vmatmul.mubr.bf16.gmra.mrb[0].mxu0 %v3121
      %v3353 = vpop.f32.mrb[0].mxu0
      %v3354 = vadd.f32 0.0, %v3353
      %v3355 = vpop.f32.mrb[0].mxu0
      %v3356 = vpop.f32.mrb[0].mxu0
      %v3357 = vadd.f32 0.0, %v3356
      %v3358 = vpop.f32.mrb[0].mxu0
      %3359 = vmatprep.mubr.bf16.mxu0 0
      %3360 = vmatmul.mubr.bf16.gmra.mrb[0].mxu0 %v3124
      %v3361 = vpop.f32.mrb[0].mxu0
      %v3362 = vadd.f32 0.0, %v3361
      %v3363 = vpop.f32.mrb[0].mxu0
      %v3364 = vpop.f32.mrb[0].mxu0
      %v3365 = vadd.f32 0.0, %v3364
      %v3366 = vpop.f32.mrb[0].mxu0
      %3367 = vmatprep.mubr.bf16.mxu0 0
      %3368 = vmatmul.mubr.bf16.gmra.mrb[0].mxu0 %v3127
      %v3369 = vpop.f32.mrb[0].mxu0
      %v3370 = vadd.f32 0.0, %v3369
      %v3371 = vpop.f32.mrb[0].mxu0
      %v3372 = vpop.f32.mrb[0].mxu0
      %v3373 = vadd.f32 0.0, %v3372
      %v3374 = vpop.f32.mrb[0].mxu0
      %3375 = vmatprep.mubr.bf16.mxu0 0
      %3376 = vmatmul.mubr.bf16.gmra.mrb[0].mxu0 %v3130
      %v3377 = vpop.f32.mrb[0].mxu0
      %v3378 = vadd.f32 0.0, %v3377
      %v3379 = vpop.f32.mrb[0].mxu0
      %v3380 = vpop.f32.mrb[0].mxu0
      %v3381 = vadd.f32 0.0, %v3380
      %v3382 = vpop.f32.mrb[0].mxu0
      %3383 = vdwg.mxu0
      %v3384 = vadd.f32 %v2913, %v3170
      %v3385 = vadd.f32 %v2914, %v3173
      %v3386 = vadd.f32 %v2915, %v3178
      %v3387 = vadd.f32 %v2916, %v3181
      %v3388 = vadd.f32 %v2917, %v3186
      %v3389 = vadd.f32 %v2918, %v3189
      %v3390 = vadd.f32 %v2919, %v3194
      %v3391 = vadd.f32 %v2920, %v3197
      %v3392 = vadd.f32 %v2921, %v3202
      %v3393 = vadd.f32 %v2922, %v3205
      %v3394 = vadd.f32 %v2923, %v3210
      %v3395 = vadd.f32 %v2924, %v3213
      %v3396 = vadd.f32 %v2925, %v3218
      %v3397 = vadd.f32 %v2926, %v3221
      %v3398 = vadd.f32 %v2927, %v3226
      %v3399 = vadd.f32 %v2928, %v3229
      %v3400 = vadd.f32 %v2929, %v3234
      %v3401 = vadd.f32 %v2930, %v3237
      %v3402 = vadd.f32 %v2931, %v3242
      %v3403 = vadd.f32 %v2932, %v3245
      %v3404 = vadd.f32 %v2933, %v3250
      %v3405 = vadd.f32 %v2934, %v3253
      %v3406 = vadd.f32 %v2935, %v3258
      %v3407 = vadd.f32 %v2936, %v3261
      %v3408 = vadd.f32 %v2937, %v3266
      %v3409 = vadd.f32 %v2938, %v3269
      %v3410 = vadd.f32 %v2939, %v3274
      %v3411 = vadd.f32 %v2940, %v3277
      %v3412 = vadd.f32 %v2941, %v3282
      %v3413 = vadd.f32 %v2942, %v3285
      %v3414 = vadd.f32 %v2943, %v3290
      %v3415 = vadd.f32 %v2944, %v3293
      %v3416 = vadd.f32 %v2945, %v3298
      %v3417 = vadd.f32 %v2946, %v3301
      %v3418 = vadd.f32 %v2947, %v3306
      %v3419 = vadd.f32 %v2948, %v3309
      %v3420 = vadd.f32 %v2949, %v3314
      %v3421 = vadd.f32 %v2950, %v3317
      %v3422 = vadd.f32 %v2951, %v3322
      %v3423 = vadd.f32 %v2952, %v3325
      %v3424 = vadd.f32 %v2953, %v3330
      %v3425 = vadd.f32 %v2954, %v3333
      %v3426 = vadd.f32 %v2955, %v3338
      %v3427 = vadd.f32 %v2956, %v3341
      %v3428 = vadd.f32 %v2957, %v3346
      %v3429 = vadd.f32 %v2958, %v3349
      %v3430 = vadd.f32 %v2959, %v3354
      %v3431 = vadd.f32 %v2960, %v3357
      %v3432 = vadd.f32 %v2961, %v3362
      %v3433 = vadd.f32 %v2962, %v3365
      %v3434 = vadd.f32 %v2963, %v3370
      %v3435 = vadd.f32 %v2964, %v3373
      %v3436 = vadd.f32 %v2965, %v3378
      %v3437 = vadd.f32 %v2966, %v3381
      %v3438 = vld [vmem:[%s2967 + $0x1] sm:$0xff]
      %v3439 = vld [vmem:[%s2967 + $0x9] sm:$0xff]
      %v3440 = vld [vmem:[%s2967 + $0x11] sm:$0xff]
      %v3441 = vld [vmem:[%s2967 + $0x21] sm:$0xff]
      %v3442 = vld [vmem:[%s2967 + $0x29] sm:$0xff]
      %v3443 = vld [vmem:[%s2967 + $0x31] sm:$0xff]
      %v3444 = vld [vmem:[%s2967 + $0x41] sm:$0xff]
      %v3445 = vld [vmem:[%s2967 + $0x49] sm:$0xff]
      %v3446 = vld [vmem:[%s2967 + $0x51] sm:$0xff]
      %v3447 = vld [vmem:[%s2967 + $0x61] sm:$0xff]
      %v3448 = vld [vmem:[%s2967 + $0x69] sm:$0xff]
      %v3449 = vld [vmem:[%s2967 + $0x71] sm:$0xff]
      %v3450 = vld [vmem:[%s2967 + $0x81] sm:$0xff]
      %v3451 = vld [vmem:[%s2967 + $0x89] sm:$0xff]
      %v3452 = vld [vmem:[%s2967 + $0x91] sm:$0xff]
      %v3453 = vld [vmem:[%s2967 + $0xa1] sm:$0xff]
      %v3454 = vld [vmem:[%s2967 + $0xa9] sm:$0xff]
      %v3455 = vld [vmem:[%s2967 + $0xb1] sm:$0xff]
      %v3456 = vld [vmem:[%s2967 + $0xc1] sm:$0xff]
      %v3457 = vld [vmem:[%s2967 + $0xc9] sm:$0xff]
      %v3458 = vld [vmem:[%s2967 + $0xd1] sm:$0xff]
      %v3459 = vld [vmem:[%s2967 + $0xe1] sm:$0xff]
      %v3460 = vld [vmem:[%s2967 + $0xe9] sm:$0xff]
      %v3461 = vld [vmem:[%s2967 + $0xf1] sm:$0xff]
      %v3462 = vld [vmem:[%s2967 + $0x101] sm:$0xff]
      %v3463 = vld [vmem:[%s2967 + $0x109] sm:$0xff]
      %v3464 = vld [vmem:[%s2967 + $0x111] sm:$0xff]
      %v3465 = vld [vmem:[%s2967 + $0x121] sm:$0xff]
      %v3466 = vld [vmem:[%s2967 + $0x129] sm:$0xff]
      %v3467 = vld [vmem:[%s2967 + $0x131] sm:$0xff]
      %v3468 = vld [vmem:[%s2967 + $0x141] sm:$0xff]
      %v3469 = vld [vmem:[%s2967 + $0x149] sm:$0xff]
      %v3470 = vld [vmem:[%s2967 + $0x151] sm:$0xff]
      %v3471 = vld [vmem:[%s2967 + $0x161] sm:$0xff]
      %v3472 = vld [vmem:[%s2967 + $0x169] sm:$0xff]
      %v3473 = vld [vmem:[%s2967 + $0x171] sm:$0xff]
      %v3474 = vld [vmem:[%s2967 + $0x181] sm:$0xff]
      %v3475 = vld [vmem:[%s2967 + $0x189] sm:$0xff]
      %v3476 = vld [vmem:[%s2967 + $0x191] sm:$0xff]
      %v3477 = vld [vmem:[%s2967 + $0x1a1] sm:$0xff]
      %v3478 = vld [vmem:[%s2967 + $0x1a9] sm:$0xff]
      %v3479 = vld [vmem:[%s2967 + $0x1b1] sm:$0xff]
      %v3480 = vld [vmem:[%s2967 + $0x1c1] sm:$0xff]
      %v3481 = vld [vmem:[%s2967 + $0x1c9] sm:$0xff]
      %v3482 = vld [vmem:[%s2967 + $0x1d1] sm:$0xff]
      %v3483 = vld [vmem:[%s2967 + $0x1e1] sm:$0xff]
      %v3484 = vld [vmem:[%s2967 + $0x1e9] sm:$0xff]
      %v3485 = vld [vmem:[%s2967 + $0x1f1] sm:$0xff]
      %v3486 = vld [vmem:[%s2967 + $0x201] sm:$0xff]
      %v3487 = vld [vmem:[%s2967 + $0x209] sm:$0xff]
      %v3488 = vld [vmem:[%s2967 + $0x211] sm:$0xff]
      %v3489 = vld [vmem:[%s2967 + $0x221] sm:$0xff]
      %v3490 = vld [vmem:[%s2967 + $0x229] sm:$0xff]
      %v3491 = vld [vmem:[%s2967 + $0x231] sm:$0xff]
      %v3492 = vpack.c.bf16 %v3439, %v3438
      %v3493 = vpack.c.bf16 %v3441, %v3440
      %v3494 = vpack.c.bf16 %v3443, %v3442
      %v3495 = vpack.c.bf16 %v3445, %v3444
      %v3496 = vpack.c.bf16 %v3447, %v3446
      %v3497 = vpack.c.bf16 %v3449, %v3448
      %v3498 = vpack.c.bf16 %v3451, %v3450
      %v3499 = vpack.c.bf16 %v3453, %v3452
      %v3500 = vpack.c.bf16 %v3455, %v3454
      %v3501 = vpack.c.bf16 %v3457, %v3456
      %v3502 = vpack.c.bf16 %v3459, %v3458
      %v3503 = vpack.c.bf16 %v3461, %v3460
      %v3504 = vpack.c.bf16 %v3463, %v3462
      %v3505 = vpack.c.bf16 %v3465, %v3464
      %v3506 = vpack.c.bf16 %v3467, %v3466
      %v3507 = vpack.c.bf16 %v3469, %v3468
      %v3508 = vpack.c.bf16 %v3471, %v3470
      %v3509 = vpack.c.bf16 %v3473, %v3472
      %v3510 = vpack.c.bf16 %v3475, %v3474
      %v3511 = vpack.c.bf16 %v3477, %v3476
      %v3512 = vpack.c.bf16 %v3479, %v3478
      %v3513 = vpack.c.bf16 %v3481, %v3480
      %v3514 = vpack.c.bf16 %v3483, %v3482
      %v3515 = vpack.c.bf16 %v3485, %v3484
      %v3516 = vpack.c.bf16 %v3487, %v3486
      %v3517 = vpack.c.bf16 %v3489, %v3488
      %v3518 = vpack.c.bf16 %v3491, %v3490
      %s3519 = scalar_lea.vmem %s2, 28
      %v3520 = vld [vmem:[%s3519] sm:$0xf]
      %v3522 = vsel %vm418, %v3492, 0
      %v3525 = vsel %vm418, %v3493, 0
      %v3528 = vsel %vm418, %v3494, 0
      %v3531 = vsel %vm418, %v3495, 0
      %v3534 = vsel %vm418, %v3496, 0
      %v3537 = vsel %vm418, %v3497, 0
      %v3540 = vsel %vm418, %v3498, 0
      %v3543 = vsel %vm418, %v3499, 0
      %v3546 = vsel %vm418, %v3500, 0
      %v3549 = vsel %vm418, %v3501, 0
      %v3552 = vsel %vm418, %v3502, 0
      %v3555 = vsel %vm418, %v3503, 0
      %v3558 = vsel %vm418, %v3504, 0
      %v3561 = vsel %vm418, %v3505, 0
      %v3564 = vsel %vm418, %v3506, 0
      %v3567 = vsel %vm418, %v3507, 0
      %v3570 = vsel %vm418, %v3508, 0
      %v3573 = vsel %vm418, %v3509, 0
      %v3576 = vsel %vm418, %v3510, 0
      %v3579 = vsel %vm418, %v3511, 0
      %v3582 = vsel %vm418, %v3512, 0
      %v3585 = vsel %vm418, %v3513, 0
      %v3588 = vsel %vm418, %v3514, 0
      %v3591 = vsel %vm418, %v3515, 0
      %v3594 = vsel %vm418, %v3516, 0
      %v3597 = vsel %vm418, %v3517, 0
      %v3600 = vsel %vm418, %v3518, 0
      %v3603 = vsel %vm500, %v3520, 0
      %3605 = vmatprep.subr.bf16.mxu0 0
      %3606 = vmatpush1.bf16.msra.mxu0 %v3603
      %3607 = vmatprep.subr.bf16.mxu0 0
      %3608 = vmatpush1.bf16.msra.mxu0 0
      %3609 = vmatprep.subr.bf16.mxu0 0
      %3610 = vmatpush1.bf16.msra.mxu0 0
      %3611 = vmatprep.subr.bf16.mxu0 0
      %3612 = vmatpush1.bf16.msra.mxu0 0
      %3613 = vmatprep.subr.bf16.mxu0 0
      %3614 = vmatpush1.bf16.msra.mxu0 0
      %3615 = vmatprep.subr.bf16.mxu0 0
      %3616 = vmatpush1.bf16.msra.mxu0 0
      %3617 = vmatprep.subr.bf16.mxu0 0
      %3618 = vmatpush1.bf16.msra.mxu0 0
      %3619 = vmatprep.subr.bf16.mxu0 0
      %3620 = vmatpush1.bf16.msra.mxu0 0
      %3621 = vmatprep.subr.bf16.mxu0 0
      %3622 = vmatpush1.bf16.msra.mxu0 0
      %3623 = vmatprep.subr.bf16.mxu0 0
      %3624 = vmatpush1.bf16.msra.mxu0 0
      %3625 = vmatprep.subr.bf16.mxu0 0
      %3626 = vmatpush1.bf16.msra.mxu0 0
      %3627 = vmatprep.subr.bf16.mxu0 0
      %3628 = vmatpush1.bf16.msra.mxu0 0
      %3629 = vmatprep.subr.bf16.mxu0 0
      %3630 = vmatpush1.bf16.msra.mxu0 0
      %3631 = vmatprep.subr.bf16.mxu0 0
      %3632 = vmatpush1.bf16.msra.mxu0 0
      %3633 = vmatprep.subr.bf16.mxu0 0
      %3634 = vmatpush1.bf16.msra.mxu0 0
      %3635 = vmatprep.subr.bf16.mxu0 0
      %3636 = vmatpush1.bf16.msra.mxu0 0
      %3637 = vmatprep.mubr.bf16.mxu0 0
      %3638 = vmatmul.mubr.bf16.gmra.mrb[0].mxu0 %v3522
      %v3639 = vpop.f32.mrb[0].mxu0
      %v3640 = vadd.f32 0.0, %v3639
      %v3641 = vpop.f32.mrb[0].mxu0
      %v3642 = vpop.f32.mrb[0].mxu0
      %v3643 = vadd.f32 0.0, %v3642
      %v3644 = vpop.f32.mrb[0].mxu0
      %3645 = vmatprep.mubr.bf16.mxu0 0
      %3646 = vmatmul.mubr.bf16.gmra.mrb[0].mxu0 %v3525
      %v3647 = vpop.f32.mrb[0].mxu0
      %v3648 = vadd.f32 0.0, %v3647
      %v3649 = vpop.f32.mrb[0].mxu0
      %v3650 = vpop.f32.mrb[0].mxu0
      %v3651 = vadd.f32 0.0, %v3650
      %v3652 = vpop.f32.mrb[0].mxu0
      %3653 = vmatprep.mubr.bf16.mxu0 0
      %3654 = vmatmul.mubr.bf16.gmra.mrb[0].mxu0 %v3528
      %v3655 = vpop.f32.mrb[0].mxu0
      %v3656 = vadd.f32 0.0, %v3655
      %v3657 = vpop.f32.mrb[0].mxu0
      %v3658 = vpop.f32.mrb[0].mxu0
      %v3659 = vadd.f32 0.0, %v3658
      %v3660 = vpop.f32.mrb[0].mxu0
      %3661 = vmatprep.mubr.bf16.mxu0 0
      %3662 = vmatmul.mubr.bf16.gmra.mrb[0].mxu0 %v3531
      %v3663 = vpop.f32.mrb[0].mxu0
      %v3664 = vadd.f32 0.0, %v3663
      %v3665 = vpop.f32.mrb[0].mxu0
      %v3666 = vpop.f32.mrb[0].mxu0
      %v3667 = vadd.f32 0.0, %v3666
      %v3668 = vpop.f32.mrb[0].mxu0
      %3669 = vmatprep.mubr.bf16.mxu0 0
      %3670 = vmatmul.mubr.bf16.gmra.mrb[0].mxu0 %v3534
      %v3671 = vpop.f32.mrb[0].mxu0
      %v3672 = vadd.f32 0.0, %v3671
      %v3673 = vpop.f32.mrb[0].mxu0
      %v3674 = vpop.f32.mrb[0].mxu0
      %v3675 = vadd.f32 0.0, %v3674
      %v3676 = vpop.f32.mrb[0].mxu0
      %3677 = vmatprep.mubr.bf16.mxu0 0
      %3678 = vmatmul.mubr.bf16.gmra.mrb[0].mxu0 %v3537
      %v3679 = vpop.f32.mrb[0].mxu0
      %v3680 = vadd.f32 0.0, %v3679
      %v3681 = vpop.f32.mrb[0].mxu0
      %v3682 = vpop.f32.mrb[0].mxu0
      %v3683 = vadd.f32 0.0, %v3682
      %v3684 = vpop.f32.mrb[0].mxu0
      %3685 = vmatprep.mubr.bf16.mxu0 0
      %3686 = vmatmul.mubr.bf16.gmra.mrb[0].mxu0 %v3540
      %v3687 = vpop.f32.mrb[0].mxu0
      %v3688 = vadd.f32 0.0, %v3687
      %v3689 = vpop.f32.mrb[0].mxu0
      %v3690 = vpop.f32.mrb[0].mxu0
      %v3691 = vadd.f32 0.0, %v3690
      %v3692 = vpop.f32.mrb[0].mxu0
      %3693 = vmatprep.mubr.bf16.mxu0 0
      %3694 = vmatmul.mubr.bf16.gmra.mrb[0].mxu0 %v3543
      %v3695 = vpop.f32.mrb[0].mxu0
      %v3696 = vadd.f32 0.0, %v3695
      %v3697 = vpop.f32.mrb[0].mxu0
      %v3698 = vpop.f32.mrb[0].mxu0
      %v3699 = vadd.f32 0.0, %v3698
      %v3700 = vpop.f32.mrb[0].mxu0
      %3701 = vmatprep.mubr.bf16.mxu0 0
      %3702 = vmatmul.mubr.bf16.gmra.mrb[0].mxu0 %v3546
      %v3703 = vpop.f32.mrb[0].mxu0
      %v3704 = vadd.f32 0.0, %v3703
      %v3705 = vpop.f32.mrb[0].mxu0
      %v3706 = vpop.f32.mrb[0].mxu0
      %v3707 = vadd.f32 0.0, %v3706
      %v3708 = vpop.f32.mrb[0].mxu0
      %3709 = vmatprep.mubr.bf16.mxu0 0
      %3710 = vmatmul.mubr.bf16.gmra.mrb[0].mxu0 %v3549
      %v3711 = vpop.f32.mrb[0].mxu0
      %v3712 = vadd.f32 0.0, %v3711
      %v3713 = vpop.f32.mrb[0].mxu0
      %v3714 = vpop.f32.mrb[0].mxu0
      %v3715 = vadd.f32 0.0, %v3714
      %v3716 = vpop.f32.mrb[0].mxu0
      %3717 = vmatprep.mubr.bf16.mxu0 0
      %3718 = vmatmul.mubr.bf16.gmra.mrb[0].mxu0 %v3552
      %v3719 = vpop.f32.mrb[0].mxu0
      %v3720 = vadd.f32 0.0, %v3719
      %v3721 = vpop.f32.mrb[0].mxu0
      %v3722 = vpop.f32.mrb[0].mxu0
      %v3723 = vadd.f32 0.0, %v3722
      %v3724 = vpop.f32.mrb[0].mxu0
      %3725 = vmatprep.mubr.bf16.mxu0 0
      %3726 = vmatmul.mubr.bf16.gmra.mrb[0].mxu0 %v3555
      %v3727 = vpop.f32.mrb[0].mxu0
      %v3728 = vadd.f32 0.0, %v3727
      %v3729 = vpop.f32.mrb[0].mxu0
      %v3730 = vpop.f32.mrb[0].mxu0
      %v3731 = vadd.f32 0.0, %v3730
      %v3732 = vpop.f32.mrb[0].mxu0
      %3733 = vmatprep.mubr.bf16.mxu0 0
      %3734 = vmatmul.mubr.bf16.gmra.mrb[0].mxu0 %v3558
      %v3735 = vpop.f32.mrb[0].mxu0
      %v3736 = vadd.f32 0.0, %v3735
      %v3737 = vpop.f32.mrb[0].mxu0
      %v3738 = vpop.f32.mrb[0].mxu0
      %v3739 = vadd.f32 0.0, %v3738
      %v3740 = vpop.f32.mrb[0].mxu0
      %3741 = vmatprep.mubr.bf16.mxu0 0
      %3742 = vmatmul.mubr.bf16.gmra.mrb[0].mxu0 %v3561
      %v3743 = vpop.f32.mrb[0].mxu0
      %v3744 = vadd.f32 0.0, %v3743
      %v3745 = vpop.f32.mrb[0].mxu0
      %v3746 = vpop.f32.mrb[0].mxu0
      %v3747 = vadd.f32 0.0, %v3746
      %v3748 = vpop.f32.mrb[0].mxu0
      %3749 = vmatprep.mubr.bf16.mxu0 0
      %3750 = vmatmul.mubr.bf16.gmra.mrb[0].mxu0 %v3564
      %v3751 = vpop.f32.mrb[0].mxu0
      %v3752 = vadd.f32 0.0, %v3751
      %v3753 = vpop.f32.mrb[0].mxu0
      %v3754 = vpop.f32.mrb[0].mxu0
      %v3755 = vadd.f32 0.0, %v3754
      %v3756 = vpop.f32.mrb[0].mxu0
      %3757 = vmatprep.mubr.bf16.mxu0 0
      %3758 = vmatmul.mubr.bf16.gmra.mrb[0].mxu0 %v3567
      %v3759 = vpop.f32.mrb[0].mxu0
      %v3760 = vadd.f32 0.0, %v3759
      %v3761 = vpop.f32.mrb[0].mxu0
      %v3762 = vpop.f32.mrb[0].mxu0
      %v3763 = vadd.f32 0.0, %v3762
      %v3764 = vpop.f32.mrb[0].mxu0
      %3765 = vmatprep.mubr.bf16.mxu0 0
      %3766 = vmatmul.mubr.bf16.gmra.mrb[0].mxu0 %v3570
      %v3767 = vpop.f32.mrb[0].mxu0
      %v3768 = vadd.f32 0.0, %v3767
      %v3769 = vpop.f32.mrb[0].mxu0
      %v3770 = vpop.f32.mrb[0].mxu0
      %v3771 = vadd.f32 0.0, %v3770
      %v3772 = vpop.f32.mrb[0].mxu0
      %3773 = vmatprep.mubr.bf16.mxu0 0
      %3774 = vmatmul.mubr.bf16.gmra.mrb[0].mxu0 %v3573
      %v3775 = vpop.f32.mrb[0].mxu0
      %v3776 = vadd.f32 0.0, %v3775
      %v3777 = vpop.f32.mrb[0].mxu0
      %v3778 = vpop.f32.mrb[0].mxu0
      %v3779 = vadd.f32 0.0, %v3778
      %v3780 = vpop.f32.mrb[0].mxu0
      %3781 = vmatprep.mubr.bf16.mxu0 0
      %3782 = vmatmul.mubr.bf16.gmra.mrb[0].mxu0 %v3576
      %v3783 = vpop.f32.mrb[0].mxu0
      %v3784 = vadd.f32 0.0, %v3783
      %v3785 = vpop.f32.mrb[0].mxu0
      %v3786 = vpop.f32.mrb[0].mxu0
      %v3787 = vadd.f32 0.0, %v3786
      %v3788 = vpop.f32.mrb[0].mxu0
      %3789 = vmatprep.mubr.bf16.mxu0 0
      %3790 = vmatmul.mubr.bf16.gmra.mrb[0].mxu0 %v3579
      %v3791 = vpop.f32.mrb[0].mxu0
      %v3792 = vadd.f32 0.0, %v3791
      %v3793 = vpop.f32.mrb[0].mxu0
      %v3794 = vpop.f32.mrb[0].mxu0
      %v3795 = vadd.f32 0.0, %v3794
      %v3796 = vpop.f32.mrb[0].mxu0
      %3797 = vmatprep.mubr.bf16.mxu0 0
      %3798 = vmatmul.mubr.bf16.gmra.mrb[0].mxu0 %v3582
      %v3799 = vpop.f32.mrb[0].mxu0
      %v3800 = vadd.f32 0.0, %v3799
      %v3801 = vpop.f32.mrb[0].mxu0
      %v3802 = vpop.f32.mrb[0].mxu0
      %v3803 = vadd.f32 0.0, %v3802
      %v3804 = vpop.f32.mrb[0].mxu0
      %3805 = vmatprep.mubr.bf16.mxu0 0
      %3806 = vmatmul.mubr.bf16.gmra.mrb[0].mxu0 %v3585
      %v3807 = vpop.f32.mrb[0].mxu0
      %v3808 = vadd.f32 0.0, %v3807
      %v3809 = vpop.f32.mrb[0].mxu0
      %v3810 = vpop.f32.mrb[0].mxu0
      %v3811 = vadd.f32 0.0, %v3810
      %v3812 = vpop.f32.mrb[0].mxu0
      %3813 = vmatprep.mubr.bf16.mxu0 0
      %3814 = vmatmul.mubr.bf16.gmra.mrb[0].mxu0 %v3588
      %v3815 = vpop.f32.mrb[0].mxu0
      %v3816 = vadd.f32 0.0, %v3815
      %v3817 = vpop.f32.mrb[0].mxu0
      %v3818 = vpop.f32.mrb[0].mxu0
      %v3819 = vadd.f32 0.0, %v3818
      %v3820 = vpop.f32.mrb[0].mxu0
      %3821 = vmatprep.mubr.bf16.mxu0 0
      %3822 = vmatmul.mubr.bf16.gmra.mrb[0].mxu0 %v3591
      %v3823 = vpop.f32.mrb[0].mxu0
      %v3824 = vadd.f32 0.0, %v3823
      %v3825 = vpop.f32.mrb[0].mxu0
      %v3826 = vpop.f32.mrb[0].mxu0
      %v3827 = vadd.f32 0.0, %v3826
      %v3828 = vpop.f32.mrb[0].mxu0
      %3829 = vmatprep.mubr.bf16.mxu0 0
      %3830 = vmatmul.mubr.bf16.gmra.mrb[0].mxu0 %v3594
      %v3831 = vpop.f32.mrb[0].mxu0
      %v3832 = vadd.f32 0.0, %v3831
      %v3833 = vpop.f32.mrb[0].mxu0
      %v3834 = vpop.f32.mrb[0].mxu0
      %v3835 = vadd.f32 0.0, %v3834
      %v3836 = vpop.f32.mrb[0].mxu0
      %3837 = vmatprep.mubr.bf16.mxu0 0
      %3838 = vmatmul.mubr.bf16.gmra.mrb[0].mxu0 %v3597
      %v3839 = vpop.f32.mrb[0].mxu0
      %v3840 = vadd.f32 0.0, %v3839
      %v3841 = vpop.f32.mrb[0].mxu0
      %v3842 = vpop.f32.mrb[0].mxu0
      %v3843 = vadd.f32 0.0, %v3842
      %v3844 = vpop.f32.mrb[0].mxu0
      %3845 = vmatprep.mubr.bf16.mxu0 0
      %3846 = vmatmul.mubr.bf16.gmra.mrb[0].mxu0 %v3600
      %v3847 = vpop.f32.mrb[0].mxu0
      %v3848 = vadd.f32 0.0, %v3847
      %v3849 = vpop.f32.mrb[0].mxu0
      %v3850 = vpop.f32.mrb[0].mxu0
      %v3851 = vadd.f32 0.0, %v3850
      %v3852 = vpop.f32.mrb[0].mxu0
      %3853 = vdwg.mxu0
      %v3854 = vadd.f32 %v3384, %v3640
      %v3855 = vadd.f32 %v3385, %v3643
      %v3856 = vadd.f32 %v3386, %v3648
      %v3857 = vadd.f32 %v3387, %v3651
      %v3858 = vadd.f32 %v3388, %v3656
      %v3859 = vadd.f32 %v3389, %v3659
      %v3860 = vadd.f32 %v3390, %v3664
      %v3861 = vadd.f32 %v3391, %v3667
      %v3862 = vadd.f32 %v3392, %v3672
      %v3863 = vadd.f32 %v3393, %v3675
      %v3864 = vadd.f32 %v3394, %v3680
      %v3865 = vadd.f32 %v3395, %v3683
      %v3866 = vadd.f32 %v3396, %v3688
      %v3867 = vadd.f32 %v3397, %v3691
      %v3868 = vadd.f32 %v3398, %v3696
      %v3869 = vadd.f32 %v3399, %v3699
      %v3870 = vadd.f32 %v3400, %v3704
      %v3871 = vadd.f32 %v3401, %v3707
      %v3872 = vadd.f32 %v3402, %v3712
      %v3873 = vadd.f32 %v3403, %v3715
      %v3874 = vadd.f32 %v3404, %v3720
      %v3875 = vadd.f32 %v3405, %v3723
      %v3876 = vadd.f32 %v3406, %v3728
      %v3877 = vadd.f32 %v3407, %v3731
      %v3878 = vadd.f32 %v3408, %v3736
      %v3879 = vadd.f32 %v3409, %v3739
      %v3880 = vadd.f32 %v3410, %v3744
      %v3881 = vadd.f32 %v3411, %v3747
      %v3882 = vadd.f32 %v3412, %v3752
      %v3883 = vadd.f32 %v3413, %v3755
      %v3884 = vadd.f32 %v3414, %v3760
      %v3885 = vadd.f32 %v3415, %v3763
      %v3886 = vadd.f32 %v3416, %v3768
      %v3887 = vadd.f32 %v3417, %v3771
      %v3888 = vadd.f32 %v3418, %v3776
      %v3889 = vadd.f32 %v3419, %v3779
      %v3890 = vadd.f32 %v3420, %v3784
      %v3891 = vadd.f32 %v3421, %v3787
      %v3892 = vadd.f32 %v3422, %v3792
      %v3893 = vadd.f32 %v3423, %v3795
      %v3894 = vadd.f32 %v3424, %v3800
      %v3895 = vadd.f32 %v3425, %v3803
      %v3896 = vadd.f32 %v3426, %v3808
      %v3897 = vadd.f32 %v3427, %v3811
      %v3898 = vadd.f32 %v3428, %v3816
      %v3899 = vadd.f32 %v3429, %v3819
      %v3900 = vadd.f32 %v3430, %v3824
      %v3901 = vadd.f32 %v3431, %v3827
      %v3902 = vadd.f32 %v3432, %v3832
      %v3903 = vadd.f32 %v3433, %v3835
      %v3904 = vadd.f32 %v3434, %v3840
      %v3905 = vadd.f32 %v3435, %v3843
      %v3906 = vadd.f32 %v3436, %v3848
      %v3907 = vadd.f32 %v3437, %v3851
      %v3908 = vld [vmem:[%s2967 + $0x2] sm:$0xff]
      %v3909 = vld [vmem:[%s2967 + $0xa] sm:$0xff]
      %v3910 = vld [vmem:[%s2967 + $0x12] sm:$0xff]
      %v3911 = vld [vmem:[%s2967 + $0x22] sm:$0xff]
      %v3912 = vld [vmem:[%s2967 + $0x2a] sm:$0xff]
      %v3913 = vld [vmem:[%s2967 + $0x32] sm:$0xff]
      %v3914 = vld [vmem:[%s2967 + $0x42] sm:$0xff]
      %v3915 = vld [vmem:[%s2967 + $0x4a] sm:$0xff]
      %v3916 = vld [vmem:[%s2967 + $0x52] sm:$0xff]
      %v3917 = vld [vmem:[%s2967 + $0x62] sm:$0xff]
      %v3918 = vld [vmem:[%s2967 + $0x6a] sm:$0xff]
      %v3919 = vld [vmem:[%s2967 + $0x72] sm:$0xff]
      %v3920 = vld [vmem:[%s2967 + $0x82] sm:$0xff]
      %v3921 = vld [vmem:[%s2967 + $0x8a] sm:$0xff]
      %v3922 = vld [vmem:[%s2967 + $0x92] sm:$0xff]
      %v3923 = vld [vmem:[%s2967 + $0xa2] sm:$0xff]
      %v3924 = vld [vmem:[%s2967 + $0xaa] sm:$0xff]
      %v3925 = vld [vmem:[%s2967 + $0xb2] sm:$0xff]
      %v3926 = vld [vmem:[%s2967 + $0xc2] sm:$0xff]
      %v3927 = vld [vmem:[%s2967 + $0xca] sm:$0xff]
      %v3928 = vld [vmem:[%s2967 + $0xd2] sm:$0xff]
      %v3929 = vld [vmem:[%s2967 + $0xe2] sm:$0xff]
      %v3930 = vld [vmem:[%s2967 + $0xea] sm:$0xff]
      %v3931 = vld [vmem:[%s2967 + $0xf2] sm:$0xff]
      %v3932 = vld [vmem:[%s2967 + $0x102] sm:$0xff]
      %v3933 = vld [vmem:[%s2967 + $0x10a] sm:$0xff]
      %v3934 = vld [vmem:[%s2967 + $0x112] sm:$0xff]
      %v3935 = vld [vmem:[%s2967 + $0x122] sm:$0xff]
      %v3936 = vld [vmem:[%s2967 + $0x12a] sm:$0xff]
      %v3937 = vld [vmem:[%s2967 + $0x132] sm:$0xff]
      %v3938 = vld [vmem:[%s2967 + $0x142] sm:$0xff]
      %v3939 = vld [vmem:[%s2967 + $0x14a] sm:$0xff]
      %v3940 = vld [vmem:[%s2967 + $0x152] sm:$0xff]
      %v3941 = vld [vmem:[%s2967 + $0x162] sm:$0xff]
      %v3942 = vld [vmem:[%s2967 + $0x16a] sm:$0xff]
      %v3943 = vld [vmem:[%s2967 + $0x172] sm:$0xff]
      %v3944 = vld [vmem:[%s2967 + $0x182] sm:$0xff]
      %v3945 = vld [vmem:[%s2967 + $0x18a] sm:$0xff]
      %v3946 = vld [vmem:[%s2967 + $0x192] sm:$0xff]
      %v3947 = vld [vmem:[%s2967 + $0x1a2] sm:$0xff]
      %v3948 = vld [vmem:[%s2967 + $0x1aa] sm:$0xff]
      %v3949 = vld [vmem:[%s2967 + $0x1b2] sm:$0xff]
      %v3950 = vld [vmem:[%s2967 + $0x1c2] sm:$0xff]
      %v3951 = vld [vmem:[%s2967 + $0x1ca] sm:$0xff]
      %v3952 = vld [vmem:[%s2967 + $0x1d2] sm:$0xff]
      %v3953 = vld [vmem:[%s2967 + $0x1e2] sm:$0xff]
      %v3954 = vld [vmem:[%s2967 + $0x1ea] sm:$0xff]
      %v3955 = vld [vmem:[%s2967 + $0x1f2] sm:$0xff]
      %v3956 = vld [vmem:[%s2967 + $0x202] sm:$0xff]
      %v3957 = vld [vmem:[%s2967 + $0x20a] sm:$0xff]
      %v3958 = vld [vmem:[%s2967 + $0x212] sm:$0xff]
      %v3959 = vld [vmem:[%s2967 + $0x222] sm:$0xff]
      %v3960 = vld [vmem:[%s2967 + $0x22a] sm:$0xff]
      %v3961 = vld [vmem:[%s2967 + $0x232] sm:$0xff]
      %v3962 = vpack.c.bf16 %v3909, %v3908
      %v3963 = vpack.c.bf16 %v3911, %v3910
      %v3964 = vpack.c.bf16 %v3913, %v3912
      %v3965 = vpack.c.bf16 %v3915, %v3914
      %v3966 = vpack.c.bf16 %v3917, %v3916
      %v3967 = vpack.c.bf16 %v3919, %v3918
      %v3968 = vpack.c.bf16 %v3921, %v3920
      %v3969 = vpack.c.bf16 %v3923, %v3922
      %v3970 = vpack.c.bf16 %v3925, %v3924
      %v3971 = vpack.c.bf16 %v3927, %v3926
      %v3972 = vpack.c.bf16 %v3929, %v3928
      %v3973 = vpack.c.bf16 %v3931, %v3930
      %v3974 = vpack.c.bf16 %v3933, %v3932
      %v3975 = vpack.c.bf16 %v3935, %v3934
      %v3976 = vpack.c.bf16 %v3937, %v3936
      %v3977 = vpack.c.bf16 %v3939, %v3938
      %v3978 = vpack.c.bf16 %v3941, %v3940
      %v3979 = vpack.c.bf16 %v3943, %v3942
      %v3980 = vpack.c.bf16 %v3945, %v3944
      %v3981 = vpack.c.bf16 %v3947, %v3946
      %v3982 = vpack.c.bf16 %v3949, %v3948
      %v3983 = vpack.c.bf16 %v3951, %v3950
      %v3984 = vpack.c.bf16 %v3953, %v3952
      %v3985 = vpack.c.bf16 %v3955, %v3954
      %v3986 = vpack.c.bf16 %v3957, %v3956
      %v3987 = vpack.c.bf16 %v3959, %v3958
      %v3988 = vpack.c.bf16 %v3961, %v3960
      %s3989 = scalar_lea.vmem %s2, 32
      %v3990 = vld [vmem:[%s3989] sm:$0xf]
      %v3992 = vsel %vm418, %v3962, 0
      %v3995 = vsel %vm418, %v3963, 0
      %v3998 = vsel %vm418, %v3964, 0
      %v4001 = vsel %vm418, %v3965, 0
      %v4004 = vsel %vm418, %v3966, 0
      %v4007 = vsel %vm418, %v3967, 0
      %v4010 = vsel %vm418, %v3968, 0
      %v4013 = vsel %vm418, %v3969, 0
      %v4016 = vsel %vm418, %v3970, 0
      %v4019 = vsel %vm418, %v3971, 0
      %v4022 = vsel %vm418, %v3972, 0
      %v4025 = vsel %vm418, %v3973, 0
      %v4028 = vsel %vm418, %v3974, 0
      %v4031 = vsel %vm418, %v3975, 0
      %v4034 = vsel %vm418, %v3976, 0
      %v4037 = vsel %vm418, %v3977, 0
      %v4040 = vsel %vm418, %v3978, 0
      %v4043 = vsel %vm418, %v3979, 0
      %v4046 = vsel %vm418, %v3980, 0
      %v4049 = vsel %vm418, %v3981, 0
      %v4052 = vsel %vm418, %v3982, 0
      %v4055 = vsel %vm418, %v3983, 0
      %v4058 = vsel %vm418, %v3984, 0
      %v4061 = vsel %vm418, %v3985, 0
      %v4064 = vsel %vm418, %v3986, 0
      %v4067 = vsel %vm418, %v3987, 0
      %v4070 = vsel %vm418, %v3988, 0
      %v4073 = vsel %vm500, %v3990, 0
      %4075 = vmatprep.subr.bf16.mxu0 0
      %4076 = vmatpush1.bf16.msra.mxu0 %v4073
      %4077 = vmatprep.subr.bf16.mxu0 0
      %4078 = vmatpush1.bf16.msra.mxu0 0
      %4079 = vmatprep.subr.bf16.mxu0 0
      %4080 = vmatpush1.bf16.msra.mxu0 0
      %4081 = vmatprep.subr.bf16.mxu0 0
      %4082 = vmatpush1.bf16.msra.mxu0 0
      %4083 = vmatprep.subr.bf16.mxu0 0
      %4084 = vmatpush1.bf16.msra.mxu0 0
      %4085 = vmatprep.subr.bf16.mxu0 0
      %4086 = vmatpush1.bf16.msra.mxu0 0
      %4087 = vmatprep.subr.bf16.mxu0 0
      %4088 = vmatpush1.bf16.msra.mxu0 0
      %4089 = vmatprep.subr.bf16.mxu0 0
      %4090 = vmatpush1.bf16.msra.mxu0 0
      %4091 = vmatprep.subr.bf16.mxu0 0
      %4092 = vmatpush1.bf16.msra.mxu0 0
      %4093 = vmatprep.subr.bf16.mxu0 0
      %4094 = vmatpush1.bf16.msra.mxu0 0
      %4095 = vmatprep.subr.bf16.mxu0 0
      %4096 = vmatpush1.bf16.msra.mxu0 0
      %4097 = vmatprep.subr.bf16.mxu0 0
      %4098 = vmatpush1.bf16.msra.mxu0 0
      %4099 = vmatprep.subr.bf16.mxu0 0
      %4100 = vmatpush1.bf16.msra.mxu0 0
      %4101 = vmatprep.subr.bf16.mxu0 0
      %4102 = vmatpush1.bf16.msra.mxu0 0
      %4103 = vmatprep.subr.bf16.mxu0 0
      %4104 = vmatpush1.bf16.msra.mxu0 0
      %4105 = vmatprep.subr.bf16.mxu0 0
      %4106 = vmatpush1.bf16.msra.mxu0 0
      %4107 = vmatprep.mubr.bf16.mxu0 0
      %4108 = vmatmul.mubr.bf16.gmra.mrb[0].mxu0 %v3992
      %v4109 = vpop.f32.mrb[0].mxu0
      %v4110 = vadd.f32 0.0, %v4109
      %v4111 = vpop.f32.mrb[0].mxu0
      %v4112 = vpop.f32.mrb[0].mxu0
      %v4113 = vadd.f32 0.0, %v4112
      %v4114 = vpop.f32.mrb[0].mxu0
      %4115 = vmatprep.mubr.bf16.mxu0 0
      %4116 = vmatmul.mubr.bf16.gmra.mrb[0].mxu0 %v3995
      %v4117 = vpop.f32.mrb[0].mxu0
      %v4118 = vadd.f32 0.0, %v4117
      %v4119 = vpop.f32.mrb[0].mxu0
      %v4120 = vpop.f32.mrb[0].mxu0
      %v4121 = vadd.f32 0.0, %v4120
      %v4122 = vpop.f32.mrb[0].mxu0
      %4123 = vmatprep.mubr.bf16.mxu0 0
      %4124 = vmatmul.mubr.bf16.gmra.mrb[0].mxu0 %v3998
      %v4125 = vpop.f32.mrb[0].mxu0
      %v4126 = vadd.f32 0.0, %v4125
      %v4127 = vpop.f32.mrb[0].mxu0
      %v4128 = vpop.f32.mrb[0].mxu0
      %v4129 = vadd.f32 0.0, %v4128
      %v4130 = vpop.f32.mrb[0].mxu0
      %4131 = vmatprep.mubr.bf16.mxu0 0
      %4132 = vmatmul.mubr.bf16.gmra.mrb[0].mxu0 %v4001
      %v4133 = vpop.f32.mrb[0].mxu0
      %v4134 = vadd.f32 0.0, %v4133
      %v4135 = vpop.f32.mrb[0].mxu0
      %v4136 = vpop.f32.mrb[0].mxu0
      %v4137 = vadd.f32 0.0, %v4136
      %v4138 = vpop.f32.mrb[0].mxu0
      %4139 = vmatprep.mubr.bf16.mxu0 0
      %4140 = vmatmul.mubr.bf16.gmra.mrb[0].mxu0 %v4004
      %v4141 = vpop.f32.mrb[0].mxu0
      %v4142 = vadd.f32 0.0, %v4141
      %v4143 = vpop.f32.mrb[0].mxu0
      %v4144 = vpop.f32.mrb[0].mxu0
      %v4145 = vadd.f32 0.0, %v4144
      %v4146 = vpop.f32.mrb[0].mxu0
      %4147 = vmatprep.mubr.bf16.mxu0 0
      %4148 = vmatmul.mubr.bf16.gmra.mrb[0].mxu0 %v4007
      %v4149 = vpop.f32.mrb[0].mxu0
      %v4150 = vadd.f32 0.0, %v4149
      %v4151 = vpop.f32.mrb[0].mxu0
      %v4152 = vpop.f32.mrb[0].mxu0
      %v4153 = vadd.f32 0.0, %v4152
      %v4154 = vpop.f32.mrb[0].mxu0
      %4155 = vmatprep.mubr.bf16.mxu0 0
      %4156 = vmatmul.mubr.bf16.gmra.mrb[0].mxu0 %v4010
      %v4157 = vpop.f32.mrb[0].mxu0
      %v4158 = vadd.f32 0.0, %v4157
      %v4159 = vpop.f32.mrb[0].mxu0
      %v4160 = vpop.f32.mrb[0].mxu0
      %v4161 = vadd.f32 0.0, %v4160
      %v4162 = vpop.f32.mrb[0].mxu0
      %4163 = vmatprep.mubr.bf16.mxu0 0
      %4164 = vmatmul.mubr.bf16.gmra.mrb[0].mxu0 %v4013
      %v4165 = vpop.f32.mrb[0].mxu0
      %v4166 = vadd.f32 0.0, %v4165
      %v4167 = vpop.f32.mrb[0].mxu0
      %v4168 = vpop.f32.mrb[0].mxu0
      %v4169 = vadd.f32 0.0, %v4168
      %v4170 = vpop.f32.mrb[0].mxu0
      %4171 = vmatprep.mubr.bf16.mxu0 0
      %4172 = vmatmul.mubr.bf16.gmra.mrb[0].mxu0 %v4016
      %v4173 = vpop.f32.mrb[0].mxu0
      %v4174 = vadd.f32 0.0, %v4173
      %v4175 = vpop.f32.mrb[0].mxu0
      %v4176 = vpop.f32.mrb[0].mxu0
      %v4177 = vadd.f32 0.0, %v4176
      %v4178 = vpop.f32.mrb[0].mxu0
      %4179 = vmatprep.mubr.bf16.mxu0 0
      %4180 = vmatmul.mubr.bf16.gmra.mrb[0].mxu0 %v4019
      %v4181 = vpop.f32.mrb[0].mxu0
      %v4182 = vadd.f32 0.0, %v4181
      %v4183 = vpop.f32.mrb[0].mxu0
      %v4184 = vpop.f32.mrb[0].mxu0
      %v4185 = vadd.f32 0.0, %v4184
      %v4186 = vpop.f32.mrb[0].mxu0
      %4187 = vmatprep.mubr.bf16.mxu0 0
      %4188 = vmatmul.mubr.bf16.gmra.mrb[0].mxu0 %v4022
      %v4189 = vpop.f32.mrb[0].mxu0
      %v4190 = vadd.f32 0.0, %v4189
      %v4191 = vpop.f32.mrb[0].mxu0
      %v4192 = vpop.f32.mrb[0].mxu0
      %v4193 = vadd.f32 0.0, %v4192
      %v4194 = vpop.f32.mrb[0].mxu0
      %4195 = vmatprep.mubr.bf16.mxu0 0
      %4196 = vmatmul.mubr.bf16.gmra.mrb[0].mxu0 %v4025
      %v4197 = vpop.f32.mrb[0].mxu0
      %v4198 = vadd.f32 0.0, %v4197
      %v4199 = vpop.f32.mrb[0].mxu0
      %v4200 = vpop.f32.mrb[0].mxu0
      %v4201 = vadd.f32 0.0, %v4200
      %v4202 = vpop.f32.mrb[0].mxu0
      %4203 = vmatprep.mubr.bf16.mxu0 0
      %4204 = vmatmul.mubr.bf16.gmra.mrb[0].mxu0 %v4028
      %v4205 = vpop.f32.mrb[0].mxu0
      %v4206 = vadd.f32 0.0, %v4205
      %v4207 = vpop.f32.mrb[0].mxu0
      %v4208 = vpop.f32.mrb[0].mxu0
      %v4209 = vadd.f32 0.0, %v4208
      %v4210 = vpop.f32.mrb[0].mxu0
      %4211 = vmatprep.mubr.bf16.mxu0 0
      %4212 = vmatmul.mubr.bf16.gmra.mrb[0].mxu0 %v4031
      %v4213 = vpop.f32.mrb[0].mxu0
      %v4214 = vadd.f32 0.0, %v4213
      %v4215 = vpop.f32.mrb[0].mxu0
      %v4216 = vpop.f32.mrb[0].mxu0
      %v4217 = vadd.f32 0.0, %v4216
      %v4218 = vpop.f32.mrb[0].mxu0
      %4219 = vmatprep.mubr.bf16.mxu0 0
      %4220 = vmatmul.mubr.bf16.gmra.mrb[0].mxu0 %v4034
      %v4221 = vpop.f32.mrb[0].mxu0
      %v4222 = vadd.f32 0.0, %v4221
      %v4223 = vpop.f32.mrb[0].mxu0
      %v4224 = vpop.f32.mrb[0].mxu0
      %v4225 = vadd.f32 0.0, %v4224
      %v4226 = vpop.f32.mrb[0].mxu0
      %4227 = vmatprep.mubr.bf16.mxu0 0
      %4228 = vmatmul.mubr.bf16.gmra.mrb[0].mxu0 %v4037
      %v4229 = vpop.f32.mrb[0].mxu0
      %v4230 = vadd.f32 0.0, %v4229
      %v4231 = vpop.f32.mrb[0].mxu0
      %v4232 = vpop.f32.mrb[0].mxu0
      %v4233 = vadd.f32 0.0, %v4232
      %v4234 = vpop.f32.mrb[0].mxu0
      %4235 = vmatprep.mubr.bf16.mxu0 0
      %4236 = vmatmul.mubr.bf16.gmra.mrb[0].mxu0 %v4040
      %v4237 = vpop.f32.mrb[0].mxu0
      %v4238 = vadd.f32 0.0, %v4237
      %v4239 = vpop.f32.mrb[0].mxu0
      %v4240 = vpop.f32.mrb[0].mxu0
      %v4241 = vadd.f32 0.0, %v4240
      %v4242 = vpop.f32.mrb[0].mxu0
      %4243 = vmatprep.mubr.bf16.mxu0 0
      %4244 = vmatmul.mubr.bf16.gmra.mrb[0].mxu0 %v4043
      %v4245 = vpop.f32.mrb[0].mxu0
      %v4246 = vadd.f32 0.0, %v4245
      %v4247 = vpop.f32.mrb[0].mxu0
      %v4248 = vpop.f32.mrb[0].mxu0
      %v4249 = vadd.f32 0.0, %v4248
      %v4250 = vpop.f32.mrb[0].mxu0
      %4251 = vmatprep.mubr.bf16.mxu0 0
      %4252 = vmatmul.mubr.bf16.gmra.mrb[0].mxu0 %v4046
      %v4253 = vpop.f32.mrb[0].mxu0
      %v4254 = vadd.f32 0.0, %v4253
      %v4255 = vpop.f32.mrb[0].mxu0
      %v4256 = vpop.f32.mrb[0].mxu0
      %v4257 = vadd.f32 0.0, %v4256
      %v4258 = vpop.f32.mrb[0].mxu0
      %4259 = vmatprep.mubr.bf16.mxu0 0
      %4260 = vmatmul.mubr.bf16.gmra.mrb[0].mxu0 %v4049
      %v4261 = vpop.f32.mrb[0].mxu0
      %v4262 = vadd.f32 0.0, %v4261
      %v4263 = vpop.f32.mrb[0].mxu0
      %v4264 = vpop.f32.mrb[0].mxu0
      %v4265 = vadd.f32 0.0, %v4264
      %v4266 = vpop.f32.mrb[0].mxu0
      %4267 = vmatprep.mubr.bf16.mxu0 0
      %4268 = vmatmul.mubr.bf16.gmra.mrb[0].mxu0 %v4052
      %v4269 = vpop.f32.mrb[0].mxu0
      %v4270 = vadd.f32 0.0, %v4269
      %v4271 = vpop.f32.mrb[0].mxu0
      %v4272 = vpop.f32.mrb[0].mxu0
      %v4273 = vadd.f32 0.0, %v4272
      %v4274 = vpop.f32.mrb[0].mxu0
      %4275 = vmatprep.mubr.bf16.mxu0 0
      %4276 = vmatmul.mubr.bf16.gmra.mrb[0].mxu0 %v4055
      %v4277 = vpop.f32.mrb[0].mxu0
      %v4278 = vadd.f32 0.0, %v4277
      %v4279 = vpop.f32.mrb[0].mxu0
      %v4280 = vpop.f32.mrb[0].mxu0
      %v4281 = vadd.f32 0.0, %v4280
      %v4282 = vpop.f32.mrb[0].mxu0
      %4283 = vmatprep.mubr.bf16.mxu0 0
      %4284 = vmatmul.mubr.bf16.gmra.mrb[0].mxu0 %v4058
      %v4285 = vpop.f32.mrb[0].mxu0
      %v4286 = vadd.f32 0.0, %v4285
      %v4287 = vpop.f32.mrb[0].mxu0
      %v4288 = vpop.f32.mrb[0].mxu0
      %v4289 = vadd.f32 0.0, %v4288
      %v4290 = vpop.f32.mrb[0].mxu0
      %4291 = vmatprep.mubr.bf16.mxu0 0
      %4292 = vmatmul.mubr.bf16.gmra.mrb[0].mxu0 %v4061
      %v4293 = vpop.f32.mrb[0].mxu0
      %v4294 = vadd.f32 0.0, %v4293
      %v4295 = vpop.f32.mrb[0].mxu0
      %v4296 = vpop.f32.mrb[0].mxu0
      %v4297 = vadd.f32 0.0, %v4296
      %v4298 = vpop.f32.mrb[0].mxu0
      %4299 = vmatprep.mubr.bf16.mxu0 0
      %4300 = vmatmul.mubr.bf16.gmra.mrb[0].mxu0 %v4064
      %v4301 = vpop.f32.mrb[0].mxu0
      %v4302 = vadd.f32 0.0, %v4301
      %v4303 = vpop.f32.mrb[0].mxu0
      %v4304 = vpop.f32.mrb[0].mxu0
      %v4305 = vadd.f32 0.0, %v4304
      %v4306 = vpop.f32.mrb[0].mxu0
      %4307 = vmatprep.mubr.bf16.mxu0 0
      %4308 = vmatmul.mubr.bf16.gmra.mrb[0].mxu0 %v4067
      %v4309 = vpop.f32.mrb[0].mxu0
      %v4310 = vadd.f32 0.0, %v4309
      %v4311 = vpop.f32.mrb[0].mxu0
      %v4312 = vpop.f32.mrb[0].mxu0
      %v4313 = vadd.f32 0.0, %v4312
      %v4314 = vpop.f32.mrb[0].mxu0
      %4315 = vmatprep.mubr.bf16.mxu0 0
      %4316 = vmatmul.mubr.bf16.gmra.mrb[0].mxu0 %v4070
      %v4317 = vpop.f32.mrb[0].mxu0
      %v4318 = vadd.f32 0.0, %v4317
      %v4319 = vpop.f32.mrb[0].mxu0
      %v4320 = vpop.f32.mrb[0].mxu0
      %v4321 = vadd.f32 0.0, %v4320
      %v4322 = vpop.f32.mrb[0].mxu0
      %4323 = vdwg.mxu0
      %v4324 = vadd.f32 %v3854, %v4110
      %v4325 = vadd.f32 %v3855, %v4113
      %v4326 = vadd.f32 %v3856, %v4118
      %v4327 = vadd.f32 %v3857, %v4121
      %v4328 = vadd.f32 %v3858, %v4126
      %v4329 = vadd.f32 %v3859, %v4129
      %v4330 = vadd.f32 %v3860, %v4134
      %v4331 = vadd.f32 %v3861, %v4137
      %v4332 = vadd.f32 %v3862, %v4142
      %v4333 = vadd.f32 %v3863, %v4145
      %v4334 = vadd.f32 %v3864, %v4150
      %v4335 = vadd.f32 %v3865, %v4153
      %v4336 = vadd.f32 %v3866, %v4158
      %v4337 = vadd.f32 %v3867, %v4161
      %v4338 = vadd.f32 %v3868, %v4166
      %v4339 = vadd.f32 %v3869, %v4169
      %v4340 = vadd.f32 %v3870, %v4174
      %v4341 = vadd.f32 %v3871, %v4177
      %v4342 = vadd.f32 %v3872, %v4182
      %v4343 = vadd.f32 %v3873, %v4185
      %v4344 = vadd.f32 %v3874, %v4190
      %v4345 = vadd.f32 %v3875, %v4193
      %v4346 = vadd.f32 %v3876, %v4198
      %v4347 = vadd.f32 %v3877, %v4201
      %v4348 = vadd.f32 %v3878, %v4206
      %v4349 = vadd.f32 %v3879, %v4209
      %v4350 = vadd.f32 %v3880, %v4214
      %v4351 = vadd.f32 %v3881, %v4217
      %v4352 = vadd.f32 %v3882, %v4222
      %v4353 = vadd.f32 %v3883, %v4225
      %v4354 = vadd.f32 %v3884, %v4230
      %v4355 = vadd.f32 %v3885, %v4233
      %v4356 = vadd.f32 %v3886, %v4238
      %v4357 = vadd.f32 %v3887, %v4241
      %v4358 = vadd.f32 %v3888, %v4246
      %v4359 = vadd.f32 %v3889, %v4249
      %v4360 = vadd.f32 %v3890, %v4254
      %v4361 = vadd.f32 %v3891, %v4257
      %v4362 = vadd.f32 %v3892, %v4262
      %v4363 = vadd.f32 %v3893, %v4265
      %v4364 = vadd.f32 %v3894, %v4270
      %v4365 = vadd.f32 %v3895, %v4273
      %v4366 = vadd.f32 %v3896, %v4278
      %v4367 = vadd.f32 %v3897, %v4281
      %v4368 = vadd.f32 %v3898, %v4286
      %v4369 = vadd.f32 %v3899, %v4289
      %v4370 = vadd.f32 %v3900, %v4294
      %v4371 = vadd.f32 %v3901, %v4297
      %v4372 = vadd.f32 %v3902, %v4302
      %v4373 = vadd.f32 %v3903, %v4305
      %v4374 = vadd.f32 %v3904, %v4310
      %v4375 = vadd.f32 %v3905, %v4313
      %v4376 = vadd.f32 %v3906, %v4318
      %v4377 = vadd.f32 %v3907, %v4321
      %v4378 = vld [vmem:[%s3] sm:$0x1]
      %v4380 = vlaneseq
      %v4381 = vshrl.u32 %v4380, 7
      %v4382 = vsub.s32 0, %v4381
      %v4383 = vrot.slane %v4378, %v4382
      %v4385 = vadd.f32 %v4324, %v4383
      %v4386 = vadd.f32 %v4325, %v4383
      %v4387 = vadd.f32 %v4326, %v4383
      %v4388 = vadd.f32 %v4327, %v4383
      %v4389 = vadd.f32 %v4328, %v4383
      %v4390 = vadd.f32 %v4329, %v4383
      %v4391 = vadd.f32 %v4330, %v4383
      %v4392 = vadd.f32 %v4331, %v4383
      %v4393 = vadd.f32 %v4332, %v4383
      %v4394 = vadd.f32 %v4333, %v4383
      %v4395 = vadd.f32 %v4334, %v4383
      %v4396 = vadd.f32 %v4335, %v4383
      %v4397 = vadd.f32 %v4336, %v4383
      %v4398 = vadd.f32 %v4337, %v4383
      %v4399 = vadd.f32 %v4338, %v4383
      %v4400 = vadd.f32 %v4339, %v4383
      %v4401 = vadd.f32 %v4340, %v4383
      %v4402 = vadd.f32 %v4341, %v4383
      %v4403 = vadd.f32 %v4342, %v4383
      %v4404 = vadd.f32 %v4343, %v4383
      %v4405 = vadd.f32 %v4344, %v4383
      %v4406 = vadd.f32 %v4345, %v4383
      %v4407 = vadd.f32 %v4346, %v4383
      %v4408 = vadd.f32 %v4347, %v4383
      %v4409 = vadd.f32 %v4348, %v4383
      %v4410 = vadd.f32 %v4349, %v4383
      %v4411 = vadd.f32 %v4350, %v4383
      %v4412 = vadd.f32 %v4351, %v4383
      %v4413 = vadd.f32 %v4352, %v4383
      %v4414 = vadd.f32 %v4353, %v4383
      %v4415 = vadd.f32 %v4354, %v4383
      %v4416 = vadd.f32 %v4355, %v4383
      %v4417 = vadd.f32 %v4356, %v4383
      %v4418 = vadd.f32 %v4357, %v4383
      %v4419 = vadd.f32 %v4358, %v4383
      %v4420 = vadd.f32 %v4359, %v4383
      %v4421 = vadd.f32 %v4360, %v4383
      %v4422 = vadd.f32 %v4361, %v4383
      %v4423 = vadd.f32 %v4362, %v4383
      %v4424 = vadd.f32 %v4363, %v4383
      %v4425 = vadd.f32 %v4364, %v4383
      %v4426 = vadd.f32 %v4365, %v4383
      %v4427 = vadd.f32 %v4366, %v4383
      %v4428 = vadd.f32 %v4367, %v4383
      %v4429 = vadd.f32 %v4368, %v4383
      %v4430 = vadd.f32 %v4369, %v4383
      %v4431 = vadd.f32 %v4370, %v4383
      %v4432 = vadd.f32 %v4371, %v4383
      %v4433 = vadd.f32 %v4372, %v4383
      %v4434 = vadd.f32 %v4373, %v4383
      %v4435 = vadd.f32 %v4374, %v4383
      %v4436 = vadd.f32 %v4375, %v4383
      %v4437 = vadd.f32 %v4376, %v4383
      %v4438 = vadd.f32 %v4377, %v4383
      %v4439 = vmax.f32 %v4385, 0.0
      %v4440 = vmax.f32 %v4386, 0.0
      %v4441 = vmax.f32 %v4387, 0.0
      %v4442 = vmax.f32 %v4388, 0.0
      %v4443 = vmax.f32 %v4389, 0.0
      %v4444 = vmax.f32 %v4390, 0.0
      %v4445 = vmax.f32 %v4391, 0.0
      %v4446 = vmax.f32 %v4392, 0.0
      %v4447 = vmax.f32 %v4393, 0.0
      %v4448 = vmax.f32 %v4394, 0.0
      %v4449 = vmax.f32 %v4395, 0.0
      %v4450 = vmax.f32 %v4396, 0.0
      %v4451 = vmax.f32 %v4397, 0.0
      %v4452 = vmax.f32 %v4398, 0.0
      %v4453 = vmax.f32 %v4399, 0.0
      %v4454 = vmax.f32 %v4400, 0.0
      %v4455 = vmax.f32 %v4401, 0.0
      %v4456 = vmax.f32 %v4402, 0.0
      %v4457 = vmax.f32 %v4403, 0.0
      %v4458 = vmax.f32 %v4404, 0.0
      %v4459 = vmax.f32 %v4405, 0.0
      %v4460 = vmax.f32 %v4406, 0.0
      %v4461 = vmax.f32 %v4407, 0.0
      %v4462 = vmax.f32 %v4408, 0.0
      %v4463 = vmax.f32 %v4409, 0.0
      %v4464 = vmax.f32 %v4410, 0.0
      %v4465 = vmax.f32 %v4411, 0.0
      %v4466 = vmax.f32 %v4412, 0.0
      %v4467 = vmax.f32 %v4413, 0.0
      %v4468 = vmax.f32 %v4414, 0.0
      %v4469 = vmax.f32 %v4415, 0.0
      %v4470 = vmax.f32 %v4416, 0.0
      %v4471 = vmax.f32 %v4417, 0.0
      %v4472 = vmax.f32 %v4418, 0.0
      %v4473 = vmax.f32 %v4419, 0.0
      %v4474 = vmax.f32 %v4420, 0.0
      %v4475 = vmax.f32 %v4421, 0.0
      %v4476 = vmax.f32 %v4422, 0.0
      %v4477 = vmax.f32 %v4423, 0.0
      %v4478 = vmax.f32 %v4424, 0.0
      %v4479 = vmax.f32 %v4425, 0.0
      %v4480 = vmax.f32 %v4426, 0.0
      %v4481 = vmax.f32 %v4427, 0.0
      %v4482 = vmax.f32 %v4428, 0.0
      %v4483 = vmax.f32 %v4429, 0.0
      %v4484 = vmax.f32 %v4430, 0.0
      %v4485 = vmax.f32 %v4431, 0.0
      %v4486 = vmax.f32 %v4432, 0.0
      %v4487 = vmax.f32 %v4433, 0.0
      %v4488 = vmax.f32 %v4434, 0.0
      %v4489 = vmax.f32 %v4435, 0.0
      %v4490 = vmax.f32 %v4436, 0.0
      %v4491 = vmax.f32 %v4437, 0.0
      %v4492 = vmax.f32 %v4438, 0.0
      %v4493 = vld [vmem:[%s1] sm:$0xff]
      %v4494 = vld [vmem:[%s1 + $0x8] sm:$0xff]
      %v4495 = vld [vmem:[%s1 + $0x10] sm:$0xff]
      %v4496 = vld [vmem:[%s1 + $0x18] sm:$0xff]
      %v4497 = vld [vmem:[%s1 + $0x20] sm:$0xff]
      %v4498 = vld [vmem:[%s1 + $0x28] sm:$0xff]
      %v4499 = vld [vmem:[%s1 + $0x30] sm:$0xff]
      %v4500 = vld [vmem:[%s1 + $0x38] sm:$0xff]
      %v4501 = vld [vmem:[%s1 + $0x40] sm:$0xff]
      %v4502 = vld [vmem:[%s1 + $0x48] sm:$0xff]
      %v4503 = vld [vmem:[%s1 + $0x50] sm:$0xff]
      %v4504 = vld [vmem:[%s1 + $0x58] sm:$0xff]
      %v4505 = vld [vmem:[%s1 + $0x60] sm:$0xff]
      %v4506 = vld [vmem:[%s1 + $0x68] sm:$0xff]
      %v4507 = vld [vmem:[%s1 + $0x70] sm:$0xff]
      %v4508 = vld [vmem:[%s1 + $0x78] sm:$0xff]
      %v4509 = vld [vmem:[%s1 + $0x80] sm:$0xff]
      %v4510 = vld [vmem:[%s1 + $0x88] sm:$0xff]
      %v4511 = vld [vmem:[%s1 + $0x90] sm:$0xff]
      %v4512 = vld [vmem:[%s1 + $0x98] sm:$0xff]
      %v4513 = vld [vmem:[%s1 + $0xa0] sm:$0xff]
      %v4514 = vld [vmem:[%s1 + $0xa8] sm:$0xff]
      %v4515 = vld [vmem:[%s1 + $0xb0] sm:$0xff]
      %v4516 = vld [vmem:[%s1 + $0xb8] sm:$0xff]
      %v4517 = vld [vmem:[%s1 + $0xc0] sm:$0xff]
      %v4518 = vld [vmem:[%s1 + $0xc8] sm:$0xff]
      %v4519 = vld [vmem:[%s1 + $0xd0] sm:$0xff]
      %v4520 = vld [vmem:[%s1 + $0xd8] sm:$0xff]
      %v4521 = vld [vmem:[%s1 + $0xe0] sm:$0xff]
      %v4522 = vld [vmem:[%s1 + $0xe8] sm:$0xff]
      %v4523 = vld [vmem:[%s1 + $0xf0] sm:$0xff]
      %v4524 = vld [vmem:[%s1 + $0xf8] sm:$0xff]
      %v4525 = vld [vmem:[%s1 + $0x100] sm:$0xff]
      %v4526 = vld [vmem:[%s1 + $0x108] sm:$0xff]
      %v4527 = vld [vmem:[%s1 + $0x110] sm:$0xff]
      %v4528 = vld [vmem:[%s1 + $0x118] sm:$0xff]
      %v4529 = vld [vmem:[%s1 + $0x120] sm:$0xff]
      %v4530 = vld [vmem:[%s1 + $0x128] sm:$0xff]
      %v4531 = vld [vmem:[%s1 + $0x130] sm:$0xff]
      %v4532 = vld [vmem:[%s1 + $0x138] sm:$0xff]
      %v4533 = vld [vmem:[%s1 + $0x140] sm:$0xff]
      %v4534 = vld [vmem:[%s1 + $0x148] sm:$0xff]
      %v4535 = vld [vmem:[%s1 + $0x150] sm:$0xff]
      %v4536 = vld [vmem:[%s1 + $0x158] sm:$0xff]
      %v4537 = vld [vmem:[%s1 + $0x160] sm:$0xff]
      %v4538 = vld [vmem:[%s1 + $0x168] sm:$0xff]
      %v4539 = vld [vmem:[%s1 + $0x170] sm:$0xff]
      %v4540 = vld [vmem:[%s1 + $0x178] sm:$0xff]
      %v4541 = vld [vmem:[%s1 + $0x180] sm:$0xff]
      %v4542 = vld [vmem:[%s1 + $0x188] sm:$0xff]
      %v4543 = vld [vmem:[%s1 + $0x190] sm:$0xff]
      %v4544 = vld [vmem:[%s1 + $0x198] sm:$0xff]
      %v4545 = vld [vmem:[%s1 + $0x1a0] sm:$0xff]
      %v4546 = vld [vmem:[%s1 + $0x1a8] sm:$0xff]
      %4548 = vset.pattern.permute.xlu0 0
      %4549 = vperm.xlu0 %4548, %v4493
      %v4550 = vpop.permute.xlu0 %4549
      %4553 = vset.pattern.permute.xlu0 0
      %4554 = vperm.xlu0 %4553, %v4494
      %v4555 = vpop.permute.xlu0 %4554
      %4558 = vset.pattern.permute.xlu0 0
      %4559 = vperm.xlu0 %4558, %v4495
      %v4560 = vpop.permute.xlu0 %4559
      %4563 = vset.pattern.permute.xlu0 0
      %4564 = vperm.xlu0 %4563, %v4496
      %v4565 = vpop.permute.xlu0 %4564
      %4568 = vset.pattern.permute.xlu0 0
      %4569 = vperm.xlu0 %4568, %v4497
      %v4570 = vpop.permute.xlu0 %4569
      %4573 = vset.pattern.permute.xlu0 0
      %4574 = vperm.xlu0 %4573, %v4498
      %v4575 = vpop.permute.xlu0 %4574
      %4578 = vset.pattern.permute.xlu0 0
      %4579 = vperm.xlu0 %4578, %v4499
      %v4580 = vpop.permute.xlu0 %4579
      %4583 = vset.pattern.permute.xlu0 0
      %4584 = vperm.xlu0 %4583, %v4500
      %v4585 = vpop.permute.xlu0 %4584
      %4588 = vset.pattern.permute.xlu0 0
      %4589 = vperm.xlu0 %4588, %v4501
      %v4590 = vpop.permute.xlu0 %4589
      %4593 = vset.pattern.permute.xlu0 0
      %4594 = vperm.xlu0 %4593, %v4502
      %v4595 = vpop.permute.xlu0 %4594
      %4598 = vset.pattern.permute.xlu0 0
      %4599 = vperm.xlu0 %4598, %v4503
      %v4600 = vpop.permute.xlu0 %4599
      %4603 = vset.pattern.permute.xlu0 0
      %4604 = vperm.xlu0 %4603, %v4504
      %v4605 = vpop.permute.xlu0 %4604
      %4608 = vset.pattern.permute.xlu0 0
      %4609 = vperm.xlu0 %4608, %v4505
      %v4610 = vpop.permute.xlu0 %4609
      %4613 = vset.pattern.permute.xlu0 0
      %4614 = vperm.xlu0 %4613, %v4506
      %v4615 = vpop.permute.xlu0 %4614
      %4618 = vset.pattern.permute.xlu0 0
      %4619 = vperm.xlu0 %4618, %v4507
      %v4620 = vpop.permute.xlu0 %4619
      %4623 = vset.pattern.permute.xlu0 0
      %4624 = vperm.xlu0 %4623, %v4508
      %v4625 = vpop.permute.xlu0 %4624
      %4628 = vset.pattern.permute.xlu0 0
      %4629 = vperm.xlu0 %4628, %v4509
      %v4630 = vpop.permute.xlu0 %4629
      %4633 = vset.pattern.permute.xlu0 0
      %4634 = vperm.xlu0 %4633, %v4510
      %v4635 = vpop.permute.xlu0 %4634
      %4638 = vset.pattern.permute.xlu0 0
      %4639 = vperm.xlu0 %4638, %v4511
      %v4640 = vpop.permute.xlu0 %4639
      %4643 = vset.pattern.permute.xlu0 0
      %4644 = vperm.xlu0 %4643, %v4512
      %v4645 = vpop.permute.xlu0 %4644
      %4648 = vset.pattern.permute.xlu0 0
      %4649 = vperm.xlu0 %4648, %v4513
      %v4650 = vpop.permute.xlu0 %4649
      %4653 = vset.pattern.permute.xlu0 0
      %4654 = vperm.xlu0 %4653, %v4514
      %v4655 = vpop.permute.xlu0 %4654
      %4658 = vset.pattern.permute.xlu0 0
      %4659 = vperm.xlu0 %4658, %v4515
      %v4660 = vpop.permute.xlu0 %4659
      %4663 = vset.pattern.permute.xlu0 0
      %4664 = vperm.xlu0 %4663, %v4516
      %v4665 = vpop.permute.xlu0 %4664
      %4668 = vset.pattern.permute.xlu0 0
      %4669 = vperm.xlu0 %4668, %v4517
      %v4670 = vpop.permute.xlu0 %4669
      %4673 = vset.pattern.permute.xlu0 0
      %4674 = vperm.xlu0 %4673, %v4518
      %v4675 = vpop.permute.xlu0 %4674
      %4678 = vset.pattern.permute.xlu0 0
      %4679 = vperm.xlu0 %4678, %v4519
      %v4680 = vpop.permute.xlu0 %4679
      %4683 = vset.pattern.permute.xlu0 0
      %4684 = vperm.xlu0 %4683, %v4520
      %v4685 = vpop.permute.xlu0 %4684
      %4688 = vset.pattern.permute.xlu0 0
      %4689 = vperm.xlu0 %4688, %v4521
      %v4690 = vpop.permute.xlu0 %4689
      %4693 = vset.pattern.permute.xlu0 0
      %4694 = vperm.xlu0 %4693, %v4522
      %v4695 = vpop.permute.xlu0 %4694
      %4698 = vset.pattern.permute.xlu0 0
      %4699 = vperm.xlu0 %4698, %v4523
      %v4700 = vpop.permute.xlu0 %4699
      %4703 = vset.pattern.permute.xlu0 0
      %4704 = vperm.xlu0 %4703, %v4524
      %v4705 = vpop.permute.xlu0 %4704
      %4708 = vset.pattern.permute.xlu0 0
      %4709 = vperm.xlu0 %4708, %v4525
      %v4710 = vpop.permute.xlu0 %4709
      %4713 = vset.pattern.permute.xlu0 0
      %4714 = vperm.xlu0 %4713, %v4526
      %v4715 = vpop.permute.xlu0 %4714
      %4718 = vset.pattern.permute.xlu0 0
      %4719 = vperm.xlu0 %4718, %v4527
      %v4720 = vpop.permute.xlu0 %4719
      %4723 = vset.pattern.permute.xlu0 0
      %4724 = vperm.xlu0 %4723, %v4528
      %v4725 = vpop.permute.xlu0 %4724
      %4728 = vset.pattern.permute.xlu0 0
      %4729 = vperm.xlu0 %4728, %v4529
      %v4730 = vpop.permute.xlu0 %4729
      %4733 = vset.pattern.permute.xlu0 0
      %4734 = vperm.xlu0 %4733, %v4530
      %v4735 = vpop.permute.xlu0 %4734
      %4738 = vset.pattern.permute.xlu0 0
      %4739 = vperm.xlu0 %4738, %v4531
      %v4740 = vpop.permute.xlu0 %4739
      %4743 = vset.pattern.permute.xlu0 0
      %4744 = vperm.xlu0 %4743, %v4532
      %v4745 = vpop.permute.xlu0 %4744
      %4748 = vset.pattern.permute.xlu0 0
      %4749 = vperm.xlu0 %4748, %v4533
      %v4750 = vpop.permute.xlu0 %4749
      %4753 = vset.pattern.permute.xlu0 0
      %4754 = vperm.xlu0 %4753, %v4534
      %v4755 = vpop.permute.xlu0 %4754
      %4758 = vset.pattern.permute.xlu0 0
      %4759 = vperm.xlu0 %4758, %v4535
      %v4760 = vpop.permute.xlu0 %4759
      %4763 = vset.pattern.permute.xlu0 0
      %4764 = vperm.xlu0 %4763, %v4536
      %v4765 = vpop.permute.xlu0 %4764
      %4768 = vset.pattern.permute.xlu0 0
      %4769 = vperm.xlu0 %4768, %v4537
      %v4770 = vpop.permute.xlu0 %4769
      %4773 = vset.pattern.permute.xlu0 0
      %4774 = vperm.xlu0 %4773, %v4538
      %v4775 = vpop.permute.xlu0 %4774
      %4778 = vset.pattern.permute.xlu0 0
      %4779 = vperm.xlu0 %4778, %v4539
      %v4780 = vpop.permute.xlu0 %4779
      %4783 = vset.pattern.permute.xlu0 0
      %4784 = vperm.xlu0 %4783, %v4540
      %v4785 = vpop.permute.xlu0 %4784
      %4788 = vset.pattern.permute.xlu0 0
      %4789 = vperm.xlu0 %4788, %v4541
      %v4790 = vpop.permute.xlu0 %4789
      %4793 = vset.pattern.permute.xlu0 0
      %4794 = vperm.xlu0 %4793, %v4542
      %v4795 = vpop.permute.xlu0 %4794
      %4798 = vset.pattern.permute.xlu0 0
      %4799 = vperm.xlu0 %4798, %v4543
      %v4800 = vpop.permute.xlu0 %4799
      %4803 = vset.pattern.permute.xlu0 0
      %4804 = vperm.xlu0 %4803, %v4544
      %v4805 = vpop.permute.xlu0 %4804
      %4808 = vset.pattern.permute.xlu0 0
      %4809 = vperm.xlu0 %4808, %v4545
      %v4810 = vpop.permute.xlu0 %4809
      %4813 = vset.pattern.permute.xlu0 0
      %4814 = vperm.xlu0 %4813, %v4546
      %v4815 = vpop.permute.xlu0 %4814
      %v4817 = vmul.f32 %v4439, %v4550
      %v4818 = vmul.f32 %v4440, %v4555
      %v4819 = vmul.f32 %v4441, %v4560
      %v4820 = vmul.f32 %v4442, %v4565
      %v4821 = vmul.f32 %v4443, %v4570
      %v4822 = vmul.f32 %v4444, %v4575
      %v4823 = vmul.f32 %v4445, %v4580
      %v4824 = vmul.f32 %v4446, %v4585
      %v4825 = vmul.f32 %v4447, %v4590
      %v4826 = vmul.f32 %v4448, %v4595
      %v4827 = vmul.f32 %v4449, %v4600
      %v4828 = vmul.f32 %v4450, %v4605
      %v4829 = vmul.f32 %v4451, %v4610
      %v4830 = vmul.f32 %v4452, %v4615
      %v4831 = vmul.f32 %v4453, %v4620
      %v4832 = vmul.f32 %v4454, %v4625
      %v4833 = vmul.f32 %v4455, %v4630
      %v4834 = vmul.f32 %v4456, %v4635
      %v4835 = vmul.f32 %v4457, %v4640
      %v4836 = vmul.f32 %v4458, %v4645
      %v4837 = vmul.f32 %v4459, %v4650
      %v4838 = vmul.f32 %v4460, %v4655
      %v4839 = vmul.f32 %v4461, %v4660
      %v4840 = vmul.f32 %v4462, %v4665
      %v4841 = vmul.f32 %v4463, %v4670
      %v4842 = vmul.f32 %v4464, %v4675
      %v4843 = vmul.f32 %v4465, %v4680
      %v4844 = vmul.f32 %v4466, %v4685
      %v4845 = vmul.f32 %v4467, %v4690
      %v4846 = vmul.f32 %v4468, %v4695
      %v4847 = vmul.f32 %v4469, %v4700
      %v4848 = vmul.f32 %v4470, %v4705
      %v4849 = vmul.f32 %v4471, %v4710
      %v4850 = vmul.f32 %v4472, %v4715
      %v4851 = vmul.f32 %v4473, %v4720
      %v4852 = vmul.f32 %v4474, %v4725
      %v4853 = vmul.f32 %v4475, %v4730
      %v4854 = vmul.f32 %v4476, %v4735
      %v4855 = vmul.f32 %v4477, %v4740
      %v4856 = vmul.f32 %v4478, %v4745
      %v4857 = vmul.f32 %v4479, %v4750
      %v4858 = vmul.f32 %v4480, %v4755
      %v4859 = vmul.f32 %v4481, %v4760
      %v4860 = vmul.f32 %v4482, %v4765
      %v4861 = vmul.f32 %v4483, %v4770
      %v4862 = vmul.f32 %v4484, %v4775
      %v4863 = vmul.f32 %v4485, %v4780
      %v4864 = vmul.f32 %v4486, %v4785
      %v4865 = vmul.f32 %v4487, %v4790
      %v4866 = vmul.f32 %v4488, %v4795
      %v4867 = vmul.f32 %v4489, %v4800
      %v4868 = vmul.f32 %v4490, %v4805
      %v4869 = vmul.f32 %v4491, %v4810
      %v4870 = vmul.f32 %v4492, %v4815
      %vm4919 = vcmask 1044480
      %v4920 = vrot.slane %v4817, 3
      %v4921 = vrot.slane %v4818, 3
      %v4922 = vsel %vm4919, %v4920, %v4921
      %v4923 = vrot.slane %v4819, 3
      %v4924 = vsel %vm4919, %v4921, %v4923
      %v4925 = vrot.slane %v4820, 3
      %v4926 = vrot.slane %v4821, 3
      %v4927 = vsel %vm4919, %v4925, %v4926
      %v4928 = vrot.slane %v4822, 3
      %v4929 = vsel %vm4919, %v4926, %v4928
      %v4930 = vrot.slane %v4823, 3
      %v4931 = vrot.slane %v4824, 3
      %v4932 = vsel %vm4919, %v4930, %v4931
      %v4933 = vrot.slane %v4825, 3
      %v4934 = vsel %vm4919, %v4931, %v4933
      %v4935 = vrot.slane %v4826, 3
      %v4936 = vrot.slane %v4827, 3
      %v4937 = vsel %vm4919, %v4935, %v4936
      %v4938 = vrot.slane %v4828, 3
      %v4939 = vsel %vm4919, %v4936, %v4938
      %v4940 = vrot.slane %v4829, 3
      %v4941 = vrot.slane %v4830, 3
      %v4942 = vsel %vm4919, %v4940, %v4941
      %v4943 = vrot.slane %v4831, 3
      %v4944 = vsel %vm4919, %v4941, %v4943
      %v4945 = vrot.slane %v4832, 3
      %v4946 = vrot.slane %v4833, 3
      %v4947 = vsel %vm4919, %v4945, %v4946
      %v4948 = vrot.slane %v4834, 3
      %v4949 = vsel %vm4919, %v4946, %v4948
      %v4950 = vrot.slane %v4835, 3
      %v4951 = vrot.slane %v4836, 3
      %v4952 = vsel %vm4919, %v4950, %v4951
      %v4953 = vrot.slane %v4837, 3
      %v4954 = vsel %vm4919, %v4951, %v4953
      %v4955 = vrot.slane %v4838, 3
      %v4956 = vrot.slane %v4839, 3
      %v4957 = vsel %vm4919, %v4955, %v4956
      %v4958 = vrot.slane %v4840, 3
      %v4959 = vsel %vm4919, %v4956, %v4958
      %v4960 = vrot.slane %v4841, 3
      %v4961 = vrot.slane %v4842, 3
      %v4962 = vsel %vm4919, %v4960, %v4961
      %v4963 = vrot.slane %v4843, 3
      %v4964 = vsel %vm4919, %v4961, %v4963
      %v4965 = vrot.slane %v4844, 3
      %v4966 = vrot.slane %v4845, 3
      %v4967 = vsel %vm4919, %v4965, %v4966
      %v4968 = vrot.slane %v4846, 3
      %v4969 = vsel %vm4919, %v4966, %v4968
      %v4970 = vrot.slane %v4847, 3
      %v4971 = vrot.slane %v4848, 3
      %v4972 = vsel %vm4919, %v4970, %v4971
      %v4973 = vrot.slane %v4849, 3
      %v4974 = vsel %vm4919, %v4971, %v4973
      %v4975 = vrot.slane %v4850, 3
      %v4976 = vrot.slane %v4851, 3
      %v4977 = vsel %vm4919, %v4975, %v4976
      %v4978 = vrot.slane %v4852, 3
      %v4979 = vsel %vm4919, %v4976, %v4978
      %v4980 = vrot.slane %v4853, 3
      %v4981 = vrot.slane %v4854, 3
      %v4982 = vsel %vm4919, %v4980, %v4981
      %v4983 = vrot.slane %v4855, 3
      %v4984 = vsel %vm4919, %v4981, %v4983
      %v4985 = vrot.slane %v4856, 3
      %v4986 = vrot.slane %v4857, 3
      %v4987 = vsel %vm4919, %v4985, %v4986
      %v4988 = vrot.slane %v4858, 3
      %v4989 = vsel %vm4919, %v4986, %v4988
      %v4990 = vrot.slane %v4859, 3
      %v4991 = vrot.slane %v4860, 3
      %v4992 = vsel %vm4919, %v4990, %v4991
      %v4993 = vrot.slane %v4861, 3
      %v4994 = vsel %vm4919, %v4991, %v4993
      %v4995 = vrot.slane %v4862, 3
      %v4996 = vrot.slane %v4863, 3
      %v4997 = vsel %vm4919, %v4995, %v4996
      %v4998 = vrot.slane %v4864, 3
      %v4999 = vsel %vm4919, %v4996, %v4998
      %v5032 = vpack.c.bf16 %v4924, %v4922
      %v5033 = vpack.c.bf16 %v4929, %v4927
      %v5034 = vpack.c.bf16 %v4934, %v4932
      %v5035 = vpack.c.bf16 %v4939, %v4937
      %v5036 = vpack.c.bf16 %v4944, %v4942
      %v5037 = vpack.c.bf16 %v4949, %v4947
      %v5038 = vpack.c.bf16 %v4954, %v4952
      %v5039 = vpack.c.bf16 %v4959, %v4957
      %v5040 = vpack.c.bf16 %v4964, %v4962
      %v5041 = vpack.c.bf16 %v4969, %v4967
      %v5042 = vpack.c.bf16 %v4974, %v4972
      %v5043 = vpack.c.bf16 %v4979, %v4977
      %v5044 = vpack.c.bf16 %v4984, %v4982
      %v5045 = vpack.c.bf16 %v4989, %v4987
      %v5046 = vpack.c.bf16 %v4994, %v4992
      %v5047 = vpack.c.bf16 %v4999, %v4997
      %v5048 = vld [vmem:[%s4] sm:$0xf]
      %v5049 = vld [vmem:[%s4 + $0x4] sm:$0xf]
      %v5050 = vld [vmem:[%s4 + $0x8] sm:$0xf]
      %v5051 = vld [vmem:[%s4 + $0xc] sm:$0xf]
      %v5052 = vld [vmem:[%s4 + $0x10] sm:$0xf]
      %v5053 = vld [vmem:[%s4 + $0x14] sm:$0xf]
      %v5054 = vld [vmem:[%s4 + $0x18] sm:$0xf]
      %v5055 = vld [vmem:[%s4 + $0x1c] sm:$0xf]
      %v5056 = vld [vmem:[%s4 + $0x20] sm:$0xf]
      %v5057 = vld [vmem:[%s4 + $0x24] sm:$0xf]
      %v5058 = vld [vmem:[%s4 + $0x28] sm:$0xf]
      %v5059 = vld [vmem:[%s4 + $0x2c] sm:$0xf]
      %v5060 = vld [vmem:[%s4 + $0x30] sm:$0xf]
      %v5061 = vld [vmem:[%s4 + $0x34] sm:$0xf]
      %v5062 = vld [vmem:[%s4 + $0x38] sm:$0xf]
      %v5063 = vld [vmem:[%s4 + $0x3c] sm:$0xf]
      %v5064 = vrot.slane %v4817, 4
      %v5065 = vrot.slane %v4818, 4
      %v5066 = vsel %vm500, %v5064, %v5065
      %v5067 = vrot.slane %v4819, 4
      %v5068 = vsel %vm500, %v5065, %v5067
      %v5069 = vrot.slane %v4820, 4
      %v5070 = vrot.slane %v4821, 4
      %v5071 = vsel %vm500, %v5069, %v5070
      %v5072 = vrot.slane %v4822, 4
      %v5073 = vsel %vm500, %v5070, %v5072
      %v5074 = vrot.slane %v4823, 4
      %v5075 = vrot.slane %v4824, 4
      %v5076 = vsel %vm500, %v5074, %v5075
      %v5077 = vrot.slane %v4825, 4
      %v5078 = vsel %vm500, %v5075, %v5077
      %v5079 = vrot.slane %v4826, 4
      %v5080 = vrot.slane %v4827, 4
      %v5081 = vsel %vm500, %v5079, %v5080
      %v5082 = vrot.slane %v4828, 4
      %v5083 = vsel %vm500, %v5080, %v5082
      %v5084 = vrot.slane %v4829, 4
      %v5085 = vrot.slane %v4830, 4
      %v5086 = vsel %vm500, %v5084, %v5085
      %v5087 = vrot.slane %v4831, 4
      %v5088 = vsel %vm500, %v5085, %v5087
      %v5089 = vrot.slane %v4832, 4
      %v5090 = vrot.slane %v4833, 4
      %v5091 = vsel %vm500, %v5089, %v5090
      %v5092 = vrot.slane %v4834, 4
      %v5093 = vsel %vm500, %v5090, %v5092
      %v5094 = vrot.slane %v4835, 4
      %v5095 = vrot.slane %v4836, 4
      %v5096 = vsel %vm500, %v5094, %v5095
      %v5097 = vrot.slane %v4837, 4
      %v5098 = vsel %vm500, %v5095, %v5097
      %v5099 = vrot.slane %v4838, 4
      %v5100 = vrot.slane %v4839, 4
      %v5101 = vsel %vm500, %v5099, %v5100
      %v5102 = vrot.slane %v4840, 4
      %v5103 = vsel %vm500, %v5100, %v5102
      %v5104 = vrot.slane %v4841, 4
      %v5105 = vrot.slane %v4842, 4
      %v5106 = vsel %vm500, %v5104, %v5105
      %v5107 = vrot.slane %v4843, 4
      %v5108 = vsel %vm500, %v5105, %v5107
      %v5109 = vrot.slane %v4844, 4
      %v5110 = vrot.slane %v4845, 4
      %v5111 = vsel %vm500, %v5109, %v5110
      %v5112 = vrot.slane %v4846, 4
      %v5113 = vsel %vm500, %v5110, %v5112
      %v5114 = vrot.slane %v4847, 4
      %v5115 = vrot.slane %v4848, 4
      %v5116 = vsel %vm500, %v5114, %v5115
      %v5117 = vrot.slane %v4849, 4
      %v5118 = vsel %vm500, %v5115, %v5117
      %v5119 = vrot.slane %v4850, 4
      %v5120 = vrot.slane %v4851, 4
      %v5121 = vsel %vm500, %v5119, %v5120
      %v5122 = vrot.slane %v4852, 4
      %v5123 = vsel %vm500, %v5120, %v5122
      %v5124 = vrot.slane %v4853, 4
      %v5125 = vrot.slane %v4854, 4
      %v5126 = vsel %vm500, %v5124, %v5125
      %v5127 = vrot.slane %v4855, 4
      %v5128 = vsel %vm500, %v5125, %v5127
      %v5129 = vrot.slane %v4856, 4
      %v5130 = vrot.slane %v4857, 4
      %v5131 = vsel %vm500, %v5129, %v5130
      %v5132 = vrot.slane %v4858, 4
      %v5133 = vsel %vm500, %v5130, %v5132
      %v5134 = vrot.slane %v4859, 4
      %v5135 = vrot.slane %v4860, 4
      %v5136 = vsel %vm500, %v5134, %v5135
      %v5137 = vrot.slane %v4861, 4
      %v5138 = vsel %vm500, %v5135, %v5137
      %v5139 = vrot.slane %v4862, 4
      %v5140 = vrot.slane %v4863, 4
      %v5141 = vsel %vm500, %v5139, %v5140
      %v5142 = vrot.slane %v4864, 4
      %v5143 = vsel %vm500, %v5140, %v5142
      %v5176 = vpack.c.bf16 %v5068, %v5066
      %v5177 = vpack.c.bf16 %v5073, %v5071
      %v5178 = vpack.c.bf16 %v5078, %v5076
      %v5179 = vpack.c.bf16 %v5083, %v5081
      %v5180 = vpack.c.bf16 %v5088, %v5086
      %v5181 = vpack.c.bf16 %v5093, %v5091
      %v5182 = vpack.c.bf16 %v5098, %v5096
      %v5183 = vpack.c.bf16 %v5103, %v5101
      %v5184 = vpack.c.bf16 %v5108, %v5106
      %v5185 = vpack.c.bf16 %v5113, %v5111
      %v5186 = vpack.c.bf16 %v5118, %v5116
      %v5187 = vpack.c.bf16 %v5123, %v5121
      %v5188 = vpack.c.bf16 %v5128, %v5126
      %v5189 = vpack.c.bf16 %v5133, %v5131
      %v5190 = vpack.c.bf16 %v5138, %v5136
      %v5191 = vpack.c.bf16 %v5143, %v5141
      %s5192 = scalar_lea.vmem %s4, 64
      %v5193 = vld [vmem:[%s5192] sm:$0xf]
      %v5194 = vld [vmem:[%s5192 + $0x4] sm:$0xf]
      %v5195 = vld [vmem:[%s5192 + $0x8] sm:$0xf]
      %v5196 = vld [vmem:[%s5192 + $0xc] sm:$0xf]
      %v5197 = vld [vmem:[%s5192 + $0x10] sm:$0xf]
      %v5198 = vld [vmem:[%s5192 + $0x14] sm:$0xf]
      %v5199 = vld [vmem:[%s5192 + $0x18] sm:$0xf]
      %v5200 = vld [vmem:[%s5192 + $0x1c] sm:$0xf]
      %v5201 = vld [vmem:[%s5192 + $0x20] sm:$0xf]
      %v5202 = vld [vmem:[%s5192 + $0x24] sm:$0xf]
      %v5203 = vld [vmem:[%s5192 + $0x28] sm:$0xf]
      %v5204 = vld [vmem:[%s5192 + $0x2c] sm:$0xf]
      %v5205 = vld [vmem:[%s5192 + $0x30] sm:$0xf]
      %v5206 = vld [vmem:[%s5192 + $0x34] sm:$0xf]
      %v5207 = vld [vmem:[%s5192 + $0x38] sm:$0xf]
      %v5208 = vld [vmem:[%s5192 + $0x3c] sm:$0xf]
      %v5225 = vunpack.c.l.b16 %v5193
      %v5226 = vunpack.c.l.b16 %v5194
      %v5227 = vunpack.c.l.b16 %v5195
      %v5228 = vunpack.c.l.b16 %v5196
      %v5229 = vunpack.c.l.b16 %v5197
      %v5230 = vunpack.c.l.b16 %v5198
      %v5231 = vunpack.c.l.b16 %v5199
      %v5232 = vunpack.c.l.b16 %v5200
      %v5233 = vunpack.c.l.b16 %v5201
      %v5234 = vunpack.c.l.b16 %v5202
      %v5235 = vunpack.c.l.b16 %v5203
      %v5236 = vunpack.c.l.b16 %v5204
      %v5237 = vunpack.c.l.b16 %v5205
      %v5238 = vunpack.c.l.b16 %v5206
      %v5239 = vunpack.c.l.b16 %v5207
      %v5240 = vunpack.c.l.b16 %v5208
      %v5241 = vpack.c.b16 %v5226, %v5225
      %v5242 = vpack.c.b16 %v5228, %v5227
      %v5243 = vpack.c.b16 %v5230, %v5229
      %v5244 = vpack.c.b16 %v5232, %v5231
      %v5245 = vpack.c.b16 %v5234, %v5233
      %v5246 = vpack.c.b16 %v5236, %v5235
      %v5247 = vpack.c.b16 %v5238, %v5237
      %v5248 = vpack.c.b16 %v5240, %v5239
      %5257 = vmatprep.subr.bf16.mxu0 0
      %5258 = vmatpush1.bf16.msra.mxu0 %v5241
      %5259 = vmatprep.subr.bf16.mxu0 0
      %5260 = vmatpush1.bf16.msra.mxu0 %v5242
      %5261 = vmatprep.subr.bf16.mxu0 0
      %5262 = vmatpush1.bf16.msra.mxu0 %v5243
      %5263 = vmatprep.subr.bf16.mxu0 0
      %5264 = vmatpush1.bf16.msra.mxu0 %v5244
      %5265 = vmatprep.subr.bf16.mxu0 0
      %5266 = vmatpush1.bf16.msra.mxu0 %v5245
      %5267 = vmatprep.subr.bf16.mxu0 0
      %5268 = vmatpush1.bf16.msra.mxu0 %v5246
      %5269 = vmatprep.subr.bf16.mxu0 0
      %5270 = vmatpush1.bf16.msra.mxu0 %v5247
      %5271 = vmatprep.subr.bf16.mxu0 0
      %5272 = vmatpush1.bf16.msra.mxu0 %v5248
      %5273 = vmatprep.subr.bf16.mxu0 0
      %5274 = vmatpush1.bf16.msra.mxu0 0
      %5275 = vmatprep.subr.bf16.mxu0 0
      %5276 = vmatpush1.bf16.msra.mxu0 0
      %5277 = vmatprep.subr.bf16.mxu0 0
      %5278 = vmatpush1.bf16.msra.mxu0 0
      %5279 = vmatprep.subr.bf16.mxu0 0
      %5280 = vmatpush1.bf16.msra.mxu0 0
      %5281 = vmatprep.subr.bf16.mxu0 0
      %5282 = vmatpush1.bf16.msra.mxu0 0
      %5283 = vmatprep.subr.bf16.mxu0 0
      %5284 = vmatpush1.bf16.msra.mxu0 0
      %5285 = vmatprep.subr.bf16.mxu0 0
      %5286 = vmatpush1.bf16.msra.mxu0 0
      %5287 = vmatprep.subr.bf16.mxu0 0
      %5288 = vmatpush1.bf16.msra.mxu0 0
      %5289 = vmatprep.mubr.bf16.mxu0 0
      %5290 = vmatmul.mubr.bf16.gmra.mrb[0].mxu0 %v5176
      %v5291 = vpop.f32.mrb[0].mxu0
      %v5292 = vadd.f32 0.0, %v5291
      %v5293 = vpop.f32.mrb[0].mxu0
      %v5294 = vpop.f32.mrb[0].mxu0
      %v5295 = vadd.f32 0.0, %v5294
      %v5296 = vpop.f32.mrb[0].mxu0
      %5297 = vmatprep.mubr.bf16.mxu0 0
      %5298 = vmatmul.mubr.bf16.gmra.mrb[0].mxu0 %v5177
      %v5299 = vpop.f32.mrb[0].mxu0
      %v5300 = vadd.f32 0.0, %v5299
      %v5301 = vpop.f32.mrb[0].mxu0
      %v5302 = vpop.f32.mrb[0].mxu0
      %v5303 = vadd.f32 0.0, %v5302
      %v5304 = vpop.f32.mrb[0].mxu0
      %5305 = vmatprep.mubr.bf16.mxu0 0
      %5306 = vmatmul.mubr.bf16.gmra.mrb[0].mxu0 %v5178
      %v5307 = vpop.f32.mrb[0].mxu0
      %v5308 = vadd.f32 0.0, %v5307
      %v5309 = vpop.f32.mrb[0].mxu0
      %v5310 = vpop.f32.mrb[0].mxu0
      %v5311 = vadd.f32 0.0, %v5310
      %v5312 = vpop.f32.mrb[0].mxu0
      %5313 = vmatprep.mubr.bf16.mxu0 0
      %5314 = vmatmul.mubr.bf16.gmra.mrb[0].mxu0 %v5179
      %v5315 = vpop.f32.mrb[0].mxu0
      %v5316 = vadd.f32 0.0, %v5315
      %v5317 = vpop.f32.mrb[0].mxu0
      %v5318 = vpop.f32.mrb[0].mxu0
      %v5319 = vadd.f32 0.0, %v5318
      %v5320 = vpop.f32.mrb[0].mxu0
      %5321 = vmatprep.mubr.bf16.mxu0 0
      %5322 = vmatmul.mubr.bf16.gmra.mrb[0].mxu0 %v5180
      %v5323 = vpop.f32.mrb[0].mxu0
      %v5324 = vadd.f32 0.0, %v5323
      %v5325 = vpop.f32.mrb[0].mxu0
      %v5326 = vpop.f32.mrb[0].mxu0
      %v5327 = vadd.f32 0.0, %v5326
      %v5328 = vpop.f32.mrb[0].mxu0
      %5329 = vmatprep.mubr.bf16.mxu0 0
      %5330 = vmatmul.mubr.bf16.gmra.mrb[0].mxu0 %v5181
      %v5331 = vpop.f32.mrb[0].mxu0
      %v5332 = vadd.f32 0.0, %v5331
      %v5333 = vpop.f32.mrb[0].mxu0
      %v5334 = vpop.f32.mrb[0].mxu0
      %v5335 = vadd.f32 0.0, %v5334
      %v5336 = vpop.f32.mrb[0].mxu0
      %5337 = vmatprep.mubr.bf16.mxu0 0
      %5338 = vmatmul.mubr.bf16.gmra.mrb[0].mxu0 %v5182
      %v5339 = vpop.f32.mrb[0].mxu0
      %v5340 = vadd.f32 0.0, %v5339
      %v5341 = vpop.f32.mrb[0].mxu0
      %v5342 = vpop.f32.mrb[0].mxu0
      %v5343 = vadd.f32 0.0, %v5342
      %v5344 = vpop.f32.mrb[0].mxu0
      %5345 = vmatprep.mubr.bf16.mxu0 0
      %5346 = vmatmul.mubr.bf16.gmra.mrb[0].mxu0 %v5183
      %v5347 = vpop.f32.mrb[0].mxu0
      %v5348 = vadd.f32 0.0, %v5347
      %v5349 = vpop.f32.mrb[0].mxu0
      %v5350 = vpop.f32.mrb[0].mxu0
      %v5351 = vadd.f32 0.0, %v5350
      %v5352 = vpop.f32.mrb[0].mxu0
      %5353 = vmatprep.mubr.bf16.mxu0 0
      %5354 = vmatmul.mubr.bf16.gmra.mrb[0].mxu0 %v5184
      %v5355 = vpop.f32.mrb[0].mxu0
      %v5356 = vadd.f32 0.0, %v5355
      %v5357 = vpop.f32.mrb[0].mxu0
      %v5358 = vpop.f32.mrb[0].mxu0
      %v5359 = vadd.f32 0.0, %v5358
      %v5360 = vpop.f32.mrb[0].mxu0
      %5361 = vmatprep.mubr.bf16.mxu0 0
      %5362 = vmatmul.mubr.bf16.gmra.mrb[0].mxu0 %v5185
      %v5363 = vpop.f32.mrb[0].mxu0
      %v5364 = vadd.f32 0.0, %v5363
      %v5365 = vpop.f32.mrb[0].mxu0
      %v5366 = vpop.f32.mrb[0].mxu0
      %v5367 = vadd.f32 0.0, %v5366
      %v5368 = vpop.f32.mrb[0].mxu0
      %5369 = vmatprep.mubr.bf16.mxu0 0
      %5370 = vmatmul.mubr.bf16.gmra.mrb[0].mxu0 %v5186
      %v5371 = vpop.f32.mrb[0].mxu0
      %v5372 = vadd.f32 0.0, %v5371
      %v5373 = vpop.f32.mrb[0].mxu0
      %v5374 = vpop.f32.mrb[0].mxu0
      %v5375 = vadd.f32 0.0, %v5374
      %v5376 = vpop.f32.mrb[0].mxu0
      %5377 = vmatprep.mubr.bf16.mxu0 0
      %5378 = vmatmul.mubr.bf16.gmra.mrb[0].mxu0 %v5187
      %v5379 = vpop.f32.mrb[0].mxu0
      %v5380 = vadd.f32 0.0, %v5379
      %v5381 = vpop.f32.mrb[0].mxu0
      %v5382 = vpop.f32.mrb[0].mxu0
      %v5383 = vadd.f32 0.0, %v5382
      %v5384 = vpop.f32.mrb[0].mxu0
      %5385 = vmatprep.mubr.bf16.mxu0 0
      %5386 = vmatmul.mubr.bf16.gmra.mrb[0].mxu0 %v5188
      %v5387 = vpop.f32.mrb[0].mxu0
      %v5388 = vadd.f32 0.0, %v5387
      %v5389 = vpop.f32.mrb[0].mxu0
      %v5390 = vpop.f32.mrb[0].mxu0
      %v5391 = vadd.f32 0.0, %v5390
      %v5392 = vpop.f32.mrb[0].mxu0
      %5393 = vmatprep.mubr.bf16.mxu0 0
      %5394 = vmatmul.mubr.bf16.gmra.mrb[0].mxu0 %v5189
      %v5395 = vpop.f32.mrb[0].mxu0
      %v5396 = vadd.f32 0.0, %v5395
      %v5397 = vpop.f32.mrb[0].mxu0
      %v5398 = vpop.f32.mrb[0].mxu0
      %v5399 = vadd.f32 0.0, %v5398
      %v5400 = vpop.f32.mrb[0].mxu0
      %5401 = vmatprep.mubr.bf16.mxu0 0
      %5402 = vmatmul.mubr.bf16.gmra.mrb[0].mxu0 %v5190
      %v5403 = vpop.f32.mrb[0].mxu0
      %v5404 = vadd.f32 0.0, %v5403
      %v5405 = vpop.f32.mrb[0].mxu0
      %v5406 = vpop.f32.mrb[0].mxu0
      %v5407 = vadd.f32 0.0, %v5406
      %v5408 = vpop.f32.mrb[0].mxu0
      %5409 = vmatprep.mubr.bf16.mxu0 0
      %5410 = vmatmul.mubr.bf16.gmra.mrb[0].mxu0 %v5191
      %v5411 = vpop.f32.mrb[0].mxu0
      %v5412 = vadd.f32 0.0, %v5411
      %v5413 = vpop.f32.mrb[0].mxu0
      %v5414 = vpop.f32.mrb[0].mxu0
      %v5415 = vadd.f32 0.0, %v5414
      %v5416 = vpop.f32.mrb[0].mxu0
      %5417 = vdwg.mxu0
      %v5434 = vunpack.c.l.b16 %v5048
      %v5435 = vunpack.c.l.b16 %v5049
      %v5436 = vunpack.c.l.b16 %v5050
      %v5437 = vunpack.c.l.b16 %v5051
      %v5438 = vunpack.c.l.b16 %v5052
      %v5439 = vunpack.c.l.b16 %v5053
      %v5440 = vunpack.c.l.b16 %v5054
      %v5441 = vunpack.c.l.b16 %v5055
      %v5442 = vunpack.c.l.b16 %v5056
      %v5443 = vunpack.c.l.b16 %v5057
      %v5444 = vunpack.c.l.b16 %v5058
      %v5445 = vunpack.c.l.b16 %v5059
      %v5446 = vunpack.c.l.b16 %v5060
      %v5447 = vunpack.c.l.b16 %v5061
      %v5448 = vunpack.c.l.b16 %v5062
      %v5449 = vunpack.c.l.b16 %v5063
      %v5450 = vpack.c.b16 %v5435, %v5434
      %v5451 = vpack.c.b16 %v5437, %v5436
      %v5452 = vpack.c.b16 %v5439, %v5438
      %v5453 = vpack.c.b16 %v5441, %v5440
      %v5454 = vpack.c.b16 %v5443, %v5442
      %v5455 = vpack.c.b16 %v5445, %v5444
      %v5456 = vpack.c.b16 %v5447, %v5446
      %v5457 = vpack.c.b16 %v5449, %v5448
      %5466 = vmatprep.subr.bf16.mxu0 0
      %5467 = vmatpush1.bf16.msra.mxu0 %v5450
      %5468 = vmatprep.subr.bf16.mxu0 0
      %5469 = vmatpush1.bf16.msra.mxu0 %v5451
      %5470 = vmatprep.subr.bf16.mxu0 0
      %5471 = vmatpush1.bf16.msra.mxu0 %v5452
      %5472 = vmatprep.subr.bf16.mxu0 0
      %5473 = vmatpush1.bf16.msra.mxu0 %v5453
      %5474 = vmatprep.subr.bf16.mxu0 0
      %5475 = vmatpush1.bf16.msra.mxu0 %v5454
      %5476 = vmatprep.subr.bf16.mxu0 0
      %5477 = vmatpush1.bf16.msra.mxu0 %v5455
      %5478 = vmatprep.subr.bf16.mxu0 0
      %5479 = vmatpush1.bf16.msra.mxu0 %v5456
      %5480 = vmatprep.subr.bf16.mxu0 0
      %5481 = vmatpush1.bf16.msra.mxu0 %v5457
      %5482 = vmatprep.subr.bf16.mxu0 0
      %5483 = vmatpush1.bf16.msra.mxu0 0
      %5484 = vmatprep.subr.bf16.mxu0 0
      %5485 = vmatpush1.bf16.msra.mxu0 0
      %5486 = vmatprep.subr.bf16.mxu0 0
      %5487 = vmatpush1.bf16.msra.mxu0 0
      %5488 = vmatprep.subr.bf16.mxu0 0
      %5489 = vmatpush1.bf16.msra.mxu0 0
      %5490 = vmatprep.subr.bf16.mxu0 0
      %5491 = vmatpush1.bf16.msra.mxu0 0
      %5492 = vmatprep.subr.bf16.mxu0 0
      %5493 = vmatpush1.bf16.msra.mxu0 0
      %5494 = vmatprep.subr.bf16.mxu0 0
      %5495 = vmatpush1.bf16.msra.mxu0 0
      %5496 = vmatprep.subr.bf16.mxu0 0
      %5497 = vmatpush1.bf16.msra.mxu0 0
      %5498 = vmatprep.mubr.bf16.mxu0 0
      %5499 = vmatmul.mubr.bf16.gmra.mrb[0].mxu0 %v5032
      %v5500 = vpop.f32.mrb[0].mxu0
      %v5501 = vadd.f32 %v5292, %v5500
      %v5502 = vpop.f32.mrb[0].mxu0
      %v5503 = vpop.f32.mrb[0].mxu0
      %v5504 = vadd.f32 %v5295, %v5503
      %v5505 = vpop.f32.mrb[0].mxu0
      %5506 = vmatprep.mubr.bf16.mxu0 0
      %5507 = vmatmul.mubr.bf16.gmra.mrb[0].mxu0 %v5033
      %v5508 = vpop.f32.mrb[0].mxu0
      %v5509 = vadd.f32 %v5300, %v5508
      %v5510 = vpop.f32.mrb[0].mxu0
      %v5511 = vpop.f32.mrb[0].mxu0
      %v5512 = vadd.f32 %v5303, %v5511
      %v5513 = vpop.f32.mrb[0].mxu0
      %5514 = vmatprep.mubr.bf16.mxu0 0
      %5515 = vmatmul.mubr.bf16.gmra.mrb[0].mxu0 %v5034
      %v5516 = vpop.f32.mrb[0].mxu0
      %v5517 = vadd.f32 %v5308, %v5516
      %v5518 = vpop.f32.mrb[0].mxu0
      %v5519 = vpop.f32.mrb[0].mxu0
      %v5520 = vadd.f32 %v5311, %v5519
      %v5521 = vpop.f32.mrb[0].mxu0
      %5522 = vmatprep.mubr.bf16.mxu0 0
      %5523 = vmatmul.mubr.bf16.gmra.mrb[0].mxu0 %v5035
      %v5524 = vpop.f32.mrb[0].mxu0
      %v5525 = vadd.f32 %v5316, %v5524
      %v5526 = vpop.f32.mrb[0].mxu0
      %v5527 = vpop.f32.mrb[0].mxu0
      %v5528 = vadd.f32 %v5319, %v5527
      %v5529 = vpop.f32.mrb[0].mxu0
      %5530 = vmatprep.mubr.bf16.mxu0 0
      %5531 = vmatmul.mubr.bf16.gmra.mrb[0].mxu0 %v5036
      %v5532 = vpop.f32.mrb[0].mxu0
      %v5533 = vadd.f32 %v5324, %v5532
      %v5534 = vpop.f32.mrb[0].mxu0
      %v5535 = vpop.f32.mrb[0].mxu0
      %v5536 = vadd.f32 %v5327, %v5535
      %v5537 = vpop.f32.mrb[0].mxu0
      %5538 = vmatprep.mubr.bf16.mxu0 0
      %5539 = vmatmul.mubr.bf16.gmra.mrb[0].mxu0 %v5037
      %v5540 = vpop.f32.mrb[0].mxu0
      %v5541 = vadd.f32 %v5332, %v5540
      %v5542 = vpop.f32.mrb[0].mxu0
      %v5543 = vpop.f32.mrb[0].mxu0
      %v5544 = vadd.f32 %v5335, %v5543
      %v5545 = vpop.f32.mrb[0].mxu0
      %5546 = vmatprep.mubr.bf16.mxu0 0
      %5547 = vmatmul.mubr.bf16.gmra.mrb[0].mxu0 %v5038
      %v5548 = vpop.f32.mrb[0].mxu0
      %v5549 = vadd.f32 %v5340, %v5548
      %v5550 = vpop.f32.mrb[0].mxu0
      %v5551 = vpop.f32.mrb[0].mxu0
      %v5552 = vadd.f32 %v5343, %v5551
      %v5553 = vpop.f32.mrb[0].mxu0
      %5554 = vmatprep.mubr.bf16.mxu0 0
      %5555 = vmatmul.mubr.bf16.gmra.mrb[0].mxu0 %v5039
      %v5556 = vpop.f32.mrb[0].mxu0
      %v5557 = vadd.f32 %v5348, %v5556
      %v5558 = vpop.f32.mrb[0].mxu0
      %v5559 = vpop.f32.mrb[0].mxu0
      %v5560 = vadd.f32 %v5351, %v5559
      %v5561 = vpop.f32.mrb[0].mxu0
      %5562 = vmatprep.mubr.bf16.mxu0 0
      %5563 = vmatmul.mubr.bf16.gmra.mrb[0].mxu0 %v5040
      %v5564 = vpop.f32.mrb[0].mxu0
      %v5565 = vadd.f32 %v5356, %v5564
      %v5566 = vpop.f32.mrb[0].mxu0
      %v5567 = vpop.f32.mrb[0].mxu0
      %v5568 = vadd.f32 %v5359, %v5567
      %v5569 = vpop.f32.mrb[0].mxu0
      %5570 = vmatprep.mubr.bf16.mxu0 0
      %5571 = vmatmul.mubr.bf16.gmra.mrb[0].mxu0 %v5041
      %v5572 = vpop.f32.mrb[0].mxu0
      %v5573 = vadd.f32 %v5364, %v5572
      %v5574 = vpop.f32.mrb[0].mxu0
      %v5575 = vpop.f32.mrb[0].mxu0
      %v5576 = vadd.f32 %v5367, %v5575
      %v5577 = vpop.f32.mrb[0].mxu0
      %5578 = vmatprep.mubr.bf16.mxu0 0
      %5579 = vmatmul.mubr.bf16.gmra.mrb[0].mxu0 %v5042
      %v5580 = vpop.f32.mrb[0].mxu0
      %v5581 = vadd.f32 %v5372, %v5580
      %v5582 = vpop.f32.mrb[0].mxu0
      %v5583 = vpop.f32.mrb[0].mxu0
      %v5584 = vadd.f32 %v5375, %v5583
      %v5585 = vpop.f32.mrb[0].mxu0
      %5586 = vmatprep.mubr.bf16.mxu0 0
      %5587 = vmatmul.mubr.bf16.gmra.mrb[0].mxu0 %v5043
      %v5588 = vpop.f32.mrb[0].mxu0
      %v5589 = vadd.f32 %v5380, %v5588
      %v5590 = vpop.f32.mrb[0].mxu0
      %v5591 = vpop.f32.mrb[0].mxu0
      %v5592 = vadd.f32 %v5383, %v5591
      %v5593 = vpop.f32.mrb[0].mxu0
      %5594 = vmatprep.mubr.bf16.mxu0 0
      %5595 = vmatmul.mubr.bf16.gmra.mrb[0].mxu0 %v5044
      %v5596 = vpop.f32.mrb[0].mxu0
      %v5597 = vadd.f32 %v5388, %v5596
      %v5598 = vpop.f32.mrb[0].mxu0
      %v5599 = vpop.f32.mrb[0].mxu0
      %v5600 = vadd.f32 %v5391, %v5599
      %v5601 = vpop.f32.mrb[0].mxu0
      %5602 = vmatprep.mubr.bf16.mxu0 0
      %5603 = vmatmul.mubr.bf16.gmra.mrb[0].mxu0 %v5045
      %v5604 = vpop.f32.mrb[0].mxu0
      %v5605 = vadd.f32 %v5396, %v5604
      %v5606 = vpop.f32.mrb[0].mxu0
      %v5607 = vpop.f32.mrb[0].mxu0
      %v5608 = vadd.f32 %v5399, %v5607
      %v5609 = vpop.f32.mrb[0].mxu0
      %5610 = vmatprep.mubr.bf16.mxu0 0
      %5611 = vmatmul.mubr.bf16.gmra.mrb[0].mxu0 %v5046
      %v5612 = vpop.f32.mrb[0].mxu0
      %v5613 = vadd.f32 %v5404, %v5612
      %v5614 = vpop.f32.mrb[0].mxu0
      %v5615 = vpop.f32.mrb[0].mxu0
      %v5616 = vadd.f32 %v5407, %v5615
      %v5617 = vpop.f32.mrb[0].mxu0
      %5618 = vmatprep.mubr.bf16.mxu0 0
      %5619 = vmatmul.mubr.bf16.gmra.mrb[0].mxu0 %v5047
      %v5620 = vpop.f32.mrb[0].mxu0
      %v5621 = vadd.f32 %v5412, %v5620
      %v5622 = vpop.f32.mrb[0].mxu0
      %v5623 = vpop.f32.mrb[0].mxu0
      %v5624 = vadd.f32 %v5415, %v5623
      %v5625 = vpop.f32.mrb[0].mxu0
      %5626 = vdwg.mxu0
      %vm5627 = vcmask 1042432
      %v5628 = vrot.slane %v4817, 5
      %v5629 = vrot.slane %v4818, 5
      %v5630 = vsel %vm5627, %v5628, %v5629
      %v5631 = vrot.slane %v4819, 5
      %v5632 = vsel %vm5627, %v5629, %v5631
      %v5633 = vrot.slane %v4820, 5
      %v5634 = vrot.slane %v4821, 5
      %v5635 = vsel %vm5627, %v5633, %v5634
      %v5636 = vrot.slane %v4822, 5
      %v5637 = vsel %vm5627, %v5634, %v5636
      %v5638 = vrot.slane %v4823, 5
      %v5639 = vrot.slane %v4824, 5
      %v5640 = vsel %vm5627, %v5638, %v5639
      %v5641 = vrot.slane %v4825, 5
      %v5642 = vsel %vm5627, %v5639, %v5641
      %v5643 = vrot.slane %v4826, 5
      %v5644 = vrot.slane %v4827, 5
      %v5645 = vsel %vm5627, %v5643, %v5644
      %v5646 = vrot.slane %v4828, 5
      %v5647 = vsel %vm5627, %v5644, %v5646
      %v5648 = vrot.slane %v4829, 5
      %v5649 = vrot.slane %v4830, 5
      %v5650 = vsel %vm5627, %v5648, %v5649
      %v5651 = vrot.slane %v4831, 5
      %v5652 = vsel %vm5627, %v5649, %v5651
      %v5653 = vrot.slane %v4832, 5
      %v5654 = vrot.slane %v4833, 5
      %v5655 = vsel %vm5627, %v5653, %v5654
      %v5656 = vrot.slane %v4834, 5
      %v5657 = vsel %vm5627, %v5654, %v5656
      %v5658 = vrot.slane %v4835, 5
      %v5659 = vrot.slane %v4836, 5
      %v5660 = vsel %vm5627, %v5658, %v5659
      %v5661 = vrot.slane %v4837, 5
      %v5662 = vsel %vm5627, %v5659, %v5661
      %v5663 = vrot.slane %v4838, 5
      %v5664 = vrot.slane %v4839, 5
      %v5665 = vsel %vm5627, %v5663, %v5664
      %v5666 = vrot.slane %v4840, 5
      %v5667 = vsel %vm5627, %v5664, %v5666
      %v5668 = vrot.slane %v4841, 5
      %v5669 = vrot.slane %v4842, 5
      %v5670 = vsel %vm5627, %v5668, %v5669
      %v5671 = vrot.slane %v4843, 5
      %v5672 = vsel %vm5627, %v5669, %v5671
      %v5673 = vrot.slane %v4844, 5
      %v5674 = vrot.slane %v4845, 5
      %v5675 = vsel %vm5627, %v5673, %v5674
      %v5676 = vrot.slane %v4846, 5
      %v5677 = vsel %vm5627, %v5674, %v5676
      %v5678 = vrot.slane %v4847, 5
      %v5679 = vrot.slane %v4848, 5
      %v5680 = vsel %vm5627, %v5678, %v5679
      %v5681 = vrot.slane %v4849, 5
      %v5682 = vsel %vm5627, %v5679, %v5681
      %v5683 = vrot.slane %v4850, 5
      %v5684 = vrot.slane %v4851, 5
      %v5685 = vsel %vm5627, %v5683, %v5684
      %v5686 = vrot.slane %v4852, 5
      %v5687 = vsel %vm5627, %v5684, %v5686
      %v5688 = vrot.slane %v4853, 5
      %v5689 = vrot.slane %v4854, 5
      %v5690 = vsel %vm5627, %v5688, %v5689
      %v5691 = vrot.slane %v4855, 5
      %v5692 = vsel %vm5627, %v5689, %v5691
      %v5693 = vrot.slane %v4856, 5
      %v5694 = vrot.slane %v4857, 5
      %v5695 = vsel %vm5627, %v5693, %v5694
      %v5696 = vrot.slane %v4858, 5
      %v5697 = vsel %vm5627, %v5694, %v5696
      %v5698 = vrot.slane %v4859, 5
      %v5699 = vrot.slane %v4860, 5
      %v5700 = vsel %vm5627, %v5698, %v5699
      %v5701 = vrot.slane %v4861, 5
      %v5702 = vsel %vm5627, %v5699, %v5701
      %v5703 = vrot.slane %v4862, 5
      %v5704 = vrot.slane %v4863, 5
      %v5705 = vsel %vm5627, %v5703, %v5704
      %v5706 = vrot.slane %v4864, 5
      %v5707 = vsel %vm5627, %v5704, %v5706
      %v5740 = vpack.c.bf16 %v5632, %v5630
      %v5741 = vpack.c.bf16 %v5637, %v5635
      %v5742 = vpack.c.bf16 %v5642, %v5640
      %v5743 = vpack.c.bf16 %v5647, %v5645
      %v5744 = vpack.c.bf16 %v5652, %v5650
      %v5745 = vpack.c.bf16 %v5657, %v5655
      %v5746 = vpack.c.bf16 %v5662, %v5660
      %v5747 = vpack.c.bf16 %v5667, %v5665
      %v5748 = vpack.c.bf16 %v5672, %v5670
      %v5749 = vpack.c.bf16 %v5677, %v5675
      %v5750 = vpack.c.bf16 %v5682, %v5680
      %v5751 = vpack.c.bf16 %v5687, %v5685
      %v5752 = vpack.c.bf16 %v5692, %v5690
      %v5753 = vpack.c.bf16 %v5697, %v5695
      %v5754 = vpack.c.bf16 %v5702, %v5700
      %v5755 = vpack.c.bf16 %v5707, %v5705
      %s5756 = scalar_lea.vmem %s4, 128
      %v5757 = vld [vmem:[%s5756] sm:$0xf]
      %v5758 = vld [vmem:[%s5756 + $0x4] sm:$0xf]
      %v5759 = vld [vmem:[%s5756 + $0x8] sm:$0xf]
      %v5760 = vld [vmem:[%s5756 + $0xc] sm:$0xf]
      %v5761 = vld [vmem:[%s5756 + $0x10] sm:$0xf]
      %v5762 = vld [vmem:[%s5756 + $0x14] sm:$0xf]
      %v5763 = vld [vmem:[%s5756 + $0x18] sm:$0xf]
      %v5764 = vld [vmem:[%s5756 + $0x1c] sm:$0xf]
      %v5765 = vld [vmem:[%s5756 + $0x20] sm:$0xf]
      %v5766 = vld [vmem:[%s5756 + $0x24] sm:$0xf]
      %v5767 = vld [vmem:[%s5756 + $0x28] sm:$0xf]
      %v5768 = vld [vmem:[%s5756 + $0x2c] sm:$0xf]
      %v5769 = vld [vmem:[%s5756 + $0x30] sm:$0xf]
      %v5770 = vld [vmem:[%s5756 + $0x34] sm:$0xf]
      %v5771 = vld [vmem:[%s5756 + $0x38] sm:$0xf]
      %v5772 = vld [vmem:[%s5756 + $0x3c] sm:$0xf]
      %v5789 = vunpack.c.l.b16 %v5757
      %v5790 = vunpack.c.l.b16 %v5758
      %v5791 = vunpack.c.l.b16 %v5759
      %v5792 = vunpack.c.l.b16 %v5760
      %v5793 = vunpack.c.l.b16 %v5761
      %v5794 = vunpack.c.l.b16 %v5762
      %v5795 = vunpack.c.l.b16 %v5763
      %v5796 = vunpack.c.l.b16 %v5764
      %v5797 = vunpack.c.l.b16 %v5765
      %v5798 = vunpack.c.l.b16 %v5766
      %v5799 = vunpack.c.l.b16 %v5767
      %v5800 = vunpack.c.l.b16 %v5768
      %v5801 = vunpack.c.l.b16 %v5769
      %v5802 = vunpack.c.l.b16 %v5770
      %v5803 = vunpack.c.l.b16 %v5771
      %v5804 = vunpack.c.l.b16 %v5772
      %v5805 = vpack.c.b16 %v5790, %v5789
      %v5806 = vpack.c.b16 %v5792, %v5791
      %v5807 = vpack.c.b16 %v5794, %v5793
      %v5808 = vpack.c.b16 %v5796, %v5795
      %v5809 = vpack.c.b16 %v5798, %v5797
      %v5810 = vpack.c.b16 %v5800, %v5799
      %v5811 = vpack.c.b16 %v5802, %v5801
      %v5812 = vpack.c.b16 %v5804, %v5803
      %5821 = vmatprep.subr.bf16.mxu0 0
      %5822 = vmatpush1.bf16.msra.mxu0 %v5805
      %5823 = vmatprep.subr.bf16.mxu0 0
      %5824 = vmatpush1.bf16.msra.mxu0 %v5806
      %5825 = vmatprep.subr.bf16.mxu0 0
      %5826 = vmatpush1.bf16.msra.mxu0 %v5807
      %5827 = vmatprep.subr.bf16.mxu0 0
      %5828 = vmatpush1.bf16.msra.mxu0 %v5808
      %5829 = vmatprep.subr.bf16.mxu0 0
      %5830 = vmatpush1.bf16.msra.mxu0 %v5809
      %5831 = vmatprep.subr.bf16.mxu0 0
      %5832 = vmatpush1.bf16.msra.mxu0 %v5810
      %5833 = vmatprep.subr.bf16.mxu0 0
      %5834 = vmatpush1.bf16.msra.mxu0 %v5811
      %5835 = vmatprep.subr.bf16.mxu0 0
      %5836 = vmatpush1.bf16.msra.mxu0 %v5812
      %5837 = vmatprep.subr.bf16.mxu0 0
      %5838 = vmatpush1.bf16.msra.mxu0 0
      %5839 = vmatprep.subr.bf16.mxu0 0
      %5840 = vmatpush1.bf16.msra.mxu0 0
      %5841 = vmatprep.subr.bf16.mxu0 0
      %5842 = vmatpush1.bf16.msra.mxu0 0
      %5843 = vmatprep.subr.bf16.mxu0 0
      %5844 = vmatpush1.bf16.msra.mxu0 0
      %5845 = vmatprep.subr.bf16.mxu0 0
      %5846 = vmatpush1.bf16.msra.mxu0 0
      %5847 = vmatprep.subr.bf16.mxu0 0
      %5848 = vmatpush1.bf16.msra.mxu0 0
      %5849 = vmatprep.subr.bf16.mxu0 0
      %5850 = vmatpush1.bf16.msra.mxu0 0
      %5851 = vmatprep.subr.bf16.mxu0 0
      %5852 = vmatpush1.bf16.msra.mxu0 0
      %5853 = vmatprep.mubr.bf16.mxu0 0
      %5854 = vmatmul.mubr.bf16.gmra.mrb[0].mxu0 %v5740
      %v5855 = vpop.f32.mrb[0].mxu0
      %v5856 = vadd.f32 0.0, %v5855
      %v5857 = vpop.f32.mrb[0].mxu0
      %v5858 = vpop.f32.mrb[0].mxu0
      %v5859 = vadd.f32 0.0, %v5858
      %v5860 = vpop.f32.mrb[0].mxu0
      %5861 = vmatprep.mubr.bf16.mxu0 0
      %5862 = vmatmul.mubr.bf16.gmra.mrb[0].mxu0 %v5741
      %v5863 = vpop.f32.mrb[0].mxu0
      %v5864 = vadd.f32 0.0, %v5863
      %v5865 = vpop.f32.mrb[0].mxu0
      %v5866 = vpop.f32.mrb[0].mxu0
      %v5867 = vadd.f32 0.0, %v5866
      %v5868 = vpop.f32.mrb[0].mxu0
      %5869 = vmatprep.mubr.bf16.mxu0 0
      %5870 = vmatmul.mubr.bf16.gmra.mrb[0].mxu0 %v5742
      %v5871 = vpop.f32.mrb[0].mxu0
      %v5872 = vadd.f32 0.0, %v5871
      %v5873 = vpop.f32.mrb[0].mxu0
      %v5874 = vpop.f32.mrb[0].mxu0
      %v5875 = vadd.f32 0.0, %v5874
      %v5876 = vpop.f32.mrb[0].mxu0
      %5877 = vmatprep.mubr.bf16.mxu0 0
      %5878 = vmatmul.mubr.bf16.gmra.mrb[0].mxu0 %v5743
      %v5879 = vpop.f32.mrb[0].mxu0
      %v5880 = vadd.f32 0.0, %v5879
      %v5881 = vpop.f32.mrb[0].mxu0
      %v5882 = vpop.f32.mrb[0].mxu0
      %v5883 = vadd.f32 0.0, %v5882
      %v5884 = vpop.f32.mrb[0].mxu0
      %5885 = vmatprep.mubr.bf16.mxu0 0
      %5886 = vmatmul.mubr.bf16.gmra.mrb[0].mxu0 %v5744
      %v5887 = vpop.f32.mrb[0].mxu0
      %v5888 = vadd.f32 0.0, %v5887
      %v5889 = vpop.f32.mrb[0].mxu0
      %v5890 = vpop.f32.mrb[0].mxu0
      %v5891 = vadd.f32 0.0, %v5890
      %v5892 = vpop.f32.mrb[0].mxu0
      %5893 = vmatprep.mubr.bf16.mxu0 0
      %5894 = vmatmul.mubr.bf16.gmra.mrb[0].mxu0 %v5745
      %v5895 = vpop.f32.mrb[0].mxu0
      %v5896 = vadd.f32 0.0, %v5895
      %v5897 = vpop.f32.mrb[0].mxu0
      %v5898 = vpop.f32.mrb[0].mxu0
      %v5899 = vadd.f32 0.0, %v5898
      %v5900 = vpop.f32.mrb[0].mxu0
      %5901 = vmatprep.mubr.bf16.mxu0 0
      %5902 = vmatmul.mubr.bf16.gmra.mrb[0].mxu0 %v5746
      %v5903 = vpop.f32.mrb[0].mxu0
      %v5904 = vadd.f32 0.0, %v5903
      %v5905 = vpop.f32.mrb[0].mxu0
      %v5906 = vpop.f32.mrb[0].mxu0
      %v5907 = vadd.f32 0.0, %v5906
      %v5908 = vpop.f32.mrb[0].mxu0
      %5909 = vmatprep.mubr.bf16.mxu0 0
      %5910 = vmatmul.mubr.bf16.gmra.mrb[0].mxu0 %v5747
      %v5911 = vpop.f32.mrb[0].mxu0
      %v5912 = vadd.f32 0.0, %v5911
      %v5913 = vpop.f32.mrb[0].mxu0
      %v5914 = vpop.f32.mrb[0].mxu0
      %v5915 = vadd.f32 0.0, %v5914
      %v5916 = vpop.f32.mrb[0].mxu0
      %5917 = vmatprep.mubr.bf16.mxu0 0
      %5918 = vmatmul.mubr.bf16.gmra.mrb[0].mxu0 %v5748
      %v5919 = vpop.f32.mrb[0].mxu0
      %v5920 = vadd.f32 0.0, %v5919
      %v5921 = vpop.f32.mrb[0].mxu0
      %v5922 = vpop.f32.mrb[0].mxu0
      %v5923 = vadd.f32 0.0, %v5922
      %v5924 = vpop.f32.mrb[0].mxu0
      %5925 = vmatprep.mubr.bf16.mxu0 0
      %5926 = vmatmul.mubr.bf16.gmra.mrb[0].mxu0 %v5749
      %v5927 = vpop.f32.mrb[0].mxu0
      %v5928 = vadd.f32 0.0, %v5927
      %v5929 = vpop.f32.mrb[0].mxu0
      %v5930 = vpop.f32.mrb[0].mxu0
      %v5931 = vadd.f32 0.0, %v5930
      %v5932 = vpop.f32.mrb[0].mxu0
      %5933 = vmatprep.mubr.bf16.mxu0 0
      %5934 = vmatmul.mubr.bf16.gmra.mrb[0].mxu0 %v5750
      %v5935 = vpop.f32.mrb[0].mxu0
      %v5936 = vadd.f32 0.0, %v5935
      %v5937 = vpop.f32.mrb[0].mxu0
      %v5938 = vpop.f32.mrb[0].mxu0
      %v5939 = vadd.f32 0.0, %v5938
      %v5940 = vpop.f32.mrb[0].mxu0
      %5941 = vmatprep.mubr.bf16.mxu0 0
      %5942 = vmatmul.mubr.bf16.gmra.mrb[0].mxu0 %v5751
      %v5943 = vpop.f32.mrb[0].mxu0
      %v5944 = vadd.f32 0.0, %v5943
      %v5945 = vpop.f32.mrb[0].mxu0
      %v5946 = vpop.f32.mrb[0].mxu0
      %v5947 = vadd.f32 0.0, %v5946
      %v5948 = vpop.f32.mrb[0].mxu0
      %5949 = vmatprep.mubr.bf16.mxu0 0
      %5950 = vmatmul.mubr.bf16.gmra.mrb[0].mxu0 %v5752
      %v5951 = vpop.f32.mrb[0].mxu0
      %v5952 = vadd.f32 0.0, %v5951
      %v5953 = vpop.f32.mrb[0].mxu0
      %v5954 = vpop.f32.mrb[0].mxu0
      %v5955 = vadd.f32 0.0, %v5954
      %v5956 = vpop.f32.mrb[0].mxu0
      %5957 = vmatprep.mubr.bf16.mxu0 0
      %5958 = vmatmul.mubr.bf16.gmra.mrb[0].mxu0 %v5753
      %v5959 = vpop.f32.mrb[0].mxu0
      %v5960 = vadd.f32 0.0, %v5959
      %v5961 = vpop.f32.mrb[0].mxu0
      %v5962 = vpop.f32.mrb[0].mxu0
      %v5963 = vadd.f32 0.0, %v5962
      %v5964 = vpop.f32.mrb[0].mxu0
      %5965 = vmatprep.mubr.bf16.mxu0 0
      %5966 = vmatmul.mubr.bf16.gmra.mrb[0].mxu0 %v5754
      %v5967 = vpop.f32.mrb[0].mxu0
      %v5968 = vadd.f32 0.0, %v5967
      %v5969 = vpop.f32.mrb[0].mxu0
      %v5970 = vpop.f32.mrb[0].mxu0
      %v5971 = vadd.f32 0.0, %v5970
      %v5972 = vpop.f32.mrb[0].mxu0
      %5973 = vmatprep.mubr.bf16.mxu0 0
      %5974 = vmatmul.mubr.bf16.gmra.mrb[0].mxu0 %v5755
      %v5975 = vpop.f32.mrb[0].mxu0
      %v5976 = vadd.f32 0.0, %v5975
      %v5977 = vpop.f32.mrb[0].mxu0
      %v5978 = vpop.f32.mrb[0].mxu0
      %v5979 = vadd.f32 0.0, %v5978
      %v5980 = vpop.f32.mrb[0].mxu0
      %5981 = vdwg.mxu0
      %v5982 = vadd.f32 %v5501, %v5856
      %v5983 = vadd.f32 %v5504, %v5859
      %v5984 = vadd.f32 %v5509, %v5864
      %v5985 = vadd.f32 %v5512, %v5867
      %v5986 = vadd.f32 %v5517, %v5872
      %v5987 = vadd.f32 %v5520, %v5875
      %v5988 = vadd.f32 %v5525, %v5880
      %v5989 = vadd.f32 %v5528, %v5883
      %v5990 = vadd.f32 %v5533, %v5888
      %v5991 = vadd.f32 %v5536, %v5891
      %v5992 = vadd.f32 %v5541, %v5896
      %v5993 = vadd.f32 %v5544, %v5899
      %v5994 = vadd.f32 %v5549, %v5904
      %v5995 = vadd.f32 %v5552, %v5907
      %v5996 = vadd.f32 %v5557, %v5912
      %v5997 = vadd.f32 %v5560, %v5915
      %v5998 = vadd.f32 %v5565, %v5920
      %v5999 = vadd.f32 %v5568, %v5923
      %v6000 = vadd.f32 %v5573, %v5928
      %v6001 = vadd.f32 %v5576, %v5931
      %v6002 = vadd.f32 %v5581, %v5936
      %v6003 = vadd.f32 %v5584, %v5939
      %v6004 = vadd.f32 %v5589, %v5944
      %v6005 = vadd.f32 %v5592, %v5947
      %v6006 = vadd.f32 %v5597, %v5952
      %v6007 = vadd.f32 %v5600, %v5955
      %v6008 = vadd.f32 %v5605, %v5960
      %v6009 = vadd.f32 %v5608, %v5963
      %v6010 = vadd.f32 %v5613, %v5968
      %v6011 = vadd.f32 %v5616, %v5971
      %v6012 = vadd.f32 %v5621, %v5976
      %v6013 = vadd.f32 %v5624, %v5979
      %v6017 = vrot.slane %v4865, 3
      %v6018 = vrot.slane %v4866, 3
      %v6019 = vsel %vm4919, %v6017, %v6018
      %v6020 = vrot.slane %v4867, 3
      %v6021 = vsel %vm4919, %v6018, %v6020
      %v6024 = vpack.c.bf16 %v6021, %v6019
      %s6025 = scalar_lea.vmem %s4, 192
      %v6026 = vld [vmem:[%s6025] sm:$0xf]
      %v6027 = vld [vmem:[%s6025 + $0x4] sm:$0xf]
      %v6028 = vld [vmem:[%s6025 + $0x8] sm:$0xf]
      %v6029 = vld [vmem:[%s6025 + $0xc] sm:$0xf]
      %v6030 = vld [vmem:[%s6025 + $0x10] sm:$0xf]
      %v6031 = vld [vmem:[%s6025 + $0x14] sm:$0xf]
      %v6032 = vld [vmem:[%s6025 + $0x18] sm:$0xf]
      %v6033 = vld [vmem:[%s6025 + $0x1c] sm:$0xf]
      %v6034 = vld [vmem:[%s6025 + $0x20] sm:$0xf]
      %v6035 = vld [vmem:[%s6025 + $0x24] sm:$0xf]
      %v6036 = vld [vmem:[%s6025 + $0x28] sm:$0xf]
      %v6037 = vld [vmem:[%s6025 + $0x2c] sm:$0xf]
      %v6038 = vld [vmem:[%s6025 + $0x30] sm:$0xf]
      %v6039 = vld [vmem:[%s6025 + $0x34] sm:$0xf]
      %v6040 = vld [vmem:[%s6025 + $0x38] sm:$0xf]
      %v6041 = vld [vmem:[%s6025 + $0x3c] sm:$0xf]
      %v6058 = vunpack.c.l.b16 %v6026
      %v6059 = vunpack.c.l.b16 %v6027
      %v6060 = vunpack.c.l.b16 %v6028
      %v6061 = vunpack.c.l.b16 %v6029
      %v6062 = vunpack.c.l.b16 %v6030
      %v6063 = vunpack.c.l.b16 %v6031
      %v6064 = vunpack.c.l.b16 %v6032
      %v6065 = vunpack.c.l.b16 %v6033
      %v6066 = vunpack.c.l.b16 %v6034
      %v6067 = vunpack.c.l.b16 %v6035
      %v6068 = vunpack.c.l.b16 %v6036
      %v6069 = vunpack.c.l.b16 %v6037
      %v6070 = vunpack.c.l.b16 %v6038
      %v6071 = vunpack.c.l.b16 %v6039
      %v6072 = vunpack.c.l.b16 %v6040
      %v6073 = vunpack.c.l.b16 %v6041
      %v6074 = vpack.c.b16 %v6059, %v6058
      %v6075 = vpack.c.b16 %v6061, %v6060
      %v6076 = vpack.c.b16 %v6063, %v6062
      %v6077 = vpack.c.b16 %v6065, %v6064
      %v6078 = vpack.c.b16 %v6067, %v6066
      %v6079 = vpack.c.b16 %v6069, %v6068
      %v6080 = vpack.c.b16 %v6071, %v6070
      %v6081 = vpack.c.b16 %v6073, %v6072
      %6090 = vmatprep.subr.bf16.mxu0 0
      %6091 = vmatpush1.bf16.msra.mxu0 %v6074
      %6092 = vmatprep.subr.bf16.mxu0 0
      %6093 = vmatpush1.bf16.msra.mxu0 %v6075
      %6094 = vmatprep.subr.bf16.mxu0 0
      %6095 = vmatpush1.bf16.msra.mxu0 %v6076
      %6096 = vmatprep.subr.bf16.mxu0 0
      %6097 = vmatpush1.bf16.msra.mxu0 %v6077
      %6098 = vmatprep.subr.bf16.mxu0 0
      %6099 = vmatpush1.bf16.msra.mxu0 %v6078
      %6100 = vmatprep.subr.bf16.mxu0 0
      %6101 = vmatpush1.bf16.msra.mxu0 %v6079
      %6102 = vmatprep.subr.bf16.mxu0 0
      %6103 = vmatpush1.bf16.msra.mxu0 %v6080
      %6104 = vmatprep.subr.bf16.mxu0 0
      %6105 = vmatpush1.bf16.msra.mxu0 %v6081
      %6106 = vmatprep.subr.bf16.mxu0 0
      %6107 = vmatpush1.bf16.msra.mxu0 0
      %6108 = vmatprep.subr.bf16.mxu0 0
      %6109 = vmatpush1.bf16.msra.mxu0 0
      %6110 = vmatprep.subr.bf16.mxu0 0
      %6111 = vmatpush1.bf16.msra.mxu0 0
      %6112 = vmatprep.subr.bf16.mxu0 0
      %6113 = vmatpush1.bf16.msra.mxu0 0
      %6114 = vmatprep.subr.bf16.mxu0 0
      %6115 = vmatpush1.bf16.msra.mxu0 0
      %6116 = vmatprep.subr.bf16.mxu0 0
      %6117 = vmatpush1.bf16.msra.mxu0 0
      %6118 = vmatprep.subr.bf16.mxu0 0
      %6119 = vmatpush1.bf16.msra.mxu0 0
      %6120 = vmatprep.subr.bf16.mxu0 0
      %6121 = vmatpush1.bf16.msra.mxu0 0
      %6122 = vmatprep.mubr.bf16.mxu0 0
      %6123 = vmatmul.mubr.bf16.gmra.mrb[0].mxu0 %v5033
      %v6124 = vpop.f32.mrb[0].mxu0
      %v6125 = vadd.f32 0.0, %v6124
      %v6126 = vpop.f32.mrb[0].mxu0
      %v6127 = vpop.f32.mrb[0].mxu0
      %v6128 = vadd.f32 0.0, %v6127
      %v6129 = vpop.f32.mrb[0].mxu0
      %6130 = vmatprep.mubr.bf16.mxu0 0
      %6131 = vmatmul.mubr.bf16.gmra.mrb[0].mxu0 %v5034
      %v6132 = vpop.f32.mrb[0].mxu0
      %v6133 = vadd.f32 0.0, %v6132
      %v6134 = vpop.f32.mrb[0].mxu0
      %v6135 = vpop.f32.mrb[0].mxu0
      %v6136 = vadd.f32 0.0, %v6135
      %v6137 = vpop.f32.mrb[0].mxu0
      %6138 = vmatprep.mubr.bf16.mxu0 0
      %6139 = vmatmul.mubr.bf16.gmra.mrb[0].mxu0 %v5035
      %v6140 = vpop.f32.mrb[0].mxu0
      %v6141 = vadd.f32 0.0, %v6140
      %v6142 = vpop.f32.mrb[0].mxu0
      %v6143 = vpop.f32.mrb[0].mxu0
      %v6144 = vadd.f32 0.0, %v6143
      %v6145 = vpop.f32.mrb[0].mxu0
      %6146 = vmatprep.mubr.bf16.mxu0 0
      %6147 = vmatmul.mubr.bf16.gmra.mrb[0].mxu0 %v5036
      %v6148 = vpop.f32.mrb[0].mxu0
      %v6149 = vadd.f32 0.0, %v6148
      %v6150 = vpop.f32.mrb[0].mxu0
      %v6151 = vpop.f32.mrb[0].mxu0
      %v6152 = vadd.f32 0.0, %v6151
      %v6153 = vpop.f32.mrb[0].mxu0
      %6154 = vmatprep.mubr.bf16.mxu0 0
      %6155 = vmatmul.mubr.bf16.gmra.mrb[0].mxu0 %v5037
      %v6156 = vpop.f32.mrb[0].mxu0
      %v6157 = vadd.f32 0.0, %v6156
      %v6158 = vpop.f32.mrb[0].mxu0
      %v6159 = vpop.f32.mrb[0].mxu0
      %v6160 = vadd.f32 0.0, %v6159
      %v6161 = vpop.f32.mrb[0].mxu0
      %6162 = vmatprep.mubr.bf16.mxu0 0
      %6163 = vmatmul.mubr.bf16.gmra.mrb[0].mxu0 %v5038
      %v6164 = vpop.f32.mrb[0].mxu0
      %v6165 = vadd.f32 0.0, %v6164
      %v6166 = vpop.f32.mrb[0].mxu0
      %v6167 = vpop.f32.mrb[0].mxu0
      %v6168 = vadd.f32 0.0, %v6167
      %v6169 = vpop.f32.mrb[0].mxu0
      %6170 = vmatprep.mubr.bf16.mxu0 0
      %6171 = vmatmul.mubr.bf16.gmra.mrb[0].mxu0 %v5039
      %v6172 = vpop.f32.mrb[0].mxu0
      %v6173 = vadd.f32 0.0, %v6172
      %v6174 = vpop.f32.mrb[0].mxu0
      %v6175 = vpop.f32.mrb[0].mxu0
      %v6176 = vadd.f32 0.0, %v6175
      %v6177 = vpop.f32.mrb[0].mxu0
      %6178 = vmatprep.mubr.bf16.mxu0 0
      %6179 = vmatmul.mubr.bf16.gmra.mrb[0].mxu0 %v5040
      %v6180 = vpop.f32.mrb[0].mxu0
      %v6181 = vadd.f32 0.0, %v6180
      %v6182 = vpop.f32.mrb[0].mxu0
      %v6183 = vpop.f32.mrb[0].mxu0
      %v6184 = vadd.f32 0.0, %v6183
      %v6185 = vpop.f32.mrb[0].mxu0
      %6186 = vmatprep.mubr.bf16.mxu0 0
      %6187 = vmatmul.mubr.bf16.gmra.mrb[0].mxu0 %v5041
      %v6188 = vpop.f32.mrb[0].mxu0
      %v6189 = vadd.f32 0.0, %v6188
      %v6190 = vpop.f32.mrb[0].mxu0
      %v6191 = vpop.f32.mrb[0].mxu0
      %v6192 = vadd.f32 0.0, %v6191
      %v6193 = vpop.f32.mrb[0].mxu0
      %6194 = vmatprep.mubr.bf16.mxu0 0
      %6195 = vmatmul.mubr.bf16.gmra.mrb[0].mxu0 %v5042
      %v6196 = vpop.f32.mrb[0].mxu0
      %v6197 = vadd.f32 0.0, %v6196
      %v6198 = vpop.f32.mrb[0].mxu0
      %v6199 = vpop.f32.mrb[0].mxu0
      %v6200 = vadd.f32 0.0, %v6199
      %v6201 = vpop.f32.mrb[0].mxu0
      %6202 = vmatprep.mubr.bf16.mxu0 0
      %6203 = vmatmul.mubr.bf16.gmra.mrb[0].mxu0 %v5043
      %v6204 = vpop.f32.mrb[0].mxu0
      %v6205 = vadd.f32 0.0, %v6204
      %v6206 = vpop.f32.mrb[0].mxu0
      %v6207 = vpop.f32.mrb[0].mxu0
      %v6208 = vadd.f32 0.0, %v6207
      %v6209 = vpop.f32.mrb[0].mxu0
      %6210 = vmatprep.mubr.bf16.mxu0 0
      %6211 = vmatmul.mubr.bf16.gmra.mrb[0].mxu0 %v5044
      %v6212 = vpop.f32.mrb[0].mxu0
      %v6213 = vadd.f32 0.0, %v6212
      %v6214 = vpop.f32.mrb[0].mxu0
      %v6215 = vpop.f32.mrb[0].mxu0
      %v6216 = vadd.f32 0.0, %v6215
      %v6217 = vpop.f32.mrb[0].mxu0
      %6218 = vmatprep.mubr.bf16.mxu0 0
      %6219 = vmatmul.mubr.bf16.gmra.mrb[0].mxu0 %v5045
      %v6220 = vpop.f32.mrb[0].mxu0
      %v6221 = vadd.f32 0.0, %v6220
      %v6222 = vpop.f32.mrb[0].mxu0
      %v6223 = vpop.f32.mrb[0].mxu0
      %v6224 = vadd.f32 0.0, %v6223
      %v6225 = vpop.f32.mrb[0].mxu0
      %6226 = vmatprep.mubr.bf16.mxu0 0
      %6227 = vmatmul.mubr.bf16.gmra.mrb[0].mxu0 %v5046
      %v6228 = vpop.f32.mrb[0].mxu0
      %v6229 = vadd.f32 0.0, %v6228
      %v6230 = vpop.f32.mrb[0].mxu0
      %v6231 = vpop.f32.mrb[0].mxu0
      %v6232 = vadd.f32 0.0, %v6231
      %v6233 = vpop.f32.mrb[0].mxu0
      %6234 = vmatprep.mubr.bf16.mxu0 0
      %6235 = vmatmul.mubr.bf16.gmra.mrb[0].mxu0 %v5047
      %v6236 = vpop.f32.mrb[0].mxu0
      %v6237 = vadd.f32 0.0, %v6236
      %v6238 = vpop.f32.mrb[0].mxu0
      %v6239 = vpop.f32.mrb[0].mxu0
      %v6240 = vadd.f32 0.0, %v6239
      %v6241 = vpop.f32.mrb[0].mxu0
      %6242 = vmatprep.mubr.bf16.mxu0 0
      %6243 = vmatmul.mubr.bf16.gmra.mrb[0].mxu0 %v6024
      %v6244 = vpop.f32.mrb[0].mxu0
      %v6245 = vadd.f32 0.0, %v6244
      %v6246 = vpop.f32.mrb[0].mxu0
      %v6247 = vpop.f32.mrb[0].mxu0
      %v6248 = vadd.f32 0.0, %v6247
      %v6249 = vpop.f32.mrb[0].mxu0
      %6250 = vdwg.mxu0
      %v6251 = vadd.f32 %v5982, %v6125
      %v6252 = vadd.f32 %v5983, %v6128
      %v6253 = vadd.f32 %v5984, %v6133
      %v6254 = vadd.f32 %v5985, %v6136
      %v6255 = vadd.f32 %v5986, %v6141
      %v6256 = vadd.f32 %v5987, %v6144
      %v6257 = vadd.f32 %v5988, %v6149
      %v6258 = vadd.f32 %v5989, %v6152
      %v6259 = vadd.f32 %v5990, %v6157
      %v6260 = vadd.f32 %v5991, %v6160
      %v6261 = vadd.f32 %v5992, %v6165
      %v6262 = vadd.f32 %v5993, %v6168
      %v6263 = vadd.f32 %v5994, %v6173
      %v6264 = vadd.f32 %v5995, %v6176
      %v6265 = vadd.f32 %v5996, %v6181
      %v6266 = vadd.f32 %v5997, %v6184
      %v6267 = vadd.f32 %v5998, %v6189
      %v6268 = vadd.f32 %v5999, %v6192
      %v6269 = vadd.f32 %v6000, %v6197
      %v6270 = vadd.f32 %v6001, %v6200
      %v6271 = vadd.f32 %v6002, %v6205
      %v6272 = vadd.f32 %v6003, %v6208
      %v6273 = vadd.f32 %v6004, %v6213
      %v6274 = vadd.f32 %v6005, %v6216
      %v6275 = vadd.f32 %v6006, %v6221
      %v6276 = vadd.f32 %v6007, %v6224
      %v6277 = vadd.f32 %v6008, %v6229
      %v6278 = vadd.f32 %v6009, %v6232
      %v6279 = vadd.f32 %v6010, %v6237
      %v6280 = vadd.f32 %v6011, %v6240
      %v6281 = vadd.f32 %v6012, %v6245
      %v6282 = vadd.f32 %v6013, %v6248
      %v6283 = vrot.slane %v4865, 4
      %v6284 = vrot.slane %v4866, 4
      %v6285 = vsel %vm500, %v6283, %v6284
      %v6286 = vrot.slane %v4867, 4
      %v6287 = vsel %vm500, %v6284, %v6286
      %v6290 = vpack.c.bf16 %v6287, %v6285
      %s6291 = scalar_lea.vmem %s4, 256
      %v6292 = vld [vmem:[%s6291] sm:$0xf]
      %v6293 = vld [vmem:[%s6291 + $0x4] sm:$0xf]
      %v6294 = vld [vmem:[%s6291 + $0x8] sm:$0xf]
      %v6295 = vld [vmem:[%s6291 + $0xc] sm:$0xf]
      %v6296 = vld [vmem:[%s6291 + $0x10] sm:$0xf]
      %v6297 = vld [vmem:[%s6291 + $0x14] sm:$0xf]
      %v6298 = vld [vmem:[%s6291 + $0x18] sm:$0xf]
      %v6299 = vld [vmem:[%s6291 + $0x1c] sm:$0xf]
      %v6300 = vld [vmem:[%s6291 + $0x20] sm:$0xf]
      %v6301 = vld [vmem:[%s6291 + $0x24] sm:$0xf]
      %v6302 = vld [vmem:[%s6291 + $0x28] sm:$0xf]
      %v6303 = vld [vmem:[%s6291 + $0x2c] sm:$0xf]
      %v6304 = vld [vmem:[%s6291 + $0x30] sm:$0xf]
      %v6305 = vld [vmem:[%s6291 + $0x34] sm:$0xf]
      %v6306 = vld [vmem:[%s6291 + $0x38] sm:$0xf]
      %v6307 = vld [vmem:[%s6291 + $0x3c] sm:$0xf]
      %v6324 = vunpack.c.l.b16 %v6292
      %v6325 = vunpack.c.l.b16 %v6293
      %v6326 = vunpack.c.l.b16 %v6294
      %v6327 = vunpack.c.l.b16 %v6295
      %v6328 = vunpack.c.l.b16 %v6296
      %v6329 = vunpack.c.l.b16 %v6297
      %v6330 = vunpack.c.l.b16 %v6298
      %v6331 = vunpack.c.l.b16 %v6299
      %v6332 = vunpack.c.l.b16 %v6300
      %v6333 = vunpack.c.l.b16 %v6301
      %v6334 = vunpack.c.l.b16 %v6302
      %v6335 = vunpack.c.l.b16 %v6303
      %v6336 = vunpack.c.l.b16 %v6304
      %v6337 = vunpack.c.l.b16 %v6305
      %v6338 = vunpack.c.l.b16 %v6306
      %v6339 = vunpack.c.l.b16 %v6307
      %v6340 = vpack.c.b16 %v6325, %v6324
      %v6341 = vpack.c.b16 %v6327, %v6326
      %v6342 = vpack.c.b16 %v6329, %v6328
      %v6343 = vpack.c.b16 %v6331, %v6330
      %v6344 = vpack.c.b16 %v6333, %v6332
      %v6345 = vpack.c.b16 %v6335, %v6334
      %v6346 = vpack.c.b16 %v6337, %v6336
      %v6347 = vpack.c.b16 %v6339, %v6338
      %6356 = vmatprep.subr.bf16.mxu0 0
      %6357 = vmatpush1.bf16.msra.mxu0 %v6340
      %6358 = vmatprep.subr.bf16.mxu0 0
      %6359 = vmatpush1.bf16.msra.mxu0 %v6341
      %6360 = vmatprep.subr.bf16.mxu0 0
      %6361 = vmatpush1.bf16.msra.mxu0 %v6342
      %6362 = vmatprep.subr.bf16.mxu0 0
      %6363 = vmatpush1.bf16.msra.mxu0 %v6343
      %6364 = vmatprep.subr.bf16.mxu0 0
      %6365 = vmatpush1.bf16.msra.mxu0 %v6344
      %6366 = vmatprep.subr.bf16.mxu0 0
      %6367 = vmatpush1.bf16.msra.mxu0 %v6345
      %6368 = vmatprep.subr.bf16.mxu0 0
      %6369 = vmatpush1.bf16.msra.mxu0 %v6346
      %6370 = vmatprep.subr.bf16.mxu0 0
      %6371 = vmatpush1.bf16.msra.mxu0 %v6347
      %6372 = vmatprep.subr.bf16.mxu0 0
      %6373 = vmatpush1.bf16.msra.mxu0 0
      %6374 = vmatprep.subr.bf16.mxu0 0
      %6375 = vmatpush1.bf16.msra.mxu0 0
      %6376 = vmatprep.subr.bf16.mxu0 0
      %6377 = vmatpush1.bf16.msra.mxu0 0
      %6378 = vmatprep.subr.bf16.mxu0 0
      %6379 = vmatpush1.bf16.msra.mxu0 0
      %6380 = vmatprep.subr.bf16.mxu0 0
      %6381 = vmatpush1.bf16.msra.mxu0 0
      %6382 = vmatprep.subr.bf16.mxu0 0
      %6383 = vmatpush1.bf16.msra.mxu0 0
      %6384 = vmatprep.subr.bf16.mxu0 0
      %6385 = vmatpush1.bf16.msra.mxu0 0
      %6386 = vmatprep.subr.bf16.mxu0 0
      %6387 = vmatpush1.bf16.msra.mxu0 0
      %6388 = vmatprep.mubr.bf16.mxu0 0
      %6389 = vmatmul.mubr.bf16.gmra.mrb[0].mxu0 %v5177
      %v6390 = vpop.f32.mrb[0].mxu0
      %v6391 = vadd.f32 0.0, %v6390
      %v6392 = vpop.f32.mrb[0].mxu0
      %v6393 = vpop.f32.mrb[0].mxu0
      %v6394 = vadd.f32 0.0, %v6393
      %v6395 = vpop.f32.mrb[0].mxu0
      %6396 = vmatprep.mubr.bf16.mxu0 0
      %6397 = vmatmul.mubr.bf16.gmra.mrb[0].mxu0 %v5178
      %v6398 = vpop.f32.mrb[0].mxu0
      %v6399 = vadd.f32 0.0, %v6398
      %v6400 = vpop.f32.mrb[0].mxu0
      %v6401 = vpop.f32.mrb[0].mxu0
      %v6402 = vadd.f32 0.0, %v6401
      %v6403 = vpop.f32.mrb[0].mxu0
      %6404 = vmatprep.mubr.bf16.mxu0 0
      %6405 = vmatmul.mubr.bf16.gmra.mrb[0].mxu0 %v5179
      %v6406 = vpop.f32.mrb[0].mxu0
      %v6407 = vadd.f32 0.0, %v6406
      %v6408 = vpop.f32.mrb[0].mxu0
      %v6409 = vpop.f32.mrb[0].mxu0
      %v6410 = vadd.f32 0.0, %v6409
      %v6411 = vpop.f32.mrb[0].mxu0
      %6412 = vmatprep.mubr.bf16.mxu0 0
      %6413 = vmatmul.mubr.bf16.gmra.mrb[0].mxu0 %v5180
      %v6414 = vpop.f32.mrb[0].mxu0
      %v6415 = vadd.f32 0.0, %v6414
      %v6416 = vpop.f32.mrb[0].mxu0
      %v6417 = vpop.f32.mrb[0].mxu0
      %v6418 = vadd.f32 0.0, %v6417
      %v6419 = vpop.f32.mrb[0].mxu0
      %6420 = vmatprep.mubr.bf16.mxu0 0
      %6421 = vmatmul.mubr.bf16.gmra.mrb[0].mxu0 %v5181
      %v6422 = vpop.f32.mrb[0].mxu0
      %v6423 = vadd.f32 0.0, %v6422
      %v6424 = vpop.f32.mrb[0].mxu0
      %v6425 = vpop.f32.mrb[0].mxu0
      %v6426 = vadd.f32 0.0, %v6425
      %v6427 = vpop.f32.mrb[0].mxu0
      %6428 = vmatprep.mubr.bf16.mxu0 0
      %6429 = vmatmul.mubr.bf16.gmra.mrb[0].mxu0 %v5182
      %v6430 = vpop.f32.mrb[0].mxu0
      %v6431 = vadd.f32 0.0, %v6430
      %v6432 = vpop.f32.mrb[0].mxu0
      %v6433 = vpop.f32.mrb[0].mxu0
      %v6434 = vadd.f32 0.0, %v6433
      %v6435 = vpop.f32.mrb[0].mxu0
      %6436 = vmatprep.mubr.bf16.mxu0 0
      %6437 = vmatmul.mubr.bf16.gmra.mrb[0].mxu0 %v5183
      %v6438 = vpop.f32.mrb[0].mxu0
      %v6439 = vadd.f32 0.0, %v6438
      %v6440 = vpop.f32.mrb[0].mxu0
      %v6441 = vpop.f32.mrb[0].mxu0
      %v6442 = vadd.f32 0.0, %v6441
      %v6443 = vpop.f32.mrb[0].mxu0
      %6444 = vmatprep.mubr.bf16.mxu0 0
      %6445 = vmatmul.mubr.bf16.gmra.mrb[0].mxu0 %v5184
      %v6446 = vpop.f32.mrb[0].mxu0
      %v6447 = vadd.f32 0.0, %v6446
      %v6448 = vpop.f32.mrb[0].mxu0
      %v6449 = vpop.f32.mrb[0].mxu0
      %v6450 = vadd.f32 0.0, %v6449
      %v6451 = vpop.f32.mrb[0].mxu0
      %6452 = vmatprep.mubr.bf16.mxu0 0
      %6453 = vmatmul.mubr.bf16.gmra.mrb[0].mxu0 %v5185
      %v6454 = vpop.f32.mrb[0].mxu0
      %v6455 = vadd.f32 0.0, %v6454
      %v6456 = vpop.f32.mrb[0].mxu0
      %v6457 = vpop.f32.mrb[0].mxu0
      %v6458 = vadd.f32 0.0, %v6457
      %v6459 = vpop.f32.mrb[0].mxu0
      %6460 = vmatprep.mubr.bf16.mxu0 0
      %6461 = vmatmul.mubr.bf16.gmra.mrb[0].mxu0 %v5186
      %v6462 = vpop.f32.mrb[0].mxu0
      %v6463 = vadd.f32 0.0, %v6462
      %v6464 = vpop.f32.mrb[0].mxu0
      %v6465 = vpop.f32.mrb[0].mxu0
      %v6466 = vadd.f32 0.0, %v6465
      %v6467 = vpop.f32.mrb[0].mxu0
      %6468 = vmatprep.mubr.bf16.mxu0 0
      %6469 = vmatmul.mubr.bf16.gmra.mrb[0].mxu0 %v5187
      %v6470 = vpop.f32.mrb[0].mxu0
      %v6471 = vadd.f32 0.0, %v6470
      %v6472 = vpop.f32.mrb[0].mxu0
      %v6473 = vpop.f32.mrb[0].mxu0
      %v6474 = vadd.f32 0.0, %v6473
      %v6475 = vpop.f32.mrb[0].mxu0
      %6476 = vmatprep.mubr.bf16.mxu0 0
      %6477 = vmatmul.mubr.bf16.gmra.mrb[0].mxu0 %v5188
      %v6478 = vpop.f32.mrb[0].mxu0
      %v6479 = vadd.f32 0.0, %v6478
      %v6480 = vpop.f32.mrb[0].mxu0
      %v6481 = vpop.f32.mrb[0].mxu0
      %v6482 = vadd.f32 0.0, %v6481
      %v6483 = vpop.f32.mrb[0].mxu0
      %6484 = vmatprep.mubr.bf16.mxu0 0
      %6485 = vmatmul.mubr.bf16.gmra.mrb[0].mxu0 %v5189
      %v6486 = vpop.f32.mrb[0].mxu0
      %v6487 = vadd.f32 0.0, %v6486
      %v6488 = vpop.f32.mrb[0].mxu0
      %v6489 = vpop.f32.mrb[0].mxu0
      %v6490 = vadd.f32 0.0, %v6489
      %v6491 = vpop.f32.mrb[0].mxu0
      %6492 = vmatprep.mubr.bf16.mxu0 0
      %6493 = vmatmul.mubr.bf16.gmra.mrb[0].mxu0 %v5190
      %v6494 = vpop.f32.mrb[0].mxu0
      %v6495 = vadd.f32 0.0, %v6494
      %v6496 = vpop.f32.mrb[0].mxu0
      %v6497 = vpop.f32.mrb[0].mxu0
      %v6498 = vadd.f32 0.0, %v6497
      %v6499 = vpop.f32.mrb[0].mxu0
      %6500 = vmatprep.mubr.bf16.mxu0 0
      %6501 = vmatmul.mubr.bf16.gmra.mrb[0].mxu0 %v5191
      %v6502 = vpop.f32.mrb[0].mxu0
      %v6503 = vadd.f32 0.0, %v6502
      %v6504 = vpop.f32.mrb[0].mxu0
      %v6505 = vpop.f32.mrb[0].mxu0
      %v6506 = vadd.f32 0.0, %v6505
      %v6507 = vpop.f32.mrb[0].mxu0
      %6508 = vmatprep.mubr.bf16.mxu0 0
      %6509 = vmatmul.mubr.bf16.gmra.mrb[0].mxu0 %v6290
      %v6510 = vpop.f32.mrb[0].mxu0
      %v6511 = vadd.f32 0.0, %v6510
      %v6512 = vpop.f32.mrb[0].mxu0
      %v6513 = vpop.f32.mrb[0].mxu0
      %v6514 = vadd.f32 0.0, %v6513
      %v6515 = vpop.f32.mrb[0].mxu0
      %6516 = vdwg.mxu0
      %v6517 = vadd.f32 %v6251, %v6391
      %v6518 = vadd.f32 %v6252, %v6394
      %v6519 = vadd.f32 %v6253, %v6399
      %v6520 = vadd.f32 %v6254, %v6402
      %v6521 = vadd.f32 %v6255, %v6407
      %v6522 = vadd.f32 %v6256, %v6410
      %v6523 = vadd.f32 %v6257, %v6415
      %v6524 = vadd.f32 %v6258, %v6418
      %v6525 = vadd.f32 %v6259, %v6423
      %v6526 = vadd.f32 %v6260, %v6426
      %v6527 = vadd.f32 %v6261, %v6431
      %v6528 = vadd.f32 %v6262, %v6434
      %v6529 = vadd.f32 %v6263, %v6439
      %v6530 = vadd.f32 %v6264, %v6442
      %v6531 = vadd.f32 %v6265, %v6447
      %v6532 = vadd.f32 %v6266, %v6450
      %v6533 = vadd.f32 %v6267, %v6455
      %v6534 = vadd.f32 %v6268, %v6458
      %v6535 = vadd.f32 %v6269, %v6463
      %v6536 = vadd.f32 %v6270, %v6466
      %v6537 = vadd.f32 %v6271, %v6471
      %v6538 = vadd.f32 %v6272, %v6474
      %v6539 = vadd.f32 %v6273, %v6479
      %v6540 = vadd.f32 %v6274, %v6482
      %v6541 = vadd.f32 %v6275, %v6487
      %v6542 = vadd.f32 %v6276, %v6490
      %v6543 = vadd.f32 %v6277, %v6495
      %v6544 = vadd.f32 %v6278, %v6498
      %v6545 = vadd.f32 %v6279, %v6503
      %v6546 = vadd.f32 %v6280, %v6506
      %v6547 = vadd.f32 %v6281, %v6511
      %v6548 = vadd.f32 %v6282, %v6514
      %v6549 = vrot.slane %v4865, 5
      %v6550 = vrot.slane %v4866, 5
      %v6551 = vsel %vm5627, %v6549, %v6550
      %v6552 = vrot.slane %v4867, 5
      %v6553 = vsel %vm5627, %v6550, %v6552
      %v6556 = vpack.c.bf16 %v6553, %v6551
      %s6557 = scalar_lea.vmem %s4, 320
      %v6558 = vld [vmem:[%s6557] sm:$0xf]
      %v6559 = vld [vmem:[%s6557 + $0x4] sm:$0xf]
      %v6560 = vld [vmem:[%s6557 + $0x8] sm:$0xf]
      %v6561 = vld [vmem:[%s6557 + $0xc] sm:$0xf]
      %v6562 = vld [vmem:[%s6557 + $0x10] sm:$0xf]
      %v6563 = vld [vmem:[%s6557 + $0x14] sm:$0xf]
      %v6564 = vld [vmem:[%s6557 + $0x18] sm:$0xf]
      %v6565 = vld [vmem:[%s6557 + $0x1c] sm:$0xf]
      %v6566 = vld [vmem:[%s6557 + $0x20] sm:$0xf]
      %v6567 = vld [vmem:[%s6557 + $0x24] sm:$0xf]
      %v6568 = vld [vmem:[%s6557 + $0x28] sm:$0xf]
      %v6569 = vld [vmem:[%s6557 + $0x2c] sm:$0xf]
      %v6570 = vld [vmem:[%s6557 + $0x30] sm:$0xf]
      %v6571 = vld [vmem:[%s6557 + $0x34] sm:$0xf]
      %v6572 = vld [vmem:[%s6557 + $0x38] sm:$0xf]
      %v6573 = vld [vmem:[%s6557 + $0x3c] sm:$0xf]
      %v6590 = vunpack.c.l.b16 %v6558
      %v6591 = vunpack.c.l.b16 %v6559
      %v6592 = vunpack.c.l.b16 %v6560
      %v6593 = vunpack.c.l.b16 %v6561
      %v6594 = vunpack.c.l.b16 %v6562
      %v6595 = vunpack.c.l.b16 %v6563
      %v6596 = vunpack.c.l.b16 %v6564
      %v6597 = vunpack.c.l.b16 %v6565
      %v6598 = vunpack.c.l.b16 %v6566
      %v6599 = vunpack.c.l.b16 %v6567
      %v6600 = vunpack.c.l.b16 %v6568
      %v6601 = vunpack.c.l.b16 %v6569
      %v6602 = vunpack.c.l.b16 %v6570
      %v6603 = vunpack.c.l.b16 %v6571
      %v6604 = vunpack.c.l.b16 %v6572
      %v6605 = vunpack.c.l.b16 %v6573
      %v6606 = vpack.c.b16 %v6591, %v6590
      %v6607 = vpack.c.b16 %v6593, %v6592
      %v6608 = vpack.c.b16 %v6595, %v6594
      %v6609 = vpack.c.b16 %v6597, %v6596
      %v6610 = vpack.c.b16 %v6599, %v6598
      %v6611 = vpack.c.b16 %v6601, %v6600
      %v6612 = vpack.c.b16 %v6603, %v6602
      %v6613 = vpack.c.b16 %v6605, %v6604
      %6622 = vmatprep.subr.bf16.mxu0 0
      %6623 = vmatpush1.bf16.msra.mxu0 %v6606
      %6624 = vmatprep.subr.bf16.mxu0 0
      %6625 = vmatpush1.bf16.msra.mxu0 %v6607
      %6626 = vmatprep.subr.bf16.mxu0 0
      %6627 = vmatpush1.bf16.msra.mxu0 %v6608
      %6628 = vmatprep.subr.bf16.mxu0 0
      %6629 = vmatpush1.bf16.msra.mxu0 %v6609
      %6630 = vmatprep.subr.bf16.mxu0 0
      %6631 = vmatpush1.bf16.msra.mxu0 %v6610
      %6632 = vmatprep.subr.bf16.mxu0 0
      %6633 = vmatpush1.bf16.msra.mxu0 %v6611
      %6634 = vmatprep.subr.bf16.mxu0 0
      %6635 = vmatpush1.bf16.msra.mxu0 %v6612
      %6636 = vmatprep.subr.bf16.mxu0 0
      %6637 = vmatpush1.bf16.msra.mxu0 %v6613
      %6638 = vmatprep.subr.bf16.mxu0 0
      %6639 = vmatpush1.bf16.msra.mxu0 0
      %6640 = vmatprep.subr.bf16.mxu0 0
      %6641 = vmatpush1.bf16.msra.mxu0 0
      %6642 = vmatprep.subr.bf16.mxu0 0
      %6643 = vmatpush1.bf16.msra.mxu0 0
      %6644 = vmatprep.subr.bf16.mxu0 0
      %6645 = vmatpush1.bf16.msra.mxu0 0
      %6646 = vmatprep.subr.bf16.mxu0 0
      %6647 = vmatpush1.bf16.msra.mxu0 0
      %6648 = vmatprep.subr.bf16.mxu0 0
      %6649 = vmatpush1.bf16.msra.mxu0 0
      %6650 = vmatprep.subr.bf16.mxu0 0
      %6651 = vmatpush1.bf16.msra.mxu0 0
      %6652 = vmatprep.subr.bf16.mxu0 0
      %6653 = vmatpush1.bf16.msra.mxu0 0
      %6654 = vmatprep.mubr.bf16.mxu0 0
      %6655 = vmatmul.mubr.bf16.gmra.mrb[0].mxu0 %v5741
      %v6656 = vpop.f32.mrb[0].mxu0
      %v6657 = vadd.f32 0.0, %v6656
      %v6658 = vpop.f32.mrb[0].mxu0
      %v6659 = vpop.f32.mrb[0].mxu0
      %v6660 = vadd.f32 0.0, %v6659
      %v6661 = vpop.f32.mrb[0].mxu0
      %6662 = vmatprep.mubr.bf16.mxu0 0
      %6663 = vmatmul.mubr.bf16.gmra.mrb[0].mxu0 %v5742
      %v6664 = vpop.f32.mrb[0].mxu0
      %v6665 = vadd.f32 0.0, %v6664
      %v6666 = vpop.f32.mrb[0].mxu0
      %v6667 = vpop.f32.mrb[0].mxu0
      %v6668 = vadd.f32 0.0, %v6667
      %v6669 = vpop.f32.mrb[0].mxu0
      %6670 = vmatprep.mubr.bf16.mxu0 0
      %6671 = vmatmul.mubr.bf16.gmra.mrb[0].mxu0 %v5743
      %v6672 = vpop.f32.mrb[0].mxu0
      %v6673 = vadd.f32 0.0, %v6672
      %v6674 = vpop.f32.mrb[0].mxu0
      %v6675 = vpop.f32.mrb[0].mxu0
      %v6676 = vadd.f32 0.0, %v6675
      %v6677 = vpop.f32.mrb[0].mxu0
      %6678 = vmatprep.mubr.bf16.mxu0 0
      %6679 = vmatmul.mubr.bf16.gmra.mrb[0].mxu0 %v5744
      %v6680 = vpop.f32.mrb[0].mxu0
      %v6681 = vadd.f32 0.0, %v6680
      %v6682 = vpop.f32.mrb[0].mxu0
      %v6683 = vpop.f32.mrb[0].mxu0
      %v6684 = vadd.f32 0.0, %v6683
      %v6685 = vpop.f32.mrb[0].mxu0
      %6686 = vmatprep.mubr.bf16.mxu0 0
      %6687 = vmatmul.mubr.bf16.gmra.mrb[0].mxu0 %v5745
      %v6688 = vpop.f32.mrb[0].mxu0
      %v6689 = vadd.f32 0.0, %v6688
      %v6690 = vpop.f32.mrb[0].mxu0
      %v6691 = vpop.f32.mrb[0].mxu0
      %v6692 = vadd.f32 0.0, %v6691
      %v6693 = vpop.f32.mrb[0].mxu0
      %6694 = vmatprep.mubr.bf16.mxu0 0
      %6695 = vmatmul.mubr.bf16.gmra.mrb[0].mxu0 %v5746
      %v6696 = vpop.f32.mrb[0].mxu0
      %v6697 = vadd.f32 0.0, %v6696
      %v6698 = vpop.f32.mrb[0].mxu0
      %v6699 = vpop.f32.mrb[0].mxu0
      %v6700 = vadd.f32 0.0, %v6699
      %v6701 = vpop.f32.mrb[0].mxu0
      %6702 = vmatprep.mubr.bf16.mxu0 0
      %6703 = vmatmul.mubr.bf16.gmra.mrb[0].mxu0 %v5747
      %v6704 = vpop.f32.mrb[0].mxu0
      %v6705 = vadd.f32 0.0, %v6704
      %v6706 = vpop.f32.mrb[0].mxu0
      %v6707 = vpop.f32.mrb[0].mxu0
      %v6708 = vadd.f32 0.0, %v6707
      %v6709 = vpop.f32.mrb[0].mxu0
      %6710 = vmatprep.mubr.bf16.mxu0 0
      %6711 = vmatmul.mubr.bf16.gmra.mrb[0].mxu0 %v5748
      %v6712 = vpop.f32.mrb[0].mxu0
      %v6713 = vadd.f32 0.0, %v6712
      %v6714 = vpop.f32.mrb[0].mxu0
      %v6715 = vpop.f32.mrb[0].mxu0
      %v6716 = vadd.f32 0.0, %v6715
      %v6717 = vpop.f32.mrb[0].mxu0
      %6718 = vmatprep.mubr.bf16.mxu0 0
      %6719 = vmatmul.mubr.bf16.gmra.mrb[0].mxu0 %v5749
      %v6720 = vpop.f32.mrb[0].mxu0
      %v6721 = vadd.f32 0.0, %v6720
      %v6722 = vpop.f32.mrb[0].mxu0
      %v6723 = vpop.f32.mrb[0].mxu0
      %v6724 = vadd.f32 0.0, %v6723
      %v6725 = vpop.f32.mrb[0].mxu0
      %6726 = vmatprep.mubr.bf16.mxu0 0
      %6727 = vmatmul.mubr.bf16.gmra.mrb[0].mxu0 %v5750
      %v6728 = vpop.f32.mrb[0].mxu0
      %v6729 = vadd.f32 0.0, %v6728
      %v6730 = vpop.f32.mrb[0].mxu0
      %v6731 = vpop.f32.mrb[0].mxu0
      %v6732 = vadd.f32 0.0, %v6731
      %v6733 = vpop.f32.mrb[0].mxu0
      %6734 = vmatprep.mubr.bf16.mxu0 0
      %6735 = vmatmul.mubr.bf16.gmra.mrb[0].mxu0 %v5751
      %v6736 = vpop.f32.mrb[0].mxu0
      %v6737 = vadd.f32 0.0, %v6736
      %v6738 = vpop.f32.mrb[0].mxu0
      %v6739 = vpop.f32.mrb[0].mxu0
      %v6740 = vadd.f32 0.0, %v6739
      %v6741 = vpop.f32.mrb[0].mxu0
      %6742 = vmatprep.mubr.bf16.mxu0 0
      %6743 = vmatmul.mubr.bf16.gmra.mrb[0].mxu0 %v5752
      %v6744 = vpop.f32.mrb[0].mxu0
      %v6745 = vadd.f32 0.0, %v6744
      %v6746 = vpop.f32.mrb[0].mxu0
      %v6747 = vpop.f32.mrb[0].mxu0
      %v6748 = vadd.f32 0.0, %v6747
      %v6749 = vpop.f32.mrb[0].mxu0
      %6750 = vmatprep.mubr.bf16.mxu0 0
      %6751 = vmatmul.mubr.bf16.gmra.mrb[0].mxu0 %v5753
      %v6752 = vpop.f32.mrb[0].mxu0
      %v6753 = vadd.f32 0.0, %v6752
      %v6754 = vpop.f32.mrb[0].mxu0
      %v6755 = vpop.f32.mrb[0].mxu0
      %v6756 = vadd.f32 0.0, %v6755
      %v6757 = vpop.f32.mrb[0].mxu0
      %6758 = vmatprep.mubr.bf16.mxu0 0
      %6759 = vmatmul.mubr.bf16.gmra.mrb[0].mxu0 %v5754
      %v6760 = vpop.f32.mrb[0].mxu0
      %v6761 = vadd.f32 0.0, %v6760
      %v6762 = vpop.f32.mrb[0].mxu0
      %v6763 = vpop.f32.mrb[0].mxu0
      %v6764 = vadd.f32 0.0, %v6763
      %v6765 = vpop.f32.mrb[0].mxu0
      %6766 = vmatprep.mubr.bf16.mxu0 0
      %6767 = vmatmul.mubr.bf16.gmra.mrb[0].mxu0 %v5755
      %v6768 = vpop.f32.mrb[0].mxu0
      %v6769 = vadd.f32 0.0, %v6768
      %v6770 = vpop.f32.mrb[0].mxu0
      %v6771 = vpop.f32.mrb[0].mxu0
      %v6772 = vadd.f32 0.0, %v6771
      %v6773 = vpop.f32.mrb[0].mxu0
      %6774 = vmatprep.mubr.bf16.mxu0 0
      %6775 = vmatmul.mubr.bf16.gmra.mrb[0].mxu0 %v6556
      %v6776 = vpop.f32.mrb[0].mxu0
      %v6777 = vadd.f32 0.0, %v6776
      %v6778 = vpop.f32.mrb[0].mxu0
      %v6779 = vpop.f32.mrb[0].mxu0
      %v6780 = vadd.f32 0.0, %v6779
      %v6781 = vpop.f32.mrb[0].mxu0
      %6782 = vdwg.mxu0
      %v6783 = vadd.f32 %v6517, %v6657
      %v6784 = vadd.f32 %v6518, %v6660
      %v6785 = vadd.f32 %v6519, %v6665
      %v6786 = vadd.f32 %v6520, %v6668
      %v6787 = vadd.f32 %v6521, %v6673
      %v6788 = vadd.f32 %v6522, %v6676
      %v6789 = vadd.f32 %v6523, %v6681
      %v6790 = vadd.f32 %v6524, %v6684
      %v6791 = vadd.f32 %v6525, %v6689
      %v6792 = vadd.f32 %v6526, %v6692
      %v6793 = vadd.f32 %v6527, %v6697
      %v6794 = vadd.f32 %v6528, %v6700
      %v6795 = vadd.f32 %v6529, %v6705
      %v6796 = vadd.f32 %v6530, %v6708
      %v6797 = vadd.f32 %v6531, %v6713
      %v6798 = vadd.f32 %v6532, %v6716
      %v6799 = vadd.f32 %v6533, %v6721
      %v6800 = vadd.f32 %v6534, %v6724
      %v6801 = vadd.f32 %v6535, %v6729
      %v6802 = vadd.f32 %v6536, %v6732
      %v6803 = vadd.f32 %v6537, %v6737
      %v6804 = vadd.f32 %v6538, %v6740
      %v6805 = vadd.f32 %v6539, %v6745
      %v6806 = vadd.f32 %v6540, %v6748
      %v6807 = vadd.f32 %v6541, %v6753
      %v6808 = vadd.f32 %v6542, %v6756
      %v6809 = vadd.f32 %v6543, %v6761
      %v6810 = vadd.f32 %v6544, %v6764
      %v6811 = vadd.f32 %v6545, %v6769
      %v6812 = vadd.f32 %v6546, %v6772
      %v6813 = vadd.f32 %v6547, %v6777
      %v6814 = vadd.f32 %v6548, %v6780
      %v6818 = vrot.slane %v4868, 3
      %v6819 = vrot.slane %v4869, 3
      %v6820 = vsel %vm4919, %v6818, %v6819
      %v6821 = vrot.slane %v4870, 3
      %v6822 = vsel %vm4919, %v6819, %v6821
      %v6825 = vpack.c.bf16 %v6822, %v6820
      %s6826 = scalar_lea.vmem %s4, 384
      %v6827 = vld [vmem:[%s6826] sm:$0xf]
      %v6828 = vld [vmem:[%s6826 + $0x4] sm:$0xf]
      %v6829 = vld [vmem:[%s6826 + $0x8] sm:$0xf]
      %v6830 = vld [vmem:[%s6826 + $0xc] sm:$0xf]
      %v6831 = vld [vmem:[%s6826 + $0x10] sm:$0xf]
      %v6832 = vld [vmem:[%s6826 + $0x14] sm:$0xf]
      %v6833 = vld [vmem:[%s6826 + $0x18] sm:$0xf]
      %v6834 = vld [vmem:[%s6826 + $0x1c] sm:$0xf]
      %v6835 = vld [vmem:[%s6826 + $0x20] sm:$0xf]
      %v6836 = vld [vmem:[%s6826 + $0x24] sm:$0xf]
      %v6837 = vld [vmem:[%s6826 + $0x28] sm:$0xf]
      %v6838 = vld [vmem:[%s6826 + $0x2c] sm:$0xf]
      %v6839 = vld [vmem:[%s6826 + $0x30] sm:$0xf]
      %v6840 = vld [vmem:[%s6826 + $0x34] sm:$0xf]
      %v6841 = vld [vmem:[%s6826 + $0x38] sm:$0xf]
      %v6842 = vld [vmem:[%s6826 + $0x3c] sm:$0xf]
      %v6859 = vunpack.c.l.b16 %v6827
      %v6860 = vunpack.c.l.b16 %v6828
      %v6861 = vunpack.c.l.b16 %v6829
      %v6862 = vunpack.c.l.b16 %v6830
      %v6863 = vunpack.c.l.b16 %v6831
      %v6864 = vunpack.c.l.b16 %v6832
      %v6865 = vunpack.c.l.b16 %v6833
      %v6866 = vunpack.c.l.b16 %v6834
      %v6867 = vunpack.c.l.b16 %v6835
      %v6868 = vunpack.c.l.b16 %v6836
      %v6869 = vunpack.c.l.b16 %v6837
      %v6870 = vunpack.c.l.b16 %v6838
      %v6871 = vunpack.c.l.b16 %v6839
      %v6872 = vunpack.c.l.b16 %v6840
      %v6873 = vunpack.c.l.b16 %v6841
      %v6874 = vunpack.c.l.b16 %v6842
      %v6875 = vpack.c.b16 %v6860, %v6859
      %v6876 = vpack.c.b16 %v6862, %v6861
      %v6877 = vpack.c.b16 %v6864, %v6863
      %v6878 = vpack.c.b16 %v6866, %v6865
      %v6879 = vpack.c.b16 %v6868, %v6867
      %v6880 = vpack.c.b16 %v6870, %v6869
      %v6881 = vpack.c.b16 %v6872, %v6871
      %v6882 = vpack.c.b16 %v6874, %v6873
      %6891 = vmatprep.subr.bf16.mxu0 0
      %6892 = vmatpush1.bf16.msra.mxu0 %v6875
      %6893 = vmatprep.subr.bf16.mxu0 0
      %6894 = vmatpush1.bf16.msra.mxu0 %v6876
      %6895 = vmatprep.subr.bf16.mxu0 0
      %6896 = vmatpush1.bf16.msra.mxu0 %v6877
      %6897 = vmatprep.subr.bf16.mxu0 0
      %6898 = vmatpush1.bf16.msra.mxu0 %v6878
      %6899 = vmatprep.subr.bf16.mxu0 0
      %6900 = vmatpush1.bf16.msra.mxu0 %v6879
      %6901 = vmatprep.subr.bf16.mxu0 0
      %6902 = vmatpush1.bf16.msra.mxu0 %v6880
      %6903 = vmatprep.subr.bf16.mxu0 0
      %6904 = vmatpush1.bf16.msra.mxu0 %v6881
      %6905 = vmatprep.subr.bf16.mxu0 0
      %6906 = vmatpush1.bf16.msra.mxu0 %v6882
      %6907 = vmatprep.subr.bf16.mxu0 0
      %6908 = vmatpush1.bf16.msra.mxu0 0
      %6909 = vmatprep.subr.bf16.mxu0 0
      %6910 = vmatpush1.bf16.msra.mxu0 0
      %6911 = vmatprep.subr.bf16.mxu0 0
      %6912 = vmatpush1.bf16.msra.mxu0 0
      %6913 = vmatprep.subr.bf16.mxu0 0
      %6914 = vmatpush1.bf16.msra.mxu0 0
      %6915 = vmatprep.subr.bf16.mxu0 0
      %6916 = vmatpush1.bf16.msra.mxu0 0
      %6917 = vmatprep.subr.bf16.mxu0 0
      %6918 = vmatpush1.bf16.msra.mxu0 0
      %6919 = vmatprep.subr.bf16.mxu0 0
      %6920 = vmatpush1.bf16.msra.mxu0 0
      %6921 = vmatprep.subr.bf16.mxu0 0
      %6922 = vmatpush1.bf16.msra.mxu0 0
      %6923 = vmatprep.mubr.bf16.mxu0 0
      %6924 = vmatmul.mubr.bf16.gmra.mrb[0].mxu0 %v5034
      %v6925 = vpop.f32.mrb[0].mxu0
      %v6926 = vadd.f32 0.0, %v6925
      %v6927 = vpop.f32.mrb[0].mxu0
      %v6928 = vpop.f32.mrb[0].mxu0
      %v6929 = vadd.f32 0.0, %v6928
      %v6930 = vpop.f32.mrb[0].mxu0
      %6931 = vmatprep.mubr.bf16.mxu0 0
      %6932 = vmatmul.mubr.bf16.gmra.mrb[0].mxu0 %v5035
      %v6933 = vpop.f32.mrb[0].mxu0
      %v6934 = vadd.f32 0.0, %v6933
      %v6935 = vpop.f32.mrb[0].mxu0
      %v6936 = vpop.f32.mrb[0].mxu0
      %v6937 = vadd.f32 0.0, %v6936
      %v6938 = vpop.f32.mrb[0].mxu0
      %6939 = vmatprep.mubr.bf16.mxu0 0
      %6940 = vmatmul.mubr.bf16.gmra.mrb[0].mxu0 %v5036
      %v6941 = vpop.f32.mrb[0].mxu0
      %v6942 = vadd.f32 0.0, %v6941
      %v6943 = vpop.f32.mrb[0].mxu0
      %v6944 = vpop.f32.mrb[0].mxu0
      %v6945 = vadd.f32 0.0, %v6944
      %v6946 = vpop.f32.mrb[0].mxu0
      %6947 = vmatprep.mubr.bf16.mxu0 0
      %6948 = vmatmul.mubr.bf16.gmra.mrb[0].mxu0 %v5037
      %v6949 = vpop.f32.mrb[0].mxu0
      %v6950 = vadd.f32 0.0, %v6949
      %v6951 = vpop.f32.mrb[0].mxu0
      %v6952 = vpop.f32.mrb[0].mxu0
      %v6953 = vadd.f32 0.0, %v6952
      %v6954 = vpop.f32.mrb[0].mxu0
      %6955 = vmatprep.mubr.bf16.mxu0 0
      %6956 = vmatmul.mubr.bf16.gmra.mrb[0].mxu0 %v5038
      %v6957 = vpop.f32.mrb[0].mxu0
      %v6958 = vadd.f32 0.0, %v6957
      %v6959 = vpop.f32.mrb[0].mxu0
      %v6960 = vpop.f32.mrb[0].mxu0
      %v6961 = vadd.f32 0.0, %v6960
      %v6962 = vpop.f32.mrb[0].mxu0
      %6963 = vmatprep.mubr.bf16.mxu0 0
      %6964 = vmatmul.mubr.bf16.gmra.mrb[0].mxu0 %v5039
      %v6965 = vpop.f32.mrb[0].mxu0
      %v6966 = vadd.f32 0.0, %v6965
      %v6967 = vpop.f32.mrb[0].mxu0
      %v6968 = vpop.f32.mrb[0].mxu0
      %v6969 = vadd.f32 0.0, %v6968
      %v6970 = vpop.f32.mrb[0].mxu0
      %6971 = vmatprep.mubr.bf16.mxu0 0
      %6972 = vmatmul.mubr.bf16.gmra.mrb[0].mxu0 %v5040
      %v6973 = vpop.f32.mrb[0].mxu0
      %v6974 = vadd.f32 0.0, %v6973
      %v6975 = vpop.f32.mrb[0].mxu0
      %v6976 = vpop.f32.mrb[0].mxu0
      %v6977 = vadd.f32 0.0, %v6976
      %v6978 = vpop.f32.mrb[0].mxu0
      %6979 = vmatprep.mubr.bf16.mxu0 0
      %6980 = vmatmul.mubr.bf16.gmra.mrb[0].mxu0 %v5041
      %v6981 = vpop.f32.mrb[0].mxu0
      %v6982 = vadd.f32 0.0, %v6981
      %v6983 = vpop.f32.mrb[0].mxu0
      %v6984 = vpop.f32.mrb[0].mxu0
      %v6985 = vadd.f32 0.0, %v6984
      %v6986 = vpop.f32.mrb[0].mxu0
      %6987 = vmatprep.mubr.bf16.mxu0 0
      %6988 = vmatmul.mubr.bf16.gmra.mrb[0].mxu0 %v5042
      %v6989 = vpop.f32.mrb[0].mxu0
      %v6990 = vadd.f32 0.0, %v6989
      %v6991 = vpop.f32.mrb[0].mxu0
      %v6992 = vpop.f32.mrb[0].mxu0
      %v6993 = vadd.f32 0.0, %v6992
      %v6994 = vpop.f32.mrb[0].mxu0
      %6995 = vmatprep.mubr.bf16.mxu0 0
      %6996 = vmatmul.mubr.bf16.gmra.mrb[0].mxu0 %v5043
      %v6997 = vpop.f32.mrb[0].mxu0
      %v6998 = vadd.f32 0.0, %v6997
      %v6999 = vpop.f32.mrb[0].mxu0
      %v7000 = vpop.f32.mrb[0].mxu0
      %v7001 = vadd.f32 0.0, %v7000
      %v7002 = vpop.f32.mrb[0].mxu0
      %7003 = vmatprep.mubr.bf16.mxu0 0
      %7004 = vmatmul.mubr.bf16.gmra.mrb[0].mxu0 %v5044
      %v7005 = vpop.f32.mrb[0].mxu0
      %v7006 = vadd.f32 0.0, %v7005
      %v7007 = vpop.f32.mrb[0].mxu0
      %v7008 = vpop.f32.mrb[0].mxu0
      %v7009 = vadd.f32 0.0, %v7008
      %v7010 = vpop.f32.mrb[0].mxu0
      %7011 = vmatprep.mubr.bf16.mxu0 0
      %7012 = vmatmul.mubr.bf16.gmra.mrb[0].mxu0 %v5045
      %v7013 = vpop.f32.mrb[0].mxu0
      %v7014 = vadd.f32 0.0, %v7013
      %v7015 = vpop.f32.mrb[0].mxu0
      %v7016 = vpop.f32.mrb[0].mxu0
      %v7017 = vadd.f32 0.0, %v7016
      %v7018 = vpop.f32.mrb[0].mxu0
      %7019 = vmatprep.mubr.bf16.mxu0 0
      %7020 = vmatmul.mubr.bf16.gmra.mrb[0].mxu0 %v5046
      %v7021 = vpop.f32.mrb[0].mxu0
      %v7022 = vadd.f32 0.0, %v7021
      %v7023 = vpop.f32.mrb[0].mxu0
      %v7024 = vpop.f32.mrb[0].mxu0
      %v7025 = vadd.f32 0.0, %v7024
      %v7026 = vpop.f32.mrb[0].mxu0
      %7027 = vmatprep.mubr.bf16.mxu0 0
      %7028 = vmatmul.mubr.bf16.gmra.mrb[0].mxu0 %v5047
      %v7029 = vpop.f32.mrb[0].mxu0
      %v7030 = vadd.f32 0.0, %v7029
      %v7031 = vpop.f32.mrb[0].mxu0
      %v7032 = vpop.f32.mrb[0].mxu0
      %v7033 = vadd.f32 0.0, %v7032
      %v7034 = vpop.f32.mrb[0].mxu0
      %7035 = vmatprep.mubr.bf16.mxu0 0
      %7036 = vmatmul.mubr.bf16.gmra.mrb[0].mxu0 %v6024
      %v7037 = vpop.f32.mrb[0].mxu0
      %v7038 = vadd.f32 0.0, %v7037
      %v7039 = vpop.f32.mrb[0].mxu0
      %v7040 = vpop.f32.mrb[0].mxu0
      %v7041 = vadd.f32 0.0, %v7040
      %v7042 = vpop.f32.mrb[0].mxu0
      %7043 = vmatprep.mubr.bf16.mxu0 0
      %7044 = vmatmul.mubr.bf16.gmra.mrb[0].mxu0 %v6825
      %v7045 = vpop.f32.mrb[0].mxu0
      %v7046 = vadd.f32 0.0, %v7045
      %v7047 = vpop.f32.mrb[0].mxu0
      %v7048 = vpop.f32.mrb[0].mxu0
      %v7049 = vadd.f32 0.0, %v7048
      %v7050 = vpop.f32.mrb[0].mxu0
      %7051 = vdwg.mxu0
      %v7052 = vadd.f32 %v6783, %v6926
      %v7053 = vadd.f32 %v6784, %v6929
      %v7054 = vadd.f32 %v6785, %v6934
      %v7055 = vadd.f32 %v6786, %v6937
      %v7056 = vadd.f32 %v6787, %v6942
      %v7057 = vadd.f32 %v6788, %v6945
      %v7058 = vadd.f32 %v6789, %v6950
      %v7059 = vadd.f32 %v6790, %v6953
      %v7060 = vadd.f32 %v6791, %v6958
      %v7061 = vadd.f32 %v6792, %v6961
      %v7062 = vadd.f32 %v6793, %v6966
      %v7063 = vadd.f32 %v6794, %v6969
      %v7064 = vadd.f32 %v6795, %v6974
      %v7065 = vadd.f32 %v6796, %v6977
      %v7066 = vadd.f32 %v6797, %v6982
      %v7067 = vadd.f32 %v6798, %v6985
      %v7068 = vadd.f32 %v6799, %v6990
      %v7069 = vadd.f32 %v6800, %v6993
      %v7070 = vadd.f32 %v6801, %v6998
      %v7071 = vadd.f32 %v6802, %v7001
      %v7072 = vadd.f32 %v6803, %v7006
      %v7073 = vadd.f32 %v6804, %v7009
      %v7074 = vadd.f32 %v6805, %v7014
      %v7075 = vadd.f32 %v6806, %v7017
      %v7076 = vadd.f32 %v6807, %v7022
      %v7077 = vadd.f32 %v6808, %v7025
      %v7078 = vadd.f32 %v6809, %v7030
      %v7079 = vadd.f32 %v6810, %v7033
      %v7080 = vadd.f32 %v6811, %v7038
      %v7081 = vadd.f32 %v6812, %v7041
      %v7082 = vadd.f32 %v6813, %v7046
      %v7083 = vadd.f32 %v6814, %v7049
      %v7084 = vrot.slane %v4868, 4
      %v7085 = vrot.slane %v4869, 4
      %v7086 = vsel %vm500, %v7084, %v7085
      %v7087 = vrot.slane %v4870, 4
      %v7088 = vsel %vm500, %v7085, %v7087
      %v7091 = vpack.c.bf16 %v7088, %v7086
      %s7092 = scalar_lea.vmem %s4, 448
      %v7093 = vld [vmem:[%s7092] sm:$0xf]
      %v7094 = vld [vmem:[%s7092 + $0x4] sm:$0xf]
      %v7095 = vld [vmem:[%s7092 + $0x8] sm:$0xf]
      %v7096 = vld [vmem:[%s7092 + $0xc] sm:$0xf]
      %v7097 = vld [vmem:[%s7092 + $0x10] sm:$0xf]
      %v7098 = vld [vmem:[%s7092 + $0x14] sm:$0xf]
      %v7099 = vld [vmem:[%s7092 + $0x18] sm:$0xf]
      %v7100 = vld [vmem:[%s7092 + $0x1c] sm:$0xf]
      %v7101 = vld [vmem:[%s7092 + $0x20] sm:$0xf]
      %v7102 = vld [vmem:[%s7092 + $0x24] sm:$0xf]
      %v7103 = vld [vmem:[%s7092 + $0x28] sm:$0xf]
      %v7104 = vld [vmem:[%s7092 + $0x2c] sm:$0xf]
      %v7105 = vld [vmem:[%s7092 + $0x30] sm:$0xf]
      %v7106 = vld [vmem:[%s7092 + $0x34] sm:$0xf]
      %v7107 = vld [vmem:[%s7092 + $0x38] sm:$0xf]
      %v7108 = vld [vmem:[%s7092 + $0x3c] sm:$0xf]
      %v7125 = vunpack.c.l.b16 %v7093
      %v7126 = vunpack.c.l.b16 %v7094
      %v7127 = vunpack.c.l.b16 %v7095
      %v7128 = vunpack.c.l.b16 %v7096
      %v7129 = vunpack.c.l.b16 %v7097
      %v7130 = vunpack.c.l.b16 %v7098
      %v7131 = vunpack.c.l.b16 %v7099
      %v7132 = vunpack.c.l.b16 %v7100
      %v7133 = vunpack.c.l.b16 %v7101
      %v7134 = vunpack.c.l.b16 %v7102
      %v7135 = vunpack.c.l.b16 %v7103
      %v7136 = vunpack.c.l.b16 %v7104
      %v7137 = vunpack.c.l.b16 %v7105
      %v7138 = vunpack.c.l.b16 %v7106
      %v7139 = vunpack.c.l.b16 %v7107
      %v7140 = vunpack.c.l.b16 %v7108
      %v7141 = vpack.c.b16 %v7126, %v7125
      %v7142 = vpack.c.b16 %v7128, %v7127
      %v7143 = vpack.c.b16 %v7130, %v7129
      %v7144 = vpack.c.b16 %v7132, %v7131
      %v7145 = vpack.c.b16 %v7134, %v7133
      %v7146 = vpack.c.b16 %v7136, %v7135
      %v7147 = vpack.c.b16 %v7138, %v7137
      %v7148 = vpack.c.b16 %v7140, %v7139
      %7157 = vmatprep.subr.bf16.mxu0 0
      %7158 = vmatpush1.bf16.msra.mxu0 %v7141
      %7159 = vmatprep.subr.bf16.mxu0 0
      %7160 = vmatpush1.bf16.msra.mxu0 %v7142
      %7161 = vmatprep.subr.bf16.mxu0 0
      %7162 = vmatpush1.bf16.msra.mxu0 %v7143
      %7163 = vmatprep.subr.bf16.mxu0 0
      %7164 = vmatpush1.bf16.msra.mxu0 %v7144
      %7165 = vmatprep.subr.bf16.mxu0 0
      %7166 = vmatpush1.bf16.msra.mxu0 %v7145
      %7167 = vmatprep.subr.bf16.mxu0 0
      %7168 = vmatpush1.bf16.msra.mxu0 %v7146
      %7169 = vmatprep.subr.bf16.mxu0 0
      %7170 = vmatpush1.bf16.msra.mxu0 %v7147
      %7171 = vmatprep.subr.bf16.mxu0 0
      %7172 = vmatpush1.bf16.msra.mxu0 %v7148
      %7173 = vmatprep.subr.bf16.mxu0 0
      %7174 = vmatpush1.bf16.msra.mxu0 0
      %7175 = vmatprep.subr.bf16.mxu0 0
      %7176 = vmatpush1.bf16.msra.mxu0 0
      %7177 = vmatprep.subr.bf16.mxu0 0
      %7178 = vmatpush1.bf16.msra.mxu0 0
      %7179 = vmatprep.subr.bf16.mxu0 0
      %7180 = vmatpush1.bf16.msra.mxu0 0
      %7181 = vmatprep.subr.bf16.mxu0 0
      %7182 = vmatpush1.bf16.msra.mxu0 0
      %7183 = vmatprep.subr.bf16.mxu0 0
      %7184 = vmatpush1.bf16.msra.mxu0 0
      %7185 = vmatprep.subr.bf16.mxu0 0
      %7186 = vmatpush1.bf16.msra.mxu0 0
      %7187 = vmatprep.subr.bf16.mxu0 0
      %7188 = vmatpush1.bf16.msra.mxu0 0
      %7189 = vmatprep.mubr.bf16.mxu0 0
      %7190 = vmatmul.mubr.bf16.gmra.mrb[0].mxu0 %v5178
      %v7191 = vpop.f32.mrb[0].mxu0
      %v7192 = vadd.f32 0.0, %v7191
      %v7193 = vpop.f32.mrb[0].mxu0
      %v7194 = vpop.f32.mrb[0].mxu0
      %v7195 = vadd.f32 0.0, %v7194
      %v7196 = vpop.f32.mrb[0].mxu0
      %7197 = vmatprep.mubr.bf16.mxu0 0
      %7198 = vmatmul.mubr.bf16.gmra.mrb[0].mxu0 %v5179
      %v7199 = vpop.f32.mrb[0].mxu0
      %v7200 = vadd.f32 0.0, %v7199
      %v7201 = vpop.f32.mrb[0].mxu0
      %v7202 = vpop.f32.mrb[0].mxu0
      %v7203 = vadd.f32 0.0, %v7202
      %v7204 = vpop.f32.mrb[0].mxu0
      %7205 = vmatprep.mubr.bf16.mxu0 0
      %7206 = vmatmul.mubr.bf16.gmra.mrb[0].mxu0 %v5180
      %v7207 = vpop.f32.mrb[0].mxu0
      %v7208 = vadd.f32 0.0, %v7207
      %v7209 = vpop.f32.mrb[0].mxu0
      %v7210 = vpop.f32.mrb[0].mxu0
      %v7211 = vadd.f32 0.0, %v7210
      %v7212 = vpop.f32.mrb[0].mxu0
      %7213 = vmatprep.mubr.bf16.mxu0 0
      %7214 = vmatmul.mubr.bf16.gmra.mrb[0].mxu0 %v5181
      %v7215 = vpop.f32.mrb[0].mxu0
      %v7216 = vadd.f32 0.0, %v7215
      %v7217 = vpop.f32.mrb[0].mxu0
      %v7218 = vpop.f32.mrb[0].mxu0
      %v7219 = vadd.f32 0.0, %v7218
      %v7220 = vpop.f32.mrb[0].mxu0
      %7221 = vmatprep.mubr.bf16.mxu0 0
      %7222 = vmatmul.mubr.bf16.gmra.mrb[0].mxu0 %v5182
      %v7223 = vpop.f32.mrb[0].mxu0
      %v7224 = vadd.f32 0.0, %v7223
      %v7225 = vpop.f32.mrb[0].mxu0
      %v7226 = vpop.f32.mrb[0].mxu0
      %v7227 = vadd.f32 0.0, %v7226
      %v7228 = vpop.f32.mrb[0].mxu0
      %7229 = vmatprep.mubr.bf16.mxu0 0
      %7230 = vmatmul.mubr.bf16.gmra.mrb[0].mxu0 %v5183
      %v7231 = vpop.f32.mrb[0].mxu0
      %v7232 = vadd.f32 0.0, %v7231
      %v7233 = vpop.f32.mrb[0].mxu0
      %v7234 = vpop.f32.mrb[0].mxu0
      %v7235 = vadd.f32 0.0, %v7234
      %v7236 = vpop.f32.mrb[0].mxu0
      %7237 = vmatprep.mubr.bf16.mxu0 0
      %7238 = vmatmul.mubr.bf16.gmra.mrb[0].mxu0 %v5184
      %v7239 = vpop.f32.mrb[0].mxu0
      %v7240 = vadd.f32 0.0, %v7239
      %v7241 = vpop.f32.mrb[0].mxu0
      %v7242 = vpop.f32.mrb[0].mxu0
      %v7243 = vadd.f32 0.0, %v7242
      %v7244 = vpop.f32.mrb[0].mxu0
      %7245 = vmatprep.mubr.bf16.mxu0 0
      %7246 = vmatmul.mubr.bf16.gmra.mrb[0].mxu0 %v5185
      %v7247 = vpop.f32.mrb[0].mxu0
      %v7248 = vadd.f32 0.0, %v7247
      %v7249 = vpop.f32.mrb[0].mxu0
      %v7250 = vpop.f32.mrb[0].mxu0
      %v7251 = vadd.f32 0.0, %v7250
      %v7252 = vpop.f32.mrb[0].mxu0
      %7253 = vmatprep.mubr.bf16.mxu0 0
      %7254 = vmatmul.mubr.bf16.gmra.mrb[0].mxu0 %v5186
      %v7255 = vpop.f32.mrb[0].mxu0
      %v7256 = vadd.f32 0.0, %v7255
      %v7257 = vpop.f32.mrb[0].mxu0
      %v7258 = vpop.f32.mrb[0].mxu0
      %v7259 = vadd.f32 0.0, %v7258
      %v7260 = vpop.f32.mrb[0].mxu0
      %7261 = vmatprep.mubr.bf16.mxu0 0
      %7262 = vmatmul.mubr.bf16.gmra.mrb[0].mxu0 %v5187
      %v7263 = vpop.f32.mrb[0].mxu0
      %v7264 = vadd.f32 0.0, %v7263
      %v7265 = vpop.f32.mrb[0].mxu0
      %v7266 = vpop.f32.mrb[0].mxu0
      %v7267 = vadd.f32 0.0, %v7266
      %v7268 = vpop.f32.mrb[0].mxu0
      %7269 = vmatprep.mubr.bf16.mxu0 0
      %7270 = vmatmul.mubr.bf16.gmra.mrb[0].mxu0 %v5188
      %v7271 = vpop.f32.mrb[0].mxu0
      %v7272 = vadd.f32 0.0, %v7271
      %v7273 = vpop.f32.mrb[0].mxu0
      %v7274 = vpop.f32.mrb[0].mxu0
      %v7275 = vadd.f32 0.0, %v7274
      %v7276 = vpop.f32.mrb[0].mxu0
      %7277 = vmatprep.mubr.bf16.mxu0 0
      %7278 = vmatmul.mubr.bf16.gmra.mrb[0].mxu0 %v5189
      %v7279 = vpop.f32.mrb[0].mxu0
      %v7280 = vadd.f32 0.0, %v7279
      %v7281 = vpop.f32.mrb[0].mxu0
      %v7282 = vpop.f32.mrb[0].mxu0
      %v7283 = vadd.f32 0.0, %v7282
      %v7284 = vpop.f32.mrb[0].mxu0
      %7285 = vmatprep.mubr.bf16.mxu0 0
      %7286 = vmatmul.mubr.bf16.gmra.mrb[0].mxu0 %v5190
      %v7287 = vpop.f32.mrb[0].mxu0
      %v7288 = vadd.f32 0.0, %v7287
      %v7289 = vpop.f32.mrb[0].mxu0
      %v7290 = vpop.f32.mrb[0].mxu0
      %v7291 = vadd.f32 0.0, %v7290
      %v7292 = vpop.f32.mrb[0].mxu0
      %7293 = vmatprep.mubr.bf16.mxu0 0
      %7294 = vmatmul.mubr.bf16.gmra.mrb[0].mxu0 %v5191
      %v7295 = vpop.f32.mrb[0].mxu0
      %v7296 = vadd.f32 0.0, %v7295
      %v7297 = vpop.f32.mrb[0].mxu0
      %v7298 = vpop.f32.mrb[0].mxu0
      %v7299 = vadd.f32 0.0, %v7298
      %v7300 = vpop.f32.mrb[0].mxu0
      %7301 = vmatprep.mubr.bf16.mxu0 0
      %7302 = vmatmul.mubr.bf16.gmra.mrb[0].mxu0 %v6290
      %v7303 = vpop.f32.mrb[0].mxu0
      %v7304 = vadd.f32 0.0, %v7303
      %v7305 = vpop.f32.mrb[0].mxu0
      %v7306 = vpop.f32.mrb[0].mxu0
      %v7307 = vadd.f32 0.0, %v7306
      %v7308 = vpop.f32.mrb[0].mxu0
      %7309 = vmatprep.mubr.bf16.mxu0 0
      %7310 = vmatmul.mubr.bf16.gmra.mrb[0].mxu0 %v7091
      %v7311 = vpop.f32.mrb[0].mxu0
      %v7312 = vadd.f32 0.0, %v7311
      %v7313 = vpop.f32.mrb[0].mxu0
      %v7314 = vpop.f32.mrb[0].mxu0
      %v7315 = vadd.f32 0.0, %v7314
      %v7316 = vpop.f32.mrb[0].mxu0
      %7317 = vdwg.mxu0
      %v7318 = vadd.f32 %v7052, %v7192
      %v7319 = vadd.f32 %v7053, %v7195
      %v7320 = vadd.f32 %v7054, %v7200
      %v7321 = vadd.f32 %v7055, %v7203
      %v7322 = vadd.f32 %v7056, %v7208
      %v7323 = vadd.f32 %v7057, %v7211
      %v7324 = vadd.f32 %v7058, %v7216
      %v7325 = vadd.f32 %v7059, %v7219
      %v7326 = vadd.f32 %v7060, %v7224
      %v7327 = vadd.f32 %v7061, %v7227
      %v7328 = vadd.f32 %v7062, %v7232
      %v7329 = vadd.f32 %v7063, %v7235
      %v7330 = vadd.f32 %v7064, %v7240
      %v7331 = vadd.f32 %v7065, %v7243
      %v7332 = vadd.f32 %v7066, %v7248
      %v7333 = vadd.f32 %v7067, %v7251
      %v7334 = vadd.f32 %v7068, %v7256
      %v7335 = vadd.f32 %v7069, %v7259
      %v7336 = vadd.f32 %v7070, %v7264
      %v7337 = vadd.f32 %v7071, %v7267
      %v7338 = vadd.f32 %v7072, %v7272
      %v7339 = vadd.f32 %v7073, %v7275
      %v7340 = vadd.f32 %v7074, %v7280
      %v7341 = vadd.f32 %v7075, %v7283
      %v7342 = vadd.f32 %v7076, %v7288
      %v7343 = vadd.f32 %v7077, %v7291
      %v7344 = vadd.f32 %v7078, %v7296
      %v7345 = vadd.f32 %v7079, %v7299
      %v7346 = vadd.f32 %v7080, %v7304
      %v7347 = vadd.f32 %v7081, %v7307
      %v7348 = vadd.f32 %v7082, %v7312
      %v7349 = vadd.f32 %v7083, %v7315
      %v7350 = vrot.slane %v4868, 5
      %v7351 = vrot.slane %v4869, 5
      %v7352 = vsel %vm5627, %v7350, %v7351
      %v7353 = vrot.slane %v4870, 5
      %v7354 = vsel %vm5627, %v7351, %v7353
      %v7357 = vpack.c.bf16 %v7354, %v7352
      %s7358 = scalar_lea.vmem %s4, 512
      %v7359 = vld [vmem:[%s7358] sm:$0xf]
      %v7360 = vld [vmem:[%s7358 + $0x4] sm:$0xf]
      %v7361 = vld [vmem:[%s7358 + $0x8] sm:$0xf]
      %v7362 = vld [vmem:[%s7358 + $0xc] sm:$0xf]
      %v7363 = vld [vmem:[%s7358 + $0x10] sm:$0xf]
      %v7364 = vld [vmem:[%s7358 + $0x14] sm:$0xf]
      %v7365 = vld [vmem:[%s7358 + $0x18] sm:$0xf]
      %v7366 = vld [vmem:[%s7358 + $0x1c] sm:$0xf]
      %v7367 = vld [vmem:[%s7358 + $0x20] sm:$0xf]
      %v7368 = vld [vmem:[%s7358 + $0x24] sm:$0xf]
      %v7369 = vld [vmem:[%s7358 + $0x28] sm:$0xf]
      %v7370 = vld [vmem:[%s7358 + $0x2c] sm:$0xf]
      %v7371 = vld [vmem:[%s7358 + $0x30] sm:$0xf]
      %v7372 = vld [vmem:[%s7358 + $0x34] sm:$0xf]
      %v7373 = vld [vmem:[%s7358 + $0x38] sm:$0xf]
      %v7374 = vld [vmem:[%s7358 + $0x3c] sm:$0xf]
      %v7391 = vunpack.c.l.b16 %v7359
      %v7392 = vunpack.c.l.b16 %v7360
      %v7393 = vunpack.c.l.b16 %v7361
      %v7394 = vunpack.c.l.b16 %v7362
      %v7395 = vunpack.c.l.b16 %v7363
      %v7396 = vunpack.c.l.b16 %v7364
      %v7397 = vunpack.c.l.b16 %v7365
      %v7398 = vunpack.c.l.b16 %v7366
      %v7399 = vunpack.c.l.b16 %v7367
      %v7400 = vunpack.c.l.b16 %v7368
      %v7401 = vunpack.c.l.b16 %v7369
      %v7402 = vunpack.c.l.b16 %v7370
      %v7403 = vunpack.c.l.b16 %v7371
      %v7404 = vunpack.c.l.b16 %v7372
      %v7405 = vunpack.c.l.b16 %v7373
      %v7406 = vunpack.c.l.b16 %v7374
      %v7407 = vpack.c.b16 %v7392, %v7391
      %v7408 = vpack.c.b16 %v7394, %v7393
      %v7409 = vpack.c.b16 %v7396, %v7395
      %v7410 = vpack.c.b16 %v7398, %v7397
      %v7411 = vpack.c.b16 %v7400, %v7399
      %v7412 = vpack.c.b16 %v7402, %v7401
      %v7413 = vpack.c.b16 %v7404, %v7403
      %v7414 = vpack.c.b16 %v7406, %v7405
      %7423 = vmatprep.subr.bf16.mxu0 0
      %7424 = vmatpush1.bf16.msra.mxu0 %v7407
      %7425 = vmatprep.subr.bf16.mxu0 0
      %7426 = vmatpush1.bf16.msra.mxu0 %v7408
      %7427 = vmatprep.subr.bf16.mxu0 0
      %7428 = vmatpush1.bf16.msra.mxu0 %v7409
      %7429 = vmatprep.subr.bf16.mxu0 0
      %7430 = vmatpush1.bf16.msra.mxu0 %v7410
      %7431 = vmatprep.subr.bf16.mxu0 0
      %7432 = vmatpush1.bf16.msra.mxu0 %v7411
      %7433 = vmatprep.subr.bf16.mxu0 0
      %7434 = vmatpush1.bf16.msra.mxu0 %v7412
      %7435 = vmatprep.subr.bf16.mxu0 0
      %7436 = vmatpush1.bf16.msra.mxu0 %v7413
      %7437 = vmatprep.subr.bf16.mxu0 0
      %7438 = vmatpush1.bf16.msra.mxu0 %v7414
      %7439 = vmatprep.subr.bf16.mxu0 0
      %7440 = vmatpush1.bf16.msra.mxu0 0
      %7441 = vmatprep.subr.bf16.mxu0 0
      %7442 = vmatpush1.bf16.msra.mxu0 0
      %7443 = vmatprep.subr.bf16.mxu0 0
      %7444 = vmatpush1.bf16.msra.mxu0 0
      %7445 = vmatprep.subr.bf16.mxu0 0
      %7446 = vmatpush1.bf16.msra.mxu0 0
      %7447 = vmatprep.subr.bf16.mxu0 0
      %7448 = vmatpush1.bf16.msra.mxu0 0
      %7449 = vmatprep.subr.bf16.mxu0 0
      %7450 = vmatpush1.bf16.msra.mxu0 0
      %7451 = vmatprep.subr.bf16.mxu0 0
      %7452 = vmatpush1.bf16.msra.mxu0 0
      %7453 = vmatprep.subr.bf16.mxu0 0
      %7454 = vmatpush1.bf16.msra.mxu0 0
      %7455 = vmatprep.mubr.bf16.mxu0 0
      %7456 = vmatmul.mubr.bf16.gmra.mrb[0].mxu0 %v5742
      %v7457 = vpop.f32.mrb[0].mxu0
      %v7458 = vadd.f32 0.0, %v7457
      %v7459 = vpop.f32.mrb[0].mxu0
      %v7460 = vpop.f32.mrb[0].mxu0
      %v7461 = vadd.f32 0.0, %v7460
      %v7462 = vpop.f32.mrb[0].mxu0
      %7463 = vmatprep.mubr.bf16.mxu0 0
      %7464 = vmatmul.mubr.bf16.gmra.mrb[0].mxu0 %v5743
      %v7465 = vpop.f32.mrb[0].mxu0
      %v7466 = vadd.f32 0.0, %v7465
      %v7467 = vpop.f32.mrb[0].mxu0
      %v7468 = vpop.f32.mrb[0].mxu0
      %v7469 = vadd.f32 0.0, %v7468
      %v7470 = vpop.f32.mrb[0].mxu0
      %7471 = vmatprep.mubr.bf16.mxu0 0
      %7472 = vmatmul.mubr.bf16.gmra.mrb[0].mxu0 %v5744
      %v7473 = vpop.f32.mrb[0].mxu0
      %v7474 = vadd.f32 0.0, %v7473
      %v7475 = vpop.f32.mrb[0].mxu0
      %v7476 = vpop.f32.mrb[0].mxu0
      %v7477 = vadd.f32 0.0, %v7476
      %v7478 = vpop.f32.mrb[0].mxu0
      %7479 = vmatprep.mubr.bf16.mxu0 0
      %7480 = vmatmul.mubr.bf16.gmra.mrb[0].mxu0 %v5745
      %v7481 = vpop.f32.mrb[0].mxu0
      %v7482 = vadd.f32 0.0, %v7481
      %v7483 = vpop.f32.mrb[0].mxu0
      %v7484 = vpop.f32.mrb[0].mxu0
      %v7485 = vadd.f32 0.0, %v7484
      %v7486 = vpop.f32.mrb[0].mxu0
      %7487 = vmatprep.mubr.bf16.mxu0 0
      %7488 = vmatmul.mubr.bf16.gmra.mrb[0].mxu0 %v5746
      %v7489 = vpop.f32.mrb[0].mxu0
      %v7490 = vadd.f32 0.0, %v7489
      %v7491 = vpop.f32.mrb[0].mxu0
      %v7492 = vpop.f32.mrb[0].mxu0
      %v7493 = vadd.f32 0.0, %v7492
      %v7494 = vpop.f32.mrb[0].mxu0
      %7495 = vmatprep.mubr.bf16.mxu0 0
      %7496 = vmatmul.mubr.bf16.gmra.mrb[0].mxu0 %v5747
      %v7497 = vpop.f32.mrb[0].mxu0
      %v7498 = vadd.f32 0.0, %v7497
      %v7499 = vpop.f32.mrb[0].mxu0
      %v7500 = vpop.f32.mrb[0].mxu0
      %v7501 = vadd.f32 0.0, %v7500
      %v7502 = vpop.f32.mrb[0].mxu0
      %7503 = vmatprep.mubr.bf16.mxu0 0
      %7504 = vmatmul.mubr.bf16.gmra.mrb[0].mxu0 %v5748
      %v7505 = vpop.f32.mrb[0].mxu0
      %v7506 = vadd.f32 0.0, %v7505
      %v7507 = vpop.f32.mrb[0].mxu0
      %v7508 = vpop.f32.mrb[0].mxu0
      %v7509 = vadd.f32 0.0, %v7508
      %v7510 = vpop.f32.mrb[0].mxu0
      %7511 = vmatprep.mubr.bf16.mxu0 0
      %7512 = vmatmul.mubr.bf16.gmra.mrb[0].mxu0 %v5749
      %v7513 = vpop.f32.mrb[0].mxu0
      %v7514 = vadd.f32 0.0, %v7513
      %v7515 = vpop.f32.mrb[0].mxu0
      %v7516 = vpop.f32.mrb[0].mxu0
      %v7517 = vadd.f32 0.0, %v7516
      %v7518 = vpop.f32.mrb[0].mxu0
      %7519 = vmatprep.mubr.bf16.mxu0 0
      %7520 = vmatmul.mubr.bf16.gmra.mrb[0].mxu0 %v5750
      %v7521 = vpop.f32.mrb[0].mxu0
      %v7522 = vadd.f32 0.0, %v7521
      %v7523 = vpop.f32.mrb[0].mxu0
      %v7524 = vpop.f32.mrb[0].mxu0
      %v7525 = vadd.f32 0.0, %v7524
      %v7526 = vpop.f32.mrb[0].mxu0
      %7527 = vmatprep.mubr.bf16.mxu0 0
      %7528 = vmatmul.mubr.bf16.gmra.mrb[0].mxu0 %v5751
      %v7529 = vpop.f32.mrb[0].mxu0
      %v7530 = vadd.f32 0.0, %v7529
      %v7531 = vpop.f32.mrb[0].mxu0
      %v7532 = vpop.f32.mrb[0].mxu0
      %v7533 = vadd.f32 0.0, %v7532
      %v7534 = vpop.f32.mrb[0].mxu0
      %7535 = vmatprep.mubr.bf16.mxu0 0
      %7536 = vmatmul.mubr.bf16.gmra.mrb[0].mxu0 %v5752
      %v7537 = vpop.f32.mrb[0].mxu0
      %v7538 = vadd.f32 0.0, %v7537
      %v7539 = vpop.f32.mrb[0].mxu0
      %v7540 = vpop.f32.mrb[0].mxu0
      %v7541 = vadd.f32 0.0, %v7540
      %v7542 = vpop.f32.mrb[0].mxu0
      %7543 = vmatprep.mubr.bf16.mxu0 0
      %7544 = vmatmul.mubr.bf16.gmra.mrb[0].mxu0 %v5753
      %v7545 = vpop.f32.mrb[0].mxu0
      %v7546 = vadd.f32 0.0, %v7545
      %v7547 = vpop.f32.mrb[0].mxu0
      %v7548 = vpop.f32.mrb[0].mxu0
      %v7549 = vadd.f32 0.0, %v7548
      %v7550 = vpop.f32.mrb[0].mxu0
      %7551 = vmatprep.mubr.bf16.mxu0 0
      %7552 = vmatmul.mubr.bf16.gmra.mrb[0].mxu0 %v5754
      %v7553 = vpop.f32.mrb[0].mxu0
      %v7554 = vadd.f32 0.0, %v7553
      %v7555 = vpop.f32.mrb[0].mxu0
      %v7556 = vpop.f32.mrb[0].mxu0
      %v7557 = vadd.f32 0.0, %v7556
      %v7558 = vpop.f32.mrb[0].mxu0
      %7559 = vmatprep.mubr.bf16.mxu0 0
      %7560 = vmatmul.mubr.bf16.gmra.mrb[0].mxu0 %v5755
      %v7561 = vpop.f32.mrb[0].mxu0
      %v7562 = vadd.f32 0.0, %v7561
      %v7563 = vpop.f32.mrb[0].mxu0
      %v7564 = vpop.f32.mrb[0].mxu0
      %v7565 = vadd.f32 0.0, %v7564
      %v7566 = vpop.f32.mrb[0].mxu0
      %7567 = vmatprep.mubr.bf16.mxu0 0
      %7568 = vmatmul.mubr.bf16.gmra.mrb[0].mxu0 %v6556
      %v7569 = vpop.f32.mrb[0].mxu0
      %v7570 = vadd.f32 0.0, %v7569
      %v7571 = vpop.f32.mrb[0].mxu0
      %v7572 = vpop.f32.mrb[0].mxu0
      %v7573 = vadd.f32 0.0, %v7572
      %v7574 = vpop.f32.mrb[0].mxu0
      %7575 = vmatprep.mubr.bf16.mxu0 0
      %7576 = vmatmul.mubr.bf16.gmra.mrb[0].mxu0 %v7357
      %v7577 = vpop.f32.mrb[0].mxu0
      %v7578 = vadd.f32 0.0, %v7577
      %v7579 = vpop.f32.mrb[0].mxu0
      %v7580 = vpop.f32.mrb[0].mxu0
      %v7581 = vadd.f32 0.0, %v7580
      %v7582 = vpop.f32.mrb[0].mxu0
      %7583 = vdwg.mxu0
      %v7584 = vadd.f32 %v7318, %v7458
      %v7585 = vadd.f32 %v7319, %v7461
      %v7586 = vadd.f32 %v7320, %v7466
      %v7587 = vadd.f32 %v7321, %v7469
      %v7588 = vadd.f32 %v7322, %v7474
      %v7589 = vadd.f32 %v7323, %v7477
      %v7590 = vadd.f32 %v7324, %v7482
      %v7591 = vadd.f32 %v7325, %v7485
      %v7592 = vadd.f32 %v7326, %v7490
      %v7593 = vadd.f32 %v7327, %v7493
      %v7594 = vadd.f32 %v7328, %v7498
      %v7595 = vadd.f32 %v7329, %v7501
      %v7596 = vadd.f32 %v7330, %v7506
      %v7597 = vadd.f32 %v7331, %v7509
      %v7598 = vadd.f32 %v7332, %v7514
      %v7599 = vadd.f32 %v7333, %v7517
      %v7600 = vadd.f32 %v7334, %v7522
      %v7601 = vadd.f32 %v7335, %v7525
      %v7602 = vadd.f32 %v7336, %v7530
      %v7603 = vadd.f32 %v7337, %v7533
      %v7604 = vadd.f32 %v7338, %v7538
      %v7605 = vadd.f32 %v7339, %v7541
      %v7606 = vadd.f32 %v7340, %v7546
      %v7607 = vadd.f32 %v7341, %v7549
      %v7608 = vadd.f32 %v7342, %v7554
      %v7609 = vadd.f32 %v7343, %v7557
      %v7610 = vadd.f32 %v7344, %v7562
      %v7611 = vadd.f32 %v7345, %v7565
      %v7612 = vadd.f32 %v7346, %v7570
      %v7613 = vadd.f32 %v7347, %v7573
      %v7614 = vadd.f32 %v7348, %v7578
      %v7615 = vadd.f32 %v7349, %v7581
      %v7616 = vld [vmem:[%s5] sm:$0x1]
      %v7618 = vlaneseq
      %v7619 = vshrl.u32 %v7618, 7
      %v7620 = vsub.s32 0, %v7619
      %v7621 = vrot.slane %v7616, %v7620
      %v7623 = vadd.f32 %v7584, %v7621
      %v7624 = vadd.f32 %v7585, %v7621
      %v7625 = vadd.f32 %v7586, %v7621
      %v7626 = vadd.f32 %v7587, %v7621
      %v7627 = vadd.f32 %v7588, %v7621
      %v7628 = vadd.f32 %v7589, %v7621
      %v7629 = vadd.f32 %v7590, %v7621
      %v7630 = vadd.f32 %v7591, %v7621
      %v7631 = vadd.f32 %v7592, %v7621
      %v7632 = vadd.f32 %v7593, %v7621
      %v7633 = vadd.f32 %v7594, %v7621
      %v7634 = vadd.f32 %v7595, %v7621
      %v7635 = vadd.f32 %v7596, %v7621
      %v7636 = vadd.f32 %v7597, %v7621
      %v7637 = vadd.f32 %v7598, %v7621
      %v7638 = vadd.f32 %v7599, %v7621
      %v7639 = vadd.f32 %v7600, %v7621
      %v7640 = vadd.f32 %v7601, %v7621
      %v7641 = vadd.f32 %v7602, %v7621
      %v7642 = vadd.f32 %v7603, %v7621
      %v7643 = vadd.f32 %v7604, %v7621
      %v7644 = vadd.f32 %v7605, %v7621
      %v7645 = vadd.f32 %v7606, %v7621
      %v7646 = vadd.f32 %v7607, %v7621
      %v7647 = vadd.f32 %v7608, %v7621
      %v7648 = vadd.f32 %v7609, %v7621
      %v7649 = vadd.f32 %v7610, %v7621
      %v7650 = vadd.f32 %v7611, %v7621
      %v7651 = vadd.f32 %v7612, %v7621
      %v7652 = vadd.f32 %v7613, %v7621
      %v7653 = vadd.f32 %v7614, %v7621
      %v7654 = vadd.f32 %v7615, %v7621
      %v7655 = vmax.f32 %v7623, 0.0
      %v7656 = vmax.f32 %v7624, 0.0
      %v7657 = vmax.f32 %v7625, 0.0
      %v7658 = vmax.f32 %v7626, 0.0
      %v7659 = vmax.f32 %v7627, 0.0
      %v7660 = vmax.f32 %v7628, 0.0
      %v7661 = vmax.f32 %v7629, 0.0
      %v7662 = vmax.f32 %v7630, 0.0
      %v7663 = vmax.f32 %v7631, 0.0
      %v7664 = vmax.f32 %v7632, 0.0
      %v7665 = vmax.f32 %v7633, 0.0
      %v7666 = vmax.f32 %v7634, 0.0
      %v7667 = vmax.f32 %v7635, 0.0
      %v7668 = vmax.f32 %v7636, 0.0
      %v7669 = vmax.f32 %v7637, 0.0
      %v7670 = vmax.f32 %v7638, 0.0
      %v7671 = vmax.f32 %v7639, 0.0
      %v7672 = vmax.f32 %v7640, 0.0
      %v7673 = vmax.f32 %v7641, 0.0
      %v7674 = vmax.f32 %v7642, 0.0
      %v7675 = vmax.f32 %v7643, 0.0
      %v7676 = vmax.f32 %v7644, 0.0
      %v7677 = vmax.f32 %v7645, 0.0
      %v7678 = vmax.f32 %v7646, 0.0
      %v7679 = vmax.f32 %v7647, 0.0
      %v7680 = vmax.f32 %v7648, 0.0
      %v7681 = vmax.f32 %v7649, 0.0
      %v7682 = vmax.f32 %v7650, 0.0
      %v7683 = vmax.f32 %v7651, 0.0
      %v7684 = vmax.f32 %v7652, 0.0
      %v7685 = vmax.f32 %v7653, 0.0
      %v7686 = vmax.f32 %v7654, 0.0
      %7687 = vst [vmem:[%s251] sm:$0xff] %v7655
      %7688 = vst [vmem:[%s251 + $0x8] sm:$0xff] %v7656
      %7689 = vst [vmem:[%s251 + $0x10] sm:$0xff] %v7657
      %7690 = vst [vmem:[%s251 + $0x18] sm:$0xff] %v7658
      %7691 = vst [vmem:[%s251 + $0x20] sm:$0xff] %v7659
      %7692 = vst [vmem:[%s251 + $0x28] sm:$0xff] %v7660
      %7693 = vst [vmem:[%s251 + $0x30] sm:$0xff] %v7661
      %7694 = vst [vmem:[%s251 + $0x38] sm:$0xff] %v7662
      %7695 = vst [vmem:[%s251 + $0x40] sm:$0xff] %v7663
      %7696 = vst [vmem:[%s251 + $0x48] sm:$0xff] %v7664
      %7697 = vst [vmem:[%s251 + $0x50] sm:$0xff] %v7665
      %7698 = vst [vmem:[%s251 + $0x58] sm:$0xff] %v7666
      %7699 = vst [vmem:[%s251 + $0x60] sm:$0xff] %v7667
      %7700 = vst [vmem:[%s251 + $0x68] sm:$0xff] %v7668
      %7701 = vst [vmem:[%s251 + $0x70] sm:$0xff] %v7669
      %7702 = vst [vmem:[%s251 + $0x78] sm:$0xff] %v7670
      %7703 = vst [vmem:[%s251 + $0x80] sm:$0xff] %v7671
      %7704 = vst [vmem:[%s251 + $0x88] sm:$0xff] %v7672
      %7705 = vst [vmem:[%s251 + $0x90] sm:$0xff] %v7673
      %7706 = vst [vmem:[%s251 + $0x98] sm:$0xff] %v7674
      %7707 = vst [vmem:[%s251 + $0xa0] sm:$0xff] %v7675
      %7708 = vst [vmem:[%s251 + $0xa8] sm:$0xff] %v7676
      %7709 = vst [vmem:[%s251 + $0xb0] sm:$0xff] %v7677
      %7710 = vst [vmem:[%s251 + $0xb8] sm:$0xff] %v7678
      %7711 = vst [vmem:[%s251 + $0xc0] sm:$0xff] %v7679
      %7712 = vst [vmem:[%s251 + $0xc8] sm:$0xff] %v7680
      %7713 = vst [vmem:[%s251 + $0xd0] sm:$0xff] %v7681
      %7714 = vst [vmem:[%s251 + $0xd8] sm:$0xff] %v7682
      %7715 = vst [vmem:[%s251 + $0xe0] sm:$0xff] %v7683
      %7716 = vst [vmem:[%s251 + $0xe8] sm:$0xff] %v7684
      %7717 = vst [vmem:[%s251 + $0xf0] sm:$0xff] %v7685
      %7718 = vst [vmem:[%s251 + $0xf8] sm:$0xff] %v7686
      %p7719 = scmp.lt.s32.totalorder %s17, 1
      %s7720 = scalar_select %p7719, %s17, 1
      %s7721 = smul.addr %s7720, 32
      %s7722 = smul.addr %s7721, 8
      %s7723 = scalar_lea.vmem %s6, %s7722
      // Predicated region
      $region45: #{double_conv_forward.1} parent=43 // pred_check
        %p7724 = pneg %p166
      $region46: #{double_conv_forward.1} parent=43 // pred_check_branch
        %7726 = sbr.rel (%p7724) target = $region48
      $region47: #{double_conv_forward.1} parent=43 // pred_region
        _
      $region48: #{double_conv_forward.1} parent=43 // pred_fallthru
        _
    $region44: #{double_conv_forward.1} parent=5 // pred_fallthru
      _
    %p7727 = scmp.le.s32.totalorder 2, %s12
    // Predicated region
    $region49: #{double_conv_forward.1} parent=5 // pred_check
      %p7728 = pneg %p7727
    $region50: #{double_conv_forward.1} parent=5 // pred_check_branch
      %7730 = sbr.rel (%p7728) target = $region52
    $region51: #{double_conv_forward.1} parent=5 // pred_region
      %s7731 = ssub.s32 %s12, 2
      // Predicated region
      $region53: #{double_conv_forward.1} parent=51 // pred_check
        %p7732 = pneg %p172
      $region54: #{double_conv_forward.1} parent=51 // pred_check_branch
        %7734 = sbr.rel (%p7732) target = $region56
      $region55: #{double_conv_forward.1} parent=51 // pred_region
        %p7735 = scmp.lt.s32.totalorder %s18, 1
        %s7736 = scalar_select %p7735, %s18, 1
        %s7737 = smul.addr %s7736, 32
        %s7738 = smul.addr %s7737, 8
        %s7739 = scalar_lea.vmem %s6, %s7738
      $region56: #{double_conv_forward.1} parent=51 // pred_fallthru
        _
    $region52: #{double_conv_forward.1} parent=5 // pred_fallthru
      _
  $region6: #{double_conv_forward.1} parent=0 // loop_footer
    %s16 = sadd.s32 1, %s12
  $region7: #{double_conv_forward.1} parent=0 // loop_footer_branch
    %11 = sbr.rel target = $region3
  $region8: #{double_conv_forward.1} parent=0 // loop_exit
    _

</llo_original>
